<compile_context>
chip_gen: v6e
topology: v6e:2x2x1
jax: 0.10.0
libtpu: 0.0.40
codegen_flags: <defaults>
</compile_context>

<pallas_src>
import functools

import jax
import jax.numpy as jnp
from jax.experimental import pallas as pl
from jax.experimental.pallas import tpu as pltpu


# ----------------------------------------------------------------------------
# Helpers
# ----------------------------------------------------------------------------
def _round_up(x, m):
    return ((x + m - 1) // m) * m


def _pad2(a, rows, cols, dtype=None):
    r, c = a.shape
    out = jnp.pad(a, ((0, rows - r), (0, cols - c)))
    if dtype is not None:
        out = out.astype(dtype)
    return out


def _full_spec(shape):
    return pl.BlockSpec(shape, lambda: (0,) * len(shape))


def _vmem_budget(required_bytes):
    """VMEM limit derived from operand sizes and the device's capacity."""
    cap = 96 * 1024 * 1024                       # safe default for v5e/v6e (128 MiB phys)
    try:
        info = pltpu.get_tpu_info()
        cap = int(getattr(info, "vmem_capacity_bytes", 128 * 1024 * 1024)) * 3 // 4
    except Exception:
        pass                                     # keep the conservative default
    need = int(required_bytes) + (8 << 20)       # pipeline buffers + compiler scratch margin
    return int(min(max(need, 16 << 20), cap))


# ----------------------------------------------------------------------------
# Fused Pallas kernel: GIN layers (A streamed from HBM) + pooled P@H_all +
# FeedForward + log_softmax
# ----------------------------------------------------------------------------
def _make_fused_kernel(num_gc_layers, num_fc_layers, out_features,
                       n_pad, f_pad, d_pad, row_tile):
    num_blocks = n_pad // row_tile

    def kernel(*refs):
        a_hbm = refs[0]                                    # (n_pad, n_pad) bf16, HBM
        h0_ref, p_ref, w1s_ref, w2s_ref, vecs_ref = refs[1:6]
        ff_refs = refs[6:6 + 2 * num_fc_layers]
        o_ref = refs[6 + 2 * num_fc_layers]
        a_buf, dma_sem, h_all = refs[6 + 2 * num_fc_layers + 1:]

        def a_copy(blk, slot):
            return pltpu.make_async_copy(
                a_hbm.at[pl.ds(blk * row_tile, row_tile), :],
                a_buf.at[slot],
                dma_sem.at[slot])

        # If A has a single row tile, fetch it once and reuse it for every GIN
        # layer; otherwise re-stream it per layer with double buffering.
        if num_blocks == 1:
            cp = a_copy(0, 0)
            cp.start()
            cp.wait()

        for l in range(num_gc_layers):
            din_pad = f_pad if l == 0 else d_pad
            if l == 0:
                hsrc = h0_ref[...]                                        # bf16
            else:
                hsrc = h_all[:, (l - 1) * d_pad:l * d_pad].astype(jnp.bfloat16)

            w1 = w1s_ref[l][:din_pad, :]                                  # bf16
            w2 = w2s_ref[l]                                               # bf16
            v = vecs_ref[l]                                               # f32 (8, d_pad)
            b1, b2 = v[0:1, :], v[1:2, :]
            bn_scale, bn_shift = v[2:3, :], v[3:4, :]

            if num_blocks > 1:
                a_copy(0, 0).start()

            for blk in range(num_blocks):
                slot = blk & 1
                if num_blocks > 1:
                    a_copy(blk, slot).wait()
                    if blk + 1 < num_blocks:
                        a_copy(blk + 1, 1 - slot).start()     # prefetch next A tile

                r0 = blk * row_tile
                if l == 0:
                    res = hsrc[r0:r0 + row_tile, :].astype(jnp.float32)
                else:
                    res = h_all[r0:r0 + row_tile, (l - 1) * d_pad:l * d_pad]

                # GIN aggregation (eps = 0): x_i + sum_j w_ij * x_j   (MXU, bf16 -> f32)
                agg = res + jnp.dot(a_buf[slot], hsrc,
                                    preferred_element_type=jnp.float32)
                # MLP: Linear -> ReLU -> Linear, then ReLU, then eval-mode BN affine.
                z = jnp.dot(agg.astype(jnp.bfloat16), w1,
                            preferred_element_type=jnp.float32) + b1
                z = jnp.maximum(z, 0.0)
                z = jnp.dot(z.astype(jnp.bfloat16), w2,
                            preferred_element_type=jnp.float32) + b2
                z = jnp.maximum(z, 0.0)
                h_all[r0:r0 + row_tile, l * d_pad:(l + 1) * d_pad] = (
                    z * bn_scale + bn_shift)

        # global_add_pool for all layers at once: single P @ H_all matmul
        # (P is exact {0,1}; padded P columns are zero so padded node rows of
        #  H_all never contribute).
        x = jnp.dot(p_ref[...], h_all[...], preferred_element_type=jnp.float32)

        # FeedForwardNetwork (Dropout == identity at inference)
        for i in range(num_fc_layers):
            w = ff_refs[2 * i][...]                                       # bf16
            b = ff_refs[2 * i + 1][...]                                   # f32
            x = jnp.dot(x.astype(jnp.bfloat16), w,
                        preferred_element_type=jnp.float32) + b
            if i != num_fc_layers - 1:
                x = jnp.maximum(x, 0.0)

        # Mask padded logit lanes (logits stay f32, so -1e30 is a safe finite min)
        col = jax.lax.broadcasted_iota(jnp.int32, x.shape, 1)
        x = jnp.where(col < out_features, x, -1e30)
        m = jnp.max(x, axis=-1, keepdims=True)
        s = x - m
        lse = jnp.log(jnp.sum(jnp.exp(s), axis=-1, keepdims=True))
        o_ref[...] = s - lse

    return kernel


# ----------------------------------------------------------------------------
# Wrapper: padding, BN folding, parameter packing, single pallas_call
# ----------------------------------------------------------------------------
def encoder_feed_forward(batch, x, edge_index, edge_weight,
                         gin_params, ff_params, num_graphs):
    """Full EncoderFeedForward forward pass (inference semantics)."""
    n, f = x.shape
    dim = gin_params[0][2].shape[1]                    # W2 output dim
    num_gc_layers = len(gin_params)
    num_fc_layers = len(ff_params)
    out_features = ff_params[-1][0].shape[1]
    ff_in = dim * num_gc_layers

    if edge_weight is None:
        edge_weight = jnp.ones((edge_index.shape[1],), jnp.float32)

    # Padded (lane-dense / MXU-friendly) sizes; node axis 256-aligned so the
    # A@H contraction fills the 2x256x256 MXU on v6e/v7x.
    ROW_TILE = 256
    n_pad = _round_up(n, ROW_TILE)
    b_pad = _round_up(num_graphs, 8)
    f_pad = _round_up(f, 128)
    d_pad = _round_up(dim, 128)
    hmax_pad = max(f_pad, d_pad)
    ffh_pad = _round_up(ff_in, 128)
    out_pad = _round_up(out_features, 128)
    num_blocks = n_pad // ROW_TILE
    n_slots = 2 if num_blocks > 1 else 1

    # Dense weighted adjacency A[i, j] = sum of w for edges j -> i; bf16 MXU
    # operand, streamed from HBM inside the kernel.
    # TODO(synk): block-diagonal / CSR edge-list aggregation for large N.
    a = jnp.zeros((n_pad, n_pad), jnp.float32).at[
        edge_index[1], edge_index[0]].add(edge_weight).astype(jnp.bfloat16)
    # Pooling one-hot matrix P[B_pad, N_pad]; padded rows/cols are zero. f32 (exact).
    p = (batch[None, :] == jnp.arange(b_pad)[:, None]).astype(jnp.float32)
    p = jnp.pad(p, ((0, 0), (0, n_pad - n)))
    # Node features, zero-padded, bf16 (MXU operand).
    h0 = _pad2(x, n_pad, f_pad, jnp.bfloat16)

    # Packed GIN parameters: stacked weights (bf16) + one (L, 8, d_pad) f32
    # vector block per layer holding [b1, b2, bn_scale, bn_shift, 0, 0, 0, 0].
    w1s = jnp.zeros((num_gc_layers, hmax_pad, d_pad), jnp.bfloat16)
    w2s = jnp.zeros((num_gc_layers, d_pad, d_pad), jnp.bfloat16)
    vecs = jnp.zeros((num_gc_layers, 8, d_pad), jnp.float32)
    for i, (w1, b1, w2, b2, gamma, beta, mean, var) in enumerate(gin_params):
        scale = gamma * jax.lax.rsqrt(var + 1e-5)      # fold eval-mode BN to affine
        shift = beta - mean * scale
        w1s = w1s.at[i, :w1.shape[0], :w1.shape[1]].set(w1.astype(jnp.bfloat16))
        w2s = w2s.at[i, :w2.shape[0], :w2.shape[1]].set(w2.astype(jnp.bfloat16))
        vecs = vecs.at[i, 0, :dim].set(b1.reshape(-1))
        vecs = vecs.at[i, 1, :dim].set(b2.reshape(-1))
        vecs = vecs.at[i, 2, :dim].set(scale.reshape(-1))
        vecs = vecs.at[i, 3, :dim].set(shift.reshape(-1))

    # FeedForward parameters (few of them -> kept as separate inputs).
    ff_flat = []
    for i, (w, b) in enumerate(ff_params):
        out_cols = out_pad if i == num_fc_layers - 1 else ffh_pad
        if i == 0:
            # graph_repr is laid out as L blocks of width d_pad; scatter the
            # original [l*dim:(l+1)*dim] rows into the padded row positions.
            w_sc = jnp.zeros((num_gc_layers * d_pad, w.shape[1]), jnp.float32)
            for l in range(num_gc_layers):
                w_sc = w_sc.at[l * d_pad:l * d_pad + dim, :].set(
                    w[l * dim:(l + 1) * dim, :])
            w_p = _pad2(w_sc, num_gc_layers * d_pad, out_cols, jnp.bfloat16)
        else:
            w_p = _pad2(w, ffh_pad, out_cols, jnp.bfloat16)
        ff_flat += [w_p, _pad2(b, 1, out_cols, jnp.float32)]

    args = (a, h0, p, w1s, w2s, vecs, *ff_flat)
    in_specs = [pl.BlockSpec(memory_space=pl.ANY)] + [
        _full_spec(t.shape) for t in args[1:]]

    scratch_shapes = [
        pltpu.VMEM((n_slots, ROW_TILE, n_pad), jnp.bfloat16),   # A row-tile double buffer
        pltpu.SemaphoreType.DMA((n_slots,)),
        pltpu.VMEM((n_pad, num_gc_layers * d_pad), jnp.float32),  # H_all (fused pooling)
    ]

    # VMEM budget from actual operand sizes (inputs are double-buffered by the
    # pallas pipeline) + scratch; capped by the device's capacity.
    vmem_arg_bytes = sum(int(t.size) * t.dtype.itemsize for t in args[1:])
    vmem_scratch_bytes = (n_slots * ROW_TILE * n_pad * 2
                          + n_pad * num_gc_layers * d_pad * 4
                          + b_pad * out_pad * 4)
    vmem_limit = _vmem_budget(2 * vmem_arg_bytes + vmem_scratch_bytes)

    # Advisory cost estimate for XLA scheduling around the custom call.
    flops = 0
    for l in range(num_gc_layers):
        din = f_pad if l == 0 else d_pad
        flops += 2 * n_pad * n_pad * din           # A @ H
        flops += 2 * n_pad * din * d_pad           # W1
        flops += 2 * n_pad * d_pad * d_pad         # W2
    flops += 2 * b_pad * n_pad * num_gc_layers * d_pad   # pooling
    prev = num_gc_layers * d_pad
    for i in range(num_fc_layers):
        cols = out_pad if i == num_fc_layers - 1 else ffh_pad
        flops += 2 * b_pad * prev * cols
        prev = cols
    bytes_accessed = (num_gc_layers * n_pad * n_pad * 2    # A streamed once per layer
                      + vmem_arg_bytes + b_pad * out_pad * 4)

    kernel = _make_fused_kernel(num_gc_layers, num_fc_layers, out_features,
                                n_pad, f_pad, d_pad, ROW_TILE)

    out_padded = pl.pallas_call(
        kernel,
        out_shape=jax.ShapeDtypeStruct((b_pad, out_pad), jnp.float32),
        in_specs=in_specs,
        out_specs=_full_spec((b_pad, out_pad)),
        scratch_shapes=scratch_shapes,
        compiler_params=pltpu.CompilerParams(vmem_limit_bytes=vmem_limit),
        cost_estimate=pl.CostEstimate(flops=int(flops),
                                      transcendentals=int(b_pad * out_pad),
                                      bytes_accessed=int(bytes_accessed)),
    )(*args)

    return out_padded[:num_graphs, :out_features]


# ----------------------------------------------------------------------------
# Pure-JAX reference (mirrors the PyTorch module, inference semantics, f32)
# ----------------------------------------------------------------------------
def reference_forward(batch, x, edge_index, edge_weight,
                      gin_params, ff_params, num_graphs):
    n = x.shape[0]
    a = jnp.zeros((n, n), jnp.float32).at[
        edge_index[1], edge_index[0]].add(edge_weight)
    p = (batch[None, :] == jnp.arange(num_graphs)[:, None]).astype(jnp.float32)
    h = x
    pooled = []
    for (w1, b1, w2, b2, gamma, beta, mean, var) in gin_params:
        agg = h + a @ h
        z = jnp.maximum(agg @ w1 + b1, 0.0)
        z = z @ w2 + b2
        z = jnp.maximum(z, 0.0)
        h = gamma * (z - mean) / jnp.sqrt(var + 1e-5) + beta
        pooled.append(p @ h)
    g = jnp.concatenate(pooled, axis=1)
    for i, (w, b) in enumerate(ff_params):
        g = g @ w + b
        if i != len(ff_params) - 1:
            g = jnp.maximum(g, 0.0)
    return jax.nn.log_softmax(g, axis=-1)


# ----------------------------------------------------------------------------
# Deterministic parameter init
# ----------------------------------------------------------------------------
def init_params(key, num_features, dim, num_gc_layers, num_fc_layers,
                out_features):
    keys = jax.random.split(key, 64)
    ki = iter(range(64))

    def lin(din, dout):
        w = jax.random.normal(keys[next(ki)], (din, dout), jnp.float32) * (
            0.5 / (din ** 0.5))
        b = jax.random.normal(keys[next(ki)], (1, dout), jnp.float32) * 0.02
        return w, b

    gin_params = []
    for i in range(num_gc_layers):
        din = num_features if i == 0 else dim
        w1, b1 = lin(din, dim)
        w2, b2 = lin(dim, dim)
        gamma = 1.0 + 0.1 * jax.random.normal(keys[next(ki)], (1, dim), jnp.float32)
        beta = 0.1 * jax.random.normal(keys[next(ki)], (1, dim), jnp.float32)
        mean = 0.05 * jax.random.normal(keys[next(ki)], (1, dim), jnp.float32)
        var = jnp.abs(1.0 + 0.1 * jax.random.normal(keys[next(ki)], (1, dim),
                                                    jnp.float32))
        gin_params.append((w1, b1, w2, b2, gamma, beta, mean, var))

    ff_in = dim * num_gc_layers
    ff_params = []
    for i in range(num_fc_layers):
        if i == num_fc_layers - 1:
            ff_params.append(lin(ff_in, out_features))
        else:
            ff_params.append(lin(ff_in, ff_in))
    return gin_params, ff_params


# ----------------------------------------------------------------------------
if __name__ == "__main__":
    NUM_FEATURES = 8
    DIM = 32
    NUM_GC_LAYERS = 3
    NUM_FC_LAYERS = 2
    OUT_FEATURES = 10
    N_PER_GRAPH = 7
    NUM_GRAPHS = 40            # 280 nodes -> n_pad = 512 -> two streamed A row tiles
    N = N_PER_GRAPH * NUM_GRAPHS

    key = jax.random.PRNGKey(0)
    k_x, k_w, k_params = jax.random.split(key, 3)

    x = jax.random.normal(k_x, (N, NUM_FEATURES), jnp.float32)
    batch = jnp.repeat(jnp.arange(NUM_GRAPHS, dtype=jnp.int32), N_PER_GRAPH)

    # Ring edges (both directions) inside each graph.
    srcs, dsts = [], []
    for g in range(NUM_GRAPHS):
        off = g * N_PER_GRAPH
        for i in range(N_PER_GRAPH):
            j = (i + 1) % N_PER_GRAPH
            srcs += [off + i, off + j]
            dsts += [off + j, off + i]
    edge_index = jnp.array([srcs, dsts], dtype=jnp.int32)  # [2, E]
    edge_weight = 0.5 + jax.random.uniform(k_w, (edge_index.shape[1],),
                                           jnp.float32)

    gin_params, ff_params = init_params(
        k_params, NUM_FEATURES, DIM, NUM_GC_LAYERS, NUM_FC_LAYERS, OUT_FEATURES)

    fwd = jax.jit(functools.partial(encoder_feed_forward,
                                    num_graphs=NUM_GRAPHS))
    out = jax.block_until_ready(fwd(batch, x, edge_index, edge_weight,
                                    gin_params, ff_params))

    assert out.shape == (NUM_GRAPHS, OUT_FEATURES)
    assert out.dtype == jnp.float32
    # log_softmax rows must sum (in prob space) to 1
    assert bool(jnp.all(jnp.abs(jnp.sum(jnp.exp(out), axis=-1) - 1.0) < 1e-3))
    # Compare against the pure-f32 reference; kernel uses bf16 MXU operands
    # with f32 accumulation, so the tolerance is necessarily looser than f32.
    ref = reference_forward(batch, x, edge_index, edge_weight,
                            gin_params, ff_params, NUM_GRAPHS)
    max_diff = float(jnp.max(jnp.abs(out - ref)))
    assert max_diff < 1e-1, f"mismatch vs reference: max abs diff {max_diff}"
    print("KERNEL_OK")
</pallas_src>

<mosaic_0001>
module attributes {stable_mosaic.version = 11 : i64} {
  func.func private @main(%arg0: i32) attributes {dimension_semantics = [#tpu.dimension_semantics<core_parallel>], iteration_bounds = array<i64: 2>, tpu.core_type = #tpu.core_type<sc_scalar_subcore>, window_params = []} {
    return
  }
}

module attributes {stable_mosaic.version = 11 : i64} {
  func.func private @main(%arg0: i32) attributes {dimension_semantics = [#tpu.dimension_semantics<core_parallel>], iteration_bounds = array<i64: 2>, tpu.core_type = #tpu.core_type<sc_scalar_subcore>, window_params = []} {
    return
  }
}

module attributes {stable_mosaic.version = 11 : i64} {
  func.func @kernel(%arg0: memref<512x512xbf16, #tpu.memory_space<any>>, %arg1: memref<512x128xbf16, #tpu.memory_space<vmem>>, %arg2: memref<40x512xf32, #tpu.memory_space<vmem>>, %arg3: memref<3x128x128xbf16, #tpu.memory_space<vmem>>, %arg4: memref<3x128x128xbf16, #tpu.memory_space<vmem>>, %arg5: memref<3x8x128xf32, #tpu.memory_space<vmem>>, %arg6: memref<384x128xbf16, #tpu.memory_space<vmem>>, %arg7: memref<1x128xf32, #tpu.memory_space<vmem>>, %arg8: memref<128x128xbf16, #tpu.memory_space<vmem>>, %arg9: memref<1x128xf32, #tpu.memory_space<vmem>>, %arg10: memref<40x128xf32, #tpu.memory_space<vmem>>, %arg11: memref<2x256x512xbf16, #tpu.memory_space<vmem>>, %arg12: memref<2x!tpu.dma_semaphore, #tpu.memory_space<semaphore_mem>>, %arg13: memref<512x384xf32, #tpu.memory_space<vmem>>) attributes {dimension_semantics = [], scalar_prefetch = 0 : i64, scratch_operands = 3 : i64, tpu.core_type = #tpu.core_type<tc>} {
    %c0 = arith.constant 0 : index
    %c0_0 = arith.constant 0 : index
    %0 = vector.load %arg1[%c0, %c0_0] : memref<512x128xbf16, #tpu.memory_space<vmem>>, vector<512x128xbf16>
    %c0_1 = arith.constant 0 : index
    %c0_2 = arith.constant 0 : index
    %c0_3 = arith.constant 0 : index
    %1 = vector.load %arg3[%c0_1, %c0_2, %c0_3] : memref<3x128x128xbf16, #tpu.memory_space<vmem>>, vector<1x128x128xbf16>
    %2 = vector.shape_cast %1 : vector<1x128x128xbf16> to vector<128x128xbf16>
    %c0_4 = arith.constant 0 : index
    %c0_5 = arith.constant 0 : index
    %c0_6 = arith.constant 0 : index
    %3 = vector.load %arg4[%c0_4, %c0_5, %c0_6] : memref<3x128x128xbf16, #tpu.memory_space<vmem>>, vector<1x128x128xbf16>
    %4 = vector.shape_cast %3 : vector<1x128x128xbf16> to vector<128x128xbf16>
    %c0_7 = arith.constant 0 : index
    %c0_8 = arith.constant 0 : index
    %c0_9 = arith.constant 0 : index
    %5 = vector.load %arg5[%c0_7, %c0_8, %c0_9] : memref<3x8x128xf32, #tpu.memory_space<vmem>>, vector<1x8x128xf32>
    %6 = vector.shape_cast %5 : vector<1x8x128xf32> to vector<8x128xf32>
    %7 = vector.extract_strided_slice %6 {offsets = [0, 0], sizes = [1, 128], strides = [1, 1]} : vector<8x128xf32> to vector<1x128xf32>
    %8 = vector.extract_strided_slice %6 {offsets = [1, 0], sizes = [1, 128], strides = [1, 1]} : vector<8x128xf32> to vector<1x128xf32>
    %9 = vector.extract_strided_slice %6 {offsets = [2, 0], sizes = [1, 128], strides = [1, 1]} : vector<8x128xf32> to vector<1x128xf32>
    %10 = vector.extract_strided_slice %6 {offsets = [3, 0], sizes = [1, 128], strides = [1, 1]} : vector<8x128xf32> to vector<1x128xf32>
    %c0_i32 = arith.constant 0 : i32
    %c0_i32_10 = arith.constant 0 : i32
    %c0_i32_11 = arith.constant 0 : i32
    %c0_i32_12 = arith.constant 0 : i32
    %11 = tpu.memref_slice %arg0[%c0_i32_11, %c0_i32_12] : memref<512x512xbf16, #tpu.memory_space<any>> -> memref<256x512xbf16, #tpu.memory_space<any>>
    %c0_i32_13 = arith.constant 0 : i32
    %c0_i32_14 = arith.constant 0 : i32
    %12 = tpu.memref_slice %arg11[%c0_i32, %c0_i32_13, %c0_i32_14] : memref<2x256x512xbf16, #tpu.memory_space<vmem>> -> memref<1x256x512xbf16, #tpu.memory_space<vmem>>
    %13 = tpu.memref_squeeze %12 : memref<1x256x512xbf16, #tpu.memory_space<vmem>> -> memref<256x512xbf16, #tpu.memory_space<vmem>>
    %14 = tpu.memref_slice %arg12[%c0_i32_10] : memref<2x!tpu.dma_semaphore, #tpu.memory_space<semaphore_mem>> -> memref<1x!tpu.dma_semaphore, #tpu.memory_space<semaphore_mem>>
    %15 = tpu.memref_squeeze %14 : memref<1x!tpu.dma_semaphore, #tpu.memory_space<semaphore_mem>> -> memref<!tpu.dma_semaphore, #tpu.memory_space<semaphore_mem>>
    tpu.enqueue_dma source(%11 : memref<256x512xbf16, #tpu.memory_space<any>>) target(%13 : memref<256x512xbf16, #tpu.memory_space<vmem>>) target_semaphore(%15 : memref<!tpu.dma_semaphore, #tpu.memory_space<semaphore_mem>>)
    %c0_i32_15 = arith.constant 0 : i32
    %c0_i32_16 = arith.constant 0 : i32
    %c0_i32_17 = arith.constant 0 : i32
    %c0_i32_18 = arith.constant 0 : i32
    %16 = tpu.memref_slice %arg0[%c0_i32_17, %c0_i32_18] : memref<512x512xbf16, #tpu.memory_space<any>> -> memref<256x512xbf16, #tpu.memory_space<any>>
    %c0_i32_19 = arith.constant 0 : i32
    %c0_i32_20 = arith.constant 0 : i32
    %17 = tpu.memref_slice %arg11[%c0_i32_15, %c0_i32_19, %c0_i32_20] : memref<2x256x512xbf16, #tpu.memory_space<vmem>> -> memref<1x256x512xbf16, #tpu.memory_space<vmem>>
    %18 = tpu.memref_squeeze %17 : memref<1x256x512xbf16, #tpu.memory_space<vmem>> -> memref<256x512xbf16, #tpu.memory_space<vmem>>
    %19 = tpu.memref_slice %arg12[%c0_i32_16] : memref<2x!tpu.dma_semaphore, #tpu.memory_space<semaphore_mem>> -> memref<1x!tpu.dma_semaphore, #tpu.memory_space<semaphore_mem>>
    %20 = tpu.memref_squeeze %19 : memref<1x!tpu.dma_semaphore, #tpu.memory_space<semaphore_mem>> -> memref<!tpu.dma_semaphore, #tpu.memory_space<semaphore_mem>>
    tpu.wait_dma2 semaphore(%20 : memref<!tpu.dma_semaphore, #tpu.memory_space<semaphore_mem>>) src(%16 : memref<256x512xbf16, #tpu.memory_space<any>>) dst(%18 : memref<256x512xbf16, #tpu.memory_space<vmem>>)
    %c1_i32 = arith.constant 1 : i32
    %c1_i32_21 = arith.constant 1 : i32
    %c256_i32 = arith.constant 256 : i32
    %c0_i32_22 = arith.constant 0 : i32
    %21 = tpu.memref_slice %arg0[%c256_i32, %c0_i32_22] : memref<512x512xbf16, #tpu.memory_space<any>> -> memref<256x512xbf16, #tpu.memory_space<any>>
    %c0_i32_23 = arith.constant 0 : i32
    %c0_i32_24 = arith.constant 0 : i32
    %22 = tpu.memref_slice %arg11[%c1_i32, %c0_i32_23, %c0_i32_24] : memref<2x256x512xbf16, #tpu.memory_space<vmem>> -> memref<1x256x512xbf16, #tpu.memory_space<vmem>>
    %23 = tpu.memref_squeeze %22 : memref<1x256x512xbf16, #tpu.memory_space<vmem>> -> memref<256x512xbf16, #tpu.memory_space<vmem>>
    %24 = tpu.memref_slice %arg12[%c1_i32_21] : memref<2x!tpu.dma_semaphore, #tpu.memory_space<semaphore_mem>> -> memref<1x!tpu.dma_semaphore, #tpu.memory_space<semaphore_mem>>
    %25 = tpu.memref_squeeze %24 : memref<1x!tpu.dma_semaphore, #tpu.memory_space<semaphore_mem>> -> memref<!tpu.dma_semaphore, #tpu.memory_space<semaphore_mem>>
    tpu.enqueue_dma source(%21 : memref<256x512xbf16, #tpu.memory_space<any>>) target(%23 : memref<256x512xbf16, #tpu.memory_space<vmem>>) target_semaphore(%25 : memref<!tpu.dma_semaphore, #tpu.memory_space<semaphore_mem>>)
    %26 = vector.extract_strided_slice %0 {offsets = [0, 0], sizes = [256, 128], strides = [1, 1]} : vector<512x128xbf16> to vector<256x128xbf16>
    %27 = arith.extf %26 : vector<256x128xbf16> to vector<256x128xf32>
    %c0_25 = arith.constant 0 : index
    %c0_26 = arith.constant 0 : index
    %c0_27 = arith.constant 0 : index
    %28 = vector.load %arg11[%c0_25, %c0_26, %c0_27] : memref<2x256x512xbf16, #tpu.memory_space<vmem>>, vector<1x256x512xbf16>
    %29 = vector.shape_cast %28 : vector<1x256x512xbf16> to vector<256x512xbf16>
    %cst = arith.constant dense<0.000000e+00> : vector<256x128xf32>
    %30 = tpu.matmul %29, %0, %cst {dimension_numbers = #tpu.dot_dimension_numbers<[1], [0], [0], [1], [0, 0, 1, 1], [], []>} : vector<256x512xbf16>, vector<512x128xbf16>, vector<256x128xf32> -> vector<256x128xf32>
    %31 = arith.addf %27, %30 : vector<256x128xf32>
    %32 = arith.truncf %31 : vector<256x128xf32> to vector<256x128xbf16>
    %cst_28 = arith.constant dense<0.000000e+00> : vector<256x128xf32>
    %33 = tpu.matmul %32, %2, %cst_28 {dimension_numbers = #tpu.dot_dimension_numbers<[1], [0], [0], [1], [0, 0, 1, 1], [], []>} : vector<256x128xbf16>, vector<128x128xbf16>, vector<256x128xf32> -> vector<256x128xf32>
    %34 = vector.broadcast %7 : vector<1x128xf32> to vector<256x128xf32>
    %35 = arith.addf %33, %34 : vector<256x128xf32>
    %cst_29 = arith.constant 0.000000e+00 : f32
    %36 = vector.broadcast %cst_29 : f32 to vector<256x128xf32>
    %37 = arith.maximumf %35, %36 : vector<256x128xf32>
    %38 = arith.truncf %37 : vector<256x128xf32> to vector<256x128xbf16>
    %cst_30 = arith.constant dense<0.000000e+00> : vector<256x128xf32>
    %39 = tpu.matmul %38, %4, %cst_30 {dimension_numbers = #tpu.dot_dimension_numbers<[1], [0], [0], [1], [0, 0, 1, 1], [], []>} : vector<256x128xbf16>, vector<128x128xbf16>, vector<256x128xf32> -> vector<256x128xf32>
    %40 = vector.broadcast %8 : vector<1x128xf32> to vector<256x128xf32>
    %41 = arith.addf %39, %40 : vector<256x128xf32>
    %cst_31 = arith.constant 0.000000e+00 : f32
    %42 = vector.broadcast %cst_31 : f32 to vector<256x128xf32>
    %43 = arith.maximumf %41, %42 : vector<256x128xf32>
    %44 = vector.broadcast %9 : vector<1x128xf32> to vector<256x128xf32>
    %45 = arith.mulf %43, %44 : vector<256x128xf32>
    %46 = vector.broadcast %10 : vector<1x128xf32> to vector<256x128xf32>
    %47 = arith.addf %45, %46 : vector<256x128xf32>
    %c0_32 = arith.constant 0 : index
    %c0_33 = arith.constant 0 : index
    %48 = vector.load %arg13[%c0_32, %c0_33] : memref<512x384xf32, #tpu.memory_space<vmem>>, vector<256x128xf32>
    tpu.vector_store %arg13[%c0_32, %c0_33], %47 {strides = array<i32>} : memref<512x384xf32, #tpu.memory_space<vmem>>, vector<256x128xf32>,
    %c1_i32_34 = arith.constant 1 : i32
    %c1_i32_35 = arith.constant 1 : i32
    %c256_i32_36 = arith.constant 256 : i32
    %c0_i32_37 = arith.constant 0 : i32
    %49 = tpu.memref_slice %arg0[%c256_i32_36, %c0_i32_37] : memref<512x512xbf16, #tpu.memory_space<any>> -> memref<256x512xbf16, #tpu.memory_space<any>>
    %c0_i32_38 = arith.constant 0 : i32
    %c0_i32_39 = arith.constant 0 : i32
    %50 = tpu.memref_slice %arg11[%c1_i32_34, %c0_i32_38, %c0_i32_39] : memref<2x256x512xbf16, #tpu.memory_space<vmem>> -> memref<1x256x512xbf16, #tpu.memory_space<vmem>>
    %51 = tpu.memref_squeeze %50 : memref<1x256x512xbf16, #tpu.memory_space<vmem>> -> memref<256x512xbf16, #tpu.memory_space<vmem>>
    %52 = tpu.memref_slice %arg12[%c1_i32_35] : memref<2x!tpu.dma_semaphore, #tpu.memory_space<semaphore_mem>> -> memref<1x!tpu.dma_semaphore, #tpu.memory_space<semaphore_mem>>
    %53 = tpu.memref_squeeze %52 : memref<1x!tpu.dma_semaphore, #tpu.memory_space<semaphore_mem>> -> memref<!tpu.dma_semaphore, #tpu.memory_space<semaphore_mem>>
    tpu.wait_dma2 semaphore(%53 : memref<!tpu.dma_semaphore, #tpu.memory_space<semaphore_mem>>) src(%49 : memref<256x512xbf16, #tpu.memory_space<any>>) dst(%51 : memref<256x512xbf16, #tpu.memory_space<vmem>>)
    %54 = vector.extract_strided_slice %0 {offsets = [256, 0], sizes = [256, 128], strides = [1, 1]} : vector<512x128xbf16> to vector<256x128xbf16>
    %55 = arith.extf %54 : vector<256x128xbf16> to vector<256x128xf32>
    %c1 = arith.constant 1 : index
    %c0_40 = arith.constant 0 : index
    %c0_41 = arith.constant 0 : index
    %56 = vector.load %arg11[%c1, %c0_40, %c0_41] : memref<2x256x512xbf16, #tpu.memory_space<vmem>>, vector<1x256x512xbf16>
    %57 = vector.shape_cast %56 : vector<1x256x512xbf16> to vector<256x512xbf16>
    %cst_42 = arith.constant dense<0.000000e+00> : vector<256x128xf32>
    %58 = tpu.matmul %57, %0, %cst_42 {dimension_numbers = #tpu.dot_dimension_numbers<[1], [0], [0], [1], [0, 0, 1, 1], [], []>} : vector<256x512xbf16>, vector<512x128xbf16>, vector<256x128xf32> -> vector<256x128xf32>
    %59 = arith.addf %55, %58 : vector<256x128xf32>
    %60 = arith.truncf %59 : vector<256x128xf32> to vector<256x128xbf16>
    %cst_43 = arith.constant dense<0.000000e+00> : vector<256x128xf32>
    %61 = tpu.matmul %60, %2, %cst_43 {dimension_numbers = #tpu.dot_dimension_numbers<[1], [0], [0], [1], [0, 0, 1, 1], [], []>} : vector<256x128xbf16>, vector<128x128xbf16>, vector<256x128xf32> -> vector<256x128xf32>
    %62 = vector.broadcast %7 : vector<1x128xf32> to vector<256x128xf32>
    %63 = arith.addf %61, %62 : vector<256x128xf32>
    %cst_44 = arith.constant 0.000000e+00 : f32
    %64 = vector.broadcast %cst_44 : f32 to vector<256x128xf32>
    %65 = arith.maximumf %63, %64 : vector<256x128xf32>
    %66 = arith.truncf %65 : vector<256x128xf32> to vector<256x128xbf16>
    %cst_45 = arith.constant dense<0.000000e+00> : vector<256x128xf32>
    %67 = tpu.matmul %66, %4, %cst_45 {dimension_numbers = #tpu.dot_dimension_numbers<[1], [0], [0], [1], [0, 0, 1, 1], [], []>} : vector<256x128xbf16>, vector<128x128xbf16>, vector<256x128xf32> -> vector<256x128xf32>
    %68 = vector.broadcast %8 : vector<1x128xf32> to vector<256x128xf32>
    %69 = arith.addf %67, %68 : vector<256x128xf32>
    %cst_46 = arith.constant 0.000000e+00 : f32
    %70 = vector.broadcast %cst_46 : f32 to vector<256x128xf32>
    %71 = arith.maximumf %69, %70 : vector<256x128xf32>
    %72 = vector.broadcast %9 : vector<1x128xf32> to vector<256x128xf32>
    %73 = arith.mulf %71, %72 : vector<256x128xf32>
    %74 = vector.broadcast %10 : vector<1x128xf32> to vector<256x128xf32>
    %75 = arith.addf %73, %74 : vector<256x128xf32>
    %c256 = arith.constant 256 : index
    %c0_47 = arith.constant 0 : index
    %76 = vector.load %arg13[%c256, %c0_47] : memref<512x384xf32, #tpu.memory_space<vmem>>, vector<256x128xf32>
    tpu.vector_store %arg13[%c256, %c0_47], %75 {strides = array<i32>} : memref<512x384xf32, #tpu.memory_space<vmem>>, vector<256x128xf32>,
    %c0_48 = arith.constant 0 : index
    %c0_49 = arith.constant 0 : index
    %77 = vector.load %arg13[%c0_48, %c0_49] : memref<512x384xf32, #tpu.memory_space<vmem>>, vector<512x128xf32>
    %78 = arith.truncf %77 : vector<512x128xf32> to vector<512x128xbf16>
    %c1_50 = arith.constant 1 : index
    %c0_51 = arith.constant 0 : index
    %c0_52 = arith.constant 0 : index
    %79 = vector.load %arg3[%c1_50, %c0_51, %c0_52] : memref<3x128x128xbf16, #tpu.memory_space<vmem>>, vector<1x128x128xbf16>
    %80 = vector.shape_cast %79 : vector<1x128x128xbf16> to vector<128x128xbf16>
    %c1_53 = arith.constant 1 : index
    %c0_54 = arith.constant 0 : index
    %c0_55 = arith.constant 0 : index
    %81 = vector.load %arg4[%c1_53, %c0_54, %c0_55] : memref<3x128x128xbf16, #tpu.memory_space<vmem>>, vector<1x128x128xbf16>
    %82 = vector.shape_cast %81 : vector<1x128x128xbf16> to vector<128x128xbf16>
    %c1_56 = arith.constant 1 : index
    %c0_57 = arith.constant 0 : index
    %c0_58 = arith.constant 0 : index
    %83 = vector.load %arg5[%c1_56, %c0_57, %c0_58] : memref<3x8x128xf32, #tpu.memory_space<vmem>>, vector<1x8x128xf32>
    %84 = vector.shape_cast %83 : vector<1x8x128xf32> to vector<8x128xf32>
    %85 = vector.extract_strided_slice %84 {offsets = [0, 0], sizes = [1, 128], strides = [1, 1]} : vector<8x128xf32> to vector<1x128xf32>
    %86 = vector.extract_strided_slice %84 {offsets = [1, 0], sizes = [1, 128], strides = [1, 1]} : vector<8x128xf32> to vector<1x128xf32>
    %87 = vector.extract_strided_slice %84 {offsets = [2, 0], sizes = [1, 128], strides = [1, 1]} : vector<8x128xf32> to vector<1x128xf32>
    %88 = vector.extract_strided_slice %84 {offsets = [3, 0], sizes = [1, 128], strides = [1, 1]} : vector<8x128xf32> to vector<1x128xf32>
    %c0_i32_59 = arith.constant 0 : i32
    %c0_i32_60 = arith.constant 0 : i32
    %c0_i32_61 = arith.constant 0 : i32
    %c0_i32_62 = arith.constant 0 : i32
    %89 = tpu.memref_slice %arg0[%c0_i32_61, %c0_i32_62] : memref<512x512xbf16, #tpu.memory_space<any>> -> memref<256x512xbf16, #tpu.memory_space<any>>
    %c0_i32_63 = arith.constant 0 : i32
    %c0_i32_64 = arith.constant 0 : i32
    %90 = tpu.memref_slice %arg11[%c0_i32_59, %c0_i32_63, %c0_i32_64] : memref<2x256x512xbf16, #tpu.memory_space<vmem>> -> memref<1x256x512xbf16, #tpu.memory_space<vmem>>
    %91 = tpu.memref_squeeze %90 : memref<1x256x512xbf16, #tpu.memory_space<vmem>> -> memref<256x512xbf16, #tpu.memory_space<vmem>>
    %92 = tpu.memref_slice %arg12[%c0_i32_60] : memref<2x!tpu.dma_semaphore, #tpu.memory_space<semaphore_mem>> -> memref<1x!tpu.dma_semaphore, #tpu.memory_space<semaphore_mem>>
    %93 = tpu.memref_squeeze %92 : memref<1x!tpu.dma_semaphore, #tpu.memory_space<semaphore_mem>> -> memref<!tpu.dma_semaphore, #tpu.memory_space<semaphore_mem>>
    tpu.enqueue_dma source(%89 : memref<256x512xbf16, #tpu.memory_space<any>>) target(%91 : memref<256x512xbf16, #tpu.memory_space<vmem>>) target_semaphore(%93 : memref<!tpu.dma_semaphore, #tpu.memory_space<semaphore_mem>>)
    %c0_i32_65 = arith.constant 0 : i32
    %c0_i32_66 = arith.constant 0 : i32
    %c0_i32_67 = arith.constant 0 : i32
    %c0_i32_68 = arith.constant 0 : i32
    %94 = tpu.memref_slice %arg0[%c0_i32_67, %c0_i32_68] : memref<512x512xbf16, #tpu.memory_space<any>> -> memref<256x512xbf16, #tpu.memory_space<any>>
    %c0_i32_69 = arith.constant 0 : i32
    %c0_i32_70 = arith.constant 0 : i32
    %95 = tpu.memref_slice %arg11[%c0_i32_65, %c0_i32_69, %c0_i32_70] : memref<2x256x512xbf16, #tpu.memory_space<vmem>> -> memref<1x256x512xbf16, #tpu.memory_space<vmem>>
    %96 = tpu.memref_squeeze %95 : memref<1x256x512xbf16, #tpu.memory_space<vmem>> -> memref<256x512xbf16, #tpu.memory_space<vmem>>
    %97 = tpu.memref_slice %arg12[%c0_i32_66] : memref<2x!tpu.dma_semaphore, #tpu.memory_space<semaphore_mem>> -> memref<1x!tpu.dma_semaphore, #tpu.memory_space<semaphore_mem>>
    %98 = tpu.memref_squeeze %97 : memref<1x!tpu.dma_semaphore, #tpu.memory_space<semaphore_mem>> -> memref<!tpu.dma_semaphore, #tpu.memory_space<semaphore_mem>>
    tpu.wait_dma2 semaphore(%98 : memref<!tpu.dma_semaphore, #tpu.memory_space<semaphore_mem>>) src(%94 : memref<256x512xbf16, #tpu.memory_space<any>>) dst(%96 : memref<256x512xbf16, #tpu.memory_space<vmem>>)
    %c1_i32_71 = arith.constant 1 : i32
    %c1_i32_72 = arith.constant 1 : i32
    %c256_i32_73 = arith.constant 256 : i32
    %c0_i32_74 = arith.constant 0 : i32
    %99 = tpu.memref_slice %arg0[%c256_i32_73, %c0_i32_74] : memref<512x512xbf16, #tpu.memory_space<any>> -> memref<256x512xbf16, #tpu.memory_space<any>>
    %c0_i32_75 = arith.constant 0 : i32
    %c0_i32_76 = arith.constant 0 : i32
    %100 = tpu.memref_slice %arg11[%c1_i32_71, %c0_i32_75, %c0_i32_76] : memref<2x256x512xbf16, #tpu.memory_space<vmem>> -> memref<1x256x512xbf16, #tpu.memory_space<vmem>>
    %101 = tpu.memref_squeeze %100 : memref<1x256x512xbf16, #tpu.memory_space<vmem>> -> memref<256x512xbf16, #tpu.memory_space<vmem>>
    %102 = tpu.memref_slice %arg12[%c1_i32_72] : memref<2x!tpu.dma_semaphore, #tpu.memory_space<semaphore_mem>> -> memref<1x!tpu.dma_semaphore, #tpu.memory_space<semaphore_mem>>
    %103 = tpu.memref_squeeze %102 : memref<1x!tpu.dma_semaphore, #tpu.memory_space<semaphore_mem>> -> memref<!tpu.dma_semaphore, #tpu.memory_space<semaphore_mem>>
    tpu.enqueue_dma source(%99 : memref<256x512xbf16, #tpu.memory_space<any>>) target(%101 : memref<256x512xbf16, #tpu.memory_space<vmem>>) target_semaphore(%103 : memref<!tpu.dma_semaphore, #tpu.memory_space<semaphore_mem>>)
    %c0_77 = arith.constant 0 : index
    %c0_78 = arith.constant 0 : index
    %104 = vector.load %arg13[%c0_77, %c0_78] : memref<512x384xf32, #tpu.memory_space<vmem>>, vector<256x128xf32>
    %c0_79 = arith.constant 0 : index
    %c0_80 = arith.constant 0 : index
    %c0_81 = arith.constant 0 : index
    %105 = vector.load %arg11[%c0_79, %c0_80, %c0_81] : memref<2x256x512xbf16, #tpu.memory_space<vmem>>, vector<1x256x512xbf16>
    %106 = vector.shape_cast %105 : vector<1x256x512xbf16> to vector<256x512xbf16>
    %cst_82 = arith.constant dense<0.000000e+00> : vector<256x128xf32>
    %107 = tpu.matmul %106, %78, %cst_82 {dimension_numbers = #tpu.dot_dimension_numbers<[1], [0], [0], [1], [0, 0, 1, 1], [], []>} : vector<256x512xbf16>, vector<512x128xbf16>, vector<256x128xf32> -> vector<256x128xf32>
    %108 = arith.addf %104, %107 : vector<256x128xf32>
    %109 = arith.truncf %108 : vector<256x128xf32> to vector<256x128xbf16>
    %cst_83 = arith.constant dense<0.000000e+00> : vector<256x128xf32>
    %110 = tpu.matmul %109, %80, %cst_83 {dimension_numbers = #tpu.dot_dimension_numbers<[1], [0], [0], [1], [0, 0, 1, 1], [], []>} : vector<256x128xbf16>, vector<128x128xbf16>, vector<256x128xf32> -> vector<256x128xf32>
    %111 = vector.broadcast %85 : vector<1x128xf32> to vector<256x128xf32>
    %112 = arith.addf %110, %111 : vector<256x128xf32>
    %cst_84 = arith.constant 0.000000e+00 : f32
    %113 = vector.broadcast %cst_84 : f32 to vector<256x128xf32>
    %114 = arith.maximumf %112, %113 : vector<256x128xf32>
    %115 = arith.truncf %114 : vector<256x128xf32> to vector<256x128xbf16>
    %cst_85 = arith.constant dense<0.000000e+00> : vector<256x128xf32>
    %116 = tpu.matmul %115, %82, %cst_85 {dimension_numbers = #tpu.dot_dimension_numbers<[1], [0], [0], [1], [0, 0, 1, 1], [], []>} : vector<256x128xbf16>, vector<128x128xbf16>, vector<256x128xf32> -> vector<256x128xf32>
    %117 = vector.broadcast %86 : vector<1x128xf32> to vector<256x128xf32>
    %118 = arith.addf %116, %117 : vector<256x128xf32>
    %cst_86 = arith.constant 0.000000e+00 : f32
    %119 = vector.broadcast %cst_86 : f32 to vector<256x128xf32>
    %120 = arith.maximumf %118, %119 : vector<256x128xf32>
    %121 = vector.broadcast %87 : vector<1x128xf32> to vector<256x128xf32>
    %122 = arith.mulf %120, %121 : vector<256x128xf32>
    %123 = vector.broadcast %88 : vector<1x128xf32> to vector<256x128xf32>
    %124 = arith.addf %122, %123 : vector<256x128xf32>
    %c0_87 = arith.constant 0 : index
    %c128 = arith.constant 128 : index
    %125 = vector.load %arg13[%c0_87, %c128] : memref<512x384xf32, #tpu.memory_space<vmem>>, vector<256x128xf32>
    tpu.vector_store %arg13[%c0_87, %c128], %124 {strides = array<i32>} : memref<512x384xf32, #tpu.memory_space<vmem>>, vector<256x128xf32>,
    %c1_i32_88 = arith.constant 1 : i32
    %c1_i32_89 = arith.constant 1 : i32
    %c256_i32_90 = arith.constant 256 : i32
    %c0_i32_91 = arith.constant 0 : i32
    %126 = tpu.memref_slice %arg0[%c256_i32_90, %c0_i32_91] : memref<512x512xbf16, #tpu.memory_space<any>> -> memref<256x512xbf16, #tpu.memory_space<any>>
    %c0_i32_92 = arith.constant 0 : i32
    %c0_i32_93 = arith.constant 0 : i32
    %127 = tpu.memref_slice %arg11[%c1_i32_88, %c0_i32_92, %c0_i32_93] : memref<2x256x512xbf16, #tpu.memory_space<vmem>> -> memref<1x256x512xbf16, #tpu.memory_space<vmem>>
    %128 = tpu.memref_squeeze %127 : memref<1x256x512xbf16, #tpu.memory_space<vmem>> -> memref<256x512xbf16, #tpu.memory_space<vmem>>
    %129 = tpu.memref_slice %arg12[%c1_i32_89] : memref<2x!tpu.dma_semaphore, #tpu.memory_space<semaphore_mem>> -> memref<1x!tpu.dma_semaphore, #tpu.memory_space<semaphore_mem>>
    %130 = tpu.memref_squeeze %129 : memref<1x!tpu.dma_semaphore, #tpu.memory_space<semaphore_mem>> -> memref<!tpu.dma_semaphore, #tpu.memory_space<semaphore_mem>>
    tpu.wait_dma2 semaphore(%130 : memref<!tpu.dma_semaphore, #tpu.memory_space<semaphore_mem>>) src(%126 : memref<256x512xbf16, #tpu.memory_space<any>>) dst(%128 : memref<256x512xbf16, #tpu.memory_space<vmem>>)
    %c256_94 = arith.constant 256 : index
    %c0_95 = arith.constant 0 : index
    %131 = vector.load %arg13[%c256_94, %c0_95] : memref<512x384xf32, #tpu.memory_space<vmem>>, vector<256x128xf32>
    %c1_96 = arith.constant 1 : index
    %c0_97 = arith.constant 0 : index
    %c0_98 = arith.constant 0 : index
    %132 = vector.load %arg11[%c1_96, %c0_97, %c0_98] : memref<2x256x512xbf16, #tpu.memory_space<vmem>>, vector<1x256x512xbf16>
    %133 = vector.shape_cast %132 : vector<1x256x512xbf16> to vector<256x512xbf16>
    %cst_99 = arith.constant dense<0.000000e+00> : vector<256x128xf32>
    %134 = tpu.matmul %133, %78, %cst_99 {dimension_numbers = #tpu.dot_dimension_numbers<[1], [0], [0], [1], [0, 0, 1, 1], [], []>} : vector<256x512xbf16>, vector<512x128xbf16>, vector<256x128xf32> -> vector<256x128xf32>
    %135 = arith.addf %131, %134 : vector<256x128xf32>
    %136 = arith.truncf %135 : vector<256x128xf32> to vector<256x128xbf16>
    %cst_100 = arith.constant dense<0.000000e+00> : vector<256x128xf32>
    %137 = tpu.matmul %136, %80, %cst_100 {dimension_numbers = #tpu.dot_dimension_numbers<[1], [0], [0], [1], [0, 0, 1, 1], [], []>} : vector<256x128xbf16>, vector<128x128xbf16>, vector<256x128xf32> -> vector<256x128xf32>
    %138 = vector.broadcast %85 : vector<1x128xf32> to vector<256x128xf32>
    %139 = arith.addf %137, %138 : vector<256x128xf32>
    %cst_101 = arith.constant 0.000000e+00 : f32
    %140 = vector.broadcast %cst_101 : f32 to vector<256x128xf32>
    %141 = arith.maximumf %139, %140 : vector<256x128xf32>
    %142 = arith.truncf %141 : vector<256x128xf32> to vector<256x128xbf16>
    %cst_102 = arith.constant dense<0.000000e+00> : vector<256x128xf32>
    %143 = tpu.matmul %142, %82, %cst_102 {dimension_numbers = #tpu.dot_dimension_numbers<[1], [0], [0], [1], [0, 0, 1, 1], [], []>} : vector<256x128xbf16>, vector<128x128xbf16>, vector<256x128xf32> -> vector<256x128xf32>
    %144 = vector.broadcast %86 : vector<1x128xf32> to vector<256x128xf32>
    %145 = arith.addf %143, %144 : vector<256x128xf32>
    %cst_103 = arith.constant 0.000000e+00 : f32
    %146 = vector.broadcast %cst_103 : f32 to vector<256x128xf32>
    %147 = arith.maximumf %145, %146 : vector<256x128xf32>
    %148 = vector.broadcast %87 : vector<1x128xf32> to vector<256x128xf32>
    %149 = arith.mulf %147, %148 : vector<256x128xf32>
    %150 = vector.broadcast %88 : vector<1x128xf32> to vector<256x128xf32>
    %151 = arith.addf %149, %150 : vector<256x128xf32>
    %c256_104 = arith.constant 256 : index
    %c128_105 = arith.constant 128 : index
    %152 = vector.load %arg13[%c256_104, %c128_105] : memref<512x384xf32, #tpu.memory_space<vmem>>, vector<256x128xf32>
    tpu.vector_store %arg13[%c256_104, %c128_105], %151 {strides = array<i32>} : memref<512x384xf32, #tpu.memory_space<vmem>>, vector<256x128xf32>,
    %c0_106 = arith.constant 0 : index
    %c128_107 = arith.constant 128 : index
    %153 = vector.load %arg13[%c0_106, %c128_107] : memref<512x384xf32, #tpu.memory_space<vmem>>, vector<512x128xf32>
    %154 = arith.truncf %153 : vector<512x128xf32> to vector<512x128xbf16>
    %c2 = arith.constant 2 : index
    %c0_108 = arith.constant 0 : index
    %c0_109 = arith.constant 0 : index
    %155 = vector.load %arg3[%c2, %c0_108, %c0_109] : memref<3x128x128xbf16, #tpu.memory_space<vmem>>, vector<1x128x128xbf16>
    %156 = vector.shape_cast %155 : vector<1x128x128xbf16> to vector<128x128xbf16>
    %c2_110 = arith.constant 2 : index
    %c0_111 = arith.constant 0 : index
    %c0_112 = arith.constant 0 : index
    %157 = vector.load %arg4[%c2_110, %c0_111, %c0_112] : memref<3x128x128xbf16, #tpu.memory_space<vmem>>, vector<1x128x128xbf16>
    %158 = vector.shape_cast %157 : vector<1x128x128xbf16> to vector<128x128xbf16>
    %c2_113 = arith.constant 2 : index
    %c0_114 = arith.constant 0 : index
    %c0_115 = arith.constant 0 : index
    %159 = vector.load %arg5[%c2_113, %c0_114, %c0_115] : memref<3x8x128xf32, #tpu.memory_space<vmem>>, vector<1x8x128xf32>
    %160 = vector.shape_cast %159 : vector<1x8x128xf32> to vector<8x128xf32>
    %161 = vector.extract_strided_slice %160 {offsets = [0, 0], sizes = [1, 128], strides = [1, 1]} : vector<8x128xf32> to vector<1x128xf32>
    %162 = vector.extract_strided_slice %160 {offsets = [1, 0], sizes = [1, 128], strides = [1, 1]} : vector<8x128xf32> to vector<1x128xf32>
    %163 = vector.extract_strided_slice %160 {offsets = [2, 0], sizes = [1, 128], strides = [1, 1]} : vector<8x128xf32> to vector<1x128xf32>
    %164 = vector.extract_strided_slice %160 {offsets = [3, 0], sizes = [1, 128], strides = [1, 1]} : vector<8x128xf32> to vector<1x128xf32>
    %c0_i32_116 = arith.constant 0 : i32
    %c0_i32_117 = arith.constant 0 : i32
    %c0_i32_118 = arith.constant 0 : i32
    %c0_i32_119 = arith.constant 0 : i32
    %165 = tpu.memref_slice %arg0[%c0_i32_118, %c0_i32_119] : memref<512x512xbf16, #tpu.memory_space<any>> -> memref<256x512xbf16, #tpu.memory_space<any>>
    %c0_i32_120 = arith.constant 0 : i32
    %c0_i32_121 = arith.constant 0 : i32
    %166 = tpu.memref_slice %arg11[%c0_i32_116, %c0_i32_120, %c0_i32_121] : memref<2x256x512xbf16, #tpu.memory_space<vmem>> -> memref<1x256x512xbf16, #tpu.memory_space<vmem>>
    %167 = tpu.memref_squeeze %166 : memref<1x256x512xbf16, #tpu.memory_space<vmem>> -> memref<256x512xbf16, #tpu.memory_space<vmem>>
    %168 = tpu.memref_slice %arg12[%c0_i32_117] : memref<2x!tpu.dma_semaphore, #tpu.memory_space<semaphore_mem>> -> memref<1x!tpu.dma_semaphore, #tpu.memory_space<semaphore_mem>>
    %169 = tpu.memref_squeeze %168 : memref<1x!tpu.dma_semaphore, #tpu.memory_space<semaphore_mem>> -> memref<!tpu.dma_semaphore, #tpu.memory_space<semaphore_mem>>
    tpu.enqueue_dma source(%165 : memref<256x512xbf16, #tpu.memory_space<any>>) target(%167 : memref<256x512xbf16, #tpu.memory_space<vmem>>) target_semaphore(%169 : memref<!tpu.dma_semaphore, #tpu.memory_space<semaphore_mem>>)
    %c0_i32_122 = arith.constant 0 : i32
    %c0_i32_123 = arith.constant 0 : i32
    %c0_i32_124 = arith.constant 0 : i32
    %c0_i32_125 = arith.constant 0 : i32
    %170 = tpu.memref_slice %arg0[%c0_i32_124, %c0_i32_125] : memref<512x512xbf16, #tpu.memory_space<any>> -> memref<256x512xbf16, #tpu.memory_space<any>>
    %c0_i32_126 = arith.constant 0 : i32
    %c0_i32_127 = arith.constant 0 : i32
    %171 = tpu.memref_slice %arg11[%c0_i32_122, %c0_i32_126, %c0_i32_127] : memref<2x256x512xbf16, #tpu.memory_space<vmem>> -> memref<1x256x512xbf16, #tpu.memory_space<vmem>>
    %172 = tpu.memref_squeeze %171 : memref<1x256x512xbf16, #tpu.memory_space<vmem>> -> memref<256x512xbf16, #tpu.memory_space<vmem>>
    %173 = tpu.memref_slice %arg12[%c0_i32_123] : memref<2x!tpu.dma_semaphore, #tpu.memory_space<semaphore_mem>> -> memref<1x!tpu.dma_semaphore, #tpu.memory_space<semaphore_mem>>
    %174 = tpu.memref_squeeze %173 : memref<1x!tpu.dma_semaphore, #tpu.memory_space<semaphore_mem>> -> memref<!tpu.dma_semaphore, #tpu.memory_space<semaphore_mem>>
    tpu.wait_dma2 semaphore(%174 : memref<!tpu.dma_semaphore, #tpu.memory_space<semaphore_mem>>) src(%170 : memref<256x512xbf16, #tpu.memory_space<any>>) dst(%172 : memref<256x512xbf16, #tpu.memory_space<vmem>>)
    %c1_i32_128 = arith.constant 1 : i32
    %c1_i32_129 = arith.constant 1 : i32
    %c256_i32_130 = arith.constant 256 : i32
    %c0_i32_131 = arith.constant 0 : i32
    %175 = tpu.memref_slice %arg0[%c256_i32_130, %c0_i32_131] : memref<512x512xbf16, #tpu.memory_space<any>> -> memref<256x512xbf16, #tpu.memory_space<any>>
    %c0_i32_132 = arith.constant 0 : i32
    %c0_i32_133 = arith.constant 0 : i32
    %176 = tpu.memref_slice %arg11[%c1_i32_128, %c0_i32_132, %c0_i32_133] : memref<2x256x512xbf16, #tpu.memory_space<vmem>> -> memref<1x256x512xbf16, #tpu.memory_space<vmem>>
    %177 = tpu.memref_squeeze %176 : memref<1x256x512xbf16, #tpu.memory_space<vmem>> -> memref<256x512xbf16, #tpu.memory_space<vmem>>
    %178 = tpu.memref_slice %arg12[%c1_i32_129] : memref<2x!tpu.dma_semaphore, #tpu.memory_space<semaphore_mem>> -> memref<1x!tpu.dma_semaphore, #tpu.memory_space<semaphore_mem>>
    %179 = tpu.memref_squeeze %178 : memref<1x!tpu.dma_semaphore, #tpu.memory_space<semaphore_mem>> -> memref<!tpu.dma_semaphore, #tpu.memory_space<semaphore_mem>>
    tpu.enqueue_dma source(%175 : memref<256x512xbf16, #tpu.memory_space<any>>) target(%177 : memref<256x512xbf16, #tpu.memory_space<vmem>>) target_semaphore(%179 : memref<!tpu.dma_semaphore, #tpu.memory_space<semaphore_mem>>)
    %c0_134 = arith.constant 0 : index
    %c128_135 = arith.constant 128 : index
    %180 = vector.load %arg13[%c0_134, %c128_135] : memref<512x384xf32, #tpu.memory_space<vmem>>, vector<256x128xf32>
    %c0_136 = arith.constant 0 : index
    %c0_137 = arith.constant 0 : index
    %c0_138 = arith.constant 0 : index
    %181 = vector.load %arg11[%c0_136, %c0_137, %c0_138] : memref<2x256x512xbf16, #tpu.memory_space<vmem>>, vector<1x256x512xbf16>
    %182 = vector.shape_cast %181 : vector<1x256x512xbf16> to vector<256x512xbf16>
    %cst_139 = arith.constant dense<0.000000e+00> : vector<256x128xf32>
    %183 = tpu.matmul %182, %154, %cst_139 {dimension_numbers = #tpu.dot_dimension_numbers<[1], [0], [0], [1], [0, 0, 1, 1], [], []>} : vector<256x512xbf16>, vector<512x128xbf16>, vector<256x128xf32> -> vector<256x128xf32>
    %184 = arith.addf %180, %183 : vector<256x128xf32>
    %185 = arith.truncf %184 : vector<256x128xf32> to vector<256x128xbf16>
    %cst_140 = arith.constant dense<0.000000e+00> : vector<256x128xf32>
    %186 = tpu.matmul %185, %156, %cst_140 {dimension_numbers = #tpu.dot_dimension_numbers<[1], [0], [0], [1], [0, 0, 1, 1], [], []>} : vector<256x128xbf16>, vector<128x128xbf16>, vector<256x128xf32> -> vector<256x128xf32>
    %187 = vector.broadcast %161 : vector<1x128xf32> to vector<256x128xf32>
    %188 = arith.addf %186, %187 : vector<256x128xf32>
    %cst_141 = arith.constant 0.000000e+00 : f32
    %189 = vector.broadcast %cst_141 : f32 to vector<256x128xf32>
    %190 = arith.maximumf %188, %189 : vector<256x128xf32>
    %191 = arith.truncf %190 : vector<256x128xf32> to vector<256x128xbf16>
    %cst_142 = arith.constant dense<0.000000e+00> : vector<256x128xf32>
    %192 = tpu.matmul %191, %158, %cst_142 {dimension_numbers = #tpu.dot_dimension_numbers<[1], [0], [0], [1], [0, 0, 1, 1], [], []>} : vector<256x128xbf16>, vector<128x128xbf16>, vector<256x128xf32> -> vector<256x128xf32>
    %193 = vector.broadcast %162 : vector<1x128xf32> to vector<256x128xf32>
    %194 = arith.addf %192, %193 : vector<256x128xf32>
    %cst_143 = arith.constant 0.000000e+00 : f32
    %195 = vector.broadcast %cst_143 : f32 to vector<256x128xf32>
    %196 = arith.maximumf %194, %195 : vector<256x128xf32>
    %197 = vector.broadcast %163 : vector<1x128xf32> to vector<256x128xf32>
    %198 = arith.mulf %196, %197 : vector<256x128xf32>
    %199 = vector.broadcast %164 : vector<1x128xf32> to vector<256x128xf32>
    %200 = arith.addf %198, %199 : vector<256x128xf32>
    %c0_144 = arith.constant 0 : index
    %c256_145 = arith.constant 256 : index
    %201 = vector.load %arg13[%c0_144, %c256_145] : memref<512x384xf32, #tpu.memory_space<vmem>>, vector<256x128xf32>
    tpu.vector_store %arg13[%c0_144, %c256_145], %200 {strides = array<i32>} : memref<512x384xf32, #tpu.memory_space<vmem>>, vector<256x128xf32>,
    %c1_i32_146 = arith.constant 1 : i32
    %c1_i32_147 = arith.constant 1 : i32
    %c256_i32_148 = arith.constant 256 : i32
    %c0_i32_149 = arith.constant 0 : i32
    %202 = tpu.memref_slice %arg0[%c256_i32_148, %c0_i32_149] : memref<512x512xbf16, #tpu.memory_space<any>> -> memref<256x512xbf16, #tpu.memory_space<any>>
    %c0_i32_150 = arith.constant 0 : i32
    %c0_i32_151 = arith.constant 0 : i32
    %203 = tpu.memref_slice %arg11[%c1_i32_146, %c0_i32_150, %c0_i32_151] : memref<2x256x512xbf16, #tpu.memory_space<vmem>> -> memref<1x256x512xbf16, #tpu.memory_space<vmem>>
    %204 = tpu.memref_squeeze %203 : memref<1x256x512xbf16, #tpu.memory_space<vmem>> -> memref<256x512xbf16, #tpu.memory_space<vmem>>
    %205 = tpu.memref_slice %arg12[%c1_i32_147] : memref<2x!tpu.dma_semaphore, #tpu.memory_space<semaphore_mem>> -> memref<1x!tpu.dma_semaphore, #tpu.memory_space<semaphore_mem>>
    %206 = tpu.memref_squeeze %205 : memref<1x!tpu.dma_semaphore, #tpu.memory_space<semaphore_mem>> -> memref<!tpu.dma_semaphore, #tpu.memory_space<semaphore_mem>>
    tpu.wait_dma2 semaphore(%206 : memref<!tpu.dma_semaphore, #tpu.memory_space<semaphore_mem>>) src(%202 : memref<256x512xbf16, #tpu.memory_space<any>>) dst(%204 : memref<256x512xbf16, #tpu.memory_space<vmem>>)
    %c256_152 = arith.constant 256 : index
    %c128_153 = arith.constant 128 : index
    %207 = vector.load %arg13[%c256_152, %c128_153] : memref<512x384xf32, #tpu.memory_space<vmem>>, vector<256x128xf32>
    %c1_154 = arith.constant 1 : index
    %c0_155 = arith.constant 0 : index
    %c0_156 = arith.constant 0 : index
    %208 = vector.load %arg11[%c1_154, %c0_155, %c0_156] : memref<2x256x512xbf16, #tpu.memory_space<vmem>>, vector<1x256x512xbf16>
    %209 = vector.shape_cast %208 : vector<1x256x512xbf16> to vector<256x512xbf16>
    %cst_157 = arith.constant dense<0.000000e+00> : vector<256x128xf32>
    %210 = tpu.matmul %209, %154, %cst_157 {dimension_numbers = #tpu.dot_dimension_numbers<[1], [0], [0], [1], [0, 0, 1, 1], [], []>} : vector<256x512xbf16>, vector<512x128xbf16>, vector<256x128xf32> -> vector<256x128xf32>
    %211 = arith.addf %207, %210 : vector<256x128xf32>
    %212 = arith.truncf %211 : vector<256x128xf32> to vector<256x128xbf16>
    %cst_158 = arith.constant dense<0.000000e+00> : vector<256x128xf32>
    %213 = tpu.matmul %212, %156, %cst_158 {dimension_numbers = #tpu.dot_dimension_numbers<[1], [0], [0], [1], [0, 0, 1, 1], [], []>} : vector<256x128xbf16>, vector<128x128xbf16>, vector<256x128xf32> -> vector<256x128xf32>
    %214 = vector.broadcast %161 : vector<1x128xf32> to vector<256x128xf32>
    %215 = arith.addf %213, %214 : vector<256x128xf32>
    %cst_159 = arith.constant 0.000000e+00 : f32
    %216 = vector.broadcast %cst_159 : f32 to vector<256x128xf32>
    %217 = arith.maximumf %215, %216 : vector<256x128xf32>
    %218 = arith.truncf %217 : vector<256x128xf32> to vector<256x128xbf16>
    %cst_160 = arith.constant dense<0.000000e+00> : vector<256x128xf32>
    %219 = tpu.matmul %218, %158, %cst_160 {dimension_numbers = #tpu.dot_dimension_numbers<[1], [0], [0], [1], [0, 0, 1, 1], [], []>} : vector<256x128xbf16>, vector<128x128xbf16>, vector<256x128xf32> -> vector<256x128xf32>
    %220 = vector.broadcast %162 : vector<1x128xf32> to vector<256x128xf32>
    %221 = arith.addf %219, %220 : vector<256x128xf32>
    %cst_161 = arith.constant 0.000000e+00 : f32
    %222 = vector.broadcast %cst_161 : f32 to vector<256x128xf32>
    %223 = arith.maximumf %221, %222 : vector<256x128xf32>
    %224 = vector.broadcast %163 : vector<1x128xf32> to vector<256x128xf32>
    %225 = arith.mulf %223, %224 : vector<256x128xf32>
    %226 = vector.broadcast %164 : vector<1x128xf32> to vector<256x128xf32>
    %227 = arith.addf %225, %226 : vector<256x128xf32>
    %c256_162 = arith.constant 256 : index
    %c256_163 = arith.constant 256 : index
    %228 = vector.load %arg13[%c256_162, %c256_163] : memref<512x384xf32, #tpu.memory_space<vmem>>, vector<256x128xf32>
    tpu.vector_store %arg13[%c256_162, %c256_163], %227 {strides = array<i32>} : memref<512x384xf32, #tpu.memory_space<vmem>>, vector<256x128xf32>,
    %c0_164 = arith.constant 0 : index
    %c0_165 = arith.constant 0 : index
    %229 = vector.load %arg2[%c0_164, %c0_165] : memref<40x512xf32, #tpu.memory_space<vmem>>, vector<40x512xf32>
    %c0_166 = arith.constant 0 : index
    %c0_167 = arith.constant 0 : index
    %230 = vector.load %arg13[%c0_166, %c0_167] : memref<512x384xf32, #tpu.memory_space<vmem>>, vector<512x384xf32>
    %cst_168 = arith.constant dense<0.000000e+00> : vector<40x384xf32>
    %231 = tpu.matmul %229, %230, %cst_168 {dimension_numbers = #tpu.dot_dimension_numbers<[1], [0], [0], [1], [0, 0, 1, 1], [], []>} : vector<40x512xf32>, vector<512x384xf32>, vector<40x384xf32> -> vector<40x384xf32>
    %c0_169 = arith.constant 0 : index
    %c0_170 = arith.constant 0 : index
    %232 = vector.load %arg6[%c0_169, %c0_170] : memref<384x128xbf16, #tpu.memory_space<vmem>>, vector<384x128xbf16>
    %c0_171 = arith.constant 0 : index
    %c0_172 = arith.constant 0 : index
    %233 = vector.load %arg7[%c0_171, %c0_172] : memref<1x128xf32, #tpu.memory_space<vmem>>, vector<1x128xf32>
    %234 = arith.truncf %231 : vector<40x384xf32> to vector<40x384xbf16>
    %cst_173 = arith.constant dense<0.000000e+00> : vector<40x128xf32>
    %235 = tpu.matmul %234, %232, %cst_173 {dimension_numbers = #tpu.dot_dimension_numbers<[1], [0], [0], [1], [0, 0, 1, 1], [], []>} : vector<40x384xbf16>, vector<384x128xbf16>, vector<40x128xf32> -> vector<40x128xf32>
    %236 = vector.broadcast %233 : vector<1x128xf32> to vector<40x128xf32>
    %237 = arith.addf %235, %236 : vector<40x128xf32>
    %cst_174 = arith.constant 0.000000e+00 : f32
    %238 = vector.broadcast %cst_174 : f32 to vector<40x128xf32>
    %239 = arith.maximumf %237, %238 : vector<40x128xf32>
    %c0_175 = arith.constant 0 : index
    %c0_176 = arith.constant 0 : index
    %240 = vector.load %arg8[%c0_175, %c0_176] : memref<128x128xbf16, #tpu.memory_space<vmem>>, vector<128x128xbf16>
    %c0_177 = arith.constant 0 : index
    %c0_178 = arith.constant 0 : index
    %241 = vector.load %arg9[%c0_177, %c0_178] : memref<1x128xf32, #tpu.memory_space<vmem>>, vector<1x128xf32>
    %242 = arith.truncf %239 : vector<40x128xf32> to vector<40x128xbf16>
    %cst_179 = arith.constant dense<0.000000e+00> : vector<40x128xf32>
    %243 = tpu.matmul %242, %240, %cst_179 {dimension_numbers = #tpu.dot_dimension_numbers<[1], [0], [0], [1], [0, 0, 1, 1], [], []>} : vector<40x128xbf16>, vector<128x128xbf16>, vector<40x128xf32> -> vector<40x128xf32>
    %244 = vector.broadcast %241 : vector<1x128xf32> to vector<40x128xf32>
    %245 = arith.addf %243, %244 : vector<40x128xf32>
    %246 = tpu.iota {dimensions = array<i32: 1>} : vector<40x128xi32>
    %c10_i32 = arith.constant 10 : i32
    %247 = vector.broadcast %c10_i32 : i32 to vector<40x128xi32>
    %248 = arith.cmpi slt, %246, %247 : vector<40x128xi32>
    %cst_180 = arith.constant -1.000000e+30 : f32
    %249 = vector.broadcast %cst_180 : f32 to vector<40x128xf32>
    %250 = arith.select %248, %245, %249 : vector<40x128xi1>, vector<40x128xf32>
    %cst_181 = arith.constant dense<0xFF800000> : vector<40xf32>
    %251 = vector.multi_reduction <maximumf>, %250, %cst_181 [1] : vector<40x128xf32> to vector<40xf32>
    %252 = vector.shape_cast %251 : vector<40xf32> to vector<40x1xf32>
    %253 = vector.broadcast %252 : vector<40x1xf32> to vector<40x128xf32>
    %254 = arith.subf %250, %253 : vector<40x128xf32>
    %255 = math.exp %254 : vector<40x128xf32>
    %cst_182 = arith.constant dense<0.000000e+00> : vector<40xf32>
    %256 = vector.multi_reduction <add>, %255, %cst_182 [1] : vector<40x128xf32> to vector<40xf32>
    %257 = vector.shape_cast %256 : vector<40xf32> to vector<40x1xf32>
    %258 = math.log %257 : vector<40x1xf32>
    %259 = vector.broadcast %258 : vector<40x1xf32> to vector<40x128xf32>
    %260 = arith.subf %254, %259 : vector<40x128xf32>
    %c0_183 = arith.constant 0 : index
    %c0_184 = arith.constant 0 : index
    %261 = vector.load %arg10[%c0_183, %c0_184] : memref<40x128xf32, #tpu.memory_space<vmem>>, vector<40x128xf32>
    tpu.vector_store %arg10[%c0_183, %c0_184], %260 {strides = array<i32>} : memref<40x128xf32, #tpu.memory_space<vmem>>, vector<40x128xf32>,
    return
  }
}

</mosaic_0001>

<llo_original>
// kernel: encoder_feed_forward.1
$region0: #{encoder_feed_forward.1}
  #allocation0 [shape = 'u32[]', space=smem, size = 0x4, offset = 0x4, fixed_abs, tag = 'smem constant byte address 0x4 - core index']
  #allocation1 [shape = 'u32[144,128]{1,0:T(1,128)}', space=vmem, size = 0x12000, scoped, tag = 'internal scratch']
  #allocation2 [shape = 'bf16[2,256,512]{2,1,0:T(8,128)(2,1)}', space=vmem, size = 0x80000, scoped, tag = 'scratch operand']
  #allocation3 [shape = 's32[2]{0}', space=sflag, size = 0x8, scoped, tag = 'scratch operand']
  #allocation4 [shape = 'f32[512,384]{1,0:T(8,128)}', space=vmem, size = 0xc0000, scoped, tag = 'scratch operand']
  #allocation5 [shape = 's32[]', space=sflag, size = 0x4, offset = 0, fixed_abs, tag = 'sflag constant byte address 0x0 - dummy sync flag']
  #allocation6 [shape = 's32[]', space=sflag, size = 0x4, offset = 0, fixed_abs, tag = 'sflag constant byte address 0x0 - dummy sync flag']
  #allocation7 [shape = 's32[]', space=sflag, size = 0x4, offset = 0, fixed_abs, tag = 'sflag constant byte address 0x0 - dummy sync flag']
  #allocation8 [shape = 's32[]', space=sflag, size = 0x4, offset = 0, fixed_abs, tag = 'sflag constant byte address 0x0 - dummy sync flag']
  #allocation9 [shape = 's32[]', space=sflag, size = 0x4, offset = 0, fixed_abs, tag = 'sflag constant byte address 0x0 - dummy sync flag']
  #allocation10 [shape = 's32[]', space=sflag, size = 0x4, offset = 0, fixed_abs, tag = 'sflag constant byte address 0x0 - dummy sync flag']
  %s0 = inlined_call_operand.vmem [shape: bf16[512,512], index: 0, kind: input, shape index: {}]
  %s1 = inlined_call_operand.vmem [shape: bf16[512,128], index: 1, kind: input, shape index: {}]
  %s2 = inlined_call_operand.vmem [shape: f32[40,512], index: 2, kind: input, shape index: {}]
  %s3 = inlined_call_operand.vmem [shape: bf16[3,128,128], index: 3, kind: input, shape index: {}]
  %s4 = inlined_call_operand.vmem [shape: bf16[3,128,128], index: 4, kind: input, shape index: {}]
  %s5 = inlined_call_operand.vmem [shape: f32[3,8,128], index: 5, kind: input, shape index: {}]
  %s6 = inlined_call_operand.vmem [shape: bf16[384,128], index: 6, kind: input, shape index: {}]
  %s7 = inlined_call_operand.vmem [shape: f32[1,128], index: 7, kind: input, shape index: {}]
  %s8 = inlined_call_operand.vmem [shape: bf16[128,128], index: 8, kind: input, shape index: {}]
  %s9 = inlined_call_operand.vmem [shape: f32[1,128], index: 9, kind: input, shape index: {}]
  %s10 = inlined_call_operand.vmem [shape: f32[40,128], index: 10, kind: output, shape index: {}]
  %s11 = sld [smem:[#allocation0]]
  $region250: #{encoder_feed_forward.1} parent=0
    _
  %s13 = ssub.s32 1, %s11
  %s14 = scalar_select 0, %s13, %s11
  // Predicated region
  $region2: #{encoder_feed_forward.1} parent=0 // pred_check
    _
  $region3: #{encoder_feed_forward.1} parent=0 // pred_check_branch
    %16 = sbr.rel (0) target = $region5
  $region4: #{encoder_feed_forward.1} parent=0 // pred_region
    _
  $region5: #{encoder_feed_forward.1} parent=0 // pred_fallthru
    _
  // Predicated region
  $region6: #{encoder_feed_forward.1} parent=0 // pred_check
    _
  $region7: #{encoder_feed_forward.1} parent=0 // pred_check_branch
    %18 = sbr.rel (0) target = $region9
  $region8: #{encoder_feed_forward.1} parent=0 // pred_region
    _
  $region9: #{encoder_feed_forward.1} parent=0 // pred_fallthru
    _
  // Predicated region
  $region10: #{encoder_feed_forward.1} parent=0 // pred_check
    _
  $region11: #{encoder_feed_forward.1} parent=0 // pred_check_branch
    %20 = sbr.rel (0) target = $region13
  $region12: #{encoder_feed_forward.1} parent=0 // pred_region
    _
  $region13: #{encoder_feed_forward.1} parent=0 // pred_fallthru
    _
  // Predicated region
  $region14: #{encoder_feed_forward.1} parent=0 // pred_check
    _
  $region15: #{encoder_feed_forward.1} parent=0 // pred_check_branch
    %22 = sbr.rel (0) target = $region17
  $region16: #{encoder_feed_forward.1} parent=0 // pred_region
    _
  $region17: #{encoder_feed_forward.1} parent=0 // pred_fallthru
    _
  // Predicated region
  $region18: #{encoder_feed_forward.1} parent=0 // pred_check
    _
  $region19: #{encoder_feed_forward.1} parent=0 // pred_check_branch
    %24 = sbr.rel (0) target = $region21
  $region20: #{encoder_feed_forward.1} parent=0 // pred_region
    _
  $region21: #{encoder_feed_forward.1} parent=0 // pred_fallthru
    _
  // Predicated region
  $region22: #{encoder_feed_forward.1} parent=0 // pred_check
    _
  $region23: #{encoder_feed_forward.1} parent=0 // pred_check_branch
    %26 = sbr.rel (0) target = $region25
  $region24: #{encoder_feed_forward.1} parent=0 // pred_region
    _
  $region25: #{encoder_feed_forward.1} parent=0 // pred_fallthru
    _
  // Predicated region
  $region26: #{encoder_feed_forward.1} parent=0 // pred_check
    _
  $region27: #{encoder_feed_forward.1} parent=0 // pred_check_branch
    %28 = sbr.rel (0) target = $region29
  $region28: #{encoder_feed_forward.1} parent=0 // pred_region
    _
  $region29: #{encoder_feed_forward.1} parent=0 // pred_fallthru
    _
  // Predicated region
  $region30: #{encoder_feed_forward.1} parent=0 // pred_check
    _
  $region31: #{encoder_feed_forward.1} parent=0 // pred_check_branch
    %30 = sbr.rel (0) target = $region33
  $region32: #{encoder_feed_forward.1} parent=0 // pred_region
    _
  $region33: #{encoder_feed_forward.1} parent=0 // pred_fallthru
    _
  // Predicated region
  $region34: #{encoder_feed_forward.1} parent=0 // pred_check
    _
  $region35: #{encoder_feed_forward.1} parent=0 // pred_check_branch
    %32 = sbr.rel (0) target = $region37
  $region36: #{encoder_feed_forward.1} parent=0 // pred_region
    _
  $region37: #{encoder_feed_forward.1} parent=0 // pred_fallthru
    _
  %v34 = vld [vmem:[%s1] sm:$0xf]
  %v35 = vld [vmem:[%s1 + $0x4] sm:$0xf]
  %v36 = vld [vmem:[%s1 + $0x8] sm:$0xf]
  %v37 = vld [vmem:[%s1 + $0xc] sm:$0xf]
  %v38 = vld [vmem:[%s1 + $0x10] sm:$0xf]
  %v39 = vld [vmem:[%s1 + $0x14] sm:$0xf]
  %v40 = vld [vmem:[%s1 + $0x18] sm:$0xf]
  %v41 = vld [vmem:[%s1 + $0x1c] sm:$0xf]
  %v42 = vld [vmem:[%s1 + $0x20] sm:$0xf]
  %v43 = vld [vmem:[%s1 + $0x24] sm:$0xf]
  %v44 = vld [vmem:[%s1 + $0x28] sm:$0xf]
  %v45 = vld [vmem:[%s1 + $0x2c] sm:$0xf]
  %v46 = vld [vmem:[%s1 + $0x30] sm:$0xf]
  %v47 = vld [vmem:[%s1 + $0x34] sm:$0xf]
  %v48 = vld [vmem:[%s1 + $0x38] sm:$0xf]
  %v49 = vld [vmem:[%s1 + $0x3c] sm:$0xf]
  %v50 = vld [vmem:[%s1 + $0x40] sm:$0xf]
  %v51 = vld [vmem:[%s1 + $0x44] sm:$0xf]
  %v52 = vld [vmem:[%s1 + $0x48] sm:$0xf]
  %v53 = vld [vmem:[%s1 + $0x4c] sm:$0xf]
  %v54 = vld [vmem:[%s1 + $0x50] sm:$0xf]
  %v55 = vld [vmem:[%s1 + $0x54] sm:$0xf]
  %v56 = vld [vmem:[%s1 + $0x58] sm:$0xf]
  %v57 = vld [vmem:[%s1 + $0x5c] sm:$0xf]
  %v58 = vld [vmem:[%s1 + $0x60] sm:$0xf]
  %v59 = vld [vmem:[%s1 + $0x64] sm:$0xf]
  %v60 = vld [vmem:[%s1 + $0x68] sm:$0xf]
  %v61 = vld [vmem:[%s1 + $0x6c] sm:$0xf]
  %v62 = vld [vmem:[%s1 + $0x70] sm:$0xf]
  %v63 = vld [vmem:[%s1 + $0x74] sm:$0xf]
  %v64 = vld [vmem:[%s1 + $0x78] sm:$0xf]
  %v65 = vld [vmem:[%s1 + $0x7c] sm:$0xf]
  %v66 = vld [vmem:[%s1 + $0x80] sm:$0xf]
  %v67 = vld [vmem:[%s1 + $0x84] sm:$0xf]
  %v68 = vld [vmem:[%s1 + $0x88] sm:$0xf]
  %v69 = vld [vmem:[%s1 + $0x8c] sm:$0xf]
  %v70 = vld [vmem:[%s1 + $0x90] sm:$0xf]
  %v71 = vld [vmem:[%s1 + $0x94] sm:$0xf]
  %v72 = vld [vmem:[%s1 + $0x98] sm:$0xf]
  %v73 = vld [vmem:[%s1 + $0x9c] sm:$0xf]
  %v74 = vld [vmem:[%s1 + $0xa0] sm:$0xf]
  %v75 = vld [vmem:[%s1 + $0xa4] sm:$0xf]
  %v76 = vld [vmem:[%s1 + $0xa8] sm:$0xf]
  %v77 = vld [vmem:[%s1 + $0xac] sm:$0xf]
  %v78 = vld [vmem:[%s1 + $0xb0] sm:$0xf]
  %v79 = vld [vmem:[%s1 + $0xb4] sm:$0xf]
  %v80 = vld [vmem:[%s1 + $0xb8] sm:$0xf]
  %v81 = vld [vmem:[%s1 + $0xbc] sm:$0xf]
  %v82 = vld [vmem:[%s1 + $0xc0] sm:$0xf]
  %v83 = vld [vmem:[%s1 + $0xc4] sm:$0xf]
  %v84 = vld [vmem:[%s1 + $0xc8] sm:$0xf]
  %v85 = vld [vmem:[%s1 + $0xcc] sm:$0xf]
  %v86 = vld [vmem:[%s1 + $0xd0] sm:$0xf]
  %v87 = vld [vmem:[%s1 + $0xd4] sm:$0xf]
  %v88 = vld [vmem:[%s1 + $0xd8] sm:$0xf]
  %v89 = vld [vmem:[%s1 + $0xdc] sm:$0xf]
  %v90 = vld [vmem:[%s1 + $0xe0] sm:$0xf]
  %v91 = vld [vmem:[%s1 + $0xe4] sm:$0xf]
  %v92 = vld [vmem:[%s1 + $0xe8] sm:$0xf]
  %v93 = vld [vmem:[%s1 + $0xec] sm:$0xf]
  %v94 = vld [vmem:[%s1 + $0xf0] sm:$0xf]
  %v95 = vld [vmem:[%s1 + $0xf4] sm:$0xf]
  %v96 = vld [vmem:[%s1 + $0xf8] sm:$0xf]
  %v97 = vld [vmem:[%s1 + $0xfc] sm:$0xf]
  %v98 = vld [vmem:[%s3] sm:$0xf]
  %v99 = vld [vmem:[%s3 + $0x4] sm:$0xf]
  %v100 = vld [vmem:[%s3 + $0x8] sm:$0xf]
  %v101 = vld [vmem:[%s3 + $0xc] sm:$0xf]
  %v102 = vld [vmem:[%s3 + $0x10] sm:$0xf]
  %v103 = vld [vmem:[%s3 + $0x14] sm:$0xf]
  %v104 = vld [vmem:[%s3 + $0x18] sm:$0xf]
  %v105 = vld [vmem:[%s3 + $0x1c] sm:$0xf]
  %v106 = vld [vmem:[%s3 + $0x20] sm:$0xf]
  %v107 = vld [vmem:[%s3 + $0x24] sm:$0xf]
  %v108 = vld [vmem:[%s3 + $0x28] sm:$0xf]
  %v109 = vld [vmem:[%s3 + $0x2c] sm:$0xf]
  %v110 = vld [vmem:[%s3 + $0x30] sm:$0xf]
  %v111 = vld [vmem:[%s3 + $0x34] sm:$0xf]
  %v112 = vld [vmem:[%s3 + $0x38] sm:$0xf]
  %v113 = vld [vmem:[%s3 + $0x3c] sm:$0xf]
  %v114 = vld [vmem:[%s4] sm:$0xf]
  %v115 = vld [vmem:[%s4 + $0x4] sm:$0xf]
  %v116 = vld [vmem:[%s4 + $0x8] sm:$0xf]
  %v117 = vld [vmem:[%s4 + $0xc] sm:$0xf]
  %v118 = vld [vmem:[%s4 + $0x10] sm:$0xf]
  %v119 = vld [vmem:[%s4 + $0x14] sm:$0xf]
  %v120 = vld [vmem:[%s4 + $0x18] sm:$0xf]
  %v121 = vld [vmem:[%s4 + $0x1c] sm:$0xf]
  %v122 = vld [vmem:[%s4 + $0x20] sm:$0xf]
  %v123 = vld [vmem:[%s4 + $0x24] sm:$0xf]
  %v124 = vld [vmem:[%s4 + $0x28] sm:$0xf]
  %v125 = vld [vmem:[%s4 + $0x2c] sm:$0xf]
  %v126 = vld [vmem:[%s4 + $0x30] sm:$0xf]
  %v127 = vld [vmem:[%s4 + $0x34] sm:$0xf]
  %v128 = vld [vmem:[%s4 + $0x38] sm:$0xf]
  %v129 = vld [vmem:[%s4 + $0x3c] sm:$0xf]
  %v130 = vld [vmem:[%s5] sm:$0xff]
  %p132 = scmp.lt.u32.totalorder 512, 8
  %p133 = pneg %p132
  // Predicated region
  $region38: #{encoder_feed_forward.1} parent=0 // pred_check
    _
  $region39: #{encoder_feed_forward.1} parent=0 // pred_check_branch
    %135 = sbr.rel (%p132) target = $region41
  $region40: #{encoder_feed_forward.1} parent=0 // pred_region
    %s151 = sand.u32 512, 7
    %p152 = scmp.eq.s32.totalorder %s151, 0
    // Predicated region
    $region53: #{encoder_feed_forward.1} parent=40 // pred_check
      %p153 = pneg %p152
    $region54: #{encoder_feed_forward.1} parent=40 // pred_check_branch
      %155 = sbr.rel (%p153) target = $region56
    $region55: #{encoder_feed_forward.1} parent=40 // pred_region
      loop: start=0, step=1, limit=1
      $region57: #{encoder_feed_forward.1} parent=55 // loop_pre_header
        _
      $region58: #{encoder_feed_forward.1} parent=55 // loop_header
        %s157 = sphi 0, %s161
        %p158 = scmp.ge.s32.totalorder %s157, 1
        %s162 = sphi %s0, %s0
        %s163 = sphi [#allocation2], [#allocation2]
      $region59: #{encoder_feed_forward.1} parent=55 // loop_header_branch
        %160 = sbr.rel (%p158) target = $region63
      $region60: #{encoder_feed_forward.1} parent=55 // loop_body
        %v164 = vld [vmem:[%s162] sm:$0xff]
        %165 = vst [vmem:[%s163] sm:$0xff] %v164
        %v166 = vld [vmem:[%s162 + $0x8] sm:$0xff]
        %167 = vst [vmem:[%s163 + $0x8] sm:$0xff] %v166
        %v168 = vld [vmem:[%s162 + $0x10] sm:$0xff]
        %169 = vst [vmem:[%s163 + $0x10] sm:$0xff] %v168
        %v170 = vld [vmem:[%s162 + $0x18] sm:$0xff]
        %171 = vst [vmem:[%s163 + $0x18] sm:$0xff] %v170
        %v172 = vld [vmem:[%s162 + $0x20] sm:$0xff]
        %173 = vst [vmem:[%s163 + $0x20] sm:$0xff] %v172
        %v174 = vld [vmem:[%s162 + $0x28] sm:$0xff]
        %175 = vst [vmem:[%s163 + $0x28] sm:$0xff] %v174
        %v176 = vld [vmem:[%s162 + $0x30] sm:$0xff]
        %177 = vst [vmem:[%s163 + $0x30] sm:$0xff] %v176
        %v178 = vld [vmem:[%s162 + $0x38] sm:$0xff]
        %179 = vst [vmem:[%s163 + $0x38] sm:$0xff] %v178
        %v180 = vld [vmem:[%s162 + $0x40] sm:$0xff]
        %181 = vst [vmem:[%s163 + $0x40] sm:$0xff] %v180
        %v182 = vld [vmem:[%s162 + $0x48] sm:$0xff]
        %183 = vst [vmem:[%s163 + $0x48] sm:$0xff] %v182
        %v184 = vld [vmem:[%s162 + $0x50] sm:$0xff]
        %185 = vst [vmem:[%s163 + $0x50] sm:$0xff] %v184
        %v186 = vld [vmem:[%s162 + $0x58] sm:$0xff]
        %187 = vst [vmem:[%s163 + $0x58] sm:$0xff] %v186
        %v188 = vld [vmem:[%s162 + $0x60] sm:$0xff]
        %189 = vst [vmem:[%s163 + $0x60] sm:$0xff] %v188
        %v190 = vld [vmem:[%s162 + $0x68] sm:$0xff]
        %191 = vst [vmem:[%s163 + $0x68] sm:$0xff] %v190
        %v192 = vld [vmem:[%s162 + $0x70] sm:$0xff]
        %193 = vst [vmem:[%s163 + $0x70] sm:$0xff] %v192
        %v194 = vld [vmem:[%s162 + $0x78] sm:$0xff]
        %195 = vst [vmem:[%s163 + $0x78] sm:$0xff] %v194
        %v196 = vld [vmem:[%s162 + $0x80] sm:$0xff]
        %197 = vst [vmem:[%s163 + $0x80] sm:$0xff] %v196
        %v198 = vld [vmem:[%s162 + $0x88] sm:$0xff]
        %199 = vst [vmem:[%s163 + $0x88] sm:$0xff] %v198
        %v200 = vld [vmem:[%s162 + $0x90] sm:$0xff]
        %201 = vst [vmem:[%s163 + $0x90] sm:$0xff] %v200
        %v202 = vld [vmem:[%s162 + $0x98] sm:$0xff]
        %203 = vst [vmem:[%s163 + $0x98] sm:$0xff] %v202
        %v204 = vld [vmem:[%s162 + $0xa0] sm:$0xff]
        %205 = vst [vmem:[%s163 + $0xa0] sm:$0xff] %v204
        %v206 = vld [vmem:[%s162 + $0xa8] sm:$0xff]
        %207 = vst [vmem:[%s163 + $0xa8] sm:$0xff] %v206
        %v208 = vld [vmem:[%s162 + $0xb0] sm:$0xff]
        %209 = vst [vmem:[%s163 + $0xb0] sm:$0xff] %v208
        %v210 = vld [vmem:[%s162 + $0xb8] sm:$0xff]
        %211 = vst [vmem:[%s163 + $0xb8] sm:$0xff] %v210
        %v212 = vld [vmem:[%s162 + $0xc0] sm:$0xff]
        %213 = vst [vmem:[%s163 + $0xc0] sm:$0xff] %v212
        %v214 = vld [vmem:[%s162 + $0xc8] sm:$0xff]
        %215 = vst [vmem:[%s163 + $0xc8] sm:$0xff] %v214
        %v216 = vld [vmem:[%s162 + $0xd0] sm:$0xff]
        %217 = vst [vmem:[%s163 + $0xd0] sm:$0xff] %v216
        %v218 = vld [vmem:[%s162 + $0xd8] sm:$0xff]
        %219 = vst [vmem:[%s163 + $0xd8] sm:$0xff] %v218
        %v220 = vld [vmem:[%s162 + $0xe0] sm:$0xff]
        %221 = vst [vmem:[%s163 + $0xe0] sm:$0xff] %v220
        %v222 = vld [vmem:[%s162 + $0xe8] sm:$0xff]
        %223 = vst [vmem:[%s163 + $0xe8] sm:$0xff] %v222
        %v224 = vld [vmem:[%s162 + $0xf0] sm:$0xff]
        %225 = vst [vmem:[%s163 + $0xf0] sm:$0xff] %v224
        %v226 = vld [vmem:[%s162 + $0xf8] sm:$0xff]
        %227 = vst [vmem:[%s163 + $0xf8] sm:$0xff] %v226
        %v228 = vld [vmem:[%s162 + $0x100] sm:$0xff]
        %229 = vst [vmem:[%s163 + $0x100] sm:$0xff] %v228
        %v230 = vld [vmem:[%s162 + $0x108] sm:$0xff]
        %231 = vst [vmem:[%s163 + $0x108] sm:$0xff] %v230
        %v232 = vld [vmem:[%s162 + $0x110] sm:$0xff]
        %233 = vst [vmem:[%s163 + $0x110] sm:$0xff] %v232
        %v234 = vld [vmem:[%s162 + $0x118] sm:$0xff]
        %235 = vst [vmem:[%s163 + $0x118] sm:$0xff] %v234
        %v236 = vld [vmem:[%s162 + $0x120] sm:$0xff]
        %237 = vst [vmem:[%s163 + $0x120] sm:$0xff] %v236
        %v238 = vld [vmem:[%s162 + $0x128] sm:$0xff]
        %239 = vst [vmem:[%s163 + $0x128] sm:$0xff] %v238
        %v240 = vld [vmem:[%s162 + $0x130] sm:$0xff]
        %241 = vst [vmem:[%s163 + $0x130] sm:$0xff] %v240
        %v242 = vld [vmem:[%s162 + $0x138] sm:$0xff]
        %243 = vst [vmem:[%s163 + $0x138] sm:$0xff] %v242
        %v244 = vld [vmem:[%s162 + $0x140] sm:$0xff]
        %245 = vst [vmem:[%s163 + $0x140] sm:$0xff] %v244
        %v246 = vld [vmem:[%s162 + $0x148] sm:$0xff]
        %247 = vst [vmem:[%s163 + $0x148] sm:$0xff] %v246
        %v248 = vld [vmem:[%s162 + $0x150] sm:$0xff]
        %249 = vst [vmem:[%s163 + $0x150] sm:$0xff] %v248
        %v250 = vld [vmem:[%s162 + $0x158] sm:$0xff]
        %251 = vst [vmem:[%s163 + $0x158] sm:$0xff] %v250
        %v252 = vld [vmem:[%s162 + $0x160] sm:$0xff]
        %253 = vst [vmem:[%s163 + $0x160] sm:$0xff] %v252
        %v254 = vld [vmem:[%s162 + $0x168] sm:$0xff]
        %255 = vst [vmem:[%s163 + $0x168] sm:$0xff] %v254
        %v256 = vld [vmem:[%s162 + $0x170] sm:$0xff]
        %257 = vst [vmem:[%s163 + $0x170] sm:$0xff] %v256
        %v258 = vld [vmem:[%s162 + $0x178] sm:$0xff]
        %259 = vst [vmem:[%s163 + $0x178] sm:$0xff] %v258
        %v260 = vld [vmem:[%s162 + $0x180] sm:$0xff]
        %261 = vst [vmem:[%s163 + $0x180] sm:$0xff] %v260
        %v262 = vld [vmem:[%s162 + $0x188] sm:$0xff]
        %263 = vst [vmem:[%s163 + $0x188] sm:$0xff] %v262
        %v264 = vld [vmem:[%s162 + $0x190] sm:$0xff]
        %265 = vst [vmem:[%s163 + $0x190] sm:$0xff] %v264
        %v266 = vld [vmem:[%s162 + $0x198] sm:$0xff]
        %267 = vst [vmem:[%s163 + $0x198] sm:$0xff] %v266
        %v268 = vld [vmem:[%s162 + $0x1a0] sm:$0xff]
        %269 = vst [vmem:[%s163 + $0x1a0] sm:$0xff] %v268
        %v270 = vld [vmem:[%s162 + $0x1a8] sm:$0xff]
        %271 = vst [vmem:[%s163 + $0x1a8] sm:$0xff] %v270
        %v272 = vld [vmem:[%s162 + $0x1b0] sm:$0xff]
        %273 = vst [vmem:[%s163 + $0x1b0] sm:$0xff] %v272
        %v274 = vld [vmem:[%s162 + $0x1b8] sm:$0xff]
        %275 = vst [vmem:[%s163 + $0x1b8] sm:$0xff] %v274
        %v276 = vld [vmem:[%s162 + $0x1c0] sm:$0xff]
        %277 = vst [vmem:[%s163 + $0x1c0] sm:$0xff] %v276
        %v278 = vld [vmem:[%s162 + $0x1c8] sm:$0xff]
        %279 = vst [vmem:[%s163 + $0x1c8] sm:$0xff] %v278
        %v280 = vld [vmem:[%s162 + $0x1d0] sm:$0xff]
        %281 = vst [vmem:[%s163 + $0x1d0] sm:$0xff] %v280
        %v282 = vld [vmem:[%s162 + $0x1d8] sm:$0xff]
        %283 = vst [vmem:[%s163 + $0x1d8] sm:$0xff] %v282
        %v284 = vld [vmem:[%s162 + $0x1e0] sm:$0xff]
        %285 = vst [vmem:[%s163 + $0x1e0] sm:$0xff] %v284
        %v286 = vld [vmem:[%s162 + $0x1e8] sm:$0xff]
        %287 = vst [vmem:[%s163 + $0x1e8] sm:$0xff] %v286
        %v288 = vld [vmem:[%s162 + $0x1f0] sm:$0xff]
        %289 = vst [vmem:[%s163 + $0x1f0] sm:$0xff] %v288
        %v290 = vld [vmem:[%s162 + $0x1f8] sm:$0xff]
        %291 = vst [vmem:[%s163 + $0x1f8] sm:$0xff] %v290
      $region61: #{encoder_feed_forward.1} parent=55 // loop_footer
        %s161 = sadd.s32 1, %s157
      $region62: #{encoder_feed_forward.1} parent=55 // loop_footer_branch
        %156 = sbr.rel target = $region58
      $region63: #{encoder_feed_forward.1} parent=55 // loop_exit
        _
    $region56: #{encoder_feed_forward.1} parent=40 // pred_fallthru
      _
    %p292 = pneg %p152
    // Predicated region
    $region64: #{encoder_feed_forward.1} parent=40 // pred_check
      _
    $region65: #{encoder_feed_forward.1} parent=40 // pred_check_branch
      %294 = sbr.rel (%p152) target = $region67
    $region66: #{encoder_feed_forward.1} parent=40 // pred_region
      %s295 = sand.u32 512, 7
    $region67: #{encoder_feed_forward.1} parent=40 // pred_fallthru
      _
  $region41: #{encoder_feed_forward.1} parent=0 // pred_fallthru
    _
  // Predicated region
  $region42: #{encoder_feed_forward.1} parent=0 // pred_check
    %p136 = pneg %p132
  $region43: #{encoder_feed_forward.1} parent=0 // pred_check_branch
    %138 = sbr.rel (%p136) target = $region45
  $region44: #{encoder_feed_forward.1} parent=0 // pred_region
    %s139 = sshll.u32 1, 512
    %s140 = ssub.s32 %s139, 1
    loop: start=0, step=1, limit=1
    $region46: #{encoder_feed_forward.1} parent=44 // loop_pre_header
      _
    $region47: #{encoder_feed_forward.1} parent=44 // loop_header
      %s142 = sphi 0, %s146
      %p143 = scmp.ge.s32.totalorder %s142, 1
      %s147 = sphi %s0, %s0
      %s148 = sphi [#allocation2], [#allocation2]
    $region48: #{encoder_feed_forward.1} parent=44 // loop_header_branch
      %145 = sbr.rel (%p143) target = $region52
    $region49: #{encoder_feed_forward.1} parent=44 // loop_body
      %v149 = vld [vmem:[%s147] sm:%s140]
      %150 = vst [vmem:[%s148] sm:%s140] %v149
    $region50: #{encoder_feed_forward.1} parent=44 // loop_footer
      %s146 = sadd.s32 1, %s142
    $region51: #{encoder_feed_forward.1} parent=44 // loop_footer_branch
      %141 = sbr.rel target = $region47
    $region52: #{encoder_feed_forward.1} parent=44 // loop_exit
      _
  $region45: #{encoder_feed_forward.1} parent=0 // pred_fallthru
    _
  // Predicated region
  $region68: #{encoder_feed_forward.1} parent=0 // pred_check
    _
  $region69: #{encoder_feed_forward.1} parent=0 // pred_check_branch
    %298 = sbr.rel (0) target = $region71
  $region70: #{encoder_feed_forward.1} parent=0 // pred_region
    %299 = vsyncadd [#allocation3], 8192
  $region71: #{encoder_feed_forward.1} parent=0 // pred_fallthru
    _
  %s300 = smul.u32 4, 32
  %s301 = smul.u32 %s300, 4
  %s302 = sshll.u32 %s301, 4
  %303 = dma.done [#allocation3], %s302
  %s304 = scalar_lea.vmem %s0, 512
  %s305 = scalar_lea.vmem [#allocation2], 512
  %s306 = scalar_lea.sflag [#allocation3], 1
  %p308 = scmp.lt.u32.totalorder 512, 8
  %p309 = pneg %p308
  // Predicated region
  $region72: #{encoder_feed_forward.1} parent=0 // pred_check
    _
  $region73: #{encoder_feed_forward.1} parent=0 // pred_check_branch
    %311 = sbr.rel (%p308) target = $region75
  $region74: #{encoder_feed_forward.1} parent=0 // pred_region
    %s327 = sand.u32 512, 7
    %p328 = scmp.eq.s32.totalorder %s327, 0
    // Predicated region
    $region87: #{encoder_feed_forward.1} parent=74 // pred_check
      %p329 = pneg %p328
    $region88: #{encoder_feed_forward.1} parent=74 // pred_check_branch
      %331 = sbr.rel (%p329) target = $region90
    $region89: #{encoder_feed_forward.1} parent=74 // pred_region
      loop: start=0, step=1, limit=1
      $region91: #{encoder_feed_forward.1} parent=89 // loop_pre_header
        _
      $region92: #{encoder_feed_forward.1} parent=89 // loop_header
        %s333 = sphi 0, %s337
        %p334 = scmp.ge.s32.totalorder %s333, 1
        %s338 = sphi %s304, %s304
        %s339 = sphi %s305, %s305
      $region93: #{encoder_feed_forward.1} parent=89 // loop_header_branch
        %336 = sbr.rel (%p334) target = $region97
      $region94: #{encoder_feed_forward.1} parent=89 // loop_body
        %v340 = vld [vmem:[%s338] sm:$0xff]
        %341 = vst [vmem:[%s339] sm:$0xff] %v340
        %v342 = vld [vmem:[%s338 + $0x8] sm:$0xff]
        %343 = vst [vmem:[%s339 + $0x8] sm:$0xff] %v342
        %v344 = vld [vmem:[%s338 + $0x10] sm:$0xff]
        %345 = vst [vmem:[%s339 + $0x10] sm:$0xff] %v344
        %v346 = vld [vmem:[%s338 + $0x18] sm:$0xff]
        %347 = vst [vmem:[%s339 + $0x18] sm:$0xff] %v346
        %v348 = vld [vmem:[%s338 + $0x20] sm:$0xff]
        %349 = vst [vmem:[%s339 + $0x20] sm:$0xff] %v348
        %v350 = vld [vmem:[%s338 + $0x28] sm:$0xff]
        %351 = vst [vmem:[%s339 + $0x28] sm:$0xff] %v350
        %v352 = vld [vmem:[%s338 + $0x30] sm:$0xff]
        %353 = vst [vmem:[%s339 + $0x30] sm:$0xff] %v352
        %v354 = vld [vmem:[%s338 + $0x38] sm:$0xff]
        %355 = vst [vmem:[%s339 + $0x38] sm:$0xff] %v354
        %v356 = vld [vmem:[%s338 + $0x40] sm:$0xff]
        %357 = vst [vmem:[%s339 + $0x40] sm:$0xff] %v356
        %v358 = vld [vmem:[%s338 + $0x48] sm:$0xff]
        %359 = vst [vmem:[%s339 + $0x48] sm:$0xff] %v358
        %v360 = vld [vmem:[%s338 + $0x50] sm:$0xff]
        %361 = vst [vmem:[%s339 + $0x50] sm:$0xff] %v360
        %v362 = vld [vmem:[%s338 + $0x58] sm:$0xff]
        %363 = vst [vmem:[%s339 + $0x58] sm:$0xff] %v362
        %v364 = vld [vmem:[%s338 + $0x60] sm:$0xff]
        %365 = vst [vmem:[%s339 + $0x60] sm:$0xff] %v364
        %v366 = vld [vmem:[%s338 + $0x68] sm:$0xff]
        %367 = vst [vmem:[%s339 + $0x68] sm:$0xff] %v366
        %v368 = vld [vmem:[%s338 + $0x70] sm:$0xff]
        %369 = vst [vmem:[%s339 + $0x70] sm:$0xff] %v368
        %v370 = vld [vmem:[%s338 + $0x78] sm:$0xff]
        %371 = vst [vmem:[%s339 + $0x78] sm:$0xff] %v370
        %v372 = vld [vmem:[%s338 + $0x80] sm:$0xff]
        %373 = vst [vmem:[%s339 + $0x80] sm:$0xff] %v372
        %v374 = vld [vmem:[%s338 + $0x88] sm:$0xff]
        %375 = vst [vmem:[%s339 + $0x88] sm:$0xff] %v374
        %v376 = vld [vmem:[%s338 + $0x90] sm:$0xff]
        %377 = vst [vmem:[%s339 + $0x90] sm:$0xff] %v376
        %v378 = vld [vmem:[%s338 + $0x98] sm:$0xff]
        %379 = vst [vmem:[%s339 + $0x98] sm:$0xff] %v378
        %v380 = vld [vmem:[%s338 + $0xa0] sm:$0xff]
        %381 = vst [vmem:[%s339 + $0xa0] sm:$0xff] %v380
        %v382 = vld [vmem:[%s338 + $0xa8] sm:$0xff]
        %383 = vst [vmem:[%s339 + $0xa8] sm:$0xff] %v382
        %v384 = vld [vmem:[%s338 + $0xb0] sm:$0xff]
        %385 = vst [vmem:[%s339 + $0xb0] sm:$0xff] %v384
        %v386 = vld [vmem:[%s338 + $0xb8] sm:$0xff]
        %387 = vst [vmem:[%s339 + $0xb8] sm:$0xff] %v386
        %v388 = vld [vmem:[%s338 + $0xc0] sm:$0xff]
        %389 = vst [vmem:[%s339 + $0xc0] sm:$0xff] %v388
        %v390 = vld [vmem:[%s338 + $0xc8] sm:$0xff]
        %391 = vst [vmem:[%s339 + $0xc8] sm:$0xff] %v390
        %v392 = vld [vmem:[%s338 + $0xd0] sm:$0xff]
        %393 = vst [vmem:[%s339 + $0xd0] sm:$0xff] %v392
        %v394 = vld [vmem:[%s338 + $0xd8] sm:$0xff]
        %395 = vst [vmem:[%s339 + $0xd8] sm:$0xff] %v394
        %v396 = vld [vmem:[%s338 + $0xe0] sm:$0xff]
        %397 = vst [vmem:[%s339 + $0xe0] sm:$0xff] %v396
        %v398 = vld [vmem:[%s338 + $0xe8] sm:$0xff]
        %399 = vst [vmem:[%s339 + $0xe8] sm:$0xff] %v398
        %v400 = vld [vmem:[%s338 + $0xf0] sm:$0xff]
        %401 = vst [vmem:[%s339 + $0xf0] sm:$0xff] %v400
        %v402 = vld [vmem:[%s338 + $0xf8] sm:$0xff]
        %403 = vst [vmem:[%s339 + $0xf8] sm:$0xff] %v402
        %v404 = vld [vmem:[%s338 + $0x100] sm:$0xff]
        %405 = vst [vmem:[%s339 + $0x100] sm:$0xff] %v404
        %v406 = vld [vmem:[%s338 + $0x108] sm:$0xff]
        %407 = vst [vmem:[%s339 + $0x108] sm:$0xff] %v406
        %v408 = vld [vmem:[%s338 + $0x110] sm:$0xff]
        %409 = vst [vmem:[%s339 + $0x110] sm:$0xff] %v408
        %v410 = vld [vmem:[%s338 + $0x118] sm:$0xff]
        %411 = vst [vmem:[%s339 + $0x118] sm:$0xff] %v410
        %v412 = vld [vmem:[%s338 + $0x120] sm:$0xff]
        %413 = vst [vmem:[%s339 + $0x120] sm:$0xff] %v412
        %v414 = vld [vmem:[%s338 + $0x128] sm:$0xff]
        %415 = vst [vmem:[%s339 + $0x128] sm:$0xff] %v414
        %v416 = vld [vmem:[%s338 + $0x130] sm:$0xff]
        %417 = vst [vmem:[%s339 + $0x130] sm:$0xff] %v416
        %v418 = vld [vmem:[%s338 + $0x138] sm:$0xff]
        %419 = vst [vmem:[%s339 + $0x138] sm:$0xff] %v418
        %v420 = vld [vmem:[%s338 + $0x140] sm:$0xff]
        %421 = vst [vmem:[%s339 + $0x140] sm:$0xff] %v420
        %v422 = vld [vmem:[%s338 + $0x148] sm:$0xff]
        %423 = vst [vmem:[%s339 + $0x148] sm:$0xff] %v422
        %v424 = vld [vmem:[%s338 + $0x150] sm:$0xff]
        %425 = vst [vmem:[%s339 + $0x150] sm:$0xff] %v424
        %v426 = vld [vmem:[%s338 + $0x158] sm:$0xff]
        %427 = vst [vmem:[%s339 + $0x158] sm:$0xff] %v426
        %v428 = vld [vmem:[%s338 + $0x160] sm:$0xff]
        %429 = vst [vmem:[%s339 + $0x160] sm:$0xff] %v428
        %v430 = vld [vmem:[%s338 + $0x168] sm:$0xff]
        %431 = vst [vmem:[%s339 + $0x168] sm:$0xff] %v430
        %v432 = vld [vmem:[%s338 + $0x170] sm:$0xff]
        %433 = vst [vmem:[%s339 + $0x170] sm:$0xff] %v432
        %v434 = vld [vmem:[%s338 + $0x178] sm:$0xff]
        %435 = vst [vmem:[%s339 + $0x178] sm:$0xff] %v434
        %v436 = vld [vmem:[%s338 + $0x180] sm:$0xff]
        %437 = vst [vmem:[%s339 + $0x180] sm:$0xff] %v436
        %v438 = vld [vmem:[%s338 + $0x188] sm:$0xff]
        %439 = vst [vmem:[%s339 + $0x188] sm:$0xff] %v438
        %v440 = vld [vmem:[%s338 + $0x190] sm:$0xff]
        %441 = vst [vmem:[%s339 + $0x190] sm:$0xff] %v440
        %v442 = vld [vmem:[%s338 + $0x198] sm:$0xff]
        %443 = vst [vmem:[%s339 + $0x198] sm:$0xff] %v442
        %v444 = vld [vmem:[%s338 + $0x1a0] sm:$0xff]
        %445 = vst [vmem:[%s339 + $0x1a0] sm:$0xff] %v444
        %v446 = vld [vmem:[%s338 + $0x1a8] sm:$0xff]
        %447 = vst [vmem:[%s339 + $0x1a8] sm:$0xff] %v446
        %v448 = vld [vmem:[%s338 + $0x1b0] sm:$0xff]
        %449 = vst [vmem:[%s339 + $0x1b0] sm:$0xff] %v448
        %v450 = vld [vmem:[%s338 + $0x1b8] sm:$0xff]
        %451 = vst [vmem:[%s339 + $0x1b8] sm:$0xff] %v450
        %v452 = vld [vmem:[%s338 + $0x1c0] sm:$0xff]
        %453 = vst [vmem:[%s339 + $0x1c0] sm:$0xff] %v452
        %v454 = vld [vmem:[%s338 + $0x1c8] sm:$0xff]
        %455 = vst [vmem:[%s339 + $0x1c8] sm:$0xff] %v454
        %v456 = vld [vmem:[%s338 + $0x1d0] sm:$0xff]
        %457 = vst [vmem:[%s339 + $0x1d0] sm:$0xff] %v456
        %v458 = vld [vmem:[%s338 + $0x1d8] sm:$0xff]
        %459 = vst [vmem:[%s339 + $0x1d8] sm:$0xff] %v458
        %v460 = vld [vmem:[%s338 + $0x1e0] sm:$0xff]
        %461 = vst [vmem:[%s339 + $0x1e0] sm:$0xff] %v460
        %v462 = vld [vmem:[%s338 + $0x1e8] sm:$0xff]
        %463 = vst [vmem:[%s339 + $0x1e8] sm:$0xff] %v462
        %v464 = vld [vmem:[%s338 + $0x1f0] sm:$0xff]
        %465 = vst [vmem:[%s339 + $0x1f0] sm:$0xff] %v464
        %v466 = vld [vmem:[%s338 + $0x1f8] sm:$0xff]
        %467 = vst [vmem:[%s339 + $0x1f8] sm:$0xff] %v466
      $region95: #{encoder_feed_forward.1} parent=89 // loop_footer
        %s337 = sadd.s32 1, %s333
      $region96: #{encoder_feed_forward.1} parent=89 // loop_footer_branch
        %332 = sbr.rel target = $region92
      $region97: #{encoder_feed_forward.1} parent=89 // loop_exit
        _
    $region90: #{encoder_feed_forward.1} parent=74 // pred_fallthru
      _
    %p468 = pneg %p328
    // Predicated region
    $region98: #{encoder_feed_forward.1} parent=74 // pred_check
      _
    $region99: #{encoder_feed_forward.1} parent=74 // pred_check_branch
      %470 = sbr.rel (%p328) target = $region101
    $region100: #{encoder_feed_forward.1} parent=74 // pred_region
      %s471 = sand.u32 512, 7
    $region101: #{encoder_feed_forward.1} parent=74 // pred_fallthru
      _
  $region75: #{encoder_feed_forward.1} parent=0 // pred_fallthru
    _
  // Predicated region
  $region76: #{encoder_feed_forward.1} parent=0 // pred_check
    %p312 = pneg %p308
  $region77: #{encoder_feed_forward.1} parent=0 // pred_check_branch
    %314 = sbr.rel (%p312) target = $region79
  $region78: #{encoder_feed_forward.1} parent=0 // pred_region
    %s315 = sshll.u32 1, 512
    %s316 = ssub.s32 %s315, 1
    loop: start=0, step=1, limit=1
    $region80: #{encoder_feed_forward.1} parent=78 // loop_pre_header
      _
    $region81: #{encoder_feed_forward.1} parent=78 // loop_header
      %s318 = sphi 0, %s322
      %p319 = scmp.ge.s32.totalorder %s318, 1
      %s323 = sphi %s304, %s304
      %s324 = sphi %s305, %s305
    $region82: #{encoder_feed_forward.1} parent=78 // loop_header_branch
      %321 = sbr.rel (%p319) target = $region86
    $region83: #{encoder_feed_forward.1} parent=78 // loop_body
      %v325 = vld [vmem:[%s323] sm:%s316]
      %326 = vst [vmem:[%s324] sm:%s316] %v325
    $region84: #{encoder_feed_forward.1} parent=78 // loop_footer
      %s322 = sadd.s32 1, %s318
    $region85: #{encoder_feed_forward.1} parent=78 // loop_footer_branch
      %317 = sbr.rel target = $region81
    $region86: #{encoder_feed_forward.1} parent=78 // loop_exit
      _
  $region79: #{encoder_feed_forward.1} parent=0 // pred_fallthru
    _
  // Predicated region
  $region102: #{encoder_feed_forward.1} parent=0 // pred_check
    _
  $region103: #{encoder_feed_forward.1} parent=0 // pred_check_branch
    %474 = sbr.rel (0) target = $region105
  $region104: #{encoder_feed_forward.1} parent=0 // pred_region
    %475 = vsyncadd %s306, 8192
  $region105: #{encoder_feed_forward.1} parent=0 // pred_fallthru
    _
  %v476 = vunpack.c.l.bf16 %v34
  %v477 = vunpack.c.l.bf16 %v35
  %v478 = vunpack.c.l.bf16 %v36
  %v479 = vunpack.c.l.bf16 %v37
  %v480 = vunpack.c.l.bf16 %v38
  %v481 = vunpack.c.l.bf16 %v39
  %v482 = vunpack.c.l.bf16 %v40
  %v483 = vunpack.c.l.bf16 %v41
  %v484 = vunpack.c.l.bf16 %v42
  %v485 = vunpack.c.l.bf16 %v43
  %v486 = vunpack.c.l.bf16 %v44
  %v487 = vunpack.c.l.bf16 %v45
  %v488 = vunpack.c.l.bf16 %v46
  %v489 = vunpack.c.l.bf16 %v47
  %v490 = vunpack.c.l.bf16 %v48
  %v491 = vunpack.c.l.bf16 %v49
  %v492 = vunpack.c.l.bf16 %v50
  %v493 = vunpack.c.l.bf16 %v51
  %v494 = vunpack.c.l.bf16 %v52
  %v495 = vunpack.c.l.bf16 %v53
  %v496 = vunpack.c.l.bf16 %v54
  %v497 = vunpack.c.l.bf16 %v55
  %v498 = vunpack.c.l.bf16 %v56
  %v499 = vunpack.c.l.bf16 %v57
  %v500 = vunpack.c.l.bf16 %v58
  %v501 = vunpack.c.l.bf16 %v59
  %v502 = vunpack.c.l.bf16 %v60
  %v503 = vunpack.c.l.bf16 %v61
  %v504 = vunpack.c.l.bf16 %v62
  %v505 = vunpack.c.l.bf16 %v63
  %v506 = vunpack.c.l.bf16 %v64
  %v507 = vunpack.c.l.bf16 %v65
  %v508 = vld [vmem:[#allocation2] sm:$0xff]
  %v509 = vld [vmem:[#allocation2 + $0x8] sm:$0xff]
  %v510 = vld [vmem:[#allocation2 + $0x10] sm:$0xff]
  %v511 = vld [vmem:[#allocation2 + $0x18] sm:$0xff]
  %v512 = vld [vmem:[#allocation2 + $0x20] sm:$0xff]
  %v513 = vld [vmem:[#allocation2 + $0x28] sm:$0xff]
  %v514 = vld [vmem:[#allocation2 + $0x30] sm:$0xff]
  %v515 = vld [vmem:[#allocation2 + $0x38] sm:$0xff]
  %v516 = vld [vmem:[#allocation2 + $0x40] sm:$0xff]
  %v517 = vld [vmem:[#allocation2 + $0x48] sm:$0xff]
  %v518 = vld [vmem:[#allocation2 + $0x50] sm:$0xff]
  %v519 = vld [vmem:[#allocation2 + $0x58] sm:$0xff]
  %v520 = vld [vmem:[#allocation2 + $0x60] sm:$0xff]
  %v521 = vld [vmem:[#allocation2 + $0x68] sm:$0xff]
  %v522 = vld [vmem:[#allocation2 + $0x70] sm:$0xff]
  %v523 = vld [vmem:[#allocation2 + $0x78] sm:$0xff]
  %v524 = vld [vmem:[#allocation2 + $0x80] sm:$0xff]
  %v525 = vld [vmem:[#allocation2 + $0x88] sm:$0xff]
  %v526 = vld [vmem:[#allocation2 + $0x90] sm:$0xff]
  %v527 = vld [vmem:[#allocation2 + $0x98] sm:$0xff]
  %v528 = vld [vmem:[#allocation2 + $0xa0] sm:$0xff]
  %v529 = vld [vmem:[#allocation2 + $0xa8] sm:$0xff]
  %v530 = vld [vmem:[#allocation2 + $0xb0] sm:$0xff]
  %v531 = vld [vmem:[#allocation2 + $0xb8] sm:$0xff]
  %v532 = vld [vmem:[#allocation2 + $0xc0] sm:$0xff]
  %v533 = vld [vmem:[#allocation2 + $0xc8] sm:$0xff]
  %v534 = vld [vmem:[#allocation2 + $0xd0] sm:$0xff]
  %v535 = vld [vmem:[#allocation2 + $0xd8] sm:$0xff]
  %v536 = vld [vmem:[#allocation2 + $0xe0] sm:$0xff]
  %v537 = vld [vmem:[#allocation2 + $0xe8] sm:$0xff]
  %v538 = vld [vmem:[#allocation2 + $0xf0] sm:$0xff]
  %v539 = vld [vmem:[#allocation2 + $0xf8] sm:$0xff]
  %v540 = vld [vmem:[#allocation2 + $0x100] sm:$0xff]
  %v541 = vld [vmem:[#allocation2 + $0x108] sm:$0xff]
  %v542 = vld [vmem:[#allocation2 + $0x110] sm:$0xff]
  %v543 = vld [vmem:[#allocation2 + $0x118] sm:$0xff]
  %v544 = vld [vmem:[#allocation2 + $0x120] sm:$0xff]
  %v545 = vld [vmem:[#allocation2 + $0x128] sm:$0xff]
  %v546 = vld [vmem:[#allocation2 + $0x130] sm:$0xff]
  %v547 = vld [vmem:[#allocation2 + $0x138] sm:$0xff]
  %v548 = vld [vmem:[#allocation2 + $0x140] sm:$0xff]
  %v549 = vld [vmem:[#allocation2 + $0x148] sm:$0xff]
  %v550 = vld [vmem:[#allocation2 + $0x150] sm:$0xff]
  %v551 = vld [vmem:[#allocation2 + $0x158] sm:$0xff]
  %v552 = vld [vmem:[#allocation2 + $0x160] sm:$0xff]
  %v553 = vld [vmem:[#allocation2 + $0x168] sm:$0xff]
  %v554 = vld [vmem:[#allocation2 + $0x170] sm:$0xff]
  %v555 = vld [vmem:[#allocation2 + $0x178] sm:$0xff]
  %v556 = vld [vmem:[#allocation2 + $0x180] sm:$0xff]
  %v557 = vld [vmem:[#allocation2 + $0x188] sm:$0xff]
  %v558 = vld [vmem:[#allocation2 + $0x190] sm:$0xff]
  %v559 = vld [vmem:[#allocation2 + $0x198] sm:$0xff]
  %v560 = vld [vmem:[#allocation2 + $0x1a0] sm:$0xff]
  %v561 = vld [vmem:[#allocation2 + $0x1a8] sm:$0xff]
  %v562 = vld [vmem:[#allocation2 + $0x1b0] sm:$0xff]
  %v563 = vld [vmem:[#allocation2 + $0x1b8] sm:$0xff]
  %v564 = vld [vmem:[#allocation2 + $0x1c0] sm:$0xff]
  %v565 = vld [vmem:[#allocation2 + $0x1c8] sm:$0xff]
  %v566 = vld [vmem:[#allocation2 + $0x1d0] sm:$0xff]
  %v567 = vld [vmem:[#allocation2 + $0x1d8] sm:$0xff]
  %v568 = vld [vmem:[#allocation2 + $0x1e0] sm:$0xff]
  %v569 = vld [vmem:[#allocation2 + $0x1e8] sm:$0xff]
  %v570 = vld [vmem:[#allocation2 + $0x1f0] sm:$0xff]
  %v571 = vld [vmem:[#allocation2 + $0x1f8] sm:$0xff]
  %v636 = vunpack.c.l.b16 %v508
  %v637 = vunpack.c.h.b16 %v508
  %v638 = vunpack.c.l.b16 %v509
  %v639 = vunpack.c.h.b16 %v509
  %v640 = vunpack.c.l.b16 %v510
  %v641 = vunpack.c.h.b16 %v510
  %v642 = vunpack.c.l.b16 %v511
  %v643 = vunpack.c.h.b16 %v511
  %v644 = vunpack.c.l.b16 %v512
  %v645 = vunpack.c.h.b16 %v512
  %v646 = vunpack.c.l.b16 %v513
  %v647 = vunpack.c.h.b16 %v513
  %v648 = vunpack.c.l.b16 %v514
  %v649 = vunpack.c.h.b16 %v514
  %v650 = vunpack.c.l.b16 %v515
  %v651 = vunpack.c.h.b16 %v515
  %v652 = vunpack.c.l.b16 %v516
  %v653 = vunpack.c.h.b16 %v516
  %v654 = vunpack.c.l.b16 %v517
  %v655 = vunpack.c.h.b16 %v517
  %v656 = vunpack.c.l.b16 %v518
  %v657 = vunpack.c.h.b16 %v518
  %v658 = vunpack.c.l.b16 %v519
  %v659 = vunpack.c.h.b16 %v519
  %v660 = vunpack.c.l.b16 %v520
  %v661 = vunpack.c.h.b16 %v520
  %v662 = vunpack.c.l.b16 %v521
  %v663 = vunpack.c.h.b16 %v521
  %v664 = vunpack.c.l.b16 %v522
  %v665 = vunpack.c.h.b16 %v522
  %v666 = vunpack.c.l.b16 %v523
  %v667 = vunpack.c.h.b16 %v523
  %v668 = vunpack.c.l.b16 %v524
  %v669 = vunpack.c.h.b16 %v524
  %v670 = vunpack.c.l.b16 %v525
  %v671 = vunpack.c.h.b16 %v525
  %v672 = vunpack.c.l.b16 %v526
  %v673 = vunpack.c.h.b16 %v526
  %v674 = vunpack.c.l.b16 %v527
  %v675 = vunpack.c.h.b16 %v527
  %v676 = vunpack.c.l.b16 %v528
  %v677 = vunpack.c.h.b16 %v528
  %v678 = vunpack.c.l.b16 %v529
  %v679 = vunpack.c.h.b16 %v529
  %v680 = vunpack.c.l.b16 %v530
  %v681 = vunpack.c.h.b16 %v530
  %v682 = vunpack.c.l.b16 %v531
  %v683 = vunpack.c.h.b16 %v531
  %v684 = vunpack.c.l.b16 %v532
  %v685 = vunpack.c.h.b16 %v532
  %v686 = vunpack.c.l.b16 %v533
  %v687 = vunpack.c.h.b16 %v533
  %v688 = vunpack.c.l.b16 %v534
  %v689 = vunpack.c.h.b16 %v534
  %v690 = vunpack.c.l.b16 %v535
  %v691 = vunpack.c.h.b16 %v535
  %v692 = vunpack.c.l.b16 %v536
  %v693 = vunpack.c.h.b16 %v536
  %v694 = vunpack.c.l.b16 %v537
  %v695 = vunpack.c.h.b16 %v537
  %v696 = vunpack.c.l.b16 %v538
  %v697 = vunpack.c.h.b16 %v538
  %v698 = vunpack.c.l.b16 %v539
  %v699 = vunpack.c.h.b16 %v539
  %v700 = vunpack.c.l.b16 %v540
  %v701 = vunpack.c.h.b16 %v540
  %v702 = vunpack.c.l.b16 %v541
  %v703 = vunpack.c.h.b16 %v541
  %v704 = vunpack.c.l.b16 %v542
  %v705 = vunpack.c.h.b16 %v542
  %v706 = vunpack.c.l.b16 %v543
  %v707 = vunpack.c.h.b16 %v543
  %v708 = vunpack.c.l.b16 %v544
  %v709 = vunpack.c.h.b16 %v544
  %v710 = vunpack.c.l.b16 %v545
  %v711 = vunpack.c.h.b16 %v545
  %v712 = vunpack.c.l.b16 %v546
  %v713 = vunpack.c.h.b16 %v546
  %v714 = vunpack.c.l.b16 %v547
  %v715 = vunpack.c.h.b16 %v547
  %v716 = vunpack.c.l.b16 %v548
  %v717 = vunpack.c.h.b16 %v548
  %v718 = vunpack.c.l.b16 %v549
  %v719 = vunpack.c.h.b16 %v549
  %v720 = vunpack.c.l.b16 %v550
  %v721 = vunpack.c.h.b16 %v550
  %v722 = vunpack.c.l.b16 %v551
  %v723 = vunpack.c.h.b16 %v551
  %v724 = vunpack.c.l.b16 %v552
  %v725 = vunpack.c.h.b16 %v552
  %v726 = vunpack.c.l.b16 %v553
  %v727 = vunpack.c.h.b16 %v553
  %v728 = vunpack.c.l.b16 %v554
  %v729 = vunpack.c.h.b16 %v554
  %v730 = vunpack.c.l.b16 %v555
  %v731 = vunpack.c.h.b16 %v555
  %v732 = vunpack.c.l.b16 %v556
  %v733 = vunpack.c.h.b16 %v556
  %v734 = vunpack.c.l.b16 %v557
  %v735 = vunpack.c.h.b16 %v557
  %v736 = vunpack.c.l.b16 %v558
  %v737 = vunpack.c.h.b16 %v558
  %v738 = vunpack.c.l.b16 %v559
  %v739 = vunpack.c.h.b16 %v559
  %v740 = vunpack.c.l.b16 %v560
  %v741 = vunpack.c.h.b16 %v560
  %v742 = vunpack.c.l.b16 %v561
  %v743 = vunpack.c.h.b16 %v561
  %v744 = vunpack.c.l.b16 %v562
  %v745 = vunpack.c.h.b16 %v562
  %v746 = vunpack.c.l.b16 %v563
  %v747 = vunpack.c.h.b16 %v563
  %v748 = vunpack.c.l.b16 %v564
  %v749 = vunpack.c.h.b16 %v564
  %v750 = vunpack.c.l.b16 %v565
  %v751 = vunpack.c.h.b16 %v565
  %v752 = vunpack.c.l.b16 %v566
  %v753 = vunpack.c.h.b16 %v566
  %v754 = vunpack.c.l.b16 %v567
  %v755 = vunpack.c.h.b16 %v567
  %v756 = vunpack.c.l.b16 %v568
  %v757 = vunpack.c.h.b16 %v568
  %v758 = vunpack.c.l.b16 %v569
  %v759 = vunpack.c.h.b16 %v569
  %v760 = vunpack.c.l.b16 %v570
  %v761 = vunpack.c.h.b16 %v570
  %v762 = vunpack.c.l.b16 %v571
  %v763 = vunpack.c.h.b16 %v571
  %v764 = vpack.c.b16 %v640, %v636
  %v765 = vpack.c.b16 %v641, %v637
  %v766 = vpack.c.b16 %v642, %v638
  %v767 = vpack.c.b16 %v643, %v639
  %v768 = vpack.c.b16 %v648, %v644
  %v769 = vpack.c.b16 %v649, %v645
  %v770 = vpack.c.b16 %v650, %v646
  %v771 = vpack.c.b16 %v651, %v647
  %v772 = vpack.c.b16 %v656, %v652
  %v773 = vpack.c.b16 %v657, %v653
  %v774 = vpack.c.b16 %v658, %v654
  %v775 = vpack.c.b16 %v659, %v655
  %v776 = vpack.c.b16 %v664, %v660
  %v777 = vpack.c.b16 %v665, %v661
  %v778 = vpack.c.b16 %v666, %v662
  %v779 = vpack.c.b16 %v667, %v663
  %v780 = vpack.c.b16 %v672, %v668
  %v781 = vpack.c.b16 %v673, %v669
  %v782 = vpack.c.b16 %v674, %v670
  %v783 = vpack.c.b16 %v675, %v671
  %v784 = vpack.c.b16 %v680, %v676
  %v785 = vpack.c.b16 %v681, %v677
  %v786 = vpack.c.b16 %v682, %v678
  %v787 = vpack.c.b16 %v683, %v679
  %v788 = vpack.c.b16 %v688, %v684
  %v789 = vpack.c.b16 %v689, %v685
  %v790 = vpack.c.b16 %v690, %v686
  %v791 = vpack.c.b16 %v691, %v687
  %v792 = vpack.c.b16 %v696, %v692
  %v793 = vpack.c.b16 %v697, %v693
  %v794 = vpack.c.b16 %v698, %v694
  %v795 = vpack.c.b16 %v699, %v695
  %v796 = vpack.c.b16 %v704, %v700
  %v797 = vpack.c.b16 %v705, %v701
  %v798 = vpack.c.b16 %v706, %v702
  %v799 = vpack.c.b16 %v707, %v703
  %v800 = vpack.c.b16 %v712, %v708
  %v801 = vpack.c.b16 %v713, %v709
  %v802 = vpack.c.b16 %v714, %v710
  %v803 = vpack.c.b16 %v715, %v711
  %v804 = vpack.c.b16 %v720, %v716
  %v805 = vpack.c.b16 %v721, %v717
  %v806 = vpack.c.b16 %v722, %v718
  %v807 = vpack.c.b16 %v723, %v719
  %v808 = vpack.c.b16 %v728, %v724
  %v809 = vpack.c.b16 %v729, %v725
  %v810 = vpack.c.b16 %v730, %v726
  %v811 = vpack.c.b16 %v731, %v727
  %v812 = vpack.c.b16 %v736, %v732
  %v813 = vpack.c.b16 %v737, %v733
  %v814 = vpack.c.b16 %v738, %v734
  %v815 = vpack.c.b16 %v739, %v735
  %v816 = vpack.c.b16 %v744, %v740
  %v817 = vpack.c.b16 %v745, %v741
  %v818 = vpack.c.b16 %v746, %v742
  %v819 = vpack.c.b16 %v747, %v743
  %v820 = vpack.c.b16 %v752, %v748
  %v821 = vpack.c.b16 %v753, %v749
  %v822 = vpack.c.b16 %v754, %v750
  %v823 = vpack.c.b16 %v755, %v751
  %v824 = vpack.c.b16 %v760, %v756
  %v825 = vpack.c.b16 %v761, %v757
  %v826 = vpack.c.b16 %v762, %v758
  %v827 = vpack.c.b16 %v763, %v759
  %v956 = vunpack.c.l.b16 %v34
  %v957 = vunpack.c.l.b16 %v35
  %v958 = vunpack.c.l.b16 %v36
  %v959 = vunpack.c.l.b16 %v37
  %v960 = vunpack.c.l.b16 %v38
  %v961 = vunpack.c.l.b16 %v39
  %v962 = vunpack.c.l.b16 %v40
  %v963 = vunpack.c.l.b16 %v41
  %v964 = vunpack.c.l.b16 %v42
  %v965 = vunpack.c.l.b16 %v43
  %v966 = vunpack.c.l.b16 %v44
  %v967 = vunpack.c.l.b16 %v45
  %v968 = vunpack.c.l.b16 %v46
  %v969 = vunpack.c.l.b16 %v47
  %v970 = vunpack.c.l.b16 %v48
  %v971 = vunpack.c.l.b16 %v49
  %v972 = vunpack.c.l.b16 %v50
  %v973 = vunpack.c.l.b16 %v51
  %v974 = vunpack.c.l.b16 %v52
  %v975 = vunpack.c.l.b16 %v53
  %v976 = vunpack.c.l.b16 %v54
  %v977 = vunpack.c.l.b16 %v55
  %v978 = vunpack.c.l.b16 %v56
  %v979 = vunpack.c.l.b16 %v57
  %v980 = vunpack.c.l.b16 %v58
  %v981 = vunpack.c.l.b16 %v59
  %v982 = vunpack.c.l.b16 %v60
  %v983 = vunpack.c.l.b16 %v61
  %v984 = vunpack.c.l.b16 %v62
  %v985 = vunpack.c.l.b16 %v63
  %v986 = vunpack.c.l.b16 %v64
  %v987 = vunpack.c.l.b16 %v65
  %v988 = vunpack.c.l.b16 %v66
  %v989 = vunpack.c.l.b16 %v67
  %v990 = vunpack.c.l.b16 %v68
  %v991 = vunpack.c.l.b16 %v69
  %v992 = vunpack.c.l.b16 %v70
  %v993 = vunpack.c.l.b16 %v71
  %v994 = vunpack.c.l.b16 %v72
  %v995 = vunpack.c.l.b16 %v73
  %v996 = vunpack.c.l.b16 %v74
  %v997 = vunpack.c.l.b16 %v75
  %v998 = vunpack.c.l.b16 %v76
  %v999 = vunpack.c.l.b16 %v77
  %v1000 = vunpack.c.l.b16 %v78
  %v1001 = vunpack.c.l.b16 %v79
  %v1002 = vunpack.c.l.b16 %v80
  %v1003 = vunpack.c.l.b16 %v81
  %v1004 = vunpack.c.l.b16 %v82
  %v1005 = vunpack.c.l.b16 %v83
  %v1006 = vunpack.c.l.b16 %v84
  %v1007 = vunpack.c.l.b16 %v85
  %v1008 = vunpack.c.l.b16 %v86
  %v1009 = vunpack.c.l.b16 %v87
  %v1010 = vunpack.c.l.b16 %v88
  %v1011 = vunpack.c.l.b16 %v89
  %v1012 = vunpack.c.l.b16 %v90
  %v1013 = vunpack.c.l.b16 %v91
  %v1014 = vunpack.c.l.b16 %v92
  %v1015 = vunpack.c.l.b16 %v93
  %v1016 = vunpack.c.l.b16 %v94
  %v1017 = vunpack.c.l.b16 %v95
  %v1018 = vunpack.c.l.b16 %v96
  %v1019 = vunpack.c.l.b16 %v97
  %v1020 = vpack.c.b16 %v957, %v956
  %v1021 = vpack.c.b16 %v959, %v958
  %v1022 = vpack.c.b16 %v961, %v960
  %v1023 = vpack.c.b16 %v963, %v962
  %v1024 = vpack.c.b16 %v965, %v964
  %v1025 = vpack.c.b16 %v967, %v966
  %v1026 = vpack.c.b16 %v969, %v968
  %v1027 = vpack.c.b16 %v971, %v970
  %v1028 = vpack.c.b16 %v973, %v972
  %v1029 = vpack.c.b16 %v975, %v974
  %v1030 = vpack.c.b16 %v977, %v976
  %v1031 = vpack.c.b16 %v979, %v978
  %v1032 = vpack.c.b16 %v981, %v980
  %v1033 = vpack.c.b16 %v983, %v982
  %v1034 = vpack.c.b16 %v985, %v984
  %v1035 = vpack.c.b16 %v987, %v986
  %v1036 = vpack.c.b16 %v989, %v988
  %v1037 = vpack.c.b16 %v991, %v990
  %v1038 = vpack.c.b16 %v993, %v992
  %v1039 = vpack.c.b16 %v995, %v994
  %v1040 = vpack.c.b16 %v997, %v996
  %v1041 = vpack.c.b16 %v999, %v998
  %v1042 = vpack.c.b16 %v1001, %v1000
  %v1043 = vpack.c.b16 %v1003, %v1002
  %v1044 = vpack.c.b16 %v1005, %v1004
  %v1045 = vpack.c.b16 %v1007, %v1006
  %v1046 = vpack.c.b16 %v1009, %v1008
  %v1047 = vpack.c.b16 %v1011, %v1010
  %v1048 = vpack.c.b16 %v1013, %v1012
  %v1049 = vpack.c.b16 %v1015, %v1014
  %v1050 = vpack.c.b16 %v1017, %v1016
  %v1051 = vpack.c.b16 %v1019, %v1018
  %1084 = vmatprep.subr.bf16.mxu0 0
  %1085 = vmatpush1.bf16.msra.mxu0 %v1027
  %1086 = vmatprep.subr.bf16.mxu0 0
  %1087 = vmatpush1.bf16.msra.mxu0 %v1026
  %1088 = vmatprep.subr.bf16.mxu0 0
  %1089 = vmatpush1.bf16.msra.mxu0 %v1025
  %1090 = vmatprep.subr.bf16.mxu0 0
  %1091 = vmatpush1.bf16.msra.mxu0 %v1024
  %1092 = vmatprep.subr.bf16.mxu0 0
  %1093 = vmatpush1.bf16.msra.mxu0 %v1023
  %1094 = vmatprep.subr.bf16.mxu0 0
  %1095 = vmatpush1.bf16.msra.mxu0 %v1022
  %1096 = vmatprep.subr.bf16.mxu0 0
  %1097 = vmatpush1.bf16.msra.mxu0 %v1021
  %1098 = vmatprep.subr.bf16.mxu0 0
  %1099 = vmatpush1.bf16.msra.mxu0 %v1020
  %1100 = vmatprep.subr.bf16.mxu0 0
  %1101 = vmatpush2.bf16.msra.mxu0 %v1035
  %1102 = vmatprep.subr.bf16.mxu0 0
  %1103 = vmatpush2.bf16.msra.mxu0 %v1034
  %1104 = vmatprep.subr.bf16.mxu0 0
  %1105 = vmatpush2.bf16.msra.mxu0 %v1033
  %1106 = vmatprep.subr.bf16.mxu0 0
  %1107 = vmatpush2.bf16.msra.mxu0 %v1032
  %1108 = vmatprep.subr.bf16.mxu0 0
  %1109 = vmatpush2.bf16.msra.mxu0 %v1031
  %1110 = vmatprep.subr.bf16.mxu0 0
  %1111 = vmatpush2.bf16.msra.mxu0 %v1030
  %1112 = vmatprep.subr.bf16.mxu0 0
  %1113 = vmatpush2.bf16.msra.mxu0 %v1029
  %1114 = vmatprep.subr.bf16.mxu0 0
  %1115 = vmatpush2.bf16.msra.mxu0 %v1028
  %1116 = vmatprep.mubr.bf16.mxu0 %v765
  %1117 = vmatmul.mubr.bf16.gmra.mxu0 %v764
  %v1118 = vpop.f32.mrf.mxu0
  %v1119 = vadd.f32 0.0, %v1118
  %v1120 = vpop.f32.mrf.mxu0
  %v1121 = vpop.f32.mrf.mxu0
  %v1122 = vadd.f32 0.0, %v1121
  %v1123 = vpop.f32.mrf.mxu0
  %1124 = vmatprep.mubr.bf16.mxu0 %v769
  %1125 = vmatmul.mubr.bf16.gmra.mxu0 %v768
  %v1126 = vpop.f32.mrf.mxu0
  %v1127 = vadd.f32 0.0, %v1126
  %v1128 = vpop.f32.mrf.mxu0
  %v1129 = vpop.f32.mrf.mxu0
  %v1130 = vadd.f32 0.0, %v1129
  %v1131 = vpop.f32.mrf.mxu0
  %1132 = vmatprep.mubr.bf16.mxu0 %v773
  %1133 = vmatmul.mubr.bf16.gmra.mxu0 %v772
  %v1134 = vpop.f32.mrf.mxu0
  %v1135 = vadd.f32 0.0, %v1134
  %v1136 = vpop.f32.mrf.mxu0
  %v1137 = vpop.f32.mrf.mxu0
  %v1138 = vadd.f32 0.0, %v1137
  %v1139 = vpop.f32.mrf.mxu0
  %1140 = vmatprep.mubr.bf16.mxu0 %v777
  %1141 = vmatmul.mubr.bf16.gmra.mxu0 %v776
  %v1142 = vpop.f32.mrf.mxu0
  %v1143 = vadd.f32 0.0, %v1142
  %v1144 = vpop.f32.mrf.mxu0
  %v1145 = vpop.f32.mrf.mxu0
  %v1146 = vadd.f32 0.0, %v1145
  %v1147 = vpop.f32.mrf.mxu0
  %1148 = vmatprep.mubr.bf16.mxu0 %v781
  %1149 = vmatmul.mubr.bf16.gmra.mxu0 %v780
  %v1150 = vpop.f32.mrf.mxu0
  %v1151 = vadd.f32 0.0, %v1150
  %v1152 = vpop.f32.mrf.mxu0
  %v1153 = vpop.f32.mrf.mxu0
  %v1154 = vadd.f32 0.0, %v1153
  %v1155 = vpop.f32.mrf.mxu0
  %1156 = vmatprep.mubr.bf16.mxu0 %v785
  %1157 = vmatmul.mubr.bf16.gmra.mxu0 %v784
  %v1158 = vpop.f32.mrf.mxu0
  %v1159 = vadd.f32 0.0, %v1158
  %v1160 = vpop.f32.mrf.mxu0
  %v1161 = vpop.f32.mrf.mxu0
  %v1162 = vadd.f32 0.0, %v1161
  %v1163 = vpop.f32.mrf.mxu0
  %1164 = vmatprep.mubr.bf16.mxu0 %v789
  %1165 = vmatmul.mubr.bf16.gmra.mxu0 %v788
  %v1166 = vpop.f32.mrf.mxu0
  %v1167 = vadd.f32 0.0, %v1166
  %v1168 = vpop.f32.mrf.mxu0
  %v1169 = vpop.f32.mrf.mxu0
  %v1170 = vadd.f32 0.0, %v1169
  %v1171 = vpop.f32.mrf.mxu0
  %1172 = vmatprep.mubr.bf16.mxu0 %v793
  %1173 = vmatmul.mubr.bf16.gmra.mxu0 %v792
  %v1174 = vpop.f32.mrf.mxu0
  %v1175 = vadd.f32 0.0, %v1174
  %v1176 = vpop.f32.mrf.mxu0
  %v1177 = vpop.f32.mrf.mxu0
  %v1178 = vadd.f32 0.0, %v1177
  %v1179 = vpop.f32.mrf.mxu0
  %1180 = vmatprep.mubr.bf16.mxu0 %v797
  %1181 = vmatmul.mubr.bf16.gmra.mxu0 %v796
  %v1182 = vpop.f32.mrf.mxu0
  %v1183 = vadd.f32 0.0, %v1182
  %v1184 = vpop.f32.mrf.mxu0
  %v1185 = vpop.f32.mrf.mxu0
  %v1186 = vadd.f32 0.0, %v1185
  %v1187 = vpop.f32.mrf.mxu0
  %1188 = vmatprep.mubr.bf16.mxu0 %v801
  %1189 = vmatmul.mubr.bf16.gmra.mxu0 %v800
  %v1190 = vpop.f32.mrf.mxu0
  %v1191 = vadd.f32 0.0, %v1190
  %v1192 = vpop.f32.mrf.mxu0
  %v1193 = vpop.f32.mrf.mxu0
  %v1194 = vadd.f32 0.0, %v1193
  %v1195 = vpop.f32.mrf.mxu0
  %1196 = vmatprep.mubr.bf16.mxu0 %v805
  %1197 = vmatmul.mubr.bf16.gmra.mxu0 %v804
  %v1198 = vpop.f32.mrf.mxu0
  %v1199 = vadd.f32 0.0, %v1198
  %v1200 = vpop.f32.mrf.mxu0
  %v1201 = vpop.f32.mrf.mxu0
  %v1202 = vadd.f32 0.0, %v1201
  %v1203 = vpop.f32.mrf.mxu0
  %1204 = vmatprep.mubr.bf16.mxu0 %v809
  %1205 = vmatmul.mubr.bf16.gmra.mxu0 %v808
  %v1206 = vpop.f32.mrf.mxu0
  %v1207 = vadd.f32 0.0, %v1206
  %v1208 = vpop.f32.mrf.mxu0
  %v1209 = vpop.f32.mrf.mxu0
  %v1210 = vadd.f32 0.0, %v1209
  %v1211 = vpop.f32.mrf.mxu0
  %1212 = vmatprep.mubr.bf16.mxu0 %v813
  %1213 = vmatmul.mubr.bf16.gmra.mxu0 %v812
  %v1214 = vpop.f32.mrf.mxu0
  %v1215 = vadd.f32 0.0, %v1214
  %v1216 = vpop.f32.mrf.mxu0
  %v1217 = vpop.f32.mrf.mxu0
  %v1218 = vadd.f32 0.0, %v1217
  %v1219 = vpop.f32.mrf.mxu0
  %1220 = vmatprep.mubr.bf16.mxu0 %v817
  %1221 = vmatmul.mubr.bf16.gmra.mxu0 %v816
  %v1222 = vpop.f32.mrf.mxu0
  %v1223 = vadd.f32 0.0, %v1222
  %v1224 = vpop.f32.mrf.mxu0
  %v1225 = vpop.f32.mrf.mxu0
  %v1226 = vadd.f32 0.0, %v1225
  %v1227 = vpop.f32.mrf.mxu0
  %1228 = vmatprep.mubr.bf16.mxu0 %v821
  %1229 = vmatmul.mubr.bf16.gmra.mxu0 %v820
  %v1230 = vpop.f32.mrf.mxu0
  %v1231 = vadd.f32 0.0, %v1230
  %v1232 = vpop.f32.mrf.mxu0
  %v1233 = vpop.f32.mrf.mxu0
  %v1234 = vadd.f32 0.0, %v1233
  %v1235 = vpop.f32.mrf.mxu0
  %1236 = vmatprep.mubr.bf16.mxu0 %v825
  %1237 = vmatmul.mubr.bf16.gmra.mxu0 %v824
  %v1238 = vpop.f32.mrf.mxu0
  %v1239 = vadd.f32 0.0, %v1238
  %v1240 = vpop.f32.mrf.mxu0
  %v1241 = vpop.f32.mrf.mxu0
  %v1242 = vadd.f32 0.0, %v1241
  %v1243 = vpop.f32.mrf.mxu0
  %1244 = vdwg.mxu0
  %1245 = vmatprep.subr.bf16.mxu0 0
  %1246 = vmatpush1.bf16.msra.mxu0 %v1043
  %1247 = vmatprep.subr.bf16.mxu0 0
  %1248 = vmatpush1.bf16.msra.mxu0 %v1042
  %1249 = vmatprep.subr.bf16.mxu0 0
  %1250 = vmatpush1.bf16.msra.mxu0 %v1041
  %1251 = vmatprep.subr.bf16.mxu0 0
  %1252 = vmatpush1.bf16.msra.mxu0 %v1040
  %1253 = vmatprep.subr.bf16.mxu0 0
  %1254 = vmatpush1.bf16.msra.mxu0 %v1039
  %1255 = vmatprep.subr.bf16.mxu0 0
  %1256 = vmatpush1.bf16.msra.mxu0 %v1038
  %1257 = vmatprep.subr.bf16.mxu0 0
  %1258 = vmatpush1.bf16.msra.mxu0 %v1037
  %1259 = vmatprep.subr.bf16.mxu0 0
  %1260 = vmatpush1.bf16.msra.mxu0 %v1036
  %1261 = vmatprep.subr.bf16.mxu0 0
  %1262 = vmatpush2.bf16.msra.mxu0 %v1051
  %1263 = vmatprep.subr.bf16.mxu0 0
  %1264 = vmatpush2.bf16.msra.mxu0 %v1050
  %1265 = vmatprep.subr.bf16.mxu0 0
  %1266 = vmatpush2.bf16.msra.mxu0 %v1049
  %1267 = vmatprep.subr.bf16.mxu0 0
  %1268 = vmatpush2.bf16.msra.mxu0 %v1048
  %1269 = vmatprep.subr.bf16.mxu0 0
  %1270 = vmatpush2.bf16.msra.mxu0 %v1047
  %1271 = vmatprep.subr.bf16.mxu0 0
  %1272 = vmatpush2.bf16.msra.mxu0 %v1046
  %1273 = vmatprep.subr.bf16.mxu0 0
  %1274 = vmatpush2.bf16.msra.mxu0 %v1045
  %1275 = vmatprep.subr.bf16.mxu0 0
  %1276 = vmatpush2.bf16.msra.mxu0 %v1044
  %1277 = vmatprep.mubr.bf16.mxu0 %v767
  %1278 = vmatmul.mubr.bf16.gmra.mxu0 %v766
  %v1279 = vpop.f32.mrf.mxu0
  %v1280 = vadd.f32 %v1119, %v1279
  %v1281 = vpop.f32.mrf.mxu0
  %v1282 = vpop.f32.mrf.mxu0
  %v1283 = vadd.f32 %v1122, %v1282
  %v1284 = vpop.f32.mrf.mxu0
  %1285 = vmatprep.mubr.bf16.mxu0 %v771
  %1286 = vmatmul.mubr.bf16.gmra.mxu0 %v770
  %v1287 = vpop.f32.mrf.mxu0
  %v1288 = vadd.f32 %v1127, %v1287
  %v1289 = vpop.f32.mrf.mxu0
  %v1290 = vpop.f32.mrf.mxu0
  %v1291 = vadd.f32 %v1130, %v1290
  %v1292 = vpop.f32.mrf.mxu0
  %1293 = vmatprep.mubr.bf16.mxu0 %v775
  %1294 = vmatmul.mubr.bf16.gmra.mxu0 %v774
  %v1295 = vpop.f32.mrf.mxu0
  %v1296 = vadd.f32 %v1135, %v1295
  %v1297 = vpop.f32.mrf.mxu0
  %v1298 = vpop.f32.mrf.mxu0
  %v1299 = vadd.f32 %v1138, %v1298
  %v1300 = vpop.f32.mrf.mxu0
  %1301 = vmatprep.mubr.bf16.mxu0 %v779
  %1302 = vmatmul.mubr.bf16.gmra.mxu0 %v778
  %v1303 = vpop.f32.mrf.mxu0
  %v1304 = vadd.f32 %v1143, %v1303
  %v1305 = vpop.f32.mrf.mxu0
  %v1306 = vpop.f32.mrf.mxu0
  %v1307 = vadd.f32 %v1146, %v1306
  %v1308 = vpop.f32.mrf.mxu0
  %1309 = vmatprep.mubr.bf16.mxu0 %v783
  %1310 = vmatmul.mubr.bf16.gmra.mxu0 %v782
  %v1311 = vpop.f32.mrf.mxu0
  %v1312 = vadd.f32 %v1151, %v1311
  %v1313 = vpop.f32.mrf.mxu0
  %v1314 = vpop.f32.mrf.mxu0
  %v1315 = vadd.f32 %v1154, %v1314
  %v1316 = vpop.f32.mrf.mxu0
  %1317 = vmatprep.mubr.bf16.mxu0 %v787
  %1318 = vmatmul.mubr.bf16.gmra.mxu0 %v786
  %v1319 = vpop.f32.mrf.mxu0
  %v1320 = vadd.f32 %v1159, %v1319
  %v1321 = vpop.f32.mrf.mxu0
  %v1322 = vpop.f32.mrf.mxu0
  %v1323 = vadd.f32 %v1162, %v1322
  %v1324 = vpop.f32.mrf.mxu0
  %1325 = vmatprep.mubr.bf16.mxu0 %v791
  %1326 = vmatmul.mubr.bf16.gmra.mxu0 %v790
  %v1327 = vpop.f32.mrf.mxu0
  %v1328 = vadd.f32 %v1167, %v1327
  %v1329 = vpop.f32.mrf.mxu0
  %v1330 = vpop.f32.mrf.mxu0
  %v1331 = vadd.f32 %v1170, %v1330
  %v1332 = vpop.f32.mrf.mxu0
  %1333 = vmatprep.mubr.bf16.mxu0 %v795
  %1334 = vmatmul.mubr.bf16.gmra.mxu0 %v794
  %v1335 = vpop.f32.mrf.mxu0
  %v1336 = vadd.f32 %v1175, %v1335
  %v1337 = vpop.f32.mrf.mxu0
  %v1338 = vpop.f32.mrf.mxu0
  %v1339 = vadd.f32 %v1178, %v1338
  %v1340 = vpop.f32.mrf.mxu0
  %1341 = vmatprep.mubr.bf16.mxu0 %v799
  %1342 = vmatmul.mubr.bf16.gmra.mxu0 %v798
  %v1343 = vpop.f32.mrf.mxu0
  %v1344 = vadd.f32 %v1183, %v1343
  %v1345 = vpop.f32.mrf.mxu0
  %v1346 = vpop.f32.mrf.mxu0
  %v1347 = vadd.f32 %v1186, %v1346
  %v1348 = vpop.f32.mrf.mxu0
  %1349 = vmatprep.mubr.bf16.mxu0 %v803
  %1350 = vmatmul.mubr.bf16.gmra.mxu0 %v802
  %v1351 = vpop.f32.mrf.mxu0
  %v1352 = vadd.f32 %v1191, %v1351
  %v1353 = vpop.f32.mrf.mxu0
  %v1354 = vpop.f32.mrf.mxu0
  %v1355 = vadd.f32 %v1194, %v1354
  %v1356 = vpop.f32.mrf.mxu0
  %1357 = vmatprep.mubr.bf16.mxu0 %v807
  %1358 = vmatmul.mubr.bf16.gmra.mxu0 %v806
  %v1359 = vpop.f32.mrf.mxu0
  %v1360 = vadd.f32 %v1199, %v1359
  %v1361 = vpop.f32.mrf.mxu0
  %v1362 = vpop.f32.mrf.mxu0
  %v1363 = vadd.f32 %v1202, %v1362
  %v1364 = vpop.f32.mrf.mxu0
  %1365 = vmatprep.mubr.bf16.mxu0 %v811
  %1366 = vmatmul.mubr.bf16.gmra.mxu0 %v810
  %v1367 = vpop.f32.mrf.mxu0
  %v1368 = vadd.f32 %v1207, %v1367
  %v1369 = vpop.f32.mrf.mxu0
  %v1370 = vpop.f32.mrf.mxu0
  %v1371 = vadd.f32 %v1210, %v1370
  %v1372 = vpop.f32.mrf.mxu0
  %1373 = vmatprep.mubr.bf16.mxu0 %v815
  %1374 = vmatmul.mubr.bf16.gmra.mxu0 %v814
  %v1375 = vpop.f32.mrf.mxu0
  %v1376 = vadd.f32 %v1215, %v1375
  %v1377 = vpop.f32.mrf.mxu0
  %v1378 = vpop.f32.mrf.mxu0
  %v1379 = vadd.f32 %v1218, %v1378
  %v1380 = vpop.f32.mrf.mxu0
  %1381 = vmatprep.mubr.bf16.mxu0 %v819
  %1382 = vmatmul.mubr.bf16.gmra.mxu0 %v818
  %v1383 = vpop.f32.mrf.mxu0
  %v1384 = vadd.f32 %v1223, %v1383
  %v1385 = vpop.f32.mrf.mxu0
  %v1386 = vpop.f32.mrf.mxu0
  %v1387 = vadd.f32 %v1226, %v1386
  %v1388 = vpop.f32.mrf.mxu0
  %1389 = vmatprep.mubr.bf16.mxu0 %v823
  %1390 = vmatmul.mubr.bf16.gmra.mxu0 %v822
  %v1391 = vpop.f32.mrf.mxu0
  %v1392 = vadd.f32 %v1231, %v1391
  %v1393 = vpop.f32.mrf.mxu0
  %v1394 = vpop.f32.mrf.mxu0
  %v1395 = vadd.f32 %v1234, %v1394
  %v1396 = vpop.f32.mrf.mxu0
  %1397 = vmatprep.mubr.bf16.mxu0 %v827
  %1398 = vmatmul.mubr.bf16.gmra.mxu0 %v826
  %v1399 = vpop.f32.mrf.mxu0
  %v1400 = vadd.f32 %v1239, %v1399
  %v1401 = vpop.f32.mrf.mxu0
  %v1402 = vpop.f32.mrf.mxu0
  %v1403 = vadd.f32 %v1242, %v1402
  %v1404 = vpop.f32.mrf.mxu0
  %1405 = vdwg.mxu0
  %v1406 = vadd.f32 %v476, %v1280
  %v1407 = vadd.f32 %v477, %v1283
  %v1408 = vadd.f32 %v478, %v1288
  %v1409 = vadd.f32 %v479, %v1291
  %v1410 = vadd.f32 %v480, %v1296
  %v1411 = vadd.f32 %v481, %v1299
  %v1412 = vadd.f32 %v482, %v1304
  %v1413 = vadd.f32 %v483, %v1307
  %v1414 = vadd.f32 %v484, %v1312
  %v1415 = vadd.f32 %v485, %v1315
  %v1416 = vadd.f32 %v486, %v1320
  %v1417 = vadd.f32 %v487, %v1323
  %v1418 = vadd.f32 %v488, %v1328
  %v1419 = vadd.f32 %v489, %v1331
  %v1420 = vadd.f32 %v490, %v1336
  %v1421 = vadd.f32 %v491, %v1339
  %v1422 = vadd.f32 %v492, %v1344
  %v1423 = vadd.f32 %v493, %v1347
  %v1424 = vadd.f32 %v494, %v1352
  %v1425 = vadd.f32 %v495, %v1355
  %v1426 = vadd.f32 %v496, %v1360
  %v1427 = vadd.f32 %v497, %v1363
  %v1428 = vadd.f32 %v498, %v1368
  %v1429 = vadd.f32 %v499, %v1371
  %v1430 = vadd.f32 %v500, %v1376
  %v1431 = vadd.f32 %v501, %v1379
  %v1432 = vadd.f32 %v502, %v1384
  %v1433 = vadd.f32 %v503, %v1387
  %v1434 = vadd.f32 %v504, %v1392
  %v1435 = vadd.f32 %v505, %v1395
  %v1436 = vadd.f32 %v506, %v1400
  %v1437 = vadd.f32 %v507, %v1403
  %v1438 = vpack.c.bf16 %v1407, %v1406
  %v1439 = vpack.c.bf16 %v1409, %v1408
  %v1440 = vpack.c.bf16 %v1411, %v1410
  %v1441 = vpack.c.bf16 %v1413, %v1412
  %v1442 = vpack.c.bf16 %v1415, %v1414
  %v1443 = vpack.c.bf16 %v1417, %v1416
  %v1444 = vpack.c.bf16 %v1419, %v1418
  %v1445 = vpack.c.bf16 %v1421, %v1420
  %v1446 = vpack.c.bf16 %v1423, %v1422
  %v1447 = vpack.c.bf16 %v1425, %v1424
  %v1448 = vpack.c.bf16 %v1427, %v1426
  %v1449 = vpack.c.bf16 %v1429, %v1428
  %v1450 = vpack.c.bf16 %v1431, %v1430
  %v1451 = vpack.c.bf16 %v1433, %v1432
  %v1452 = vpack.c.bf16 %v1435, %v1434
  %v1453 = vpack.c.bf16 %v1437, %v1436
  %v1454 = vlaneseq
  %v1455 = vshrl.u32 %v1454, 7
  %v1456 = vsub.s32 0, %v1455
  %v1457 = vrot.slane %v130, %v1456
  %v1474 = vunpack.c.l.b16 %v98
  %v1475 = vunpack.c.l.b16 %v99
  %v1476 = vunpack.c.l.b16 %v100
  %v1477 = vunpack.c.l.b16 %v101
  %v1478 = vunpack.c.l.b16 %v102
  %v1479 = vunpack.c.l.b16 %v103
  %v1480 = vunpack.c.l.b16 %v104
  %v1481 = vunpack.c.l.b16 %v105
  %v1482 = vunpack.c.l.b16 %v106
  %v1483 = vunpack.c.l.b16 %v107
  %v1484 = vunpack.c.l.b16 %v108
  %v1485 = vunpack.c.l.b16 %v109
  %v1486 = vunpack.c.l.b16 %v110
  %v1487 = vunpack.c.l.b16 %v111
  %v1488 = vunpack.c.l.b16 %v112
  %v1489 = vunpack.c.l.b16 %v113
  %v1490 = vpack.c.b16 %v1475, %v1474
  %v1491 = vpack.c.b16 %v1477, %v1476
  %v1492 = vpack.c.b16 %v1479, %v1478
  %v1493 = vpack.c.b16 %v1481, %v1480
  %v1494 = vpack.c.b16 %v1483, %v1482
  %v1495 = vpack.c.b16 %v1485, %v1484
  %v1496 = vpack.c.b16 %v1487, %v1486
  %v1497 = vpack.c.b16 %v1489, %v1488
  %1506 = vmatprep.subr.bf16.mxu0 0
  %1507 = vmatpush1.bf16.msra.mxu0 %v1497
  %1508 = vmatprep.subr.bf16.mxu0 0
  %1509 = vmatpush1.bf16.msra.mxu0 %v1496
  %1510 = vmatprep.subr.bf16.mxu0 0
  %1511 = vmatpush1.bf16.msra.mxu0 %v1495
  %1512 = vmatprep.subr.bf16.mxu0 0
  %1513 = vmatpush1.bf16.msra.mxu0 %v1494
  %1514 = vmatprep.subr.bf16.mxu0 0
  %1515 = vmatpush1.bf16.msra.mxu0 %v1493
  %1516 = vmatprep.subr.bf16.mxu0 0
  %1517 = vmatpush1.bf16.msra.mxu0 %v1492
  %1518 = vmatprep.subr.bf16.mxu0 0
  %1519 = vmatpush1.bf16.msra.mxu0 %v1491
  %1520 = vmatprep.subr.bf16.mxu0 0
  %1521 = vmatpush1.bf16.msra.mxu0 %v1490
  %1522 = vmatprep.subr.bf16.mxu0 0
  %1523 = vmatpush2.bf16.msra.mxu0 0
  %1524 = vmatprep.subr.bf16.mxu0 0
  %1525 = vmatpush2.bf16.msra.mxu0 0
  %1526 = vmatprep.subr.bf16.mxu0 0
  %1527 = vmatpush2.bf16.msra.mxu0 0
  %1528 = vmatprep.subr.bf16.mxu0 0
  %1529 = vmatpush2.bf16.msra.mxu0 0
  %1530 = vmatprep.subr.bf16.mxu0 0
  %1531 = vmatpush2.bf16.msra.mxu0 0
  %1532 = vmatprep.subr.bf16.mxu0 0
  %1533 = vmatpush2.bf16.msra.mxu0 0
  %1534 = vmatprep.subr.bf16.mxu0 0
  %1535 = vmatpush2.bf16.msra.mxu0 0
  %1536 = vmatprep.subr.bf16.mxu0 0
  %1537 = vmatpush2.bf16.msra.mxu0 0
  %1538 = vmatprep.mubr.bf16.mxu0 0
  %1539 = vmatmul.mubr.bf16.gmra.mxu0 %v1438
  %v1540 = vpop.f32.mrf.mxu0
  %v1541 = vadd.f32 %v1457, %v1540
  %v1542 = vpop.f32.mrf.mxu0
  %v1543 = vpop.f32.mrf.mxu0
  %v1544 = vadd.f32 %v1457, %v1543
  %v1545 = vpop.f32.mrf.mxu0
  %1546 = vmatprep.mubr.bf16.mxu0 0
  %1547 = vmatmul.mubr.bf16.gmra.mxu0 %v1439
  %v1548 = vpop.f32.mrf.mxu0
  %v1549 = vadd.f32 %v1457, %v1548
  %v1550 = vpop.f32.mrf.mxu0
  %v1551 = vpop.f32.mrf.mxu0
  %v1552 = vadd.f32 %v1457, %v1551
  %v1553 = vpop.f32.mrf.mxu0
  %1554 = vmatprep.mubr.bf16.mxu0 0
  %1555 = vmatmul.mubr.bf16.gmra.mxu0 %v1440
  %v1556 = vpop.f32.mrf.mxu0
  %v1557 = vadd.f32 %v1457, %v1556
  %v1558 = vpop.f32.mrf.mxu0
  %v1559 = vpop.f32.mrf.mxu0
  %v1560 = vadd.f32 %v1457, %v1559
  %v1561 = vpop.f32.mrf.mxu0
  %1562 = vmatprep.mubr.bf16.mxu0 0
  %1563 = vmatmul.mubr.bf16.gmra.mxu0 %v1441
  %v1564 = vpop.f32.mrf.mxu0
  %v1565 = vadd.f32 %v1457, %v1564
  %v1566 = vpop.f32.mrf.mxu0
  %v1567 = vpop.f32.mrf.mxu0
  %v1568 = vadd.f32 %v1457, %v1567
  %v1569 = vpop.f32.mrf.mxu0
  %1570 = vmatprep.mubr.bf16.mxu0 0
  %1571 = vmatmul.mubr.bf16.gmra.mxu0 %v1442
  %v1572 = vpop.f32.mrf.mxu0
  %v1573 = vadd.f32 %v1457, %v1572
  %v1574 = vpop.f32.mrf.mxu0
  %v1575 = vpop.f32.mrf.mxu0
  %v1576 = vadd.f32 %v1457, %v1575
  %v1577 = vpop.f32.mrf.mxu0
  %1578 = vmatprep.mubr.bf16.mxu0 0
  %1579 = vmatmul.mubr.bf16.gmra.mxu0 %v1443
  %v1580 = vpop.f32.mrf.mxu0
  %v1581 = vadd.f32 %v1457, %v1580
  %v1582 = vpop.f32.mrf.mxu0
  %v1583 = vpop.f32.mrf.mxu0
  %v1584 = vadd.f32 %v1457, %v1583
  %v1585 = vpop.f32.mrf.mxu0
  %1586 = vmatprep.mubr.bf16.mxu0 0
  %1587 = vmatmul.mubr.bf16.gmra.mxu0 %v1444
  %v1588 = vpop.f32.mrf.mxu0
  %v1589 = vadd.f32 %v1457, %v1588
  %v1590 = vpop.f32.mrf.mxu0
  %v1591 = vpop.f32.mrf.mxu0
  %v1592 = vadd.f32 %v1457, %v1591
  %v1593 = vpop.f32.mrf.mxu0
  %1594 = vmatprep.mubr.bf16.mxu0 0
  %1595 = vmatmul.mubr.bf16.gmra.mxu0 %v1445
  %v1596 = vpop.f32.mrf.mxu0
  %v1597 = vadd.f32 %v1457, %v1596
  %v1598 = vpop.f32.mrf.mxu0
  %v1599 = vpop.f32.mrf.mxu0
  %v1600 = vadd.f32 %v1457, %v1599
  %v1601 = vpop.f32.mrf.mxu0
  %1602 = vmatprep.mubr.bf16.mxu0 0
  %1603 = vmatmul.mubr.bf16.gmra.mxu0 %v1446
  %v1604 = vpop.f32.mrf.mxu0
  %v1605 = vadd.f32 %v1457, %v1604
  %v1606 = vpop.f32.mrf.mxu0
  %v1607 = vpop.f32.mrf.mxu0
  %v1608 = vadd.f32 %v1457, %v1607
  %v1609 = vpop.f32.mrf.mxu0
  %1610 = vmatprep.mubr.bf16.mxu0 0
  %1611 = vmatmul.mubr.bf16.gmra.mxu0 %v1447
  %v1612 = vpop.f32.mrf.mxu0
  %v1613 = vadd.f32 %v1457, %v1612
  %v1614 = vpop.f32.mrf.mxu0
  %v1615 = vpop.f32.mrf.mxu0
  %v1616 = vadd.f32 %v1457, %v1615
  %v1617 = vpop.f32.mrf.mxu0
  %1618 = vmatprep.mubr.bf16.mxu0 0
  %1619 = vmatmul.mubr.bf16.gmra.mxu0 %v1448
  %v1620 = vpop.f32.mrf.mxu0
  %v1621 = vadd.f32 %v1457, %v1620
  %v1622 = vpop.f32.mrf.mxu0
  %v1623 = vpop.f32.mrf.mxu0
  %v1624 = vadd.f32 %v1457, %v1623
  %v1625 = vpop.f32.mrf.mxu0
  %1626 = vmatprep.mubr.bf16.mxu0 0
  %1627 = vmatmul.mubr.bf16.gmra.mxu0 %v1449
  %v1628 = vpop.f32.mrf.mxu0
  %v1629 = vadd.f32 %v1457, %v1628
  %v1630 = vpop.f32.mrf.mxu0
  %v1631 = vpop.f32.mrf.mxu0
  %v1632 = vadd.f32 %v1457, %v1631
  %v1633 = vpop.f32.mrf.mxu0
  %1634 = vmatprep.mubr.bf16.mxu0 0
  %1635 = vmatmul.mubr.bf16.gmra.mxu0 %v1450
  %v1636 = vpop.f32.mrf.mxu0
  %v1637 = vadd.f32 %v1457, %v1636
  %v1638 = vpop.f32.mrf.mxu0
  %v1639 = vpop.f32.mrf.mxu0
  %v1640 = vadd.f32 %v1457, %v1639
  %v1641 = vpop.f32.mrf.mxu0
  %1642 = vmatprep.mubr.bf16.mxu0 0
  %1643 = vmatmul.mubr.bf16.gmra.mxu0 %v1451
  %v1644 = vpop.f32.mrf.mxu0
  %v1645 = vadd.f32 %v1457, %v1644
  %v1646 = vpop.f32.mrf.mxu0
  %v1647 = vpop.f32.mrf.mxu0
  %v1648 = vadd.f32 %v1457, %v1647
  %v1649 = vpop.f32.mrf.mxu0
  %1650 = vmatprep.mubr.bf16.mxu0 0
  %1651 = vmatmul.mubr.bf16.gmra.mxu0 %v1452
  %v1652 = vpop.f32.mrf.mxu0
  %v1653 = vadd.f32 %v1457, %v1652
  %v1654 = vpop.f32.mrf.mxu0
  %v1655 = vpop.f32.mrf.mxu0
  %v1656 = vadd.f32 %v1457, %v1655
  %v1657 = vpop.f32.mrf.mxu0
  %1658 = vmatprep.mubr.bf16.mxu0 0
  %1659 = vmatmul.mubr.bf16.gmra.mxu0 %v1453
  %v1660 = vpop.f32.mrf.mxu0
  %v1661 = vadd.f32 %v1457, %v1660
  %v1662 = vpop.f32.mrf.mxu0
  %v1663 = vpop.f32.mrf.mxu0
  %v1664 = vadd.f32 %v1457, %v1663
  %v1665 = vpop.f32.mrf.mxu0
  %1666 = vdwg.mxu0
  %v1667 = vmax.f32 %v1541, 0.0
  %v1668 = vmax.f32 %v1544, 0.0
  %v1669 = vmax.f32 %v1549, 0.0
  %v1670 = vmax.f32 %v1552, 0.0
  %v1671 = vmax.f32 %v1557, 0.0
  %v1672 = vmax.f32 %v1560, 0.0
  %v1673 = vmax.f32 %v1565, 0.0
  %v1674 = vmax.f32 %v1568, 0.0
  %v1675 = vmax.f32 %v1573, 0.0
  %v1676 = vmax.f32 %v1576, 0.0
  %v1677 = vmax.f32 %v1581, 0.0
  %v1678 = vmax.f32 %v1584, 0.0
  %v1679 = vmax.f32 %v1589, 0.0
  %v1680 = vmax.f32 %v1592, 0.0
  %v1681 = vmax.f32 %v1597, 0.0
  %v1682 = vmax.f32 %v1600, 0.0
  %v1683 = vmax.f32 %v1605, 0.0
  %v1684 = vmax.f32 %v1608, 0.0
  %v1685 = vmax.f32 %v1613, 0.0
  %v1686 = vmax.f32 %v1616, 0.0
  %v1687 = vmax.f32 %v1621, 0.0
  %v1688 = vmax.f32 %v1624, 0.0
  %v1689 = vmax.f32 %v1629, 0.0
  %v1690 = vmax.f32 %v1632, 0.0
  %v1691 = vmax.f32 %v1637, 0.0
  %v1692 = vmax.f32 %v1640, 0.0
  %v1693 = vmax.f32 %v1645, 0.0
  %v1694 = vmax.f32 %v1648, 0.0
  %v1695 = vmax.f32 %v1653, 0.0
  %v1696 = vmax.f32 %v1656, 0.0
  %v1697 = vmax.f32 %v1661, 0.0
  %v1698 = vmax.f32 %v1664, 0.0
  %v1699 = vpack.c.bf16 %v1668, %v1667
  %v1700 = vpack.c.bf16 %v1670, %v1669
  %v1701 = vpack.c.bf16 %v1672, %v1671
  %v1702 = vpack.c.bf16 %v1674, %v1673
  %v1703 = vpack.c.bf16 %v1676, %v1675
  %v1704 = vpack.c.bf16 %v1678, %v1677
  %v1705 = vpack.c.bf16 %v1680, %v1679
  %v1706 = vpack.c.bf16 %v1682, %v1681
  %v1707 = vpack.c.bf16 %v1684, %v1683
  %v1708 = vpack.c.bf16 %v1686, %v1685
  %v1709 = vpack.c.bf16 %v1688, %v1687
  %v1710 = vpack.c.bf16 %v1690, %v1689
  %v1711 = vpack.c.bf16 %v1692, %v1691
  %v1712 = vpack.c.bf16 %v1694, %v1693
  %v1713 = vpack.c.bf16 %v1696, %v1695
  %v1714 = vpack.c.bf16 %v1698, %v1697
  %v1715 = vlaneseq
  %v1716 = vshrl.u32 %v1715, 7
  %v1717 = vsub.s32 1, %v1716
  %v1718 = vrot.slane %v130, %v1717
  %v1735 = vunpack.c.l.b16 %v114
  %v1736 = vunpack.c.l.b16 %v115
  %v1737 = vunpack.c.l.b16 %v116
  %v1738 = vunpack.c.l.b16 %v117
  %v1739 = vunpack.c.l.b16 %v118
  %v1740 = vunpack.c.l.b16 %v119
  %v1741 = vunpack.c.l.b16 %v120
  %v1742 = vunpack.c.l.b16 %v121
  %v1743 = vunpack.c.l.b16 %v122
  %v1744 = vunpack.c.l.b16 %v123
  %v1745 = vunpack.c.l.b16 %v124
  %v1746 = vunpack.c.l.b16 %v125
  %v1747 = vunpack.c.l.b16 %v126
  %v1748 = vunpack.c.l.b16 %v127
  %v1749 = vunpack.c.l.b16 %v128
  %v1750 = vunpack.c.l.b16 %v129
  %v1751 = vpack.c.b16 %v1736, %v1735
  %v1752 = vpack.c.b16 %v1738, %v1737
  %v1753 = vpack.c.b16 %v1740, %v1739
  %v1754 = vpack.c.b16 %v1742, %v1741
  %v1755 = vpack.c.b16 %v1744, %v1743
  %v1756 = vpack.c.b16 %v1746, %v1745
  %v1757 = vpack.c.b16 %v1748, %v1747
  %v1758 = vpack.c.b16 %v1750, %v1749
  %1767 = vmatprep.subr.bf16.mxu0 0
  %1768 = vmatpush1.bf16.msra.mxu0 %v1758
  %1769 = vmatprep.subr.bf16.mxu0 0
  %1770 = vmatpush1.bf16.msra.mxu0 %v1757
  %1771 = vmatprep.subr.bf16.mxu0 0
  %1772 = vmatpush1.bf16.msra.mxu0 %v1756
  %1773 = vmatprep.subr.bf16.mxu0 0
  %1774 = vmatpush1.bf16.msra.mxu0 %v1755
  %1775 = vmatprep.subr.bf16.mxu0 0
  %1776 = vmatpush1.bf16.msra.mxu0 %v1754
  %1777 = vmatprep.subr.bf16.mxu0 0
  %1778 = vmatpush1.bf16.msra.mxu0 %v1753
  %1779 = vmatprep.subr.bf16.mxu0 0
  %1780 = vmatpush1.bf16.msra.mxu0 %v1752
  %1781 = vmatprep.subr.bf16.mxu0 0
  %1782 = vmatpush1.bf16.msra.mxu0 %v1751
  %1783 = vmatprep.subr.bf16.mxu0 0
  %1784 = vmatpush2.bf16.msra.mxu0 0
  %1785 = vmatprep.subr.bf16.mxu0 0
  %1786 = vmatpush2.bf16.msra.mxu0 0
  %1787 = vmatprep.subr.bf16.mxu0 0
  %1788 = vmatpush2.bf16.msra.mxu0 0
  %1789 = vmatprep.subr.bf16.mxu0 0
  %1790 = vmatpush2.bf16.msra.mxu0 0
  %1791 = vmatprep.subr.bf16.mxu0 0
  %1792 = vmatpush2.bf16.msra.mxu0 0
  %1793 = vmatprep.subr.bf16.mxu0 0
  %1794 = vmatpush2.bf16.msra.mxu0 0
  %1795 = vmatprep.subr.bf16.mxu0 0
  %1796 = vmatpush2.bf16.msra.mxu0 0
  %1797 = vmatprep.subr.bf16.mxu0 0
  %1798 = vmatpush2.bf16.msra.mxu0 0
  %1799 = vmatprep.mubr.bf16.mxu0 0
  %1800 = vmatmul.mubr.bf16.gmra.mxu0 %v1699
  %v1801 = vpop.f32.mrf.mxu0
  %v1802 = vadd.f32 %v1718, %v1801
  %v1803 = vpop.f32.mrf.mxu0
  %v1804 = vpop.f32.mrf.mxu0
  %v1805 = vadd.f32 %v1718, %v1804
  %v1806 = vpop.f32.mrf.mxu0
  %1807 = vmatprep.mubr.bf16.mxu0 0
  %1808 = vmatmul.mubr.bf16.gmra.mxu0 %v1700
  %v1809 = vpop.f32.mrf.mxu0
  %v1810 = vadd.f32 %v1718, %v1809
  %v1811 = vpop.f32.mrf.mxu0
  %v1812 = vpop.f32.mrf.mxu0
  %v1813 = vadd.f32 %v1718, %v1812
  %v1814 = vpop.f32.mrf.mxu0
  %1815 = vmatprep.mubr.bf16.mxu0 0
  %1816 = vmatmul.mubr.bf16.gmra.mxu0 %v1701
  %v1817 = vpop.f32.mrf.mxu0
  %v1818 = vadd.f32 %v1718, %v1817
  %v1819 = vpop.f32.mrf.mxu0
  %v1820 = vpop.f32.mrf.mxu0
  %v1821 = vadd.f32 %v1718, %v1820
  %v1822 = vpop.f32.mrf.mxu0
  %1823 = vmatprep.mubr.bf16.mxu0 0
  %1824 = vmatmul.mubr.bf16.gmra.mxu0 %v1702
  %v1825 = vpop.f32.mrf.mxu0
  %v1826 = vadd.f32 %v1718, %v1825
  %v1827 = vpop.f32.mrf.mxu0
  %v1828 = vpop.f32.mrf.mxu0
  %v1829 = vadd.f32 %v1718, %v1828
  %v1830 = vpop.f32.mrf.mxu0
  %1831 = vmatprep.mubr.bf16.mxu0 0
  %1832 = vmatmul.mubr.bf16.gmra.mxu0 %v1703
  %v1833 = vpop.f32.mrf.mxu0
  %v1834 = vadd.f32 %v1718, %v1833
  %v1835 = vpop.f32.mrf.mxu0
  %v1836 = vpop.f32.mrf.mxu0
  %v1837 = vadd.f32 %v1718, %v1836
  %v1838 = vpop.f32.mrf.mxu0
  %1839 = vmatprep.mubr.bf16.mxu0 0
  %1840 = vmatmul.mubr.bf16.gmra.mxu0 %v1704
  %v1841 = vpop.f32.mrf.mxu0
  %v1842 = vadd.f32 %v1718, %v1841
  %v1843 = vpop.f32.mrf.mxu0
  %v1844 = vpop.f32.mrf.mxu0
  %v1845 = vadd.f32 %v1718, %v1844
  %v1846 = vpop.f32.mrf.mxu0
  %1847 = vmatprep.mubr.bf16.mxu0 0
  %1848 = vmatmul.mubr.bf16.gmra.mxu0 %v1705
  %v1849 = vpop.f32.mrf.mxu0
  %v1850 = vadd.f32 %v1718, %v1849
  %v1851 = vpop.f32.mrf.mxu0
  %v1852 = vpop.f32.mrf.mxu0
  %v1853 = vadd.f32 %v1718, %v1852
  %v1854 = vpop.f32.mrf.mxu0
  %1855 = vmatprep.mubr.bf16.mxu0 0
  %1856 = vmatmul.mubr.bf16.gmra.mxu0 %v1706
  %v1857 = vpop.f32.mrf.mxu0
  %v1858 = vadd.f32 %v1718, %v1857
  %v1859 = vpop.f32.mrf.mxu0
  %v1860 = vpop.f32.mrf.mxu0
  %v1861 = vadd.f32 %v1718, %v1860
  %v1862 = vpop.f32.mrf.mxu0
  %1863 = vmatprep.mubr.bf16.mxu0 0
  %1864 = vmatmul.mubr.bf16.gmra.mxu0 %v1707
  %v1865 = vpop.f32.mrf.mxu0
  %v1866 = vadd.f32 %v1718, %v1865
  %v1867 = vpop.f32.mrf.mxu0
  %v1868 = vpop.f32.mrf.mxu0
  %v1869 = vadd.f32 %v1718, %v1868
  %v1870 = vpop.f32.mrf.mxu0
  %1871 = vmatprep.mubr.bf16.mxu0 0
  %1872 = vmatmul.mubr.bf16.gmra.mxu0 %v1708
  %v1873 = vpop.f32.mrf.mxu0
  %v1874 = vadd.f32 %v1718, %v1873
  %v1875 = vpop.f32.mrf.mxu0
  %v1876 = vpop.f32.mrf.mxu0
  %v1877 = vadd.f32 %v1718, %v1876
  %v1878 = vpop.f32.mrf.mxu0
  %1879 = vmatprep.mubr.bf16.mxu0 0
  %1880 = vmatmul.mubr.bf16.gmra.mxu0 %v1709
  %v1881 = vpop.f32.mrf.mxu0
  %v1882 = vadd.f32 %v1718, %v1881
  %v1883 = vpop.f32.mrf.mxu0
  %v1884 = vpop.f32.mrf.mxu0
  %v1885 = vadd.f32 %v1718, %v1884
  %v1886 = vpop.f32.mrf.mxu0
  %1887 = vmatprep.mubr.bf16.mxu0 0
  %1888 = vmatmul.mubr.bf16.gmra.mxu0 %v1710
  %v1889 = vpop.f32.mrf.mxu0
  %v1890 = vadd.f32 %v1718, %v1889
  %v1891 = vpop.f32.mrf.mxu0
  %v1892 = vpop.f32.mrf.mxu0
  %v1893 = vadd.f32 %v1718, %v1892
  %v1894 = vpop.f32.mrf.mxu0
  %1895 = vmatprep.mubr.bf16.mxu0 0
  %1896 = vmatmul.mubr.bf16.gmra.mxu0 %v1711
  %v1897 = vpop.f32.mrf.mxu0
  %v1898 = vadd.f32 %v1718, %v1897
  %v1899 = vpop.f32.mrf.mxu0
  %v1900 = vpop.f32.mrf.mxu0
  %v1901 = vadd.f32 %v1718, %v1900
  %v1902 = vpop.f32.mrf.mxu0
  %1903 = vmatprep.mubr.bf16.mxu0 0
  %1904 = vmatmul.mubr.bf16.gmra.mxu0 %v1712
  %v1905 = vpop.f32.mrf.mxu0
  %v1906 = vadd.f32 %v1718, %v1905
  %v1907 = vpop.f32.mrf.mxu0
  %v1908 = vpop.f32.mrf.mxu0
  %v1909 = vadd.f32 %v1718, %v1908
  %v1910 = vpop.f32.mrf.mxu0
  %1911 = vmatprep.mubr.bf16.mxu0 0
  %1912 = vmatmul.mubr.bf16.gmra.mxu0 %v1713
  %v1913 = vpop.f32.mrf.mxu0
  %v1914 = vadd.f32 %v1718, %v1913
  %v1915 = vpop.f32.mrf.mxu0
  %v1916 = vpop.f32.mrf.mxu0
  %v1917 = vadd.f32 %v1718, %v1916
  %v1918 = vpop.f32.mrf.mxu0
  %1919 = vmatprep.mubr.bf16.mxu0 0
  %1920 = vmatmul.mubr.bf16.gmra.mxu0 %v1714
  %v1921 = vpop.f32.mrf.mxu0
  %v1922 = vadd.f32 %v1718, %v1921
  %v1923 = vpop.f32.mrf.mxu0
  %v1924 = vpop.f32.mrf.mxu0
  %v1925 = vadd.f32 %v1718, %v1924
  %v1926 = vpop.f32.mrf.mxu0
  %1927 = vdwg.mxu0
  %v1928 = vmax.f32 %v1802, 0.0
  %v1929 = vmax.f32 %v1805, 0.0
  %v1930 = vmax.f32 %v1810, 0.0
  %v1931 = vmax.f32 %v1813, 0.0
  %v1932 = vmax.f32 %v1818, 0.0
  %v1933 = vmax.f32 %v1821, 0.0
  %v1934 = vmax.f32 %v1826, 0.0
  %v1935 = vmax.f32 %v1829, 0.0
  %v1936 = vmax.f32 %v1834, 0.0
  %v1937 = vmax.f32 %v1837, 0.0
  %v1938 = vmax.f32 %v1842, 0.0
  %v1939 = vmax.f32 %v1845, 0.0
  %v1940 = vmax.f32 %v1850, 0.0
  %v1941 = vmax.f32 %v1853, 0.0
  %v1942 = vmax.f32 %v1858, 0.0
  %v1943 = vmax.f32 %v1861, 0.0
  %v1944 = vmax.f32 %v1866, 0.0
  %v1945 = vmax.f32 %v1869, 0.0
  %v1946 = vmax.f32 %v1874, 0.0
  %v1947 = vmax.f32 %v1877, 0.0
  %v1948 = vmax.f32 %v1882, 0.0
  %v1949 = vmax.f32 %v1885, 0.0
  %v1950 = vmax.f32 %v1890, 0.0
  %v1951 = vmax.f32 %v1893, 0.0
  %v1952 = vmax.f32 %v1898, 0.0
  %v1953 = vmax.f32 %v1901, 0.0
  %v1954 = vmax.f32 %v1906, 0.0
  %v1955 = vmax.f32 %v1909, 0.0
  %v1956 = vmax.f32 %v1914, 0.0
  %v1957 = vmax.f32 %v1917, 0.0
  %v1958 = vmax.f32 %v1922, 0.0
  %v1959 = vmax.f32 %v1925, 0.0
  %v1960 = vlaneseq
  %v1961 = vshrl.u32 %v1960, 7
  %v1962 = vsub.s32 2, %v1961
  %v1963 = vrot.slane %v130, %v1962
  %v1964 = vmul.f32 %v1928, %v1963
  %v1965 = vmul.f32 %v1929, %v1963
  %v1966 = vmul.f32 %v1930, %v1963
  %v1967 = vmul.f32 %v1931, %v1963
  %v1968 = vmul.f32 %v1932, %v1963
  %v1969 = vmul.f32 %v1933, %v1963
  %v1970 = vmul.f32 %v1934, %v1963
  %v1971 = vmul.f32 %v1935, %v1963
  %v1972 = vmul.f32 %v1936, %v1963
  %v1973 = vmul.f32 %v1937, %v1963
  %v1974 = vmul.f32 %v1938, %v1963
  %v1975 = vmul.f32 %v1939, %v1963
  %v1976 = vmul.f32 %v1940, %v1963
  %v1977 = vmul.f32 %v1941, %v1963
  %v1978 = vmul.f32 %v1942, %v1963
  %v1979 = vmul.f32 %v1943, %v1963
  %v1980 = vmul.f32 %v1944, %v1963
  %v1981 = vmul.f32 %v1945, %v1963
  %v1982 = vmul.f32 %v1946, %v1963
  %v1983 = vmul.f32 %v1947, %v1963
  %v1984 = vmul.f32 %v1948, %v1963
  %v1985 = vmul.f32 %v1949, %v1963
  %v1986 = vmul.f32 %v1950, %v1963
  %v1987 = vmul.f32 %v1951, %v1963
  %v1988 = vmul.f32 %v1952, %v1963
  %v1989 = vmul.f32 %v1953, %v1963
  %v1990 = vmul.f32 %v1954, %v1963
  %v1991 = vmul.f32 %v1955, %v1963
  %v1992 = vmul.f32 %v1956, %v1963
  %v1993 = vmul.f32 %v1957, %v1963
  %v1994 = vmul.f32 %v1958, %v1963
  %v1995 = vmul.f32 %v1959, %v1963
  %v1996 = vlaneseq
  %v1997 = vshrl.u32 %v1996, 7
  %v1998 = vsub.s32 3, %v1997
  %v1999 = vrot.slane %v130, %v1998
  %v2000 = vadd.f32 %v1964, %v1999
  %v2001 = vadd.f32 %v1965, %v1999
  %v2002 = vadd.f32 %v1966, %v1999
  %v2003 = vadd.f32 %v1967, %v1999
  %v2004 = vadd.f32 %v1968, %v1999
  %v2005 = vadd.f32 %v1969, %v1999
  %v2006 = vadd.f32 %v1970, %v1999
  %v2007 = vadd.f32 %v1971, %v1999
  %v2008 = vadd.f32 %v1972, %v1999
  %v2009 = vadd.f32 %v1973, %v1999
  %v2010 = vadd.f32 %v1974, %v1999
  %v2011 = vadd.f32 %v1975, %v1999
  %v2012 = vadd.f32 %v1976, %v1999
  %v2013 = vadd.f32 %v1977, %v1999
  %v2014 = vadd.f32 %v1978, %v1999
  %v2015 = vadd.f32 %v1979, %v1999
  %v2016 = vadd.f32 %v1980, %v1999
  %v2017 = vadd.f32 %v1981, %v1999
  %v2018 = vadd.f32 %v1982, %v1999
  %v2019 = vadd.f32 %v1983, %v1999
  %v2020 = vadd.f32 %v1984, %v1999
  %v2021 = vadd.f32 %v1985, %v1999
  %v2022 = vadd.f32 %v1986, %v1999
  %v2023 = vadd.f32 %v1987, %v1999
  %v2024 = vadd.f32 %v1988, %v1999
  %v2025 = vadd.f32 %v1989, %v1999
  %v2026 = vadd.f32 %v1990, %v1999
  %v2027 = vadd.f32 %v1991, %v1999
  %v2028 = vadd.f32 %v1992, %v1999
  %v2029 = vadd.f32 %v1993, %v1999
  %v2030 = vadd.f32 %v1994, %v1999
  %v2031 = vadd.f32 %v1995, %v1999
  %2032 = vst [vmem:[#allocation4] sm:$0xff] %v2000
  %2033 = vst [vmem:[#allocation4 + $0x18] sm:$0xff] %v2001
  %2034 = vst [vmem:[#allocation4 + $0x30] sm:$0xff] %v2002
  %2035 = vst [vmem:[#allocation4 + $0x48] sm:$0xff] %v2003
  %2036 = vst [vmem:[#allocation4 + $0x60] sm:$0xff] %v2004
  %2037 = vst [vmem:[#allocation4 + $0x78] sm:$0xff] %v2005
  %2038 = vst [vmem:[#allocation4 + $0x90] sm:$0xff] %v2006
  %2039 = vst [vmem:[#allocation4 + $0xa8] sm:$0xff] %v2007
  %2040 = vst [vmem:[#allocation4 + $0xc0] sm:$0xff] %v2008
  %2041 = vst [vmem:[#allocation4 + $0xd8] sm:$0xff] %v2009
  %2042 = vst [vmem:[#allocation4 + $0xf0] sm:$0xff] %v2010
  %2043 = vst [vmem:[#allocation4 + $0x108] sm:$0xff] %v2011
  %2044 = vst [vmem:[#allocation4 + $0x120] sm:$0xff] %v2012
  %2045 = vst [vmem:[#allocation4 + $0x138] sm:$0xff] %v2013
  %2046 = vst [vmem:[#allocation4 + $0x150] sm:$0xff] %v2014
  %2047 = vst [vmem:[#allocation4 + $0x168] sm:$0xff] %v2015
  %2048 = vst [vmem:[#allocation4 + $0x180] sm:$0xff] %v2016
  %2049 = vst [vmem:[#allocation4 + $0x198] sm:$0xff] %v2017
  %2050 = vst [vmem:[#allocation4 + $0x1b0] sm:$0xff] %v2018
  %2051 = vst [vmem:[#allocation4 + $0x1c8] sm:$0xff] %v2019
  %2052 = vst [vmem:[#allocation4 + $0x1e0] sm:$0xff] %v2020
  %2053 = vst [vmem:[#allocation4 + $0x1f8] sm:$0xff] %v2021
  %2054 = vst [vmem:[#allocation4 + $0x210] sm:$0xff] %v2022
  %2055 = vst [vmem:[#allocation4 + $0x228] sm:$0xff] %v2023
  %2056 = vst [vmem:[#allocation4 + $0x240] sm:$0xff] %v2024
  %2057 = vst [vmem:[#allocation4 + $0x258] sm:$0xff] %v2025
  %2058 = vst [vmem:[#allocation4 + $0x270] sm:$0xff] %v2026
  %2059 = vst [vmem:[#allocation4 + $0x288] sm:$0xff] %v2027
  %2060 = vst [vmem:[#allocation4 + $0x2a0] sm:$0xff] %v2028
  %2061 = vst [vmem:[#allocation4 + $0x2b8] sm:$0xff] %v2029
  %2062 = vst [vmem:[#allocation4 + $0x2d0] sm:$0xff] %v2030
  %2063 = vst [vmem:[#allocation4 + $0x2e8] sm:$0xff] %v2031
  %s2064 = sshll.u32 %s301, 4
  %2065 = dma.done %s306, %s2064
  %v2066 = vunpack.c.l.bf16 %v66
  %v2067 = vunpack.c.l.bf16 %v67
  %v2068 = vunpack.c.l.bf16 %v68
  %v2069 = vunpack.c.l.bf16 %v69
  %v2070 = vunpack.c.l.bf16 %v70
  %v2071 = vunpack.c.l.bf16 %v71
  %v2072 = vunpack.c.l.bf16 %v72
  %v2073 = vunpack.c.l.bf16 %v73
  %v2074 = vunpack.c.l.bf16 %v74
  %v2075 = vunpack.c.l.bf16 %v75
  %v2076 = vunpack.c.l.bf16 %v76
  %v2077 = vunpack.c.l.bf16 %v77
  %v2078 = vunpack.c.l.bf16 %v78
  %v2079 = vunpack.c.l.bf16 %v79
  %v2080 = vunpack.c.l.bf16 %v80
  %v2081 = vunpack.c.l.bf16 %v81
  %v2082 = vunpack.c.l.bf16 %v82
  %v2083 = vunpack.c.l.bf16 %v83
  %v2084 = vunpack.c.l.bf16 %v84
  %v2085 = vunpack.c.l.bf16 %v85
  %v2086 = vunpack.c.l.bf16 %v86
  %v2087 = vunpack.c.l.bf16 %v87
  %v2088 = vunpack.c.l.bf16 %v88
  %v2089 = vunpack.c.l.bf16 %v89
  %v2090 = vunpack.c.l.bf16 %v90
  %v2091 = vunpack.c.l.bf16 %v91
  %v2092 = vunpack.c.l.bf16 %v92
  %v2093 = vunpack.c.l.bf16 %v93
  %v2094 = vunpack.c.l.bf16 %v94
  %v2095 = vunpack.c.l.bf16 %v95
  %v2096 = vunpack.c.l.bf16 %v96
  %v2097 = vunpack.c.l.bf16 %v97
  %v2098 = vld [vmem:[%s305] sm:$0xff]
  %v2099 = vld [vmem:[%s305 + $0x8] sm:$0xff]
  %v2100 = vld [vmem:[%s305 + $0x10] sm:$0xff]
  %v2101 = vld [vmem:[%s305 + $0x18] sm:$0xff]
  %v2102 = vld [vmem:[%s305 + $0x20] sm:$0xff]
  %v2103 = vld [vmem:[%s305 + $0x28] sm:$0xff]
  %v2104 = vld [vmem:[%s305 + $0x30] sm:$0xff]
  %v2105 = vld [vmem:[%s305 + $0x38] sm:$0xff]
  %v2106 = vld [vmem:[%s305 + $0x40] sm:$0xff]
  %v2107 = vld [vmem:[%s305 + $0x48] sm:$0xff]
  %v2108 = vld [vmem:[%s305 + $0x50] sm:$0xff]
  %v2109 = vld [vmem:[%s305 + $0x58] sm:$0xff]
  %v2110 = vld [vmem:[%s305 + $0x60] sm:$0xff]
  %v2111 = vld [vmem:[%s305 + $0x68] sm:$0xff]
  %v2112 = vld [vmem:[%s305 + $0x70] sm:$0xff]
  %v2113 = vld [vmem:[%s305 + $0x78] sm:$0xff]
  %v2114 = vld [vmem:[%s305 + $0x80] sm:$0xff]
  %v2115 = vld [vmem:[%s305 + $0x88] sm:$0xff]
  %v2116 = vld [vmem:[%s305 + $0x90] sm:$0xff]
  %v2117 = vld [vmem:[%s305 + $0x98] sm:$0xff]
  %v2118 = vld [vmem:[%s305 + $0xa0] sm:$0xff]
  %v2119 = vld [vmem:[%s305 + $0xa8] sm:$0xff]
  %v2120 = vld [vmem:[%s305 + $0xb0] sm:$0xff]
  %v2121 = vld [vmem:[%s305 + $0xb8] sm:$0xff]
  %v2122 = vld [vmem:[%s305 + $0xc0] sm:$0xff]
  %v2123 = vld [vmem:[%s305 + $0xc8] sm:$0xff]
  %v2124 = vld [vmem:[%s305 + $0xd0] sm:$0xff]
  %v2125 = vld [vmem:[%s305 + $0xd8] sm:$0xff]
  %v2126 = vld [vmem:[%s305 + $0xe0] sm:$0xff]
  %v2127 = vld [vmem:[%s305 + $0xe8] sm:$0xff]
  %v2128 = vld [vmem:[%s305 + $0xf0] sm:$0xff]
  %v2129 = vld [vmem:[%s305 + $0xf8] sm:$0xff]
  %v2130 = vld [vmem:[%s305 + $0x100] sm:$0xff]
  %v2131 = vld [vmem:[%s305 + $0x108] sm:$0xff]
  %v2132 = vld [vmem:[%s305 + $0x110] sm:$0xff]
  %v2133 = vld [vmem:[%s305 + $0x118] sm:$0xff]
  %v2134 = vld [vmem:[%s305 + $0x120] sm:$0xff]
  %v2135 = vld [vmem:[%s305 + $0x128] sm:$0xff]
  %v2136 = vld [vmem:[%s305 + $0x130] sm:$0xff]
  %v2137 = vld [vmem:[%s305 + $0x138] sm:$0xff]
  %v2138 = vld [vmem:[%s305 + $0x140] sm:$0xff]
  %v2139 = vld [vmem:[%s305 + $0x148] sm:$0xff]
  %v2140 = vld [vmem:[%s305 + $0x150] sm:$0xff]
  %v2141 = vld [vmem:[%s305 + $0x158] sm:$0xff]
  %v2142 = vld [vmem:[%s305 + $0x160] sm:$0xff]
  %v2143 = vld [vmem:[%s305 + $0x168] sm:$0xff]
  %v2144 = vld [vmem:[%s305 + $0x170] sm:$0xff]
  %v2145 = vld [vmem:[%s305 + $0x178] sm:$0xff]
  %v2146 = vld [vmem:[%s305 + $0x180] sm:$0xff]
  %v2147 = vld [vmem:[%s305 + $0x188] sm:$0xff]
  %v2148 = vld [vmem:[%s305 + $0x190] sm:$0xff]
  %v2149 = vld [vmem:[%s305 + $0x198] sm:$0xff]
  %v2150 = vld [vmem:[%s305 + $0x1a0] sm:$0xff]
  %v2151 = vld [vmem:[%s305 + $0x1a8] sm:$0xff]
  %v2152 = vld [vmem:[%s305 + $0x1b0] sm:$0xff]
  %v2153 = vld [vmem:[%s305 + $0x1b8] sm:$0xff]
  %v2154 = vld [vmem:[%s305 + $0x1c0] sm:$0xff]
  %v2155 = vld [vmem:[%s305 + $0x1c8] sm:$0xff]
  %v2156 = vld [vmem:[%s305 + $0x1d0] sm:$0xff]
  %v2157 = vld [vmem:[%s305 + $0x1d8] sm:$0xff]
  %v2158 = vld [vmem:[%s305 + $0x1e0] sm:$0xff]
  %v2159 = vld [vmem:[%s305 + $0x1e8] sm:$0xff]
  %v2160 = vld [vmem:[%s305 + $0x1f0] sm:$0xff]
  %v2161 = vld [vmem:[%s305 + $0x1f8] sm:$0xff]
  %v2226 = vunpack.c.l.b16 %v2098
  %v2227 = vunpack.c.h.b16 %v2098
  %v2228 = vunpack.c.l.b16 %v2099
  %v2229 = vunpack.c.h.b16 %v2099
  %v2230 = vunpack.c.l.b16 %v2100
  %v2231 = vunpack.c.h.b16 %v2100
  %v2232 = vunpack.c.l.b16 %v2101
  %v2233 = vunpack.c.h.b16 %v2101
  %v2234 = vunpack.c.l.b16 %v2102
  %v2235 = vunpack.c.h.b16 %v2102
  %v2236 = vunpack.c.l.b16 %v2103
  %v2237 = vunpack.c.h.b16 %v2103
  %v2238 = vunpack.c.l.b16 %v2104
  %v2239 = vunpack.c.h.b16 %v2104
  %v2240 = vunpack.c.l.b16 %v2105
  %v2241 = vunpack.c.h.b16 %v2105
  %v2242 = vunpack.c.l.b16 %v2106
  %v2243 = vunpack.c.h.b16 %v2106
  %v2244 = vunpack.c.l.b16 %v2107
  %v2245 = vunpack.c.h.b16 %v2107
  %v2246 = vunpack.c.l.b16 %v2108
  %v2247 = vunpack.c.h.b16 %v2108
  %v2248 = vunpack.c.l.b16 %v2109
  %v2249 = vunpack.c.h.b16 %v2109
  %v2250 = vunpack.c.l.b16 %v2110
  %v2251 = vunpack.c.h.b16 %v2110
  %v2252 = vunpack.c.l.b16 %v2111
  %v2253 = vunpack.c.h.b16 %v2111
  %v2254 = vunpack.c.l.b16 %v2112
  %v2255 = vunpack.c.h.b16 %v2112
  %v2256 = vunpack.c.l.b16 %v2113
  %v2257 = vunpack.c.h.b16 %v2113
  %v2258 = vunpack.c.l.b16 %v2114
  %v2259 = vunpack.c.h.b16 %v2114
  %v2260 = vunpack.c.l.b16 %v2115
  %v2261 = vunpack.c.h.b16 %v2115
  %v2262 = vunpack.c.l.b16 %v2116
  %v2263 = vunpack.c.h.b16 %v2116
  %v2264 = vunpack.c.l.b16 %v2117
  %v2265 = vunpack.c.h.b16 %v2117
  %v2266 = vunpack.c.l.b16 %v2118
  %v2267 = vunpack.c.h.b16 %v2118
  %v2268 = vunpack.c.l.b16 %v2119
  %v2269 = vunpack.c.h.b16 %v2119
  %v2270 = vunpack.c.l.b16 %v2120
  %v2271 = vunpack.c.h.b16 %v2120
  %v2272 = vunpack.c.l.b16 %v2121
  %v2273 = vunpack.c.h.b16 %v2121
  %v2274 = vunpack.c.l.b16 %v2122
  %v2275 = vunpack.c.h.b16 %v2122
  %v2276 = vunpack.c.l.b16 %v2123
  %v2277 = vunpack.c.h.b16 %v2123
  %v2278 = vunpack.c.l.b16 %v2124
  %v2279 = vunpack.c.h.b16 %v2124
  %v2280 = vunpack.c.l.b16 %v2125
  %v2281 = vunpack.c.h.b16 %v2125
  %v2282 = vunpack.c.l.b16 %v2126
  %v2283 = vunpack.c.h.b16 %v2126
  %v2284 = vunpack.c.l.b16 %v2127
  %v2285 = vunpack.c.h.b16 %v2127
  %v2286 = vunpack.c.l.b16 %v2128
  %v2287 = vunpack.c.h.b16 %v2128
  %v2288 = vunpack.c.l.b16 %v2129
  %v2289 = vunpack.c.h.b16 %v2129
  %v2290 = vunpack.c.l.b16 %v2130
  %v2291 = vunpack.c.h.b16 %v2130
  %v2292 = vunpack.c.l.b16 %v2131
  %v2293 = vunpack.c.h.b16 %v2131
  %v2294 = vunpack.c.l.b16 %v2132
  %v2295 = vunpack.c.h.b16 %v2132
  %v2296 = vunpack.c.l.b16 %v2133
  %v2297 = vunpack.c.h.b16 %v2133
  %v2298 = vunpack.c.l.b16 %v2134
  %v2299 = vunpack.c.h.b16 %v2134
  %v2300 = vunpack.c.l.b16 %v2135
  %v2301 = vunpack.c.h.b16 %v2135
  %v2302 = vunpack.c.l.b16 %v2136
  %v2303 = vunpack.c.h.b16 %v2136
  %v2304 = vunpack.c.l.b16 %v2137
  %v2305 = vunpack.c.h.b16 %v2137
  %v2306 = vunpack.c.l.b16 %v2138
  %v2307 = vunpack.c.h.b16 %v2138
  %v2308 = vunpack.c.l.b16 %v2139
  %v2309 = vunpack.c.h.b16 %v2139
  %v2310 = vunpack.c.l.b16 %v2140
  %v2311 = vunpack.c.h.b16 %v2140
  %v2312 = vunpack.c.l.b16 %v2141
  %v2313 = vunpack.c.h.b16 %v2141
  %v2314 = vunpack.c.l.b16 %v2142
  %v2315 = vunpack.c.h.b16 %v2142
  %v2316 = vunpack.c.l.b16 %v2143
  %v2317 = vunpack.c.h.b16 %v2143
  %v2318 = vunpack.c.l.b16 %v2144
  %v2319 = vunpack.c.h.b16 %v2144
  %v2320 = vunpack.c.l.b16 %v2145
  %v2321 = vunpack.c.h.b16 %v2145
  %v2322 = vunpack.c.l.b16 %v2146
  %v2323 = vunpack.c.h.b16 %v2146
  %v2324 = vunpack.c.l.b16 %v2147
  %v2325 = vunpack.c.h.b16 %v2147
  %v2326 = vunpack.c.l.b16 %v2148
  %v2327 = vunpack.c.h.b16 %v2148
  %v2328 = vunpack.c.l.b16 %v2149
  %v2329 = vunpack.c.h.b16 %v2149
  %v2330 = vunpack.c.l.b16 %v2150
  %v2331 = vunpack.c.h.b16 %v2150
  %v2332 = vunpack.c.l.b16 %v2151
  %v2333 = vunpack.c.h.b16 %v2151
  %v2334 = vunpack.c.l.b16 %v2152
  %v2335 = vunpack.c.h.b16 %v2152
  %v2336 = vunpack.c.l.b16 %v2153
  %v2337 = vunpack.c.h.b16 %v2153
  %v2338 = vunpack.c.l.b16 %v2154
  %v2339 = vunpack.c.h.b16 %v2154
  %v2340 = vunpack.c.l.b16 %v2155
  %v2341 = vunpack.c.h.b16 %v2155
  %v2342 = vunpack.c.l.b16 %v2156
  %v2343 = vunpack.c.h.b16 %v2156
  %v2344 = vunpack.c.l.b16 %v2157
  %v2345 = vunpack.c.h.b16 %v2157
  %v2346 = vunpack.c.l.b16 %v2158
  %v2347 = vunpack.c.h.b16 %v2158
  %v2348 = vunpack.c.l.b16 %v2159
  %v2349 = vunpack.c.h.b16 %v2159
  %v2350 = vunpack.c.l.b16 %v2160
  %v2351 = vunpack.c.h.b16 %v2160
  %v2352 = vunpack.c.l.b16 %v2161
  %v2353 = vunpack.c.h.b16 %v2161
  %v2354 = vpack.c.b16 %v2230, %v2226
  %v2355 = vpack.c.b16 %v2231, %v2227
  %v2356 = vpack.c.b16 %v2232, %v2228
  %v2357 = vpack.c.b16 %v2233, %v2229
  %v2358 = vpack.c.b16 %v2238, %v2234
  %v2359 = vpack.c.b16 %v2239, %v2235
  %v2360 = vpack.c.b16 %v2240, %v2236
  %v2361 = vpack.c.b16 %v2241, %v2237
  %v2362 = vpack.c.b16 %v2246, %v2242
  %v2363 = vpack.c.b16 %v2247, %v2243
  %v2364 = vpack.c.b16 %v2248, %v2244
  %v2365 = vpack.c.b16 %v2249, %v2245
  %v2366 = vpack.c.b16 %v2254, %v2250
  %v2367 = vpack.c.b16 %v2255, %v2251
  %v2368 = vpack.c.b16 %v2256, %v2252
  %v2369 = vpack.c.b16 %v2257, %v2253
  %v2370 = vpack.c.b16 %v2262, %v2258
  %v2371 = vpack.c.b16 %v2263, %v2259
  %v2372 = vpack.c.b16 %v2264, %v2260
  %v2373 = vpack.c.b16 %v2265, %v2261
  %v2374 = vpack.c.b16 %v2270, %v2266
  %v2375 = vpack.c.b16 %v2271, %v2267
  %v2376 = vpack.c.b16 %v2272, %v2268
  %v2377 = vpack.c.b16 %v2273, %v2269
  %v2378 = vpack.c.b16 %v2278, %v2274
  %v2379 = vpack.c.b16 %v2279, %v2275
  %v2380 = vpack.c.b16 %v2280, %v2276
  %v2381 = vpack.c.b16 %v2281, %v2277
  %v2382 = vpack.c.b16 %v2286, %v2282
  %v2383 = vpack.c.b16 %v2287, %v2283
  %v2384 = vpack.c.b16 %v2288, %v2284
  %v2385 = vpack.c.b16 %v2289, %v2285
  %v2386 = vpack.c.b16 %v2294, %v2290
  %v2387 = vpack.c.b16 %v2295, %v2291
  %v2388 = vpack.c.b16 %v2296, %v2292
  %v2389 = vpack.c.b16 %v2297, %v2293
  %v2390 = vpack.c.b16 %v2302, %v2298
  %v2391 = vpack.c.b16 %v2303, %v2299
  %v2392 = vpack.c.b16 %v2304, %v2300
  %v2393 = vpack.c.b16 %v2305, %v2301
  %v2394 = vpack.c.b16 %v2310, %v2306
  %v2395 = vpack.c.b16 %v2311, %v2307
  %v2396 = vpack.c.b16 %v2312, %v2308
  %v2397 = vpack.c.b16 %v2313, %v2309
  %v2398 = vpack.c.b16 %v2318, %v2314
  %v2399 = vpack.c.b16 %v2319, %v2315
  %v2400 = vpack.c.b16 %v2320, %v2316
  %v2401 = vpack.c.b16 %v2321, %v2317
  %v2402 = vpack.c.b16 %v2326, %v2322
  %v2403 = vpack.c.b16 %v2327, %v2323
  %v2404 = vpack.c.b16 %v2328, %v2324
  %v2405 = vpack.c.b16 %v2329, %v2325
  %v2406 = vpack.c.b16 %v2334, %v2330
  %v2407 = vpack.c.b16 %v2335, %v2331
  %v2408 = vpack.c.b16 %v2336, %v2332
  %v2409 = vpack.c.b16 %v2337, %v2333
  %v2410 = vpack.c.b16 %v2342, %v2338
  %v2411 = vpack.c.b16 %v2343, %v2339
  %v2412 = vpack.c.b16 %v2344, %v2340
  %v2413 = vpack.c.b16 %v2345, %v2341
  %v2414 = vpack.c.b16 %v2350, %v2346
  %v2415 = vpack.c.b16 %v2351, %v2347
  %v2416 = vpack.c.b16 %v2352, %v2348
  %v2417 = vpack.c.b16 %v2353, %v2349
  %2482 = vmatprep.subr.bf16.mxu0 0
  %2483 = vmatpush1.bf16.msra.mxu0 %v1027
  %2484 = vmatprep.subr.bf16.mxu0 0
  %2485 = vmatpush1.bf16.msra.mxu0 %v1026
  %2486 = vmatprep.subr.bf16.mxu0 0
  %2487 = vmatpush1.bf16.msra.mxu0 %v1025
  %2488 = vmatprep.subr.bf16.mxu0 0
  %2489 = vmatpush1.bf16.msra.mxu0 %v1024
  %2490 = vmatprep.subr.bf16.mxu0 0
  %2491 = vmatpush1.bf16.msra.mxu0 %v1023
  %2492 = vmatprep.subr.bf16.mxu0 0
  %2493 = vmatpush1.bf16.msra.mxu0 %v1022
  %2494 = vmatprep.subr.bf16.mxu0 0
  %2495 = vmatpush1.bf16.msra.mxu0 %v1021
  %2496 = vmatprep.subr.bf16.mxu0 0
  %2497 = vmatpush1.bf16.msra.mxu0 %v1020
  %2498 = vmatprep.subr.bf16.mxu0 0
  %2499 = vmatpush2.bf16.msra.mxu0 %v1035
  %2500 = vmatprep.subr.bf16.mxu0 0
  %2501 = vmatpush2.bf16.msra.mxu0 %v1034
  %2502 = vmatprep.subr.bf16.mxu0 0
  %2503 = vmatpush2.bf16.msra.mxu0 %v1033
  %2504 = vmatprep.subr.bf16.mxu0 0
  %2505 = vmatpush2.bf16.msra.mxu0 %v1032
  %2506 = vmatprep.subr.bf16.mxu0 0
  %2507 = vmatpush2.bf16.msra.mxu0 %v1031
  %2508 = vmatprep.subr.bf16.mxu0 0
  %2509 = vmatpush2.bf16.msra.mxu0 %v1030
  %2510 = vmatprep.subr.bf16.mxu0 0
  %2511 = vmatpush2.bf16.msra.mxu0 %v1029
  %2512 = vmatprep.subr.bf16.mxu0 0
  %2513 = vmatpush2.bf16.msra.mxu0 %v1028
  %2514 = vmatprep.mubr.bf16.mxu0 %v2355
  %2515 = vmatmul.mubr.bf16.gmra.mxu0 %v2354
  %v2516 = vpop.f32.mrf.mxu0
  %v2517 = vadd.f32 0.0, %v2516
  %v2518 = vpop.f32.mrf.mxu0
  %v2519 = vpop.f32.mrf.mxu0
  %v2520 = vadd.f32 0.0, %v2519
  %v2521 = vpop.f32.mrf.mxu0
  %2522 = vmatprep.mubr.bf16.mxu0 %v2359
  %2523 = vmatmul.mubr.bf16.gmra.mxu0 %v2358
  %v2524 = vpop.f32.mrf.mxu0
  %v2525 = vadd.f32 0.0, %v2524
  %v2526 = vpop.f32.mrf.mxu0
  %v2527 = vpop.f32.mrf.mxu0
  %v2528 = vadd.f32 0.0, %v2527
  %v2529 = vpop.f32.mrf.mxu0
  %2530 = vmatprep.mubr.bf16.mxu0 %v2363
  %2531 = vmatmul.mubr.bf16.gmra.mxu0 %v2362
  %v2532 = vpop.f32.mrf.mxu0
  %v2533 = vadd.f32 0.0, %v2532
  %v2534 = vpop.f32.mrf.mxu0
  %v2535 = vpop.f32.mrf.mxu0
  %v2536 = vadd.f32 0.0, %v2535
  %v2537 = vpop.f32.mrf.mxu0
  %2538 = vmatprep.mubr.bf16.mxu0 %v2367
  %2539 = vmatmul.mubr.bf16.gmra.mxu0 %v2366
  %v2540 = vpop.f32.mrf.mxu0
  %v2541 = vadd.f32 0.0, %v2540
  %v2542 = vpop.f32.mrf.mxu0
  %v2543 = vpop.f32.mrf.mxu0
  %v2544 = vadd.f32 0.0, %v2543
  %v2545 = vpop.f32.mrf.mxu0
  %2546 = vmatprep.mubr.bf16.mxu0 %v2371
  %2547 = vmatmul.mubr.bf16.gmra.mxu0 %v2370
  %v2548 = vpop.f32.mrf.mxu0
  %v2549 = vadd.f32 0.0, %v2548
  %v2550 = vpop.f32.mrf.mxu0
  %v2551 = vpop.f32.mrf.mxu0
  %v2552 = vadd.f32 0.0, %v2551
  %v2553 = vpop.f32.mrf.mxu0
  %2554 = vmatprep.mubr.bf16.mxu0 %v2375
  %2555 = vmatmul.mubr.bf16.gmra.mxu0 %v2374
  %v2556 = vpop.f32.mrf.mxu0
  %v2557 = vadd.f32 0.0, %v2556
  %v2558 = vpop.f32.mrf.mxu0
  %v2559 = vpop.f32.mrf.mxu0
  %v2560 = vadd.f32 0.0, %v2559
  %v2561 = vpop.f32.mrf.mxu0
  %2562 = vmatprep.mubr.bf16.mxu0 %v2379
  %2563 = vmatmul.mubr.bf16.gmra.mxu0 %v2378
  %v2564 = vpop.f32.mrf.mxu0
  %v2565 = vadd.f32 0.0, %v2564
  %v2566 = vpop.f32.mrf.mxu0
  %v2567 = vpop.f32.mrf.mxu0
  %v2568 = vadd.f32 0.0, %v2567
  %v2569 = vpop.f32.mrf.mxu0
  %2570 = vmatprep.mubr.bf16.mxu0 %v2383
  %2571 = vmatmul.mubr.bf16.gmra.mxu0 %v2382
  %v2572 = vpop.f32.mrf.mxu0
  %v2573 = vadd.f32 0.0, %v2572
  %v2574 = vpop.f32.mrf.mxu0
  %v2575 = vpop.f32.mrf.mxu0
  %v2576 = vadd.f32 0.0, %v2575
  %v2577 = vpop.f32.mrf.mxu0
  %2578 = vmatprep.mubr.bf16.mxu0 %v2387
  %2579 = vmatmul.mubr.bf16.gmra.mxu0 %v2386
  %v2580 = vpop.f32.mrf.mxu0
  %v2581 = vadd.f32 0.0, %v2580
  %v2582 = vpop.f32.mrf.mxu0
  %v2583 = vpop.f32.mrf.mxu0
  %v2584 = vadd.f32 0.0, %v2583
  %v2585 = vpop.f32.mrf.mxu0
  %2586 = vmatprep.mubr.bf16.mxu0 %v2391
  %2587 = vmatmul.mubr.bf16.gmra.mxu0 %v2390
  %v2588 = vpop.f32.mrf.mxu0
  %v2589 = vadd.f32 0.0, %v2588
  %v2590 = vpop.f32.mrf.mxu0
  %v2591 = vpop.f32.mrf.mxu0
  %v2592 = vadd.f32 0.0, %v2591
  %v2593 = vpop.f32.mrf.mxu0
  %2594 = vmatprep.mubr.bf16.mxu0 %v2395
  %2595 = vmatmul.mubr.bf16.gmra.mxu0 %v2394
  %v2596 = vpop.f32.mrf.mxu0
  %v2597 = vadd.f32 0.0, %v2596
  %v2598 = vpop.f32.mrf.mxu0
  %v2599 = vpop.f32.mrf.mxu0
  %v2600 = vadd.f32 0.0, %v2599
  %v2601 = vpop.f32.mrf.mxu0
  %2602 = vmatprep.mubr.bf16.mxu0 %v2399
  %2603 = vmatmul.mubr.bf16.gmra.mxu0 %v2398
  %v2604 = vpop.f32.mrf.mxu0
  %v2605 = vadd.f32 0.0, %v2604
  %v2606 = vpop.f32.mrf.mxu0
  %v2607 = vpop.f32.mrf.mxu0
  %v2608 = vadd.f32 0.0, %v2607
  %v2609 = vpop.f32.mrf.mxu0
  %2610 = vmatprep.mubr.bf16.mxu0 %v2403
  %2611 = vmatmul.mubr.bf16.gmra.mxu0 %v2402
  %v2612 = vpop.f32.mrf.mxu0
  %v2613 = vadd.f32 0.0, %v2612
  %v2614 = vpop.f32.mrf.mxu0
  %v2615 = vpop.f32.mrf.mxu0
  %v2616 = vadd.f32 0.0, %v2615
  %v2617 = vpop.f32.mrf.mxu0
  %2618 = vmatprep.mubr.bf16.mxu0 %v2407
  %2619 = vmatmul.mubr.bf16.gmra.mxu0 %v2406
  %v2620 = vpop.f32.mrf.mxu0
  %v2621 = vadd.f32 0.0, %v2620
  %v2622 = vpop.f32.mrf.mxu0
  %v2623 = vpop.f32.mrf.mxu0
  %v2624 = vadd.f32 0.0, %v2623
  %v2625 = vpop.f32.mrf.mxu0
  %2626 = vmatprep.mubr.bf16.mxu0 %v2411
  %2627 = vmatmul.mubr.bf16.gmra.mxu0 %v2410
  %v2628 = vpop.f32.mrf.mxu0
  %v2629 = vadd.f32 0.0, %v2628
  %v2630 = vpop.f32.mrf.mxu0
  %v2631 = vpop.f32.mrf.mxu0
  %v2632 = vadd.f32 0.0, %v2631
  %v2633 = vpop.f32.mrf.mxu0
  %2634 = vmatprep.mubr.bf16.mxu0 %v2415
  %2635 = vmatmul.mubr.bf16.gmra.mxu0 %v2414
  %v2636 = vpop.f32.mrf.mxu0
  %v2637 = vadd.f32 0.0, %v2636
  %v2638 = vpop.f32.mrf.mxu0
  %v2639 = vpop.f32.mrf.mxu0
  %v2640 = vadd.f32 0.0, %v2639
  %v2641 = vpop.f32.mrf.mxu0
  %2642 = vdwg.mxu0
  %2643 = vmatprep.subr.bf16.mxu0 0
  %2644 = vmatpush1.bf16.msra.mxu0 %v1043
  %2645 = vmatprep.subr.bf16.mxu0 0
  %2646 = vmatpush1.bf16.msra.mxu0 %v1042
  %2647 = vmatprep.subr.bf16.mxu0 0
  %2648 = vmatpush1.bf16.msra.mxu0 %v1041
  %2649 = vmatprep.subr.bf16.mxu0 0
  %2650 = vmatpush1.bf16.msra.mxu0 %v1040
  %2651 = vmatprep.subr.bf16.mxu0 0
  %2652 = vmatpush1.bf16.msra.mxu0 %v1039
  %2653 = vmatprep.subr.bf16.mxu0 0
  %2654 = vmatpush1.bf16.msra.mxu0 %v1038
  %2655 = vmatprep.subr.bf16.mxu0 0
  %2656 = vmatpush1.bf16.msra.mxu0 %v1037
  %2657 = vmatprep.subr.bf16.mxu0 0
  %2658 = vmatpush1.bf16.msra.mxu0 %v1036
  %2659 = vmatprep.subr.bf16.mxu0 0
  %2660 = vmatpush2.bf16.msra.mxu0 %v1051
  %2661 = vmatprep.subr.bf16.mxu0 0
  %2662 = vmatpush2.bf16.msra.mxu0 %v1050
  %2663 = vmatprep.subr.bf16.mxu0 0
  %2664 = vmatpush2.bf16.msra.mxu0 %v1049
  %2665 = vmatprep.subr.bf16.mxu0 0
  %2666 = vmatpush2.bf16.msra.mxu0 %v1048
  %2667 = vmatprep.subr.bf16.mxu0 0
  %2668 = vmatpush2.bf16.msra.mxu0 %v1047
  %2669 = vmatprep.subr.bf16.mxu0 0
  %2670 = vmatpush2.bf16.msra.mxu0 %v1046
  %2671 = vmatprep.subr.bf16.mxu0 0
  %2672 = vmatpush2.bf16.msra.mxu0 %v1045
  %2673 = vmatprep.subr.bf16.mxu0 0
  %2674 = vmatpush2.bf16.msra.mxu0 %v1044
  %2675 = vmatprep.mubr.bf16.mxu0 %v2357
  %2676 = vmatmul.mubr.bf16.gmra.mxu0 %v2356
  %v2677 = vpop.f32.mrf.mxu0
  %v2678 = vadd.f32 %v2517, %v2677
  %v2679 = vpop.f32.mrf.mxu0
  %v2680 = vpop.f32.mrf.mxu0
  %v2681 = vadd.f32 %v2520, %v2680
  %v2682 = vpop.f32.mrf.mxu0
  %2683 = vmatprep.mubr.bf16.mxu0 %v2361
  %2684 = vmatmul.mubr.bf16.gmra.mxu0 %v2360
  %v2685 = vpop.f32.mrf.mxu0
  %v2686 = vadd.f32 %v2525, %v2685
  %v2687 = vpop.f32.mrf.mxu0
  %v2688 = vpop.f32.mrf.mxu0
  %v2689 = vadd.f32 %v2528, %v2688
  %v2690 = vpop.f32.mrf.mxu0
  %2691 = vmatprep.mubr.bf16.mxu0 %v2365
  %2692 = vmatmul.mubr.bf16.gmra.mxu0 %v2364
  %v2693 = vpop.f32.mrf.mxu0
  %v2694 = vadd.f32 %v2533, %v2693
  %v2695 = vpop.f32.mrf.mxu0
  %v2696 = vpop.f32.mrf.mxu0
  %v2697 = vadd.f32 %v2536, %v2696
  %v2698 = vpop.f32.mrf.mxu0
  %2699 = vmatprep.mubr.bf16.mxu0 %v2369
  %2700 = vmatmul.mubr.bf16.gmra.mxu0 %v2368
  %v2701 = vpop.f32.mrf.mxu0
  %v2702 = vadd.f32 %v2541, %v2701
  %v2703 = vpop.f32.mrf.mxu0
  %v2704 = vpop.f32.mrf.mxu0
  %v2705 = vadd.f32 %v2544, %v2704
  %v2706 = vpop.f32.mrf.mxu0
  %2707 = vmatprep.mubr.bf16.mxu0 %v2373
  %2708 = vmatmul.mubr.bf16.gmra.mxu0 %v2372
  %v2709 = vpop.f32.mrf.mxu0
  %v2710 = vadd.f32 %v2549, %v2709
  %v2711 = vpop.f32.mrf.mxu0
  %v2712 = vpop.f32.mrf.mxu0
  %v2713 = vadd.f32 %v2552, %v2712
  %v2714 = vpop.f32.mrf.mxu0
  %2715 = vmatprep.mubr.bf16.mxu0 %v2377
  %2716 = vmatmul.mubr.bf16.gmra.mxu0 %v2376
  %v2717 = vpop.f32.mrf.mxu0
  %v2718 = vadd.f32 %v2557, %v2717
  %v2719 = vpop.f32.mrf.mxu0
  %v2720 = vpop.f32.mrf.mxu0
  %v2721 = vadd.f32 %v2560, %v2720
  %v2722 = vpop.f32.mrf.mxu0
  %2723 = vmatprep.mubr.bf16.mxu0 %v2381
  %2724 = vmatmul.mubr.bf16.gmra.mxu0 %v2380
  %v2725 = vpop.f32.mrf.mxu0
  %v2726 = vadd.f32 %v2565, %v2725
  %v2727 = vpop.f32.mrf.mxu0
  %v2728 = vpop.f32.mrf.mxu0
  %v2729 = vadd.f32 %v2568, %v2728
  %v2730 = vpop.f32.mrf.mxu0
  %2731 = vmatprep.mubr.bf16.mxu0 %v2385
  %2732 = vmatmul.mubr.bf16.gmra.mxu0 %v2384
  %v2733 = vpop.f32.mrf.mxu0
  %v2734 = vadd.f32 %v2573, %v2733
  %v2735 = vpop.f32.mrf.mxu0
  %v2736 = vpop.f32.mrf.mxu0
  %v2737 = vadd.f32 %v2576, %v2736
  %v2738 = vpop.f32.mrf.mxu0
  %2739 = vmatprep.mubr.bf16.mxu0 %v2389
  %2740 = vmatmul.mubr.bf16.gmra.mxu0 %v2388
  %v2741 = vpop.f32.mrf.mxu0
  %v2742 = vadd.f32 %v2581, %v2741
  %v2743 = vpop.f32.mrf.mxu0
  %v2744 = vpop.f32.mrf.mxu0
  %v2745 = vadd.f32 %v2584, %v2744
  %v2746 = vpop.f32.mrf.mxu0
  %2747 = vmatprep.mubr.bf16.mxu0 %v2393
  %2748 = vmatmul.mubr.bf16.gmra.mxu0 %v2392
  %v2749 = vpop.f32.mrf.mxu0
  %v2750 = vadd.f32 %v2589, %v2749
  %v2751 = vpop.f32.mrf.mxu0
  %v2752 = vpop.f32.mrf.mxu0
  %v2753 = vadd.f32 %v2592, %v2752
  %v2754 = vpop.f32.mrf.mxu0
  %2755 = vmatprep.mubr.bf16.mxu0 %v2397
  %2756 = vmatmul.mubr.bf16.gmra.mxu0 %v2396
  %v2757 = vpop.f32.mrf.mxu0
  %v2758 = vadd.f32 %v2597, %v2757
  %v2759 = vpop.f32.mrf.mxu0
  %v2760 = vpop.f32.mrf.mxu0
  %v2761 = vadd.f32 %v2600, %v2760
  %v2762 = vpop.f32.mrf.mxu0
  %2763 = vmatprep.mubr.bf16.mxu0 %v2401
  %2764 = vmatmul.mubr.bf16.gmra.mxu0 %v2400
  %v2765 = vpop.f32.mrf.mxu0
  %v2766 = vadd.f32 %v2605, %v2765
  %v2767 = vpop.f32.mrf.mxu0
  %v2768 = vpop.f32.mrf.mxu0
  %v2769 = vadd.f32 %v2608, %v2768
  %v2770 = vpop.f32.mrf.mxu0
  %2771 = vmatprep.mubr.bf16.mxu0 %v2405
  %2772 = vmatmul.mubr.bf16.gmra.mxu0 %v2404
  %v2773 = vpop.f32.mrf.mxu0
  %v2774 = vadd.f32 %v2613, %v2773
  %v2775 = vpop.f32.mrf.mxu0
  %v2776 = vpop.f32.mrf.mxu0
  %v2777 = vadd.f32 %v2616, %v2776
  %v2778 = vpop.f32.mrf.mxu0
  %2779 = vmatprep.mubr.bf16.mxu0 %v2409
  %2780 = vmatmul.mubr.bf16.gmra.mxu0 %v2408
  %v2781 = vpop.f32.mrf.mxu0
  %v2782 = vadd.f32 %v2621, %v2781
  %v2783 = vpop.f32.mrf.mxu0
  %v2784 = vpop.f32.mrf.mxu0
  %v2785 = vadd.f32 %v2624, %v2784
  %v2786 = vpop.f32.mrf.mxu0
  %2787 = vmatprep.mubr.bf16.mxu0 %v2413
  %2788 = vmatmul.mubr.bf16.gmra.mxu0 %v2412
  %v2789 = vpop.f32.mrf.mxu0
  %v2790 = vadd.f32 %v2629, %v2789
  %v2791 = vpop.f32.mrf.mxu0
  %v2792 = vpop.f32.mrf.mxu0
  %v2793 = vadd.f32 %v2632, %v2792
  %v2794 = vpop.f32.mrf.mxu0
  %2795 = vmatprep.mubr.bf16.mxu0 %v2417
  %2796 = vmatmul.mubr.bf16.gmra.mxu0 %v2416
  %v2797 = vpop.f32.mrf.mxu0
  %v2798 = vadd.f32 %v2637, %v2797
  %v2799 = vpop.f32.mrf.mxu0
  %v2800 = vpop.f32.mrf.mxu0
  %v2801 = vadd.f32 %v2640, %v2800
  %v2802 = vpop.f32.mrf.mxu0
  %2803 = vdwg.mxu0
  %v2804 = vadd.f32 %v2066, %v2678
  %v2805 = vadd.f32 %v2067, %v2681
  %v2806 = vadd.f32 %v2068, %v2686
  %v2807 = vadd.f32 %v2069, %v2689
  %v2808 = vadd.f32 %v2070, %v2694
  %v2809 = vadd.f32 %v2071, %v2697
  %v2810 = vadd.f32 %v2072, %v2702
  %v2811 = vadd.f32 %v2073, %v2705
  %v2812 = vadd.f32 %v2074, %v2710
  %v2813 = vadd.f32 %v2075, %v2713
  %v2814 = vadd.f32 %v2076, %v2718
  %v2815 = vadd.f32 %v2077, %v2721
  %v2816 = vadd.f32 %v2078, %v2726
  %v2817 = vadd.f32 %v2079, %v2729
  %v2818 = vadd.f32 %v2080, %v2734
  %v2819 = vadd.f32 %v2081, %v2737
  %v2820 = vadd.f32 %v2082, %v2742
  %v2821 = vadd.f32 %v2083, %v2745
  %v2822 = vadd.f32 %v2084, %v2750
  %v2823 = vadd.f32 %v2085, %v2753
  %v2824 = vadd.f32 %v2086, %v2758
  %v2825 = vadd.f32 %v2087, %v2761
  %v2826 = vadd.f32 %v2088, %v2766
  %v2827 = vadd.f32 %v2089, %v2769
  %v2828 = vadd.f32 %v2090, %v2774
  %v2829 = vadd.f32 %v2091, %v2777
  %v2830 = vadd.f32 %v2092, %v2782
  %v2831 = vadd.f32 %v2093, %v2785
  %v2832 = vadd.f32 %v2094, %v2790
  %v2833 = vadd.f32 %v2095, %v2793
  %v2834 = vadd.f32 %v2096, %v2798
  %v2835 = vadd.f32 %v2097, %v2801
  %v2836 = vpack.c.bf16 %v2805, %v2804
  %v2837 = vpack.c.bf16 %v2807, %v2806
  %v2838 = vpack.c.bf16 %v2809, %v2808
  %v2839 = vpack.c.bf16 %v2811, %v2810
  %v2840 = vpack.c.bf16 %v2813, %v2812
  %v2841 = vpack.c.bf16 %v2815, %v2814
  %v2842 = vpack.c.bf16 %v2817, %v2816
  %v2843 = vpack.c.bf16 %v2819, %v2818
  %v2844 = vpack.c.bf16 %v2821, %v2820
  %v2845 = vpack.c.bf16 %v2823, %v2822
  %v2846 = vpack.c.bf16 %v2825, %v2824
  %v2847 = vpack.c.bf16 %v2827, %v2826
  %v2848 = vpack.c.bf16 %v2829, %v2828
  %v2849 = vpack.c.bf16 %v2831, %v2830
  %v2850 = vpack.c.bf16 %v2833, %v2832
  %v2851 = vpack.c.bf16 %v2835, %v2834
  %2852 = vmatprep.subr.bf16.mxu0 0
  %2853 = vmatpush1.bf16.msra.mxu0 %v1497
  %2854 = vmatprep.subr.bf16.mxu0 0
  %2855 = vmatpush1.bf16.msra.mxu0 %v1496
  %2856 = vmatprep.subr.bf16.mxu0 0
  %2857 = vmatpush1.bf16.msra.mxu0 %v1495
  %2858 = vmatprep.subr.bf16.mxu0 0
  %2859 = vmatpush1.bf16.msra.mxu0 %v1494
  %2860 = vmatprep.subr.bf16.mxu0 0
  %2861 = vmatpush1.bf16.msra.mxu0 %v1493
  %2862 = vmatprep.subr.bf16.mxu0 0
  %2863 = vmatpush1.bf16.msra.mxu0 %v1492
  %2864 = vmatprep.subr.bf16.mxu0 0
  %2865 = vmatpush1.bf16.msra.mxu0 %v1491
  %2866 = vmatprep.subr.bf16.mxu0 0
  %2867 = vmatpush1.bf16.msra.mxu0 %v1490
  %2868 = vmatprep.subr.bf16.mxu0 0
  %2869 = vmatpush2.bf16.msra.mxu0 0
  %2870 = vmatprep.subr.bf16.mxu0 0
  %2871 = vmatpush2.bf16.msra.mxu0 0
  %2872 = vmatprep.subr.bf16.mxu0 0
  %2873 = vmatpush2.bf16.msra.mxu0 0
  %2874 = vmatprep.subr.bf16.mxu0 0
  %2875 = vmatpush2.bf16.msra.mxu0 0
  %2876 = vmatprep.subr.bf16.mxu0 0
  %2877 = vmatpush2.bf16.msra.mxu0 0
  %2878 = vmatprep.subr.bf16.mxu0 0
  %2879 = vmatpush2.bf16.msra.mxu0 0
  %2880 = vmatprep.subr.bf16.mxu0 0
  %2881 = vmatpush2.bf16.msra.mxu0 0
  %2882 = vmatprep.subr.bf16.mxu0 0
  %2883 = vmatpush2.bf16.msra.mxu0 0
  %2884 = vmatprep.mubr.bf16.mxu0 0
  %2885 = vmatmul.mubr.bf16.gmra.mxu0 %v2836
  %v2886 = vpop.f32.mrf.mxu0
  %v2887 = vadd.f32 %v1457, %v2886
  %v2888 = vpop.f32.mrf.mxu0
  %v2889 = vpop.f32.mrf.mxu0
  %v2890 = vadd.f32 %v1457, %v2889
  %v2891 = vpop.f32.mrf.mxu0
  %2892 = vmatprep.mubr.bf16.mxu0 0
  %2893 = vmatmul.mubr.bf16.gmra.mxu0 %v2837
  %v2894 = vpop.f32.mrf.mxu0
  %v2895 = vadd.f32 %v1457, %v2894
  %v2896 = vpop.f32.mrf.mxu0
  %v2897 = vpop.f32.mrf.mxu0
  %v2898 = vadd.f32 %v1457, %v2897
  %v2899 = vpop.f32.mrf.mxu0
  %2900 = vmatprep.mubr.bf16.mxu0 0
  %2901 = vmatmul.mubr.bf16.gmra.mxu0 %v2838
  %v2902 = vpop.f32.mrf.mxu0
  %v2903 = vadd.f32 %v1457, %v2902
  %v2904 = vpop.f32.mrf.mxu0
  %v2905 = vpop.f32.mrf.mxu0
  %v2906 = vadd.f32 %v1457, %v2905
  %v2907 = vpop.f32.mrf.mxu0
  %2908 = vmatprep.mubr.bf16.mxu0 0
  %2909 = vmatmul.mubr.bf16.gmra.mxu0 %v2839
  %v2910 = vpop.f32.mrf.mxu0
  %v2911 = vadd.f32 %v1457, %v2910
  %v2912 = vpop.f32.mrf.mxu0
  %v2913 = vpop.f32.mrf.mxu0
  %v2914 = vadd.f32 %v1457, %v2913
  %v2915 = vpop.f32.mrf.mxu0
  %2916 = vmatprep.mubr.bf16.mxu0 0
  %2917 = vmatmul.mubr.bf16.gmra.mxu0 %v2840
  %v2918 = vpop.f32.mrf.mxu0
  %v2919 = vadd.f32 %v1457, %v2918
  %v2920 = vpop.f32.mrf.mxu0
  %v2921 = vpop.f32.mrf.mxu0
  %v2922 = vadd.f32 %v1457, %v2921
  %v2923 = vpop.f32.mrf.mxu0
  %2924 = vmatprep.mubr.bf16.mxu0 0
  %2925 = vmatmul.mubr.bf16.gmra.mxu0 %v2841
  %v2926 = vpop.f32.mrf.mxu0
  %v2927 = vadd.f32 %v1457, %v2926
  %v2928 = vpop.f32.mrf.mxu0
  %v2929 = vpop.f32.mrf.mxu0
  %v2930 = vadd.f32 %v1457, %v2929
  %v2931 = vpop.f32.mrf.mxu0
  %2932 = vmatprep.mubr.bf16.mxu0 0
  %2933 = vmatmul.mubr.bf16.gmra.mxu0 %v2842
  %v2934 = vpop.f32.mrf.mxu0
  %v2935 = vadd.f32 %v1457, %v2934
  %v2936 = vpop.f32.mrf.mxu0
  %v2937 = vpop.f32.mrf.mxu0
  %v2938 = vadd.f32 %v1457, %v2937
  %v2939 = vpop.f32.mrf.mxu0
  %2940 = vmatprep.mubr.bf16.mxu0 0
  %2941 = vmatmul.mubr.bf16.gmra.mxu0 %v2843
  %v2942 = vpop.f32.mrf.mxu0
  %v2943 = vadd.f32 %v1457, %v2942
  %v2944 = vpop.f32.mrf.mxu0
  %v2945 = vpop.f32.mrf.mxu0
  %v2946 = vadd.f32 %v1457, %v2945
  %v2947 = vpop.f32.mrf.mxu0
  %2948 = vmatprep.mubr.bf16.mxu0 0
  %2949 = vmatmul.mubr.bf16.gmra.mxu0 %v2844
  %v2950 = vpop.f32.mrf.mxu0
  %v2951 = vadd.f32 %v1457, %v2950
  %v2952 = vpop.f32.mrf.mxu0
  %v2953 = vpop.f32.mrf.mxu0
  %v2954 = vadd.f32 %v1457, %v2953
  %v2955 = vpop.f32.mrf.mxu0
  %2956 = vmatprep.mubr.bf16.mxu0 0
  %2957 = vmatmul.mubr.bf16.gmra.mxu0 %v2845
  %v2958 = vpop.f32.mrf.mxu0
  %v2959 = vadd.f32 %v1457, %v2958
  %v2960 = vpop.f32.mrf.mxu0
  %v2961 = vpop.f32.mrf.mxu0
  %v2962 = vadd.f32 %v1457, %v2961
  %v2963 = vpop.f32.mrf.mxu0
  %2964 = vmatprep.mubr.bf16.mxu0 0
  %2965 = vmatmul.mubr.bf16.gmra.mxu0 %v2846
  %v2966 = vpop.f32.mrf.mxu0
  %v2967 = vadd.f32 %v1457, %v2966
  %v2968 = vpop.f32.mrf.mxu0
  %v2969 = vpop.f32.mrf.mxu0
  %v2970 = vadd.f32 %v1457, %v2969
  %v2971 = vpop.f32.mrf.mxu0
  %2972 = vmatprep.mubr.bf16.mxu0 0
  %2973 = vmatmul.mubr.bf16.gmra.mxu0 %v2847
  %v2974 = vpop.f32.mrf.mxu0
  %v2975 = vadd.f32 %v1457, %v2974
  %v2976 = vpop.f32.mrf.mxu0
  %v2977 = vpop.f32.mrf.mxu0
  %v2978 = vadd.f32 %v1457, %v2977
  %v2979 = vpop.f32.mrf.mxu0
  %2980 = vmatprep.mubr.bf16.mxu0 0
  %2981 = vmatmul.mubr.bf16.gmra.mxu0 %v2848
  %v2982 = vpop.f32.mrf.mxu0
  %v2983 = vadd.f32 %v1457, %v2982
  %v2984 = vpop.f32.mrf.mxu0
  %v2985 = vpop.f32.mrf.mxu0
  %v2986 = vadd.f32 %v1457, %v2985
  %v2987 = vpop.f32.mrf.mxu0
  %2988 = vmatprep.mubr.bf16.mxu0 0
  %2989 = vmatmul.mubr.bf16.gmra.mxu0 %v2849
  %v2990 = vpop.f32.mrf.mxu0
  %v2991 = vadd.f32 %v1457, %v2990
  %v2992 = vpop.f32.mrf.mxu0
  %v2993 = vpop.f32.mrf.mxu0
  %v2994 = vadd.f32 %v1457, %v2993
  %v2995 = vpop.f32.mrf.mxu0
  %2996 = vmatprep.mubr.bf16.mxu0 0
  %2997 = vmatmul.mubr.bf16.gmra.mxu0 %v2850
  %v2998 = vpop.f32.mrf.mxu0
  %v2999 = vadd.f32 %v1457, %v2998
  %v3000 = vpop.f32.mrf.mxu0
  %v3001 = vpop.f32.mrf.mxu0
  %v3002 = vadd.f32 %v1457, %v3001
  %v3003 = vpop.f32.mrf.mxu0
  %3004 = vmatprep.mubr.bf16.mxu0 0
  %3005 = vmatmul.mubr.bf16.gmra.mxu0 %v2851
  %v3006 = vpop.f32.mrf.mxu0
  %v3007 = vadd.f32 %v1457, %v3006
  %v3008 = vpop.f32.mrf.mxu0
  %v3009 = vpop.f32.mrf.mxu0
  %v3010 = vadd.f32 %v1457, %v3009
  %v3011 = vpop.f32.mrf.mxu0
  %3012 = vdwg.mxu0
  %v3013 = vmax.f32 %v2887, 0.0
  %v3014 = vmax.f32 %v2890, 0.0
  %v3015 = vmax.f32 %v2895, 0.0
  %v3016 = vmax.f32 %v2898, 0.0
  %v3017 = vmax.f32 %v2903, 0.0
  %v3018 = vmax.f32 %v2906, 0.0
  %v3019 = vmax.f32 %v2911, 0.0
  %v3020 = vmax.f32 %v2914, 0.0
  %v3021 = vmax.f32 %v2919, 0.0
  %v3022 = vmax.f32 %v2922, 0.0
  %v3023 = vmax.f32 %v2927, 0.0
  %v3024 = vmax.f32 %v2930, 0.0
  %v3025 = vmax.f32 %v2935, 0.0
  %v3026 = vmax.f32 %v2938, 0.0
  %v3027 = vmax.f32 %v2943, 0.0
  %v3028 = vmax.f32 %v2946, 0.0
  %v3029 = vmax.f32 %v2951, 0.0
  %v3030 = vmax.f32 %v2954, 0.0
  %v3031 = vmax.f32 %v2959, 0.0
  %v3032 = vmax.f32 %v2962, 0.0
  %v3033 = vmax.f32 %v2967, 0.0
  %v3034 = vmax.f32 %v2970, 0.0
  %v3035 = vmax.f32 %v2975, 0.0
  %v3036 = vmax.f32 %v2978, 0.0
  %v3037 = vmax.f32 %v2983, 0.0
  %v3038 = vmax.f32 %v2986, 0.0
  %v3039 = vmax.f32 %v2991, 0.0
  %v3040 = vmax.f32 %v2994, 0.0
  %v3041 = vmax.f32 %v2999, 0.0
  %v3042 = vmax.f32 %v3002, 0.0
  %v3043 = vmax.f32 %v3007, 0.0
  %v3044 = vmax.f32 %v3010, 0.0
  %v3045 = vpack.c.bf16 %v3014, %v3013
  %v3046 = vpack.c.bf16 %v3016, %v3015
  %v3047 = vpack.c.bf16 %v3018, %v3017
  %v3048 = vpack.c.bf16 %v3020, %v3019
  %v3049 = vpack.c.bf16 %v3022, %v3021
  %v3050 = vpack.c.bf16 %v3024, %v3023
  %v3051 = vpack.c.bf16 %v3026, %v3025
  %v3052 = vpack.c.bf16 %v3028, %v3027
  %v3053 = vpack.c.bf16 %v3030, %v3029
  %v3054 = vpack.c.bf16 %v3032, %v3031
  %v3055 = vpack.c.bf16 %v3034, %v3033
  %v3056 = vpack.c.bf16 %v3036, %v3035
  %v3057 = vpack.c.bf16 %v3038, %v3037
  %v3058 = vpack.c.bf16 %v3040, %v3039
  %v3059 = vpack.c.bf16 %v3042, %v3041
  %v3060 = vpack.c.bf16 %v3044, %v3043
  %3061 = vmatprep.subr.bf16.mxu0 0
  %3062 = vmatpush1.bf16.msra.mxu0 %v1758
  %3063 = vmatprep.subr.bf16.mxu0 0
  %3064 = vmatpush1.bf16.msra.mxu0 %v1757
  %3065 = vmatprep.subr.bf16.mxu0 0
  %3066 = vmatpush1.bf16.msra.mxu0 %v1756
  %3067 = vmatprep.subr.bf16.mxu0 0
  %3068 = vmatpush1.bf16.msra.mxu0 %v1755
  %3069 = vmatprep.subr.bf16.mxu0 0
  %3070 = vmatpush1.bf16.msra.mxu0 %v1754
  %3071 = vmatprep.subr.bf16.mxu0 0
  %3072 = vmatpush1.bf16.msra.mxu0 %v1753
  %3073 = vmatprep.subr.bf16.mxu0 0
  %3074 = vmatpush1.bf16.msra.mxu0 %v1752
  %3075 = vmatprep.subr.bf16.mxu0 0
  %3076 = vmatpush1.bf16.msra.mxu0 %v1751
  %3077 = vmatprep.subr.bf16.mxu0 0
  %3078 = vmatpush2.bf16.msra.mxu0 0
  %3079 = vmatprep.subr.bf16.mxu0 0
  %3080 = vmatpush2.bf16.msra.mxu0 0
  %3081 = vmatprep.subr.bf16.mxu0 0
  %3082 = vmatpush2.bf16.msra.mxu0 0
  %3083 = vmatprep.subr.bf16.mxu0 0
  %3084 = vmatpush2.bf16.msra.mxu0 0
  %3085 = vmatprep.subr.bf16.mxu0 0
  %3086 = vmatpush2.bf16.msra.mxu0 0
  %3087 = vmatprep.subr.bf16.mxu0 0
  %3088 = vmatpush2.bf16.msra.mxu0 0
  %3089 = vmatprep.subr.bf16.mxu0 0
  %3090 = vmatpush2.bf16.msra.mxu0 0
  %3091 = vmatprep.subr.bf16.mxu0 0
  %3092 = vmatpush2.bf16.msra.mxu0 0
  %3093 = vmatprep.mubr.bf16.mxu0 0
  %3094 = vmatmul.mubr.bf16.gmra.mxu0 %v3045
  %v3095 = vpop.f32.mrf.mxu0
  %v3096 = vadd.f32 %v1718, %v3095
  %v3097 = vpop.f32.mrf.mxu0
  %v3098 = vpop.f32.mrf.mxu0
  %v3099 = vadd.f32 %v1718, %v3098
  %v3100 = vpop.f32.mrf.mxu0
  %3101 = vmatprep.mubr.bf16.mxu0 0
  %3102 = vmatmul.mubr.bf16.gmra.mxu0 %v3046
  %v3103 = vpop.f32.mrf.mxu0
  %v3104 = vadd.f32 %v1718, %v3103
  %v3105 = vpop.f32.mrf.mxu0
  %v3106 = vpop.f32.mrf.mxu0
  %v3107 = vadd.f32 %v1718, %v3106
  %v3108 = vpop.f32.mrf.mxu0
  %3109 = vmatprep.mubr.bf16.mxu0 0
  %3110 = vmatmul.mubr.bf16.gmra.mxu0 %v3047
  %v3111 = vpop.f32.mrf.mxu0
  %v3112 = vadd.f32 %v1718, %v3111
  %v3113 = vpop.f32.mrf.mxu0
  %v3114 = vpop.f32.mrf.mxu0
  %v3115 = vadd.f32 %v1718, %v3114
  %v3116 = vpop.f32.mrf.mxu0
  %3117 = vmatprep.mubr.bf16.mxu0 0
  %3118 = vmatmul.mubr.bf16.gmra.mxu0 %v3048
  %v3119 = vpop.f32.mrf.mxu0
  %v3120 = vadd.f32 %v1718, %v3119
  %v3121 = vpop.f32.mrf.mxu0
  %v3122 = vpop.f32.mrf.mxu0
  %v3123 = vadd.f32 %v1718, %v3122
  %v3124 = vpop.f32.mrf.mxu0
  %3125 = vmatprep.mubr.bf16.mxu0 0
  %3126 = vmatmul.mubr.bf16.gmra.mxu0 %v3049
  %v3127 = vpop.f32.mrf.mxu0
  %v3128 = vadd.f32 %v1718, %v3127
  %v3129 = vpop.f32.mrf.mxu0
  %v3130 = vpop.f32.mrf.mxu0
  %v3131 = vadd.f32 %v1718, %v3130
  %v3132 = vpop.f32.mrf.mxu0
  %3133 = vmatprep.mubr.bf16.mxu0 0
  %3134 = vmatmul.mubr.bf16.gmra.mxu0 %v3050
  %v3135 = vpop.f32.mrf.mxu0
  %v3136 = vadd.f32 %v1718, %v3135
  %v3137 = vpop.f32.mrf.mxu0
  %v3138 = vpop.f32.mrf.mxu0
  %v3139 = vadd.f32 %v1718, %v3138
  %v3140 = vpop.f32.mrf.mxu0
  %3141 = vmatprep.mubr.bf16.mxu0 0
  %3142 = vmatmul.mubr.bf16.gmra.mxu0 %v3051
  %v3143 = vpop.f32.mrf.mxu0
  %v3144 = vadd.f32 %v1718, %v3143
  %v3145 = vpop.f32.mrf.mxu0
  %v3146 = vpop.f32.mrf.mxu0
  %v3147 = vadd.f32 %v1718, %v3146
  %v3148 = vpop.f32.mrf.mxu0
  %3149 = vmatprep.mubr.bf16.mxu0 0
  %3150 = vmatmul.mubr.bf16.gmra.mxu0 %v3052
  %v3151 = vpop.f32.mrf.mxu0
  %v3152 = vadd.f32 %v1718, %v3151
  %v3153 = vpop.f32.mrf.mxu0
  %v3154 = vpop.f32.mrf.mxu0
  %v3155 = vadd.f32 %v1718, %v3154
  %v3156 = vpop.f32.mrf.mxu0
  %3157 = vmatprep.mubr.bf16.mxu0 0
  %3158 = vmatmul.mubr.bf16.gmra.mxu0 %v3053
  %v3159 = vpop.f32.mrf.mxu0
  %v3160 = vadd.f32 %v1718, %v3159
  %v3161 = vpop.f32.mrf.mxu0
  %v3162 = vpop.f32.mrf.mxu0
  %v3163 = vadd.f32 %v1718, %v3162
  %v3164 = vpop.f32.mrf.mxu0
  %3165 = vmatprep.mubr.bf16.mxu0 0
  %3166 = vmatmul.mubr.bf16.gmra.mxu0 %v3054
  %v3167 = vpop.f32.mrf.mxu0
  %v3168 = vadd.f32 %v1718, %v3167
  %v3169 = vpop.f32.mrf.mxu0
  %v3170 = vpop.f32.mrf.mxu0
  %v3171 = vadd.f32 %v1718, %v3170
  %v3172 = vpop.f32.mrf.mxu0
  %3173 = vmatprep.mubr.bf16.mxu0 0
  %3174 = vmatmul.mubr.bf16.gmra.mxu0 %v3055
  %v3175 = vpop.f32.mrf.mxu0
  %v3176 = vadd.f32 %v1718, %v3175
  %v3177 = vpop.f32.mrf.mxu0
  %v3178 = vpop.f32.mrf.mxu0
  %v3179 = vadd.f32 %v1718, %v3178
  %v3180 = vpop.f32.mrf.mxu0
  %3181 = vmatprep.mubr.bf16.mxu0 0
  %3182 = vmatmul.mubr.bf16.gmra.mxu0 %v3056
  %v3183 = vpop.f32.mrf.mxu0
  %v3184 = vadd.f32 %v1718, %v3183
  %v3185 = vpop.f32.mrf.mxu0
  %v3186 = vpop.f32.mrf.mxu0
  %v3187 = vadd.f32 %v1718, %v3186
  %v3188 = vpop.f32.mrf.mxu0
  %3189 = vmatprep.mubr.bf16.mxu0 0
  %3190 = vmatmul.mubr.bf16.gmra.mxu0 %v3057
  %v3191 = vpop.f32.mrf.mxu0
  %v3192 = vadd.f32 %v1718, %v3191
  %v3193 = vpop.f32.mrf.mxu0
  %v3194 = vpop.f32.mrf.mxu0
  %v3195 = vadd.f32 %v1718, %v3194
  %v3196 = vpop.f32.mrf.mxu0
  %3197 = vmatprep.mubr.bf16.mxu0 0
  %3198 = vmatmul.mubr.bf16.gmra.mxu0 %v3058
  %v3199 = vpop.f32.mrf.mxu0
  %v3200 = vadd.f32 %v1718, %v3199
  %v3201 = vpop.f32.mrf.mxu0
  %v3202 = vpop.f32.mrf.mxu0
  %v3203 = vadd.f32 %v1718, %v3202
  %v3204 = vpop.f32.mrf.mxu0
  %3205 = vmatprep.mubr.bf16.mxu0 0
  %3206 = vmatmul.mubr.bf16.gmra.mxu0 %v3059
  %v3207 = vpop.f32.mrf.mxu0
  %v3208 = vadd.f32 %v1718, %v3207
  %v3209 = vpop.f32.mrf.mxu0
  %v3210 = vpop.f32.mrf.mxu0
  %v3211 = vadd.f32 %v1718, %v3210
  %v3212 = vpop.f32.mrf.mxu0
  %3213 = vmatprep.mubr.bf16.mxu0 0
  %3214 = vmatmul.mubr.bf16.gmra.mxu0 %v3060
  %v3215 = vpop.f32.mrf.mxu0
  %v3216 = vadd.f32 %v1718, %v3215
  %v3217 = vpop.f32.mrf.mxu0
  %v3218 = vpop.f32.mrf.mxu0
  %v3219 = vadd.f32 %v1718, %v3218
  %v3220 = vpop.f32.mrf.mxu0
  %3221 = vdwg.mxu0
  %v3222 = vmax.f32 %v3096, 0.0
  %v3223 = vmax.f32 %v3099, 0.0
  %v3224 = vmax.f32 %v3104, 0.0
  %v3225 = vmax.f32 %v3107, 0.0
  %v3226 = vmax.f32 %v3112, 0.0
  %v3227 = vmax.f32 %v3115, 0.0
  %v3228 = vmax.f32 %v3120, 0.0
  %v3229 = vmax.f32 %v3123, 0.0
  %v3230 = vmax.f32 %v3128, 0.0
  %v3231 = vmax.f32 %v3131, 0.0
  %v3232 = vmax.f32 %v3136, 0.0
  %v3233 = vmax.f32 %v3139, 0.0
  %v3234 = vmax.f32 %v3144, 0.0
  %v3235 = vmax.f32 %v3147, 0.0
  %v3236 = vmax.f32 %v3152, 0.0
  %v3237 = vmax.f32 %v3155, 0.0
  %v3238 = vmax.f32 %v3160, 0.0
  %v3239 = vmax.f32 %v3163, 0.0
  %v3240 = vmax.f32 %v3168, 0.0
  %v3241 = vmax.f32 %v3171, 0.0
  %v3242 = vmax.f32 %v3176, 0.0
  %v3243 = vmax.f32 %v3179, 0.0
  %v3244 = vmax.f32 %v3184, 0.0
  %v3245 = vmax.f32 %v3187, 0.0
  %v3246 = vmax.f32 %v3192, 0.0
  %v3247 = vmax.f32 %v3195, 0.0
  %v3248 = vmax.f32 %v3200, 0.0
  %v3249 = vmax.f32 %v3203, 0.0
  %v3250 = vmax.f32 %v3208, 0.0
  %v3251 = vmax.f32 %v3211, 0.0
  %v3252 = vmax.f32 %v3216, 0.0
  %v3253 = vmax.f32 %v3219, 0.0
  %v3254 = vmul.f32 %v3222, %v1963
  %v3255 = vmul.f32 %v3223, %v1963
  %v3256 = vmul.f32 %v3224, %v1963
  %v3257 = vmul.f32 %v3225, %v1963
  %v3258 = vmul.f32 %v3226, %v1963
  %v3259 = vmul.f32 %v3227, %v1963
  %v3260 = vmul.f32 %v3228, %v1963
  %v3261 = vmul.f32 %v3229, %v1963
  %v3262 = vmul.f32 %v3230, %v1963
  %v3263 = vmul.f32 %v3231, %v1963
  %v3264 = vmul.f32 %v3232, %v1963
  %v3265 = vmul.f32 %v3233, %v1963
  %v3266 = vmul.f32 %v3234, %v1963
  %v3267 = vmul.f32 %v3235, %v1963
  %v3268 = vmul.f32 %v3236, %v1963
  %v3269 = vmul.f32 %v3237, %v1963
  %v3270 = vmul.f32 %v3238, %v1963
  %v3271 = vmul.f32 %v3239, %v1963
  %v3272 = vmul.f32 %v3240, %v1963
  %v3273 = vmul.f32 %v3241, %v1963
  %v3274 = vmul.f32 %v3242, %v1963
  %v3275 = vmul.f32 %v3243, %v1963
  %v3276 = vmul.f32 %v3244, %v1963
  %v3277 = vmul.f32 %v3245, %v1963
  %v3278 = vmul.f32 %v3246, %v1963
  %v3279 = vmul.f32 %v3247, %v1963
  %v3280 = vmul.f32 %v3248, %v1963
  %v3281 = vmul.f32 %v3249, %v1963
  %v3282 = vmul.f32 %v3250, %v1963
  %v3283 = vmul.f32 %v3251, %v1963
  %v3284 = vmul.f32 %v3252, %v1963
  %v3285 = vmul.f32 %v3253, %v1963
  %v3286 = vadd.f32 %v3254, %v1999
  %v3287 = vadd.f32 %v3255, %v1999
  %v3288 = vadd.f32 %v3256, %v1999
  %v3289 = vadd.f32 %v3257, %v1999
  %v3290 = vadd.f32 %v3258, %v1999
  %v3291 = vadd.f32 %v3259, %v1999
  %v3292 = vadd.f32 %v3260, %v1999
  %v3293 = vadd.f32 %v3261, %v1999
  %v3294 = vadd.f32 %v3262, %v1999
  %v3295 = vadd.f32 %v3263, %v1999
  %v3296 = vadd.f32 %v3264, %v1999
  %v3297 = vadd.f32 %v3265, %v1999
  %v3298 = vadd.f32 %v3266, %v1999
  %v3299 = vadd.f32 %v3267, %v1999
  %v3300 = vadd.f32 %v3268, %v1999
  %v3301 = vadd.f32 %v3269, %v1999
  %v3302 = vadd.f32 %v3270, %v1999
  %v3303 = vadd.f32 %v3271, %v1999
  %v3304 = vadd.f32 %v3272, %v1999
  %v3305 = vadd.f32 %v3273, %v1999
  %v3306 = vadd.f32 %v3274, %v1999
  %v3307 = vadd.f32 %v3275, %v1999
  %v3308 = vadd.f32 %v3276, %v1999
  %v3309 = vadd.f32 %v3277, %v1999
  %v3310 = vadd.f32 %v3278, %v1999
  %v3311 = vadd.f32 %v3279, %v1999
  %v3312 = vadd.f32 %v3280, %v1999
  %v3313 = vadd.f32 %v3281, %v1999
  %v3314 = vadd.f32 %v3282, %v1999
  %v3315 = vadd.f32 %v3283, %v1999
  %v3316 = vadd.f32 %v3284, %v1999
  %v3317 = vadd.f32 %v3285, %v1999
  %3318 = vst [vmem:[#allocation4 + $0x300] sm:$0xff] %v3286
  %3319 = vst [vmem:[#allocation4 + $0x318] sm:$0xff] %v3287
  %3320 = vst [vmem:[#allocation4 + $0x330] sm:$0xff] %v3288
  %3321 = vst [vmem:[#allocation4 + $0x348] sm:$0xff] %v3289
  %3322 = vst [vmem:[#allocation4 + $0x360] sm:$0xff] %v3290
  %3323 = vst [vmem:[#allocation4 + $0x378] sm:$0xff] %v3291
  %3324 = vst [vmem:[#allocation4 + $0x390] sm:$0xff] %v3292
  %3325 = vst [vmem:[#allocation4 + $0x3a8] sm:$0xff] %v3293
  %3326 = vst [vmem:[#allocation4 + $0x3c0] sm:$0xff] %v3294
  %3327 = vst [vmem:[#allocation4 + $0x3d8] sm:$0xff] %v3295
  %3328 = vst [vmem:[#allocation4 + $0x3f0] sm:$0xff] %v3296
  %3329 = vst [vmem:[#allocation4 + $0x408] sm:$0xff] %v3297
  %3330 = vst [vmem:[#allocation4 + $0x420] sm:$0xff] %v3298
  %3331 = vst [vmem:[#allocation4 + $0x438] sm:$0xff] %v3299
  %3332 = vst [vmem:[#allocation4 + $0x450] sm:$0xff] %v3300
  %3333 = vst [vmem:[#allocation4 + $0x468] sm:$0xff] %v3301
  %3334 = vst [vmem:[#allocation4 + $0x480] sm:$0xff] %v3302
  %3335 = vst [vmem:[#allocation4 + $0x498] sm:$0xff] %v3303
  %3336 = vst [vmem:[#allocation4 + $0x4b0] sm:$0xff] %v3304
  %3337 = vst [vmem:[#allocation4 + $0x4c8] sm:$0xff] %v3305
  %3338 = vst [vmem:[#allocation4 + $0x4e0] sm:$0xff] %v3306
  %3339 = vst [vmem:[#allocation4 + $0x4f8] sm:$0xff] %v3307
  %3340 = vst [vmem:[#allocation4 + $0x510] sm:$0xff] %v3308
  %3341 = vst [vmem:[#allocation4 + $0x528] sm:$0xff] %v3309
  %3342 = vst [vmem:[#allocation4 + $0x540] sm:$0xff] %v3310
  %3343 = vst [vmem:[#allocation4 + $0x558] sm:$0xff] %v3311
  %3344 = vst [vmem:[#allocation4 + $0x570] sm:$0xff] %v3312
  %3345 = vst [vmem:[#allocation4 + $0x588] sm:$0xff] %v3313
  %3346 = vst [vmem:[#allocation4 + $0x5a0] sm:$0xff] %v3314
  %3347 = vst [vmem:[#allocation4 + $0x5b8] sm:$0xff] %v3315
  %3348 = vst [vmem:[#allocation4 + $0x5d0] sm:$0xff] %v3316
  %3349 = vst [vmem:[#allocation4 + $0x5e8] sm:$0xff] %v3317
  %v3350 = vld [vmem:[#allocation4] sm:$0xff]
  %v3351 = vld [vmem:[#allocation4 + $0x18] sm:$0xff]
  %v3352 = vld [vmem:[#allocation4 + $0x30] sm:$0xff]
  %v3353 = vld [vmem:[#allocation4 + $0x48] sm:$0xff]
  %v3354 = vld [vmem:[#allocation4 + $0x60] sm:$0xff]
  %v3355 = vld [vmem:[#allocation4 + $0x78] sm:$0xff]
  %v3356 = vld [vmem:[#allocation4 + $0x90] sm:$0xff]
  %v3357 = vld [vmem:[#allocation4 + $0xa8] sm:$0xff]
  %v3358 = vld [vmem:[#allocation4 + $0xc0] sm:$0xff]
  %v3359 = vld [vmem:[#allocation4 + $0xd8] sm:$0xff]
  %v3360 = vld [vmem:[#allocation4 + $0xf0] sm:$0xff]
  %v3361 = vld [vmem:[#allocation4 + $0x108] sm:$0xff]
  %v3362 = vld [vmem:[#allocation4 + $0x120] sm:$0xff]
  %v3363 = vld [vmem:[#allocation4 + $0x138] sm:$0xff]
  %v3364 = vld [vmem:[#allocation4 + $0x150] sm:$0xff]
  %v3365 = vld [vmem:[#allocation4 + $0x168] sm:$0xff]
  %v3366 = vld [vmem:[#allocation4 + $0x180] sm:$0xff]
  %v3367 = vld [vmem:[#allocation4 + $0x198] sm:$0xff]
  %v3368 = vld [vmem:[#allocation4 + $0x1b0] sm:$0xff]
  %v3369 = vld [vmem:[#allocation4 + $0x1c8] sm:$0xff]
  %v3370 = vld [vmem:[#allocation4 + $0x1e0] sm:$0xff]
  %v3371 = vld [vmem:[#allocation4 + $0x1f8] sm:$0xff]
  %v3372 = vld [vmem:[#allocation4 + $0x210] sm:$0xff]
  %v3373 = vld [vmem:[#allocation4 + $0x228] sm:$0xff]
  %v3374 = vld [vmem:[#allocation4 + $0x240] sm:$0xff]
  %v3375 = vld [vmem:[#allocation4 + $0x258] sm:$0xff]
  %v3376 = vld [vmem:[#allocation4 + $0x270] sm:$0xff]
  %v3377 = vld [vmem:[#allocation4 + $0x288] sm:$0xff]
  %v3378 = vld [vmem:[#allocation4 + $0x2a0] sm:$0xff]
  %v3379 = vld [vmem:[#allocation4 + $0x2b8] sm:$0xff]
  %v3380 = vld [vmem:[#allocation4 + $0x2d0] sm:$0xff]
  %v3381 = vld [vmem:[#allocation4 + $0x2e8] sm:$0xff]
  %v3382 = vld [vmem:[#allocation4 + $0x300] sm:$0xff]
  %v3383 = vld [vmem:[#allocation4 + $0x318] sm:$0xff]
  %v3384 = vld [vmem:[#allocation4 + $0x330] sm:$0xff]
  %v3385 = vld [vmem:[#allocation4 + $0x348] sm:$0xff]
  %v3386 = vld [vmem:[#allocation4 + $0x360] sm:$0xff]
  %v3387 = vld [vmem:[#allocation4 + $0x378] sm:$0xff]
  %v3388 = vld [vmem:[#allocation4 + $0x390] sm:$0xff]
  %v3389 = vld [vmem:[#allocation4 + $0x3a8] sm:$0xff]
  %v3390 = vld [vmem:[#allocation4 + $0x3c0] sm:$0xff]
  %v3391 = vld [vmem:[#allocation4 + $0x3d8] sm:$0xff]
  %v3392 = vld [vmem:[#allocation4 + $0x3f0] sm:$0xff]
  %v3393 = vld [vmem:[#allocation4 + $0x408] sm:$0xff]
  %v3394 = vld [vmem:[#allocation4 + $0x420] sm:$0xff]
  %v3395 = vld [vmem:[#allocation4 + $0x438] sm:$0xff]
  %v3396 = vld [vmem:[#allocation4 + $0x450] sm:$0xff]
  %v3397 = vld [vmem:[#allocation4 + $0x468] sm:$0xff]
  %v3398 = vld [vmem:[#allocation4 + $0x480] sm:$0xff]
  %v3399 = vld [vmem:[#allocation4 + $0x498] sm:$0xff]
  %v3400 = vld [vmem:[#allocation4 + $0x4b0] sm:$0xff]
  %v3401 = vld [vmem:[#allocation4 + $0x4c8] sm:$0xff]
  %v3402 = vld [vmem:[#allocation4 + $0x4e0] sm:$0xff]
  %v3403 = vld [vmem:[#allocation4 + $0x4f8] sm:$0xff]
  %v3404 = vld [vmem:[#allocation4 + $0x510] sm:$0xff]
  %v3405 = vld [vmem:[#allocation4 + $0x528] sm:$0xff]
  %v3406 = vld [vmem:[#allocation4 + $0x540] sm:$0xff]
  %v3407 = vld [vmem:[#allocation4 + $0x558] sm:$0xff]
  %v3408 = vld [vmem:[#allocation4 + $0x570] sm:$0xff]
  %v3409 = vld [vmem:[#allocation4 + $0x588] sm:$0xff]
  %v3410 = vld [vmem:[#allocation4 + $0x5a0] sm:$0xff]
  %v3411 = vld [vmem:[#allocation4 + $0x5b8] sm:$0xff]
  %v3412 = vld [vmem:[#allocation4 + $0x5d0] sm:$0xff]
  %v3413 = vld [vmem:[#allocation4 + $0x5e8] sm:$0xff]
  %v3414 = vpack.c.bf16 %v3351, %v3350
  %v3415 = vpack.c.bf16 %v3353, %v3352
  %v3416 = vpack.c.bf16 %v3355, %v3354
  %v3417 = vpack.c.bf16 %v3357, %v3356
  %v3418 = vpack.c.bf16 %v3359, %v3358
  %v3419 = vpack.c.bf16 %v3361, %v3360
  %v3420 = vpack.c.bf16 %v3363, %v3362
  %v3421 = vpack.c.bf16 %v3365, %v3364
  %v3422 = vpack.c.bf16 %v3367, %v3366
  %v3423 = vpack.c.bf16 %v3369, %v3368
  %v3424 = vpack.c.bf16 %v3371, %v3370
  %v3425 = vpack.c.bf16 %v3373, %v3372
  %v3426 = vpack.c.bf16 %v3375, %v3374
  %v3427 = vpack.c.bf16 %v3377, %v3376
  %v3428 = vpack.c.bf16 %v3379, %v3378
  %v3429 = vpack.c.bf16 %v3381, %v3380
  %v3430 = vpack.c.bf16 %v3383, %v3382
  %v3431 = vpack.c.bf16 %v3385, %v3384
  %v3432 = vpack.c.bf16 %v3387, %v3386
  %v3433 = vpack.c.bf16 %v3389, %v3388
  %v3434 = vpack.c.bf16 %v3391, %v3390
  %v3435 = vpack.c.bf16 %v3393, %v3392
  %v3436 = vpack.c.bf16 %v3395, %v3394
  %v3437 = vpack.c.bf16 %v3397, %v3396
  %v3438 = vpack.c.bf16 %v3399, %v3398
  %v3439 = vpack.c.bf16 %v3401, %v3400
  %v3440 = vpack.c.bf16 %v3403, %v3402
  %v3441 = vpack.c.bf16 %v3405, %v3404
  %v3442 = vpack.c.bf16 %v3407, %v3406
  %v3443 = vpack.c.bf16 %v3409, %v3408
  %v3444 = vpack.c.bf16 %v3411, %v3410
  %v3445 = vpack.c.bf16 %v3413, %v3412
  %s3446 = scalar_lea.vmem %s3, 64
  %v3447 = vld [vmem:[%s3446] sm:$0xf]
  %v3448 = vld [vmem:[%s3446 + $0x4] sm:$0xf]
  %v3449 = vld [vmem:[%s3446 + $0x8] sm:$0xf]
  %v3450 = vld [vmem:[%s3446 + $0xc] sm:$0xf]
  %v3451 = vld [vmem:[%s3446 + $0x10] sm:$0xf]
  %v3452 = vld [vmem:[%s3446 + $0x14] sm:$0xf]
  %v3453 = vld [vmem:[%s3446 + $0x18] sm:$0xf]
  %v3454 = vld [vmem:[%s3446 + $0x1c] sm:$0xf]
  %v3455 = vld [vmem:[%s3446 + $0x20] sm:$0xf]
  %v3456 = vld [vmem:[%s3446 + $0x24] sm:$0xf]
  %v3457 = vld [vmem:[%s3446 + $0x28] sm:$0xf]
  %v3458 = vld [vmem:[%s3446 + $0x2c] sm:$0xf]
  %v3459 = vld [vmem:[%s3446 + $0x30] sm:$0xf]
  %v3460 = vld [vmem:[%s3446 + $0x34] sm:$0xf]
  %v3461 = vld [vmem:[%s3446 + $0x38] sm:$0xf]
  %v3462 = vld [vmem:[%s3446 + $0x3c] sm:$0xf]
  %s3463 = scalar_lea.vmem %s4, 64
  %v3464 = vld [vmem:[%s3463] sm:$0xf]
  %v3465 = vld [vmem:[%s3463 + $0x4] sm:$0xf]
  %v3466 = vld [vmem:[%s3463 + $0x8] sm:$0xf]
  %v3467 = vld [vmem:[%s3463 + $0xc] sm:$0xf]
  %v3468 = vld [vmem:[%s3463 + $0x10] sm:$0xf]
  %v3469 = vld [vmem:[%s3463 + $0x14] sm:$0xf]
  %v3470 = vld [vmem:[%s3463 + $0x18] sm:$0xf]
  %v3471 = vld [vmem:[%s3463 + $0x1c] sm:$0xf]
  %v3472 = vld [vmem:[%s3463 + $0x20] sm:$0xf]
  %v3473 = vld [vmem:[%s3463 + $0x24] sm:$0xf]
  %v3474 = vld [vmem:[%s3463 + $0x28] sm:$0xf]
  %v3475 = vld [vmem:[%s3463 + $0x2c] sm:$0xf]
  %v3476 = vld [vmem:[%s3463 + $0x30] sm:$0xf]
  %v3477 = vld [vmem:[%s3463 + $0x34] sm:$0xf]
  %v3478 = vld [vmem:[%s3463 + $0x38] sm:$0xf]
  %v3479 = vld [vmem:[%s3463 + $0x3c] sm:$0xf]
  %s3480 = scalar_lea.vmem %s5, 8
  %v3481 = vld [vmem:[%s3480] sm:$0xff]
  %p3483 = scmp.lt.u32.totalorder 512, 8
  %p3484 = pneg %p3483
  // Predicated region
  $region106: #{encoder_feed_forward.1} parent=0 // pred_check
    _
  $region107: #{encoder_feed_forward.1} parent=0 // pred_check_branch
    %3486 = sbr.rel (%p3483) target = $region109
  $region108: #{encoder_feed_forward.1} parent=0 // pred_region
    %s3502 = sand.u32 512, 7
    %p3503 = scmp.eq.s32.totalorder %s3502, 0
    // Predicated region
    $region121: #{encoder_feed_forward.1} parent=108 // pred_check
      %p3504 = pneg %p3503
    $region122: #{encoder_feed_forward.1} parent=108 // pred_check_branch
      %3506 = sbr.rel (%p3504) target = $region124
    $region123: #{encoder_feed_forward.1} parent=108 // pred_region
      loop: start=0, step=1, limit=1
      $region125: #{encoder_feed_forward.1} parent=123 // loop_pre_header
        _
      $region126: #{encoder_feed_forward.1} parent=123 // loop_header
        %s3508 = sphi 0, %s3512
        %p3509 = scmp.ge.s32.totalorder %s3508, 1
        %s3513 = sphi %s0, %s0
        %s3514 = sphi [#allocation2], [#allocation2]
      $region127: #{encoder_feed_forward.1} parent=123 // loop_header_branch
        %3511 = sbr.rel (%p3509) target = $region131
      $region128: #{encoder_feed_forward.1} parent=123 // loop_body
        %v3515 = vld [vmem:[%s3513] sm:$0xff]
        %3516 = vst [vmem:[%s3514] sm:$0xff] %v3515
        %v3517 = vld [vmem:[%s3513 + $0x8] sm:$0xff]
        %3518 = vst [vmem:[%s3514 + $0x8] sm:$0xff] %v3517
        %v3519 = vld [vmem:[%s3513 + $0x10] sm:$0xff]
        %3520 = vst [vmem:[%s3514 + $0x10] sm:$0xff] %v3519
        %v3521 = vld [vmem:[%s3513 + $0x18] sm:$0xff]
        %3522 = vst [vmem:[%s3514 + $0x18] sm:$0xff] %v3521
        %v3523 = vld [vmem:[%s3513 + $0x20] sm:$0xff]
        %3524 = vst [vmem:[%s3514 + $0x20] sm:$0xff] %v3523
        %v3525 = vld [vmem:[%s3513 + $0x28] sm:$0xff]
        %3526 = vst [vmem:[%s3514 + $0x28] sm:$0xff] %v3525
        %v3527 = vld [vmem:[%s3513 + $0x30] sm:$0xff]
        %3528 = vst [vmem:[%s3514 + $0x30] sm:$0xff] %v3527
        %v3529 = vld [vmem:[%s3513 + $0x38] sm:$0xff]
        %3530 = vst [vmem:[%s3514 + $0x38] sm:$0xff] %v3529
        %v3531 = vld [vmem:[%s3513 + $0x40] sm:$0xff]
        %3532 = vst [vmem:[%s3514 + $0x40] sm:$0xff] %v3531
        %v3533 = vld [vmem:[%s3513 + $0x48] sm:$0xff]
        %3534 = vst [vmem:[%s3514 + $0x48] sm:$0xff] %v3533
        %v3535 = vld [vmem:[%s3513 + $0x50] sm:$0xff]
        %3536 = vst [vmem:[%s3514 + $0x50] sm:$0xff] %v3535
        %v3537 = vld [vmem:[%s3513 + $0x58] sm:$0xff]
        %3538 = vst [vmem:[%s3514 + $0x58] sm:$0xff] %v3537
        %v3539 = vld [vmem:[%s3513 + $0x60] sm:$0xff]
        %3540 = vst [vmem:[%s3514 + $0x60] sm:$0xff] %v3539
        %v3541 = vld [vmem:[%s3513 + $0x68] sm:$0xff]
        %3542 = vst [vmem:[%s3514 + $0x68] sm:$0xff] %v3541
        %v3543 = vld [vmem:[%s3513 + $0x70] sm:$0xff]
        %3544 = vst [vmem:[%s3514 + $0x70] sm:$0xff] %v3543
        %v3545 = vld [vmem:[%s3513 + $0x78] sm:$0xff]
        %3546 = vst [vmem:[%s3514 + $0x78] sm:$0xff] %v3545
        %v3547 = vld [vmem:[%s3513 + $0x80] sm:$0xff]
        %3548 = vst [vmem:[%s3514 + $0x80] sm:$0xff] %v3547
        %v3549 = vld [vmem:[%s3513 + $0x88] sm:$0xff]
        %3550 = vst [vmem:[%s3514 + $0x88] sm:$0xff] %v3549
        %v3551 = vld [vmem:[%s3513 + $0x90] sm:$0xff]
        %3552 = vst [vmem:[%s3514 + $0x90] sm:$0xff] %v3551
        %v3553 = vld [vmem:[%s3513 + $0x98] sm:$0xff]
        %3554 = vst [vmem:[%s3514 + $0x98] sm:$0xff] %v3553
        %v3555 = vld [vmem:[%s3513 + $0xa0] sm:$0xff]
        %3556 = vst [vmem:[%s3514 + $0xa0] sm:$0xff] %v3555
        %v3557 = vld [vmem:[%s3513 + $0xa8] sm:$0xff]
        %3558 = vst [vmem:[%s3514 + $0xa8] sm:$0xff] %v3557
        %v3559 = vld [vmem:[%s3513 + $0xb0] sm:$0xff]
        %3560 = vst [vmem:[%s3514 + $0xb0] sm:$0xff] %v3559
        %v3561 = vld [vmem:[%s3513 + $0xb8] sm:$0xff]
        %3562 = vst [vmem:[%s3514 + $0xb8] sm:$0xff] %v3561
        %v3563 = vld [vmem:[%s3513 + $0xc0] sm:$0xff]
        %3564 = vst [vmem:[%s3514 + $0xc0] sm:$0xff] %v3563
        %v3565 = vld [vmem:[%s3513 + $0xc8] sm:$0xff]
        %3566 = vst [vmem:[%s3514 + $0xc8] sm:$0xff] %v3565
        %v3567 = vld [vmem:[%s3513 + $0xd0] sm:$0xff]
        %3568 = vst [vmem:[%s3514 + $0xd0] sm:$0xff] %v3567
        %v3569 = vld [vmem:[%s3513 + $0xd8] sm:$0xff]
        %3570 = vst [vmem:[%s3514 + $0xd8] sm:$0xff] %v3569
        %v3571 = vld [vmem:[%s3513 + $0xe0] sm:$0xff]
        %3572 = vst [vmem:[%s3514 + $0xe0] sm:$0xff] %v3571
        %v3573 = vld [vmem:[%s3513 + $0xe8] sm:$0xff]
        %3574 = vst [vmem:[%s3514 + $0xe8] sm:$0xff] %v3573
        %v3575 = vld [vmem:[%s3513 + $0xf0] sm:$0xff]
        %3576 = vst [vmem:[%s3514 + $0xf0] sm:$0xff] %v3575
        %v3577 = vld [vmem:[%s3513 + $0xf8] sm:$0xff]
        %3578 = vst [vmem:[%s3514 + $0xf8] sm:$0xff] %v3577
        %v3579 = vld [vmem:[%s3513 + $0x100] sm:$0xff]
        %3580 = vst [vmem:[%s3514 + $0x100] sm:$0xff] %v3579
        %v3581 = vld [vmem:[%s3513 + $0x108] sm:$0xff]
        %3582 = vst [vmem:[%s3514 + $0x108] sm:$0xff] %v3581
        %v3583 = vld [vmem:[%s3513 + $0x110] sm:$0xff]
        %3584 = vst [vmem:[%s3514 + $0x110] sm:$0xff] %v3583
        %v3585 = vld [vmem:[%s3513 + $0x118] sm:$0xff]
        %3586 = vst [vmem:[%s3514 + $0x118] sm:$0xff] %v3585
        %v3587 = vld [vmem:[%s3513 + $0x120] sm:$0xff]
        %3588 = vst [vmem:[%s3514 + $0x120] sm:$0xff] %v3587
        %v3589 = vld [vmem:[%s3513 + $0x128] sm:$0xff]
        %3590 = vst [vmem:[%s3514 + $0x128] sm:$0xff] %v3589
        %v3591 = vld [vmem:[%s3513 + $0x130] sm:$0xff]
        %3592 = vst [vmem:[%s3514 + $0x130] sm:$0xff] %v3591
        %v3593 = vld [vmem:[%s3513 + $0x138] sm:$0xff]
        %3594 = vst [vmem:[%s3514 + $0x138] sm:$0xff] %v3593
        %v3595 = vld [vmem:[%s3513 + $0x140] sm:$0xff]
        %3596 = vst [vmem:[%s3514 + $0x140] sm:$0xff] %v3595
        %v3597 = vld [vmem:[%s3513 + $0x148] sm:$0xff]
        %3598 = vst [vmem:[%s3514 + $0x148] sm:$0xff] %v3597
        %v3599 = vld [vmem:[%s3513 + $0x150] sm:$0xff]
        %3600 = vst [vmem:[%s3514 + $0x150] sm:$0xff] %v3599
        %v3601 = vld [vmem:[%s3513 + $0x158] sm:$0xff]
        %3602 = vst [vmem:[%s3514 + $0x158] sm:$0xff] %v3601
        %v3603 = vld [vmem:[%s3513 + $0x160] sm:$0xff]
        %3604 = vst [vmem:[%s3514 + $0x160] sm:$0xff] %v3603
        %v3605 = vld [vmem:[%s3513 + $0x168] sm:$0xff]
        %3606 = vst [vmem:[%s3514 + $0x168] sm:$0xff] %v3605
        %v3607 = vld [vmem:[%s3513 + $0x170] sm:$0xff]
        %3608 = vst [vmem:[%s3514 + $0x170] sm:$0xff] %v3607
        %v3609 = vld [vmem:[%s3513 + $0x178] sm:$0xff]
        %3610 = vst [vmem:[%s3514 + $0x178] sm:$0xff] %v3609
        %v3611 = vld [vmem:[%s3513 + $0x180] sm:$0xff]
        %3612 = vst [vmem:[%s3514 + $0x180] sm:$0xff] %v3611
        %v3613 = vld [vmem:[%s3513 + $0x188] sm:$0xff]
        %3614 = vst [vmem:[%s3514 + $0x188] sm:$0xff] %v3613
        %v3615 = vld [vmem:[%s3513 + $0x190] sm:$0xff]
        %3616 = vst [vmem:[%s3514 + $0x190] sm:$0xff] %v3615
        %v3617 = vld [vmem:[%s3513 + $0x198] sm:$0xff]
        %3618 = vst [vmem:[%s3514 + $0x198] sm:$0xff] %v3617
        %v3619 = vld [vmem:[%s3513 + $0x1a0] sm:$0xff]
        %3620 = vst [vmem:[%s3514 + $0x1a0] sm:$0xff] %v3619
        %v3621 = vld [vmem:[%s3513 + $0x1a8] sm:$0xff]
        %3622 = vst [vmem:[%s3514 + $0x1a8] sm:$0xff] %v3621
        %v3623 = vld [vmem:[%s3513 + $0x1b0] sm:$0xff]
        %3624 = vst [vmem:[%s3514 + $0x1b0] sm:$0xff] %v3623
        %v3625 = vld [vmem:[%s3513 + $0x1b8] sm:$0xff]
        %3626 = vst [vmem:[%s3514 + $0x1b8] sm:$0xff] %v3625
        %v3627 = vld [vmem:[%s3513 + $0x1c0] sm:$0xff]
        %3628 = vst [vmem:[%s3514 + $0x1c0] sm:$0xff] %v3627
        %v3629 = vld [vmem:[%s3513 + $0x1c8] sm:$0xff]
        %3630 = vst [vmem:[%s3514 + $0x1c8] sm:$0xff] %v3629
        %v3631 = vld [vmem:[%s3513 + $0x1d0] sm:$0xff]
        %3632 = vst [vmem:[%s3514 + $0x1d0] sm:$0xff] %v3631
        %v3633 = vld [vmem:[%s3513 + $0x1d8] sm:$0xff]
        %3634 = vst [vmem:[%s3514 + $0x1d8] sm:$0xff] %v3633
        %v3635 = vld [vmem:[%s3513 + $0x1e0] sm:$0xff]
        %3636 = vst [vmem:[%s3514 + $0x1e0] sm:$0xff] %v3635
        %v3637 = vld [vmem:[%s3513 + $0x1e8] sm:$0xff]
        %3638 = vst [vmem:[%s3514 + $0x1e8] sm:$0xff] %v3637
        %v3639 = vld [vmem:[%s3513 + $0x1f0] sm:$0xff]
        %3640 = vst [vmem:[%s3514 + $0x1f0] sm:$0xff] %v3639
        %v3641 = vld [vmem:[%s3513 + $0x1f8] sm:$0xff]
        %3642 = vst [vmem:[%s3514 + $0x1f8] sm:$0xff] %v3641
      $region129: #{encoder_feed_forward.1} parent=123 // loop_footer
        %s3512 = sadd.s32 1, %s3508
      $region130: #{encoder_feed_forward.1} parent=123 // loop_footer_branch
        %3507 = sbr.rel target = $region126
      $region131: #{encoder_feed_forward.1} parent=123 // loop_exit
        _
    $region124: #{encoder_feed_forward.1} parent=108 // pred_fallthru
      _
    %p3643 = pneg %p3503
    // Predicated region
    $region132: #{encoder_feed_forward.1} parent=108 // pred_check
      _
    $region133: #{encoder_feed_forward.1} parent=108 // pred_check_branch
      %3645 = sbr.rel (%p3503) target = $region135
    $region134: #{encoder_feed_forward.1} parent=108 // pred_region
      %s3646 = sand.u32 512, 7
    $region135: #{encoder_feed_forward.1} parent=108 // pred_fallthru
      _
  $region109: #{encoder_feed_forward.1} parent=0 // pred_fallthru
    _
  // Predicated region
  $region110: #{encoder_feed_forward.1} parent=0 // pred_check
    %p3487 = pneg %p3483
  $region111: #{encoder_feed_forward.1} parent=0 // pred_check_branch
    %3489 = sbr.rel (%p3487) target = $region113
  $region112: #{encoder_feed_forward.1} parent=0 // pred_region
    %s3490 = sshll.u32 1, 512
    %s3491 = ssub.s32 %s3490, 1
    loop: start=0, step=1, limit=1
    $region114: #{encoder_feed_forward.1} parent=112 // loop_pre_header
      _
    $region115: #{encoder_feed_forward.1} parent=112 // loop_header
      %s3493 = sphi 0, %s3497
      %p3494 = scmp.ge.s32.totalorder %s3493, 1
      %s3498 = sphi %s0, %s0
      %s3499 = sphi [#allocation2], [#allocation2]
    $region116: #{encoder_feed_forward.1} parent=112 // loop_header_branch
      %3496 = sbr.rel (%p3494) target = $region120
    $region117: #{encoder_feed_forward.1} parent=112 // loop_body
      %v3500 = vld [vmem:[%s3498] sm:%s3491]
      %3501 = vst [vmem:[%s3499] sm:%s3491] %v3500
    $region118: #{encoder_feed_forward.1} parent=112 // loop_footer
      %s3497 = sadd.s32 1, %s3493
    $region119: #{encoder_feed_forward.1} parent=112 // loop_footer_branch
      %3492 = sbr.rel target = $region115
    $region120: #{encoder_feed_forward.1} parent=112 // loop_exit
      _
  $region113: #{encoder_feed_forward.1} parent=0 // pred_fallthru
    _
  // Predicated region
  $region136: #{encoder_feed_forward.1} parent=0 // pred_check
    _
  $region137: #{encoder_feed_forward.1} parent=0 // pred_check_branch
    %3649 = sbr.rel (0) target = $region139
  $region138: #{encoder_feed_forward.1} parent=0 // pred_region
    %3650 = vsyncadd [#allocation3], 8192
  $region139: #{encoder_feed_forward.1} parent=0 // pred_fallthru
    _
  %s3651 = sshll.u32 %s301, 4
  %3652 = dma.done [#allocation3], %s3651
  %p3654 = scmp.lt.u32.totalorder 512, 8
  %p3655 = pneg %p3654
  // Predicated region
  $region140: #{encoder_feed_forward.1} parent=0 // pred_check
    _
  $region141: #{encoder_feed_forward.1} parent=0 // pred_check_branch
    %3657 = sbr.rel (%p3654) target = $region143
  $region142: #{encoder_feed_forward.1} parent=0 // pred_region
    %s3673 = sand.u32 512, 7
    %p3674 = scmp.eq.s32.totalorder %s3673, 0
    // Predicated region
    $region155: #{encoder_feed_forward.1} parent=142 // pred_check
      %p3675 = pneg %p3674
    $region156: #{encoder_feed_forward.1} parent=142 // pred_check_branch
      %3677 = sbr.rel (%p3675) target = $region158
    $region157: #{encoder_feed_forward.1} parent=142 // pred_region
      loop: start=0, step=1, limit=1
      $region159: #{encoder_feed_forward.1} parent=157 // loop_pre_header
        _
      $region160: #{encoder_feed_forward.1} parent=157 // loop_header
        %s3679 = sphi 0, %s3683
        %p3680 = scmp.ge.s32.totalorder %s3679, 1
        %s3684 = sphi %s304, %s304
        %s3685 = sphi %s305, %s305
      $region161: #{encoder_feed_forward.1} parent=157 // loop_header_branch
        %3682 = sbr.rel (%p3680) target = $region165
      $region162: #{encoder_feed_forward.1} parent=157 // loop_body
        %v3686 = vld [vmem:[%s3684] sm:$0xff]
        %3687 = vst [vmem:[%s3685] sm:$0xff] %v3686
        %v3688 = vld [vmem:[%s3684 + $0x8] sm:$0xff]
        %3689 = vst [vmem:[%s3685 + $0x8] sm:$0xff] %v3688
        %v3690 = vld [vmem:[%s3684 + $0x10] sm:$0xff]
        %3691 = vst [vmem:[%s3685 + $0x10] sm:$0xff] %v3690
        %v3692 = vld [vmem:[%s3684 + $0x18] sm:$0xff]
        %3693 = vst [vmem:[%s3685 + $0x18] sm:$0xff] %v3692
        %v3694 = vld [vmem:[%s3684 + $0x20] sm:$0xff]
        %3695 = vst [vmem:[%s3685 + $0x20] sm:$0xff] %v3694
        %v3696 = vld [vmem:[%s3684 + $0x28] sm:$0xff]
        %3697 = vst [vmem:[%s3685 + $0x28] sm:$0xff] %v3696
        %v3698 = vld [vmem:[%s3684 + $0x30] sm:$0xff]
        %3699 = vst [vmem:[%s3685 + $0x30] sm:$0xff] %v3698
        %v3700 = vld [vmem:[%s3684 + $0x38] sm:$0xff]
        %3701 = vst [vmem:[%s3685 + $0x38] sm:$0xff] %v3700
        %v3702 = vld [vmem:[%s3684 + $0x40] sm:$0xff]
        %3703 = vst [vmem:[%s3685 + $0x40] sm:$0xff] %v3702
        %v3704 = vld [vmem:[%s3684 + $0x48] sm:$0xff]
        %3705 = vst [vmem:[%s3685 + $0x48] sm:$0xff] %v3704
        %v3706 = vld [vmem:[%s3684 + $0x50] sm:$0xff]
        %3707 = vst [vmem:[%s3685 + $0x50] sm:$0xff] %v3706
        %v3708 = vld [vmem:[%s3684 + $0x58] sm:$0xff]
        %3709 = vst [vmem:[%s3685 + $0x58] sm:$0xff] %v3708
        %v3710 = vld [vmem:[%s3684 + $0x60] sm:$0xff]
        %3711 = vst [vmem:[%s3685 + $0x60] sm:$0xff] %v3710
        %v3712 = vld [vmem:[%s3684 + $0x68] sm:$0xff]
        %3713 = vst [vmem:[%s3685 + $0x68] sm:$0xff] %v3712
        %v3714 = vld [vmem:[%s3684 + $0x70] sm:$0xff]
        %3715 = vst [vmem:[%s3685 + $0x70] sm:$0xff] %v3714
        %v3716 = vld [vmem:[%s3684 + $0x78] sm:$0xff]
        %3717 = vst [vmem:[%s3685 + $0x78] sm:$0xff] %v3716
        %v3718 = vld [vmem:[%s3684 + $0x80] sm:$0xff]
        %3719 = vst [vmem:[%s3685 + $0x80] sm:$0xff] %v3718
        %v3720 = vld [vmem:[%s3684 + $0x88] sm:$0xff]
        %3721 = vst [vmem:[%s3685 + $0x88] sm:$0xff] %v3720
        %v3722 = vld [vmem:[%s3684 + $0x90] sm:$0xff]
        %3723 = vst [vmem:[%s3685 + $0x90] sm:$0xff] %v3722
        %v3724 = vld [vmem:[%s3684 + $0x98] sm:$0xff]
        %3725 = vst [vmem:[%s3685 + $0x98] sm:$0xff] %v3724
        %v3726 = vld [vmem:[%s3684 + $0xa0] sm:$0xff]
        %3727 = vst [vmem:[%s3685 + $0xa0] sm:$0xff] %v3726
        %v3728 = vld [vmem:[%s3684 + $0xa8] sm:$0xff]
        %3729 = vst [vmem:[%s3685 + $0xa8] sm:$0xff] %v3728
        %v3730 = vld [vmem:[%s3684 + $0xb0] sm:$0xff]
        %3731 = vst [vmem:[%s3685 + $0xb0] sm:$0xff] %v3730
        %v3732 = vld [vmem:[%s3684 + $0xb8] sm:$0xff]
        %3733 = vst [vmem:[%s3685 + $0xb8] sm:$0xff] %v3732
        %v3734 = vld [vmem:[%s3684 + $0xc0] sm:$0xff]
        %3735 = vst [vmem:[%s3685 + $0xc0] sm:$0xff] %v3734
        %v3736 = vld [vmem:[%s3684 + $0xc8] sm:$0xff]
        %3737 = vst [vmem:[%s3685 + $0xc8] sm:$0xff] %v3736
        %v3738 = vld [vmem:[%s3684 + $0xd0] sm:$0xff]
        %3739 = vst [vmem:[%s3685 + $0xd0] sm:$0xff] %v3738
        %v3740 = vld [vmem:[%s3684 + $0xd8] sm:$0xff]
        %3741 = vst [vmem:[%s3685 + $0xd8] sm:$0xff] %v3740
        %v3742 = vld [vmem:[%s3684 + $0xe0] sm:$0xff]
        %3743 = vst [vmem:[%s3685 + $0xe0] sm:$0xff] %v3742
        %v3744 = vld [vmem:[%s3684 + $0xe8] sm:$0xff]
        %3745 = vst [vmem:[%s3685 + $0xe8] sm:$0xff] %v3744
        %v3746 = vld [vmem:[%s3684 + $0xf0] sm:$0xff]
        %3747 = vst [vmem:[%s3685 + $0xf0] sm:$0xff] %v3746
        %v3748 = vld [vmem:[%s3684 + $0xf8] sm:$0xff]
        %3749 = vst [vmem:[%s3685 + $0xf8] sm:$0xff] %v3748
        %v3750 = vld [vmem:[%s3684 + $0x100] sm:$0xff]
        %3751 = vst [vmem:[%s3685 + $0x100] sm:$0xff] %v3750
        %v3752 = vld [vmem:[%s3684 + $0x108] sm:$0xff]
        %3753 = vst [vmem:[%s3685 + $0x108] sm:$0xff] %v3752
        %v3754 = vld [vmem:[%s3684 + $0x110] sm:$0xff]
        %3755 = vst [vmem:[%s3685 + $0x110] sm:$0xff] %v3754
        %v3756 = vld [vmem:[%s3684 + $0x118] sm:$0xff]
        %3757 = vst [vmem:[%s3685 + $0x118] sm:$0xff] %v3756
        %v3758 = vld [vmem:[%s3684 + $0x120] sm:$0xff]
        %3759 = vst [vmem:[%s3685 + $0x120] sm:$0xff] %v3758
        %v3760 = vld [vmem:[%s3684 + $0x128] sm:$0xff]
        %3761 = vst [vmem:[%s3685 + $0x128] sm:$0xff] %v3760
        %v3762 = vld [vmem:[%s3684 + $0x130] sm:$0xff]
        %3763 = vst [vmem:[%s3685 + $0x130] sm:$0xff] %v3762
        %v3764 = vld [vmem:[%s3684 + $0x138] sm:$0xff]
        %3765 = vst [vmem:[%s3685 + $0x138] sm:$0xff] %v3764
        %v3766 = vld [vmem:[%s3684 + $0x140] sm:$0xff]
        %3767 = vst [vmem:[%s3685 + $0x140] sm:$0xff] %v3766
        %v3768 = vld [vmem:[%s3684 + $0x148] sm:$0xff]
        %3769 = vst [vmem:[%s3685 + $0x148] sm:$0xff] %v3768
        %v3770 = vld [vmem:[%s3684 + $0x150] sm:$0xff]
        %3771 = vst [vmem:[%s3685 + $0x150] sm:$0xff] %v3770
        %v3772 = vld [vmem:[%s3684 + $0x158] sm:$0xff]
        %3773 = vst [vmem:[%s3685 + $0x158] sm:$0xff] %v3772
        %v3774 = vld [vmem:[%s3684 + $0x160] sm:$0xff]
        %3775 = vst [vmem:[%s3685 + $0x160] sm:$0xff] %v3774
        %v3776 = vld [vmem:[%s3684 + $0x168] sm:$0xff]
        %3777 = vst [vmem:[%s3685 + $0x168] sm:$0xff] %v3776
        %v3778 = vld [vmem:[%s3684 + $0x170] sm:$0xff]
        %3779 = vst [vmem:[%s3685 + $0x170] sm:$0xff] %v3778
        %v3780 = vld [vmem:[%s3684 + $0x178] sm:$0xff]
        %3781 = vst [vmem:[%s3685 + $0x178] sm:$0xff] %v3780
        %v3782 = vld [vmem:[%s3684 + $0x180] sm:$0xff]
        %3783 = vst [vmem:[%s3685 + $0x180] sm:$0xff] %v3782
        %v3784 = vld [vmem:[%s3684 + $0x188] sm:$0xff]
        %3785 = vst [vmem:[%s3685 + $0x188] sm:$0xff] %v3784
        %v3786 = vld [vmem:[%s3684 + $0x190] sm:$0xff]
        %3787 = vst [vmem:[%s3685 + $0x190] sm:$0xff] %v3786
        %v3788 = vld [vmem:[%s3684 + $0x198] sm:$0xff]
        %3789 = vst [vmem:[%s3685 + $0x198] sm:$0xff] %v3788
        %v3790 = vld [vmem:[%s3684 + $0x1a0] sm:$0xff]
        %3791 = vst [vmem:[%s3685 + $0x1a0] sm:$0xff] %v3790
        %v3792 = vld [vmem:[%s3684 + $0x1a8] sm:$0xff]
        %3793 = vst [vmem:[%s3685 + $0x1a8] sm:$0xff] %v3792
        %v3794 = vld [vmem:[%s3684 + $0x1b0] sm:$0xff]
        %3795 = vst [vmem:[%s3685 + $0x1b0] sm:$0xff] %v3794
        %v3796 = vld [vmem:[%s3684 + $0x1b8] sm:$0xff]
        %3797 = vst [vmem:[%s3685 + $0x1b8] sm:$0xff] %v3796
        %v3798 = vld [vmem:[%s3684 + $0x1c0] sm:$0xff]
        %3799 = vst [vmem:[%s3685 + $0x1c0] sm:$0xff] %v3798
        %v3800 = vld [vmem:[%s3684 + $0x1c8] sm:$0xff]
        %3801 = vst [vmem:[%s3685 + $0x1c8] sm:$0xff] %v3800
        %v3802 = vld [vmem:[%s3684 + $0x1d0] sm:$0xff]
        %3803 = vst [vmem:[%s3685 + $0x1d0] sm:$0xff] %v3802
        %v3804 = vld [vmem:[%s3684 + $0x1d8] sm:$0xff]
        %3805 = vst [vmem:[%s3685 + $0x1d8] sm:$0xff] %v3804
        %v3806 = vld [vmem:[%s3684 + $0x1e0] sm:$0xff]
        %3807 = vst [vmem:[%s3685 + $0x1e0] sm:$0xff] %v3806
        %v3808 = vld [vmem:[%s3684 + $0x1e8] sm:$0xff]
        %3809 = vst [vmem:[%s3685 + $0x1e8] sm:$0xff] %v3808
        %v3810 = vld [vmem:[%s3684 + $0x1f0] sm:$0xff]
        %3811 = vst [vmem:[%s3685 + $0x1f0] sm:$0xff] %v3810
        %v3812 = vld [vmem:[%s3684 + $0x1f8] sm:$0xff]
        %3813 = vst [vmem:[%s3685 + $0x1f8] sm:$0xff] %v3812
      $region163: #{encoder_feed_forward.1} parent=157 // loop_footer
        %s3683 = sadd.s32 1, %s3679
      $region164: #{encoder_feed_forward.1} parent=157 // loop_footer_branch
        %3678 = sbr.rel target = $region160
      $region165: #{encoder_feed_forward.1} parent=157 // loop_exit
        _
    $region158: #{encoder_feed_forward.1} parent=142 // pred_fallthru
      _
    %p3814 = pneg %p3674
    // Predicated region
    $region166: #{encoder_feed_forward.1} parent=142 // pred_check
      _
    $region167: #{encoder_feed_forward.1} parent=142 // pred_check_branch
      %3816 = sbr.rel (%p3674) target = $region169
    $region168: #{encoder_feed_forward.1} parent=142 // pred_region
      %s3817 = sand.u32 512, 7
    $region169: #{encoder_feed_forward.1} parent=142 // pred_fallthru
      _
  $region143: #{encoder_feed_forward.1} parent=0 // pred_fallthru
    _
  // Predicated region
  $region144: #{encoder_feed_forward.1} parent=0 // pred_check
    %p3658 = pneg %p3654
  $region145: #{encoder_feed_forward.1} parent=0 // pred_check_branch
    %3660 = sbr.rel (%p3658) target = $region147
  $region146: #{encoder_feed_forward.1} parent=0 // pred_region
    %s3661 = sshll.u32 1, 512
    %s3662 = ssub.s32 %s3661, 1
    loop: start=0, step=1, limit=1
    $region148: #{encoder_feed_forward.1} parent=146 // loop_pre_header
      _
    $region149: #{encoder_feed_forward.1} parent=146 // loop_header
      %s3664 = sphi 0, %s3668
      %p3665 = scmp.ge.s32.totalorder %s3664, 1
      %s3669 = sphi %s304, %s304
      %s3670 = sphi %s305, %s305
    $region150: #{encoder_feed_forward.1} parent=146 // loop_header_branch
      %3667 = sbr.rel (%p3665) target = $region154
    $region151: #{encoder_feed_forward.1} parent=146 // loop_body
      %v3671 = vld [vmem:[%s3669] sm:%s3662]
      %3672 = vst [vmem:[%s3670] sm:%s3662] %v3671
    $region152: #{encoder_feed_forward.1} parent=146 // loop_footer
      %s3668 = sadd.s32 1, %s3664
    $region153: #{encoder_feed_forward.1} parent=146 // loop_footer_branch
      %3663 = sbr.rel target = $region149
    $region154: #{encoder_feed_forward.1} parent=146 // loop_exit
      _
  $region147: #{encoder_feed_forward.1} parent=0 // pred_fallthru
    _
  // Predicated region
  $region170: #{encoder_feed_forward.1} parent=0 // pred_check
    _
  $region171: #{encoder_feed_forward.1} parent=0 // pred_check_branch
    %3820 = sbr.rel (0) target = $region173
  $region172: #{encoder_feed_forward.1} parent=0 // pred_region
    %3821 = vsyncadd %s306, 8192
  $region173: #{encoder_feed_forward.1} parent=0 // pred_fallthru
    _
  %v3822 = vld [vmem:[#allocation4] sm:$0xff]
  %v3823 = vld [vmem:[#allocation4 + $0x18] sm:$0xff]
  %v3824 = vld [vmem:[#allocation4 + $0x30] sm:$0xff]
  %v3825 = vld [vmem:[#allocation4 + $0x48] sm:$0xff]
  %v3826 = vld [vmem:[#allocation4 + $0x60] sm:$0xff]
  %v3827 = vld [vmem:[#allocation4 + $0x78] sm:$0xff]
  %v3828 = vld [vmem:[#allocation4 + $0x90] sm:$0xff]
  %v3829 = vld [vmem:[#allocation4 + $0xa8] sm:$0xff]
  %v3830 = vld [vmem:[#allocation4 + $0xc0] sm:$0xff]
  %v3831 = vld [vmem:[#allocation4 + $0xd8] sm:$0xff]
  %v3832 = vld [vmem:[#allocation4 + $0xf0] sm:$0xff]
  %v3833 = vld [vmem:[#allocation4 + $0x108] sm:$0xff]
  %v3834 = vld [vmem:[#allocation4 + $0x120] sm:$0xff]
  %v3835 = vld [vmem:[#allocation4 + $0x138] sm:$0xff]
  %v3836 = vld [vmem:[#allocation4 + $0x150] sm:$0xff]
  %v3837 = vld [vmem:[#allocation4 + $0x168] sm:$0xff]
  %v3838 = vld [vmem:[#allocation4 + $0x180] sm:$0xff]
  %v3839 = vld [vmem:[#allocation4 + $0x198] sm:$0xff]
  %v3840 = vld [vmem:[#allocation4 + $0x1b0] sm:$0xff]
  %v3841 = vld [vmem:[#allocation4 + $0x1c8] sm:$0xff]
  %v3842 = vld [vmem:[#allocation4 + $0x1e0] sm:$0xff]
  %v3843 = vld [vmem:[#allocation4 + $0x1f8] sm:$0xff]
  %v3844 = vld [vmem:[#allocation4 + $0x210] sm:$0xff]
  %v3845 = vld [vmem:[#allocation4 + $0x228] sm:$0xff]
  %v3846 = vld [vmem:[#allocation4 + $0x240] sm:$0xff]
  %v3847 = vld [vmem:[#allocation4 + $0x258] sm:$0xff]
  %v3848 = vld [vmem:[#allocation4 + $0x270] sm:$0xff]
  %v3849 = vld [vmem:[#allocation4 + $0x288] sm:$0xff]
  %v3850 = vld [vmem:[#allocation4 + $0x2a0] sm:$0xff]
  %v3851 = vld [vmem:[#allocation4 + $0x2b8] sm:$0xff]
  %v3852 = vld [vmem:[#allocation4 + $0x2d0] sm:$0xff]
  %v3853 = vld [vmem:[#allocation4 + $0x2e8] sm:$0xff]
  %v3854 = vld [vmem:[#allocation2] sm:$0xff]
  %v3855 = vld [vmem:[#allocation2 + $0x8] sm:$0xff]
  %v3856 = vld [vmem:[#allocation2 + $0x10] sm:$0xff]
  %v3857 = vld [vmem:[#allocation2 + $0x18] sm:$0xff]
  %v3858 = vld [vmem:[#allocation2 + $0x20] sm:$0xff]
  %v3859 = vld [vmem:[#allocation2 + $0x28] sm:$0xff]
  %v3860 = vld [vmem:[#allocation2 + $0x30] sm:$0xff]
  %v3861 = vld [vmem:[#allocation2 + $0x38] sm:$0xff]
  %v3862 = vld [vmem:[#allocation2 + $0x40] sm:$0xff]
  %v3863 = vld [vmem:[#allocation2 + $0x48] sm:$0xff]
  %v3864 = vld [vmem:[#allocation2 + $0x50] sm:$0xff]
  %v3865 = vld [vmem:[#allocation2 + $0x58] sm:$0xff]
  %v3866 = vld [vmem:[#allocation2 + $0x60] sm:$0xff]
  %v3867 = vld [vmem:[#allocation2 + $0x68] sm:$0xff]
  %v3868 = vld [vmem:[#allocation2 + $0x70] sm:$0xff]
  %v3869 = vld [vmem:[#allocation2 + $0x78] sm:$0xff]
  %v3870 = vld [vmem:[#allocation2 + $0x80] sm:$0xff]
  %v3871 = vld [vmem:[#allocation2 + $0x88] sm:$0xff]
  %v3872 = vld [vmem:[#allocation2 + $0x90] sm:$0xff]
  %v3873 = vld [vmem:[#allocation2 + $0x98] sm:$0xff]
  %v3874 = vld [vmem:[#allocation2 + $0xa0] sm:$0xff]
  %v3875 = vld [vmem:[#allocation2 + $0xa8] sm:$0xff]
  %v3876 = vld [vmem:[#allocation2 + $0xb0] sm:$0xff]
  %v3877 = vld [vmem:[#allocation2 + $0xb8] sm:$0xff]
  %v3878 = vld [vmem:[#allocation2 + $0xc0] sm:$0xff]
  %v3879 = vld [vmem:[#allocation2 + $0xc8] sm:$0xff]
  %v3880 = vld [vmem:[#allocation2 + $0xd0] sm:$0xff]
  %v3881 = vld [vmem:[#allocation2 + $0xd8] sm:$0xff]
  %v3882 = vld [vmem:[#allocation2 + $0xe0] sm:$0xff]
  %v3883 = vld [vmem:[#allocation2 + $0xe8] sm:$0xff]
  %v3884 = vld [vmem:[#allocation2 + $0xf0] sm:$0xff]
  %v3885 = vld [vmem:[#allocation2 + $0xf8] sm:$0xff]
  %v3886 = vld [vmem:[#allocation2 + $0x100] sm:$0xff]
  %v3887 = vld [vmem:[#allocation2 + $0x108] sm:$0xff]
  %v3888 = vld [vmem:[#allocation2 + $0x110] sm:$0xff]
  %v3889 = vld [vmem:[#allocation2 + $0x118] sm:$0xff]
  %v3890 = vld [vmem:[#allocation2 + $0x120] sm:$0xff]
  %v3891 = vld [vmem:[#allocation2 + $0x128] sm:$0xff]
  %v3892 = vld [vmem:[#allocation2 + $0x130] sm:$0xff]
  %v3893 = vld [vmem:[#allocation2 + $0x138] sm:$0xff]
  %v3894 = vld [vmem:[#allocation2 + $0x140] sm:$0xff]
  %v3895 = vld [vmem:[#allocation2 + $0x148] sm:$0xff]
  %v3896 = vld [vmem:[#allocation2 + $0x150] sm:$0xff]
  %v3897 = vld [vmem:[#allocation2 + $0x158] sm:$0xff]
  %v3898 = vld [vmem:[#allocation2 + $0x160] sm:$0xff]
  %v3899 = vld [vmem:[#allocation2 + $0x168] sm:$0xff]
  %v3900 = vld [vmem:[#allocation2 + $0x170] sm:$0xff]
  %v3901 = vld [vmem:[#allocation2 + $0x178] sm:$0xff]
  %v3902 = vld [vmem:[#allocation2 + $0x180] sm:$0xff]
  %v3903 = vld [vmem:[#allocation2 + $0x188] sm:$0xff]
  %v3904 = vld [vmem:[#allocation2 + $0x190] sm:$0xff]
  %v3905 = vld [vmem:[#allocation2 + $0x198] sm:$0xff]
  %v3906 = vld [vmem:[#allocation2 + $0x1a0] sm:$0xff]
  %v3907 = vld [vmem:[#allocation2 + $0x1a8] sm:$0xff]
  %v3908 = vld [vmem:[#allocation2 + $0x1b0] sm:$0xff]
  %v3909 = vld [vmem:[#allocation2 + $0x1b8] sm:$0xff]
  %v3910 = vld [vmem:[#allocation2 + $0x1c0] sm:$0xff]
  %v3911 = vld [vmem:[#allocation2 + $0x1c8] sm:$0xff]
  %v3912 = vld [vmem:[#allocation2 + $0x1d0] sm:$0xff]
  %v3913 = vld [vmem:[#allocation2 + $0x1d8] sm:$0xff]
  %v3914 = vld [vmem:[#allocation2 + $0x1e0] sm:$0xff]
  %v3915 = vld [vmem:[#allocation2 + $0x1e8] sm:$0xff]
  %v3916 = vld [vmem:[#allocation2 + $0x1f0] sm:$0xff]
  %v3917 = vld [vmem:[#allocation2 + $0x1f8] sm:$0xff]
  %v3982 = vunpack.c.l.b16 %v3854
  %v3983 = vunpack.c.h.b16 %v3854
  %v3984 = vunpack.c.l.b16 %v3855
  %v3985 = vunpack.c.h.b16 %v3855
  %v3986 = vunpack.c.l.b16 %v3856
  %v3987 = vunpack.c.h.b16 %v3856
  %v3988 = vunpack.c.l.b16 %v3857
  %v3989 = vunpack.c.h.b16 %v3857
  %v3990 = vunpack.c.l.b16 %v3858
  %v3991 = vunpack.c.h.b16 %v3858
  %v3992 = vunpack.c.l.b16 %v3859
  %v3993 = vunpack.c.h.b16 %v3859
  %v3994 = vunpack.c.l.b16 %v3860
  %v3995 = vunpack.c.h.b16 %v3860
  %v3996 = vunpack.c.l.b16 %v3861
  %v3997 = vunpack.c.h.b16 %v3861
  %v3998 = vunpack.c.l.b16 %v3862
  %v3999 = vunpack.c.h.b16 %v3862
  %v4000 = vunpack.c.l.b16 %v3863
  %v4001 = vunpack.c.h.b16 %v3863
  %v4002 = vunpack.c.l.b16 %v3864
  %v4003 = vunpack.c.h.b16 %v3864
  %v4004 = vunpack.c.l.b16 %v3865
  %v4005 = vunpack.c.h.b16 %v3865
  %v4006 = vunpack.c.l.b16 %v3866
  %v4007 = vunpack.c.h.b16 %v3866
  %v4008 = vunpack.c.l.b16 %v3867
  %v4009 = vunpack.c.h.b16 %v3867
  %v4010 = vunpack.c.l.b16 %v3868
  %v4011 = vunpack.c.h.b16 %v3868
  %v4012 = vunpack.c.l.b16 %v3869
  %v4013 = vunpack.c.h.b16 %v3869
  %v4014 = vunpack.c.l.b16 %v3870
  %v4015 = vunpack.c.h.b16 %v3870
  %v4016 = vunpack.c.l.b16 %v3871
  %v4017 = vunpack.c.h.b16 %v3871
  %v4018 = vunpack.c.l.b16 %v3872
  %v4019 = vunpack.c.h.b16 %v3872
  %v4020 = vunpack.c.l.b16 %v3873
  %v4021 = vunpack.c.h.b16 %v3873
  %v4022 = vunpack.c.l.b16 %v3874
  %v4023 = vunpack.c.h.b16 %v3874
  %v4024 = vunpack.c.l.b16 %v3875
  %v4025 = vunpack.c.h.b16 %v3875
  %v4026 = vunpack.c.l.b16 %v3876
  %v4027 = vunpack.c.h.b16 %v3876
  %v4028 = vunpack.c.l.b16 %v3877
  %v4029 = vunpack.c.h.b16 %v3877
  %v4030 = vunpack.c.l.b16 %v3878
  %v4031 = vunpack.c.h.b16 %v3878
  %v4032 = vunpack.c.l.b16 %v3879
  %v4033 = vunpack.c.h.b16 %v3879
  %v4034 = vunpack.c.l.b16 %v3880
  %v4035 = vunpack.c.h.b16 %v3880
  %v4036 = vunpack.c.l.b16 %v3881
  %v4037 = vunpack.c.h.b16 %v3881
  %v4038 = vunpack.c.l.b16 %v3882
  %v4039 = vunpack.c.h.b16 %v3882
  %v4040 = vunpack.c.l.b16 %v3883
  %v4041 = vunpack.c.h.b16 %v3883
  %v4042 = vunpack.c.l.b16 %v3884
  %v4043 = vunpack.c.h.b16 %v3884
  %v4044 = vunpack.c.l.b16 %v3885
  %v4045 = vunpack.c.h.b16 %v3885
  %v4046 = vunpack.c.l.b16 %v3886
  %v4047 = vunpack.c.h.b16 %v3886
  %v4048 = vunpack.c.l.b16 %v3887
  %v4049 = vunpack.c.h.b16 %v3887
  %v4050 = vunpack.c.l.b16 %v3888
  %v4051 = vunpack.c.h.b16 %v3888
  %v4052 = vunpack.c.l.b16 %v3889
  %v4053 = vunpack.c.h.b16 %v3889
  %v4054 = vunpack.c.l.b16 %v3890
  %v4055 = vunpack.c.h.b16 %v3890
  %v4056 = vunpack.c.l.b16 %v3891
  %v4057 = vunpack.c.h.b16 %v3891
  %v4058 = vunpack.c.l.b16 %v3892
  %v4059 = vunpack.c.h.b16 %v3892
  %v4060 = vunpack.c.l.b16 %v3893
  %v4061 = vunpack.c.h.b16 %v3893
  %v4062 = vunpack.c.l.b16 %v3894
  %v4063 = vunpack.c.h.b16 %v3894
  %v4064 = vunpack.c.l.b16 %v3895
  %v4065 = vunpack.c.h.b16 %v3895
  %v4066 = vunpack.c.l.b16 %v3896
  %v4067 = vunpack.c.h.b16 %v3896
  %v4068 = vunpack.c.l.b16 %v3897
  %v4069 = vunpack.c.h.b16 %v3897
  %v4070 = vunpack.c.l.b16 %v3898
  %v4071 = vunpack.c.h.b16 %v3898
  %v4072 = vunpack.c.l.b16 %v3899
  %v4073 = vunpack.c.h.b16 %v3899
  %v4074 = vunpack.c.l.b16 %v3900
  %v4075 = vunpack.c.h.b16 %v3900
  %v4076 = vunpack.c.l.b16 %v3901
  %v4077 = vunpack.c.h.b16 %v3901
  %v4078 = vunpack.c.l.b16 %v3902
  %v4079 = vunpack.c.h.b16 %v3902
  %v4080 = vunpack.c.l.b16 %v3903
  %v4081 = vunpack.c.h.b16 %v3903
  %v4082 = vunpack.c.l.b16 %v3904
  %v4083 = vunpack.c.h.b16 %v3904
  %v4084 = vunpack.c.l.b16 %v3905
  %v4085 = vunpack.c.h.b16 %v3905
  %v4086 = vunpack.c.l.b16 %v3906
  %v4087 = vunpack.c.h.b16 %v3906
  %v4088 = vunpack.c.l.b16 %v3907
  %v4089 = vunpack.c.h.b16 %v3907
  %v4090 = vunpack.c.l.b16 %v3908
  %v4091 = vunpack.c.h.b16 %v3908
  %v4092 = vunpack.c.l.b16 %v3909
  %v4093 = vunpack.c.h.b16 %v3909
  %v4094 = vunpack.c.l.b16 %v3910
  %v4095 = vunpack.c.h.b16 %v3910
  %v4096 = vunpack.c.l.b16 %v3911
  %v4097 = vunpack.c.h.b16 %v3911
  %v4098 = vunpack.c.l.b16 %v3912
  %v4099 = vunpack.c.h.b16 %v3912
  %v4100 = vunpack.c.l.b16 %v3913
  %v4101 = vunpack.c.h.b16 %v3913
  %v4102 = vunpack.c.l.b16 %v3914
  %v4103 = vunpack.c.h.b16 %v3914
  %v4104 = vunpack.c.l.b16 %v3915
  %v4105 = vunpack.c.h.b16 %v3915
  %v4106 = vunpack.c.l.b16 %v3916
  %v4107 = vunpack.c.h.b16 %v3916
  %v4108 = vunpack.c.l.b16 %v3917
  %v4109 = vunpack.c.h.b16 %v3917
  %v4110 = vpack.c.b16 %v3986, %v3982
  %v4111 = vpack.c.b16 %v3987, %v3983
  %v4112 = vpack.c.b16 %v3988, %v3984
  %v4113 = vpack.c.b16 %v3989, %v3985
  %v4114 = vpack.c.b16 %v3994, %v3990
  %v4115 = vpack.c.b16 %v3995, %v3991
  %v4116 = vpack.c.b16 %v3996, %v3992
  %v4117 = vpack.c.b16 %v3997, %v3993
  %v4118 = vpack.c.b16 %v4002, %v3998
  %v4119 = vpack.c.b16 %v4003, %v3999
  %v4120 = vpack.c.b16 %v4004, %v4000
  %v4121 = vpack.c.b16 %v4005, %v4001
  %v4122 = vpack.c.b16 %v4010, %v4006
  %v4123 = vpack.c.b16 %v4011, %v4007
  %v4124 = vpack.c.b16 %v4012, %v4008
  %v4125 = vpack.c.b16 %v4013, %v4009
  %v4126 = vpack.c.b16 %v4018, %v4014
  %v4127 = vpack.c.b16 %v4019, %v4015
  %v4128 = vpack.c.b16 %v4020, %v4016
  %v4129 = vpack.c.b16 %v4021, %v4017
  %v4130 = vpack.c.b16 %v4026, %v4022
  %v4131 = vpack.c.b16 %v4027, %v4023
  %v4132 = vpack.c.b16 %v4028, %v4024
  %v4133 = vpack.c.b16 %v4029, %v4025
  %v4134 = vpack.c.b16 %v4034, %v4030
  %v4135 = vpack.c.b16 %v4035, %v4031
  %v4136 = vpack.c.b16 %v4036, %v4032
  %v4137 = vpack.c.b16 %v4037, %v4033
  %v4138 = vpack.c.b16 %v4042, %v4038
  %v4139 = vpack.c.b16 %v4043, %v4039
  %v4140 = vpack.c.b16 %v4044, %v4040
  %v4141 = vpack.c.b16 %v4045, %v4041
  %v4142 = vpack.c.b16 %v4050, %v4046
  %v4143 = vpack.c.b16 %v4051, %v4047
  %v4144 = vpack.c.b16 %v4052, %v4048
  %v4145 = vpack.c.b16 %v4053, %v4049
  %v4146 = vpack.c.b16 %v4058, %v4054
  %v4147 = vpack.c.b16 %v4059, %v4055
  %v4148 = vpack.c.b16 %v4060, %v4056
  %v4149 = vpack.c.b16 %v4061, %v4057
  %v4150 = vpack.c.b16 %v4066, %v4062
  %v4151 = vpack.c.b16 %v4067, %v4063
  %v4152 = vpack.c.b16 %v4068, %v4064
  %v4153 = vpack.c.b16 %v4069, %v4065
  %v4154 = vpack.c.b16 %v4074, %v4070
  %v4155 = vpack.c.b16 %v4075, %v4071
  %v4156 = vpack.c.b16 %v4076, %v4072
  %v4157 = vpack.c.b16 %v4077, %v4073
  %v4158 = vpack.c.b16 %v4082, %v4078
  %v4159 = vpack.c.b16 %v4083, %v4079
  %v4160 = vpack.c.b16 %v4084, %v4080
  %v4161 = vpack.c.b16 %v4085, %v4081
  %v4162 = vpack.c.b16 %v4090, %v4086
  %v4163 = vpack.c.b16 %v4091, %v4087
  %v4164 = vpack.c.b16 %v4092, %v4088
  %v4165 = vpack.c.b16 %v4093, %v4089
  %v4166 = vpack.c.b16 %v4098, %v4094
  %v4167 = vpack.c.b16 %v4099, %v4095
  %v4168 = vpack.c.b16 %v4100, %v4096
  %v4169 = vpack.c.b16 %v4101, %v4097
  %v4170 = vpack.c.b16 %v4106, %v4102
  %v4171 = vpack.c.b16 %v4107, %v4103
  %v4172 = vpack.c.b16 %v4108, %v4104
  %v4173 = vpack.c.b16 %v4109, %v4105
  %4238 = vmatprep.subr.bf16.mxu0 0
  %4239 = vmatpush1.bf16.msra.mxu0 %v3421
  %4240 = vmatprep.subr.bf16.mxu0 0
  %4241 = vmatpush1.bf16.msra.mxu0 %v3420
  %4242 = vmatprep.subr.bf16.mxu0 0
  %4243 = vmatpush1.bf16.msra.mxu0 %v3419
  %4244 = vmatprep.subr.bf16.mxu0 0
  %4245 = vmatpush1.bf16.msra.mxu0 %v3418
  %4246 = vmatprep.subr.bf16.mxu0 0
  %4247 = vmatpush1.bf16.msra.mxu0 %v3417
  %4248 = vmatprep.subr.bf16.mxu0 0
  %4249 = vmatpush1.bf16.msra.mxu0 %v3416
  %4250 = vmatprep.subr.bf16.mxu0 0
  %4251 = vmatpush1.bf16.msra.mxu0 %v3415
  %4252 = vmatprep.subr.bf16.mxu0 0
  %4253 = vmatpush1.bf16.msra.mxu0 %v3414
  %4254 = vmatprep.subr.bf16.mxu0 0
  %4255 = vmatpush2.bf16.msra.mxu0 %v3429
  %4256 = vmatprep.subr.bf16.mxu0 0
  %4257 = vmatpush2.bf16.msra.mxu0 %v3428
  %4258 = vmatprep.subr.bf16.mxu0 0
  %4259 = vmatpush2.bf16.msra.mxu0 %v3427
  %4260 = vmatprep.subr.bf16.mxu0 0
  %4261 = vmatpush2.bf16.msra.mxu0 %v3426
  %4262 = vmatprep.subr.bf16.mxu0 0
  %4263 = vmatpush2.bf16.msra.mxu0 %v3425
  %4264 = vmatprep.subr.bf16.mxu0 0
  %4265 = vmatpush2.bf16.msra.mxu0 %v3424
  %4266 = vmatprep.subr.bf16.mxu0 0
  %4267 = vmatpush2.bf16.msra.mxu0 %v3423
  %4268 = vmatprep.subr.bf16.mxu0 0
  %4269 = vmatpush2.bf16.msra.mxu0 %v3422
  %4270 = vmatprep.mubr.bf16.mxu0 %v4111
  %4271 = vmatmul.mubr.bf16.gmra.mxu0 %v4110
  %v4272 = vpop.f32.mrf.mxu0
  %v4273 = vadd.f32 0.0, %v4272
  %v4274 = vpop.f32.mrf.mxu0
  %v4275 = vpop.f32.mrf.mxu0
  %v4276 = vadd.f32 0.0, %v4275
  %v4277 = vpop.f32.mrf.mxu0
  %4278 = vmatprep.mubr.bf16.mxu0 %v4115
  %4279 = vmatmul.mubr.bf16.gmra.mxu0 %v4114
  %v4280 = vpop.f32.mrf.mxu0
  %v4281 = vadd.f32 0.0, %v4280
  %v4282 = vpop.f32.mrf.mxu0
  %v4283 = vpop.f32.mrf.mxu0
  %v4284 = vadd.f32 0.0, %v4283
  %v4285 = vpop.f32.mrf.mxu0
  %4286 = vmatprep.mubr.bf16.mxu0 %v4119
  %4287 = vmatmul.mubr.bf16.gmra.mxu0 %v4118
  %v4288 = vpop.f32.mrf.mxu0
  %v4289 = vadd.f32 0.0, %v4288
  %v4290 = vpop.f32.mrf.mxu0
  %v4291 = vpop.f32.mrf.mxu0
  %v4292 = vadd.f32 0.0, %v4291
  %v4293 = vpop.f32.mrf.mxu0
  %4294 = vmatprep.mubr.bf16.mxu0 %v4123
  %4295 = vmatmul.mubr.bf16.gmra.mxu0 %v4122
  %v4296 = vpop.f32.mrf.mxu0
  %v4297 = vadd.f32 0.0, %v4296
  %v4298 = vpop.f32.mrf.mxu0
  %v4299 = vpop.f32.mrf.mxu0
  %v4300 = vadd.f32 0.0, %v4299
  %v4301 = vpop.f32.mrf.mxu0
  %4302 = vmatprep.mubr.bf16.mxu0 %v4127
  %4303 = vmatmul.mubr.bf16.gmra.mxu0 %v4126
  %v4304 = vpop.f32.mrf.mxu0
  %v4305 = vadd.f32 0.0, %v4304
  %v4306 = vpop.f32.mrf.mxu0
  %v4307 = vpop.f32.mrf.mxu0
  %v4308 = vadd.f32 0.0, %v4307
  %v4309 = vpop.f32.mrf.mxu0
  %4310 = vmatprep.mubr.bf16.mxu0 %v4131
  %4311 = vmatmul.mubr.bf16.gmra.mxu0 %v4130
  %v4312 = vpop.f32.mrf.mxu0
  %v4313 = vadd.f32 0.0, %v4312
  %v4314 = vpop.f32.mrf.mxu0
  %v4315 = vpop.f32.mrf.mxu0
  %v4316 = vadd.f32 0.0, %v4315
  %v4317 = vpop.f32.mrf.mxu0
  %4318 = vmatprep.mubr.bf16.mxu0 %v4135
  %4319 = vmatmul.mubr.bf16.gmra.mxu0 %v4134
  %v4320 = vpop.f32.mrf.mxu0
  %v4321 = vadd.f32 0.0, %v4320
  %v4322 = vpop.f32.mrf.mxu0
  %v4323 = vpop.f32.mrf.mxu0
  %v4324 = vadd.f32 0.0, %v4323
  %v4325 = vpop.f32.mrf.mxu0
  %4326 = vmatprep.mubr.bf16.mxu0 %v4139
  %4327 = vmatmul.mubr.bf16.gmra.mxu0 %v4138
  %v4328 = vpop.f32.mrf.mxu0
  %v4329 = vadd.f32 0.0, %v4328
  %v4330 = vpop.f32.mrf.mxu0
  %v4331 = vpop.f32.mrf.mxu0
  %v4332 = vadd.f32 0.0, %v4331
  %v4333 = vpop.f32.mrf.mxu0
  %4334 = vmatprep.mubr.bf16.mxu0 %v4143
  %4335 = vmatmul.mubr.bf16.gmra.mxu0 %v4142
  %v4336 = vpop.f32.mrf.mxu0
  %v4337 = vadd.f32 0.0, %v4336
  %v4338 = vpop.f32.mrf.mxu0
  %v4339 = vpop.f32.mrf.mxu0
  %v4340 = vadd.f32 0.0, %v4339
  %v4341 = vpop.f32.mrf.mxu0
  %4342 = vmatprep.mubr.bf16.mxu0 %v4147
  %4343 = vmatmul.mubr.bf16.gmra.mxu0 %v4146
  %v4344 = vpop.f32.mrf.mxu0
  %v4345 = vadd.f32 0.0, %v4344
  %v4346 = vpop.f32.mrf.mxu0
  %v4347 = vpop.f32.mrf.mxu0
  %v4348 = vadd.f32 0.0, %v4347
  %v4349 = vpop.f32.mrf.mxu0
  %4350 = vmatprep.mubr.bf16.mxu0 %v4151
  %4351 = vmatmul.mubr.bf16.gmra.mxu0 %v4150
  %v4352 = vpop.f32.mrf.mxu0
  %v4353 = vadd.f32 0.0, %v4352
  %v4354 = vpop.f32.mrf.mxu0
  %v4355 = vpop.f32.mrf.mxu0
  %v4356 = vadd.f32 0.0, %v4355
  %v4357 = vpop.f32.mrf.mxu0
  %4358 = vmatprep.mubr.bf16.mxu0 %v4155
  %4359 = vmatmul.mubr.bf16.gmra.mxu0 %v4154
  %v4360 = vpop.f32.mrf.mxu0
  %v4361 = vadd.f32 0.0, %v4360
  %v4362 = vpop.f32.mrf.mxu0
  %v4363 = vpop.f32.mrf.mxu0
  %v4364 = vadd.f32 0.0, %v4363
  %v4365 = vpop.f32.mrf.mxu0
  %4366 = vmatprep.mubr.bf16.mxu0 %v4159
  %4367 = vmatmul.mubr.bf16.gmra.mxu0 %v4158
  %v4368 = vpop.f32.mrf.mxu0
  %v4369 = vadd.f32 0.0, %v4368
  %v4370 = vpop.f32.mrf.mxu0
  %v4371 = vpop.f32.mrf.mxu0
  %v4372 = vadd.f32 0.0, %v4371
  %v4373 = vpop.f32.mrf.mxu0
  %4374 = vmatprep.mubr.bf16.mxu0 %v4163
  %4375 = vmatmul.mubr.bf16.gmra.mxu0 %v4162
  %v4376 = vpop.f32.mrf.mxu0
  %v4377 = vadd.f32 0.0, %v4376
  %v4378 = vpop.f32.mrf.mxu0
  %v4379 = vpop.f32.mrf.mxu0
  %v4380 = vadd.f32 0.0, %v4379
  %v4381 = vpop.f32.mrf.mxu0
  %4382 = vmatprep.mubr.bf16.mxu0 %v4167
  %4383 = vmatmul.mubr.bf16.gmra.mxu0 %v4166
  %v4384 = vpop.f32.mrf.mxu0
  %v4385 = vadd.f32 0.0, %v4384
  %v4386 = vpop.f32.mrf.mxu0
  %v4387 = vpop.f32.mrf.mxu0
  %v4388 = vadd.f32 0.0, %v4387
  %v4389 = vpop.f32.mrf.mxu0
  %4390 = vmatprep.mubr.bf16.mxu0 %v4171
  %4391 = vmatmul.mubr.bf16.gmra.mxu0 %v4170
  %v4392 = vpop.f32.mrf.mxu0
  %v4393 = vadd.f32 0.0, %v4392
  %v4394 = vpop.f32.mrf.mxu0
  %v4395 = vpop.f32.mrf.mxu0
  %v4396 = vadd.f32 0.0, %v4395
  %v4397 = vpop.f32.mrf.mxu0
  %4398 = vdwg.mxu0
  %4399 = vmatprep.subr.bf16.mxu0 0
  %4400 = vmatpush1.bf16.msra.mxu0 %v3437
  %4401 = vmatprep.subr.bf16.mxu0 0
  %4402 = vmatpush1.bf16.msra.mxu0 %v3436
  %4403 = vmatprep.subr.bf16.mxu0 0
  %4404 = vmatpush1.bf16.msra.mxu0 %v3435
  %4405 = vmatprep.subr.bf16.mxu0 0
  %4406 = vmatpush1.bf16.msra.mxu0 %v3434
  %4407 = vmatprep.subr.bf16.mxu0 0
  %4408 = vmatpush1.bf16.msra.mxu0 %v3433
  %4409 = vmatprep.subr.bf16.mxu0 0
  %4410 = vmatpush1.bf16.msra.mxu0 %v3432
  %4411 = vmatprep.subr.bf16.mxu0 0
  %4412 = vmatpush1.bf16.msra.mxu0 %v3431
  %4413 = vmatprep.subr.bf16.mxu0 0
  %4414 = vmatpush1.bf16.msra.mxu0 %v3430
  %4415 = vmatprep.subr.bf16.mxu0 0
  %4416 = vmatpush2.bf16.msra.mxu0 %v3445
  %4417 = vmatprep.subr.bf16.mxu0 0
  %4418 = vmatpush2.bf16.msra.mxu0 %v3444
  %4419 = vmatprep.subr.bf16.mxu0 0
  %4420 = vmatpush2.bf16.msra.mxu0 %v3443
  %4421 = vmatprep.subr.bf16.mxu0 0
  %4422 = vmatpush2.bf16.msra.mxu0 %v3442
  %4423 = vmatprep.subr.bf16.mxu0 0
  %4424 = vmatpush2.bf16.msra.mxu0 %v3441
  %4425 = vmatprep.subr.bf16.mxu0 0
  %4426 = vmatpush2.bf16.msra.mxu0 %v3440
  %4427 = vmatprep.subr.bf16.mxu0 0
  %4428 = vmatpush2.bf16.msra.mxu0 %v3439
  %4429 = vmatprep.subr.bf16.mxu0 0
  %4430 = vmatpush2.bf16.msra.mxu0 %v3438
  %4431 = vmatprep.mubr.bf16.mxu0 %v4113
  %4432 = vmatmul.mubr.bf16.gmra.mxu0 %v4112
  %v4433 = vpop.f32.mrf.mxu0
  %v4434 = vadd.f32 %v4273, %v4433
  %v4435 = vpop.f32.mrf.mxu0
  %v4436 = vpop.f32.mrf.mxu0
  %v4437 = vadd.f32 %v4276, %v4436
  %v4438 = vpop.f32.mrf.mxu0
  %4439 = vmatprep.mubr.bf16.mxu0 %v4117
  %4440 = vmatmul.mubr.bf16.gmra.mxu0 %v4116
  %v4441 = vpop.f32.mrf.mxu0
  %v4442 = vadd.f32 %v4281, %v4441
  %v4443 = vpop.f32.mrf.mxu0
  %v4444 = vpop.f32.mrf.mxu0
  %v4445 = vadd.f32 %v4284, %v4444
  %v4446 = vpop.f32.mrf.mxu0
  %4447 = vmatprep.mubr.bf16.mxu0 %v4121
  %4448 = vmatmul.mubr.bf16.gmra.mxu0 %v4120
  %v4449 = vpop.f32.mrf.mxu0
  %v4450 = vadd.f32 %v4289, %v4449
  %v4451 = vpop.f32.mrf.mxu0
  %v4452 = vpop.f32.mrf.mxu0
  %v4453 = vadd.f32 %v4292, %v4452
  %v4454 = vpop.f32.mrf.mxu0
  %4455 = vmatprep.mubr.bf16.mxu0 %v4125
  %4456 = vmatmul.mubr.bf16.gmra.mxu0 %v4124
  %v4457 = vpop.f32.mrf.mxu0
  %v4458 = vadd.f32 %v4297, %v4457
  %v4459 = vpop.f32.mrf.mxu0
  %v4460 = vpop.f32.mrf.mxu0
  %v4461 = vadd.f32 %v4300, %v4460
  %v4462 = vpop.f32.mrf.mxu0
  %4463 = vmatprep.mubr.bf16.mxu0 %v4129
  %4464 = vmatmul.mubr.bf16.gmra.mxu0 %v4128
  %v4465 = vpop.f32.mrf.mxu0
  %v4466 = vadd.f32 %v4305, %v4465
  %v4467 = vpop.f32.mrf.mxu0
  %v4468 = vpop.f32.mrf.mxu0
  %v4469 = vadd.f32 %v4308, %v4468
  %v4470 = vpop.f32.mrf.mxu0
  %4471 = vmatprep.mubr.bf16.mxu0 %v4133
  %4472 = vmatmul.mubr.bf16.gmra.mxu0 %v4132
  %v4473 = vpop.f32.mrf.mxu0
  %v4474 = vadd.f32 %v4313, %v4473
  %v4475 = vpop.f32.mrf.mxu0
  %v4476 = vpop.f32.mrf.mxu0
  %v4477 = vadd.f32 %v4316, %v4476
  %v4478 = vpop.f32.mrf.mxu0
  %4479 = vmatprep.mubr.bf16.mxu0 %v4137
  %4480 = vmatmul.mubr.bf16.gmra.mxu0 %v4136
  %v4481 = vpop.f32.mrf.mxu0
  %v4482 = vadd.f32 %v4321, %v4481
  %v4483 = vpop.f32.mrf.mxu0
  %v4484 = vpop.f32.mrf.mxu0
  %v4485 = vadd.f32 %v4324, %v4484
  %v4486 = vpop.f32.mrf.mxu0
  %4487 = vmatprep.mubr.bf16.mxu0 %v4141
  %4488 = vmatmul.mubr.bf16.gmra.mxu0 %v4140
  %v4489 = vpop.f32.mrf.mxu0
  %v4490 = vadd.f32 %v4329, %v4489
  %v4491 = vpop.f32.mrf.mxu0
  %v4492 = vpop.f32.mrf.mxu0
  %v4493 = vadd.f32 %v4332, %v4492
  %v4494 = vpop.f32.mrf.mxu0
  %4495 = vmatprep.mubr.bf16.mxu0 %v4145
  %4496 = vmatmul.mubr.bf16.gmra.mxu0 %v4144
  %v4497 = vpop.f32.mrf.mxu0
  %v4498 = vadd.f32 %v4337, %v4497
  %v4499 = vpop.f32.mrf.mxu0
  %v4500 = vpop.f32.mrf.mxu0
  %v4501 = vadd.f32 %v4340, %v4500
  %v4502 = vpop.f32.mrf.mxu0
  %4503 = vmatprep.mubr.bf16.mxu0 %v4149
  %4504 = vmatmul.mubr.bf16.gmra.mxu0 %v4148
  %v4505 = vpop.f32.mrf.mxu0
  %v4506 = vadd.f32 %v4345, %v4505
  %v4507 = vpop.f32.mrf.mxu0
  %v4508 = vpop.f32.mrf.mxu0
  %v4509 = vadd.f32 %v4348, %v4508
  %v4510 = vpop.f32.mrf.mxu0
  %4511 = vmatprep.mubr.bf16.mxu0 %v4153
  %4512 = vmatmul.mubr.bf16.gmra.mxu0 %v4152
  %v4513 = vpop.f32.mrf.mxu0
  %v4514 = vadd.f32 %v4353, %v4513
  %v4515 = vpop.f32.mrf.mxu0
  %v4516 = vpop.f32.mrf.mxu0
  %v4517 = vadd.f32 %v4356, %v4516
  %v4518 = vpop.f32.mrf.mxu0
  %4519 = vmatprep.mubr.bf16.mxu0 %v4157
  %4520 = vmatmul.mubr.bf16.gmra.mxu0 %v4156
  %v4521 = vpop.f32.mrf.mxu0
  %v4522 = vadd.f32 %v4361, %v4521
  %v4523 = vpop.f32.mrf.mxu0
  %v4524 = vpop.f32.mrf.mxu0
  %v4525 = vadd.f32 %v4364, %v4524
  %v4526 = vpop.f32.mrf.mxu0
  %4527 = vmatprep.mubr.bf16.mxu0 %v4161
  %4528 = vmatmul.mubr.bf16.gmra.mxu0 %v4160
  %v4529 = vpop.f32.mrf.mxu0
  %v4530 = vadd.f32 %v4369, %v4529
  %v4531 = vpop.f32.mrf.mxu0
  %v4532 = vpop.f32.mrf.mxu0
  %v4533 = vadd.f32 %v4372, %v4532
  %v4534 = vpop.f32.mrf.mxu0
  %4535 = vmatprep.mubr.bf16.mxu0 %v4165
  %4536 = vmatmul.mubr.bf16.gmra.mxu0 %v4164
  %v4537 = vpop.f32.mrf.mxu0
  %v4538 = vadd.f32 %v4377, %v4537
  %v4539 = vpop.f32.mrf.mxu0
  %v4540 = vpop.f32.mrf.mxu0
  %v4541 = vadd.f32 %v4380, %v4540
  %v4542 = vpop.f32.mrf.mxu0
  %4543 = vmatprep.mubr.bf16.mxu0 %v4169
  %4544 = vmatmul.mubr.bf16.gmra.mxu0 %v4168
  %v4545 = vpop.f32.mrf.mxu0
  %v4546 = vadd.f32 %v4385, %v4545
  %v4547 = vpop.f32.mrf.mxu0
  %v4548 = vpop.f32.mrf.mxu0
  %v4549 = vadd.f32 %v4388, %v4548
  %v4550 = vpop.f32.mrf.mxu0
  %4551 = vmatprep.mubr.bf16.mxu0 %v4173
  %4552 = vmatmul.mubr.bf16.gmra.mxu0 %v4172
  %v4553 = vpop.f32.mrf.mxu0
  %v4554 = vadd.f32 %v4393, %v4553
  %v4555 = vpop.f32.mrf.mxu0
  %v4556 = vpop.f32.mrf.mxu0
  %v4557 = vadd.f32 %v4396, %v4556
  %v4558 = vpop.f32.mrf.mxu0
  %4559 = vdwg.mxu0
  %v4560 = vadd.f32 %v3822, %v4434
  %v4561 = vadd.f32 %v3823, %v4437
  %v4562 = vadd.f32 %v3824, %v4442
  %v4563 = vadd.f32 %v3825, %v4445
  %v4564 = vadd.f32 %v3826, %v4450
  %v4565 = vadd.f32 %v3827, %v4453
  %v4566 = vadd.f32 %v3828, %v4458
  %v4567 = vadd.f32 %v3829, %v4461
  %v4568 = vadd.f32 %v3830, %v4466
  %v4569 = vadd.f32 %v3831, %v4469
  %v4570 = vadd.f32 %v3832, %v4474
  %v4571 = vadd.f32 %v3833, %v4477
  %v4572 = vadd.f32 %v3834, %v4482
  %v4573 = vadd.f32 %v3835, %v4485
  %v4574 = vadd.f32 %v3836, %v4490
  %v4575 = vadd.f32 %v3837, %v4493
  %v4576 = vadd.f32 %v3838, %v4498
  %v4577 = vadd.f32 %v3839, %v4501
  %v4578 = vadd.f32 %v3840, %v4506
  %v4579 = vadd.f32 %v3841, %v4509
  %v4580 = vadd.f32 %v3842, %v4514
  %v4581 = vadd.f32 %v3843, %v4517
  %v4582 = vadd.f32 %v3844, %v4522
  %v4583 = vadd.f32 %v3845, %v4525
  %v4584 = vadd.f32 %v3846, %v4530
  %v4585 = vadd.f32 %v3847, %v4533
  %v4586 = vadd.f32 %v3848, %v4538
  %v4587 = vadd.f32 %v3849, %v4541
  %v4588 = vadd.f32 %v3850, %v4546
  %v4589 = vadd.f32 %v3851, %v4549
  %v4590 = vadd.f32 %v3852, %v4554
  %v4591 = vadd.f32 %v3853, %v4557
  %v4592 = vpack.c.bf16 %v4561, %v4560
  %v4593 = vpack.c.bf16 %v4563, %v4562
  %v4594 = vpack.c.bf16 %v4565, %v4564
  %v4595 = vpack.c.bf16 %v4567, %v4566
  %v4596 = vpack.c.bf16 %v4569, %v4568
  %v4597 = vpack.c.bf16 %v4571, %v4570
  %v4598 = vpack.c.bf16 %v4573, %v4572
  %v4599 = vpack.c.bf16 %v4575, %v4574
  %v4600 = vpack.c.bf16 %v4577, %v4576
  %v4601 = vpack.c.bf16 %v4579, %v4578
  %v4602 = vpack.c.bf16 %v4581, %v4580
  %v4603 = vpack.c.bf16 %v4583, %v4582
  %v4604 = vpack.c.bf16 %v4585, %v4584
  %v4605 = vpack.c.bf16 %v4587, %v4586
  %v4606 = vpack.c.bf16 %v4589, %v4588
  %v4607 = vpack.c.bf16 %v4591, %v4590
  %v4608 = vlaneseq
  %v4609 = vshrl.u32 %v4608, 7
  %v4610 = vsub.s32 0, %v4609
  %v4611 = vrot.slane %v3481, %v4610
  %v4628 = vunpack.c.l.b16 %v3447
  %v4629 = vunpack.c.l.b16 %v3448
  %v4630 = vunpack.c.l.b16 %v3449
  %v4631 = vunpack.c.l.b16 %v3450
  %v4632 = vunpack.c.l.b16 %v3451
  %v4633 = vunpack.c.l.b16 %v3452
  %v4634 = vunpack.c.l.b16 %v3453
  %v4635 = vunpack.c.l.b16 %v3454
  %v4636 = vunpack.c.l.b16 %v3455
  %v4637 = vunpack.c.l.b16 %v3456
  %v4638 = vunpack.c.l.b16 %v3457
  %v4639 = vunpack.c.l.b16 %v3458
  %v4640 = vunpack.c.l.b16 %v3459
  %v4641 = vunpack.c.l.b16 %v3460
  %v4642 = vunpack.c.l.b16 %v3461
  %v4643 = vunpack.c.l.b16 %v3462
  %v4644 = vpack.c.b16 %v4629, %v4628
  %v4645 = vpack.c.b16 %v4631, %v4630
  %v4646 = vpack.c.b16 %v4633, %v4632
  %v4647 = vpack.c.b16 %v4635, %v4634
  %v4648 = vpack.c.b16 %v4637, %v4636
  %v4649 = vpack.c.b16 %v4639, %v4638
  %v4650 = vpack.c.b16 %v4641, %v4640
  %v4651 = vpack.c.b16 %v4643, %v4642
  %4660 = vmatprep.subr.bf16.mxu0 0
  %4661 = vmatpush1.bf16.msra.mxu0 %v4651
  %4662 = vmatprep.subr.bf16.mxu0 0
  %4663 = vmatpush1.bf16.msra.mxu0 %v4650
  %4664 = vmatprep.subr.bf16.mxu0 0
  %4665 = vmatpush1.bf16.msra.mxu0 %v4649
  %4666 = vmatprep.subr.bf16.mxu0 0
  %4667 = vmatpush1.bf16.msra.mxu0 %v4648
  %4668 = vmatprep.subr.bf16.mxu0 0
  %4669 = vmatpush1.bf16.msra.mxu0 %v4647
  %4670 = vmatprep.subr.bf16.mxu0 0
  %4671 = vmatpush1.bf16.msra.mxu0 %v4646
  %4672 = vmatprep.subr.bf16.mxu0 0
  %4673 = vmatpush1.bf16.msra.mxu0 %v4645
  %4674 = vmatprep.subr.bf16.mxu0 0
  %4675 = vmatpush1.bf16.msra.mxu0 %v4644
  %4676 = vmatprep.subr.bf16.mxu0 0
  %4677 = vmatpush2.bf16.msra.mxu0 0
  %4678 = vmatprep.subr.bf16.mxu0 0
  %4679 = vmatpush2.bf16.msra.mxu0 0
  %4680 = vmatprep.subr.bf16.mxu0 0
  %4681 = vmatpush2.bf16.msra.mxu0 0
  %4682 = vmatprep.subr.bf16.mxu0 0
  %4683 = vmatpush2.bf16.msra.mxu0 0
  %4684 = vmatprep.subr.bf16.mxu0 0
  %4685 = vmatpush2.bf16.msra.mxu0 0
  %4686 = vmatprep.subr.bf16.mxu0 0
  %4687 = vmatpush2.bf16.msra.mxu0 0
  %4688 = vmatprep.subr.bf16.mxu0 0
  %4689 = vmatpush2.bf16.msra.mxu0 0
  %4690 = vmatprep.subr.bf16.mxu0 0
  %4691 = vmatpush2.bf16.msra.mxu0 0
  %4692 = vmatprep.mubr.bf16.mxu0 0
  %4693 = vmatmul.mubr.bf16.gmra.mxu0 %v4592
  %v4694 = vpop.f32.mrf.mxu0
  %v4695 = vadd.f32 %v4611, %v4694
  %v4696 = vpop.f32.mrf.mxu0
  %v4697 = vpop.f32.mrf.mxu0
  %v4698 = vadd.f32 %v4611, %v4697
  %v4699 = vpop.f32.mrf.mxu0
  %4700 = vmatprep.mubr.bf16.mxu0 0
  %4701 = vmatmul.mubr.bf16.gmra.mxu0 %v4593
  %v4702 = vpop.f32.mrf.mxu0
  %v4703 = vadd.f32 %v4611, %v4702
  %v4704 = vpop.f32.mrf.mxu0
  %v4705 = vpop.f32.mrf.mxu0
  %v4706 = vadd.f32 %v4611, %v4705
  %v4707 = vpop.f32.mrf.mxu0
  %4708 = vmatprep.mubr.bf16.mxu0 0
  %4709 = vmatmul.mubr.bf16.gmra.mxu0 %v4594
  %v4710 = vpop.f32.mrf.mxu0
  %v4711 = vadd.f32 %v4611, %v4710
  %v4712 = vpop.f32.mrf.mxu0
  %v4713 = vpop.f32.mrf.mxu0
  %v4714 = vadd.f32 %v4611, %v4713
  %v4715 = vpop.f32.mrf.mxu0
  %4716 = vmatprep.mubr.bf16.mxu0 0
  %4717 = vmatmul.mubr.bf16.gmra.mxu0 %v4595
  %v4718 = vpop.f32.mrf.mxu0
  %v4719 = vadd.f32 %v4611, %v4718
  %v4720 = vpop.f32.mrf.mxu0
  %v4721 = vpop.f32.mrf.mxu0
  %v4722 = vadd.f32 %v4611, %v4721
  %v4723 = vpop.f32.mrf.mxu0
  %4724 = vmatprep.mubr.bf16.mxu0 0
  %4725 = vmatmul.mubr.bf16.gmra.mxu0 %v4596
  %v4726 = vpop.f32.mrf.mxu0
  %v4727 = vadd.f32 %v4611, %v4726
  %v4728 = vpop.f32.mrf.mxu0
  %v4729 = vpop.f32.mrf.mxu0
  %v4730 = vadd.f32 %v4611, %v4729
  %v4731 = vpop.f32.mrf.mxu0
  %4732 = vmatprep.mubr.bf16.mxu0 0
  %4733 = vmatmul.mubr.bf16.gmra.mxu0 %v4597
  %v4734 = vpop.f32.mrf.mxu0
  %v4735 = vadd.f32 %v4611, %v4734
  %v4736 = vpop.f32.mrf.mxu0
  %v4737 = vpop.f32.mrf.mxu0
  %v4738 = vadd.f32 %v4611, %v4737
  %v4739 = vpop.f32.mrf.mxu0
  %4740 = vmatprep.mubr.bf16.mxu0 0
  %4741 = vmatmul.mubr.bf16.gmra.mxu0 %v4598
  %v4742 = vpop.f32.mrf.mxu0
  %v4743 = vadd.f32 %v4611, %v4742
  %v4744 = vpop.f32.mrf.mxu0
  %v4745 = vpop.f32.mrf.mxu0
  %v4746 = vadd.f32 %v4611, %v4745
  %v4747 = vpop.f32.mrf.mxu0
  %4748 = vmatprep.mubr.bf16.mxu0 0
  %4749 = vmatmul.mubr.bf16.gmra.mxu0 %v4599
  %v4750 = vpop.f32.mrf.mxu0
  %v4751 = vadd.f32 %v4611, %v4750
  %v4752 = vpop.f32.mrf.mxu0
  %v4753 = vpop.f32.mrf.mxu0
  %v4754 = vadd.f32 %v4611, %v4753
  %v4755 = vpop.f32.mrf.mxu0
  %4756 = vmatprep.mubr.bf16.mxu0 0
  %4757 = vmatmul.mubr.bf16.gmra.mxu0 %v4600
  %v4758 = vpop.f32.mrf.mxu0
  %v4759 = vadd.f32 %v4611, %v4758
  %v4760 = vpop.f32.mrf.mxu0
  %v4761 = vpop.f32.mrf.mxu0
  %v4762 = vadd.f32 %v4611, %v4761
  %v4763 = vpop.f32.mrf.mxu0
  %4764 = vmatprep.mubr.bf16.mxu0 0
  %4765 = vmatmul.mubr.bf16.gmra.mxu0 %v4601
  %v4766 = vpop.f32.mrf.mxu0
  %v4767 = vadd.f32 %v4611, %v4766
  %v4768 = vpop.f32.mrf.mxu0
  %v4769 = vpop.f32.mrf.mxu0
  %v4770 = vadd.f32 %v4611, %v4769
  %v4771 = vpop.f32.mrf.mxu0
  %4772 = vmatprep.mubr.bf16.mxu0 0
  %4773 = vmatmul.mubr.bf16.gmra.mxu0 %v4602
  %v4774 = vpop.f32.mrf.mxu0
  %v4775 = vadd.f32 %v4611, %v4774
  %v4776 = vpop.f32.mrf.mxu0
  %v4777 = vpop.f32.mrf.mxu0
  %v4778 = vadd.f32 %v4611, %v4777
  %v4779 = vpop.f32.mrf.mxu0
  %4780 = vmatprep.mubr.bf16.mxu0 0
  %4781 = vmatmul.mubr.bf16.gmra.mxu0 %v4603
  %v4782 = vpop.f32.mrf.mxu0
  %v4783 = vadd.f32 %v4611, %v4782
  %v4784 = vpop.f32.mrf.mxu0
  %v4785 = vpop.f32.mrf.mxu0
  %v4786 = vadd.f32 %v4611, %v4785
  %v4787 = vpop.f32.mrf.mxu0
  %4788 = vmatprep.mubr.bf16.mxu0 0
  %4789 = vmatmul.mubr.bf16.gmra.mxu0 %v4604
  %v4790 = vpop.f32.mrf.mxu0
  %v4791 = vadd.f32 %v4611, %v4790
  %v4792 = vpop.f32.mrf.mxu0
  %v4793 = vpop.f32.mrf.mxu0
  %v4794 = vadd.f32 %v4611, %v4793
  %v4795 = vpop.f32.mrf.mxu0
  %4796 = vmatprep.mubr.bf16.mxu0 0
  %4797 = vmatmul.mubr.bf16.gmra.mxu0 %v4605
  %v4798 = vpop.f32.mrf.mxu0
  %v4799 = vadd.f32 %v4611, %v4798
  %v4800 = vpop.f32.mrf.mxu0
  %v4801 = vpop.f32.mrf.mxu0
  %v4802 = vadd.f32 %v4611, %v4801
  %v4803 = vpop.f32.mrf.mxu0
  %4804 = vmatprep.mubr.bf16.mxu0 0
  %4805 = vmatmul.mubr.bf16.gmra.mxu0 %v4606
  %v4806 = vpop.f32.mrf.mxu0
  %v4807 = vadd.f32 %v4611, %v4806
  %v4808 = vpop.f32.mrf.mxu0
  %v4809 = vpop.f32.mrf.mxu0
  %v4810 = vadd.f32 %v4611, %v4809
  %v4811 = vpop.f32.mrf.mxu0
  %4812 = vmatprep.mubr.bf16.mxu0 0
  %4813 = vmatmul.mubr.bf16.gmra.mxu0 %v4607
  %v4814 = vpop.f32.mrf.mxu0
  %v4815 = vadd.f32 %v4611, %v4814
  %v4816 = vpop.f32.mrf.mxu0
  %v4817 = vpop.f32.mrf.mxu0
  %v4818 = vadd.f32 %v4611, %v4817
  %v4819 = vpop.f32.mrf.mxu0
  %4820 = vdwg.mxu0
  %v4821 = vmax.f32 %v4695, 0.0
  %v4822 = vmax.f32 %v4698, 0.0
  %v4823 = vmax.f32 %v4703, 0.0
  %v4824 = vmax.f32 %v4706, 0.0
  %v4825 = vmax.f32 %v4711, 0.0
  %v4826 = vmax.f32 %v4714, 0.0
  %v4827 = vmax.f32 %v4719, 0.0
  %v4828 = vmax.f32 %v4722, 0.0
  %v4829 = vmax.f32 %v4727, 0.0
  %v4830 = vmax.f32 %v4730, 0.0
  %v4831 = vmax.f32 %v4735, 0.0
  %v4832 = vmax.f32 %v4738, 0.0
  %v4833 = vmax.f32 %v4743, 0.0
  %v4834 = vmax.f32 %v4746, 0.0
  %v4835 = vmax.f32 %v4751, 0.0
  %v4836 = vmax.f32 %v4754, 0.0
  %v4837 = vmax.f32 %v4759, 0.0
  %v4838 = vmax.f32 %v4762, 0.0
  %v4839 = vmax.f32 %v4767, 0.0
  %v4840 = vmax.f32 %v4770, 0.0
  %v4841 = vmax.f32 %v4775, 0.0
  %v4842 = vmax.f32 %v4778, 0.0
  %v4843 = vmax.f32 %v4783, 0.0
  %v4844 = vmax.f32 %v4786, 0.0
  %v4845 = vmax.f32 %v4791, 0.0
  %v4846 = vmax.f32 %v4794, 0.0
  %v4847 = vmax.f32 %v4799, 0.0
  %v4848 = vmax.f32 %v4802, 0.0
  %v4849 = vmax.f32 %v4807, 0.0
  %v4850 = vmax.f32 %v4810, 0.0
  %v4851 = vmax.f32 %v4815, 0.0
  %v4852 = vmax.f32 %v4818, 0.0
  %v4853 = vpack.c.bf16 %v4822, %v4821
  %v4854 = vpack.c.bf16 %v4824, %v4823
  %v4855 = vpack.c.bf16 %v4826, %v4825
  %v4856 = vpack.c.bf16 %v4828, %v4827
  %v4857 = vpack.c.bf16 %v4830, %v4829
  %v4858 = vpack.c.bf16 %v4832, %v4831
  %v4859 = vpack.c.bf16 %v4834, %v4833
  %v4860 = vpack.c.bf16 %v4836, %v4835
  %v4861 = vpack.c.bf16 %v4838, %v4837
  %v4862 = vpack.c.bf16 %v4840, %v4839
  %v4863 = vpack.c.bf16 %v4842, %v4841
  %v4864 = vpack.c.bf16 %v4844, %v4843
  %v4865 = vpack.c.bf16 %v4846, %v4845
  %v4866 = vpack.c.bf16 %v4848, %v4847
  %v4867 = vpack.c.bf16 %v4850, %v4849
  %v4868 = vpack.c.bf16 %v4852, %v4851
  %v4869 = vlaneseq
  %v4870 = vshrl.u32 %v4869, 7
  %v4871 = vsub.s32 1, %v4870
  %v4872 = vrot.slane %v3481, %v4871
  %v4889 = vunpack.c.l.b16 %v3464
  %v4890 = vunpack.c.l.b16 %v3465
  %v4891 = vunpack.c.l.b16 %v3466
  %v4892 = vunpack.c.l.b16 %v3467
  %v4893 = vunpack.c.l.b16 %v3468
  %v4894 = vunpack.c.l.b16 %v3469
  %v4895 = vunpack.c.l.b16 %v3470
  %v4896 = vunpack.c.l.b16 %v3471
  %v4897 = vunpack.c.l.b16 %v3472
  %v4898 = vunpack.c.l.b16 %v3473
  %v4899 = vunpack.c.l.b16 %v3474
  %v4900 = vunpack.c.l.b16 %v3475
  %v4901 = vunpack.c.l.b16 %v3476
  %v4902 = vunpack.c.l.b16 %v3477
  %v4903 = vunpack.c.l.b16 %v3478
  %v4904 = vunpack.c.l.b16 %v3479
  %v4905 = vpack.c.b16 %v4890, %v4889
  %v4906 = vpack.c.b16 %v4892, %v4891
  %v4907 = vpack.c.b16 %v4894, %v4893
  %v4908 = vpack.c.b16 %v4896, %v4895
  %v4909 = vpack.c.b16 %v4898, %v4897
  %v4910 = vpack.c.b16 %v4900, %v4899
  %v4911 = vpack.c.b16 %v4902, %v4901
  %v4912 = vpack.c.b16 %v4904, %v4903
  %4921 = vmatprep.subr.bf16.mxu0 0
  %4922 = vmatpush1.bf16.msra.mxu0 %v4912
  %4923 = vmatprep.subr.bf16.mxu0 0
  %4924 = vmatpush1.bf16.msra.mxu0 %v4911
  %4925 = vmatprep.subr.bf16.mxu0 0
  %4926 = vmatpush1.bf16.msra.mxu0 %v4910
  %4927 = vmatprep.subr.bf16.mxu0 0
  %4928 = vmatpush1.bf16.msra.mxu0 %v4909
  %4929 = vmatprep.subr.bf16.mxu0 0
  %4930 = vmatpush1.bf16.msra.mxu0 %v4908
  %4931 = vmatprep.subr.bf16.mxu0 0
  %4932 = vmatpush1.bf16.msra.mxu0 %v4907
  %4933 = vmatprep.subr.bf16.mxu0 0
  %4934 = vmatpush1.bf16.msra.mxu0 %v4906
  %4935 = vmatprep.subr.bf16.mxu0 0
  %4936 = vmatpush1.bf16.msra.mxu0 %v4905
  %4937 = vmatprep.subr.bf16.mxu0 0
  %4938 = vmatpush2.bf16.msra.mxu0 0
  %4939 = vmatprep.subr.bf16.mxu0 0
  %4940 = vmatpush2.bf16.msra.mxu0 0
  %4941 = vmatprep.subr.bf16.mxu0 0
  %4942 = vmatpush2.bf16.msra.mxu0 0
  %4943 = vmatprep.subr.bf16.mxu0 0
  %4944 = vmatpush2.bf16.msra.mxu0 0
  %4945 = vmatprep.subr.bf16.mxu0 0
  %4946 = vmatpush2.bf16.msra.mxu0 0
  %4947 = vmatprep.subr.bf16.mxu0 0
  %4948 = vmatpush2.bf16.msra.mxu0 0
  %4949 = vmatprep.subr.bf16.mxu0 0
  %4950 = vmatpush2.bf16.msra.mxu0 0
  %4951 = vmatprep.subr.bf16.mxu0 0
  %4952 = vmatpush2.bf16.msra.mxu0 0
  %4953 = vmatprep.mubr.bf16.mxu0 0
  %4954 = vmatmul.mubr.bf16.gmra.mxu0 %v4853
  %v4955 = vpop.f32.mrf.mxu0
  %v4956 = vadd.f32 %v4872, %v4955
  %v4957 = vpop.f32.mrf.mxu0
  %v4958 = vpop.f32.mrf.mxu0
  %v4959 = vadd.f32 %v4872, %v4958
  %v4960 = vpop.f32.mrf.mxu0
  %4961 = vmatprep.mubr.bf16.mxu0 0
  %4962 = vmatmul.mubr.bf16.gmra.mxu0 %v4854
  %v4963 = vpop.f32.mrf.mxu0
  %v4964 = vadd.f32 %v4872, %v4963
  %v4965 = vpop.f32.mrf.mxu0
  %v4966 = vpop.f32.mrf.mxu0
  %v4967 = vadd.f32 %v4872, %v4966
  %v4968 = vpop.f32.mrf.mxu0
  %4969 = vmatprep.mubr.bf16.mxu0 0
  %4970 = vmatmul.mubr.bf16.gmra.mxu0 %v4855
  %v4971 = vpop.f32.mrf.mxu0
  %v4972 = vadd.f32 %v4872, %v4971
  %v4973 = vpop.f32.mrf.mxu0
  %v4974 = vpop.f32.mrf.mxu0
  %v4975 = vadd.f32 %v4872, %v4974
  %v4976 = vpop.f32.mrf.mxu0
  %4977 = vmatprep.mubr.bf16.mxu0 0
  %4978 = vmatmul.mubr.bf16.gmra.mxu0 %v4856
  %v4979 = vpop.f32.mrf.mxu0
  %v4980 = vadd.f32 %v4872, %v4979
  %v4981 = vpop.f32.mrf.mxu0
  %v4982 = vpop.f32.mrf.mxu0
  %v4983 = vadd.f32 %v4872, %v4982
  %v4984 = vpop.f32.mrf.mxu0
  %4985 = vmatprep.mubr.bf16.mxu0 0
  %4986 = vmatmul.mubr.bf16.gmra.mxu0 %v4857
  %v4987 = vpop.f32.mrf.mxu0
  %v4988 = vadd.f32 %v4872, %v4987
  %v4989 = vpop.f32.mrf.mxu0
  %v4990 = vpop.f32.mrf.mxu0
  %v4991 = vadd.f32 %v4872, %v4990
  %v4992 = vpop.f32.mrf.mxu0
  %4993 = vmatprep.mubr.bf16.mxu0 0
  %4994 = vmatmul.mubr.bf16.gmra.mxu0 %v4858
  %v4995 = vpop.f32.mrf.mxu0
  %v4996 = vadd.f32 %v4872, %v4995
  %v4997 = vpop.f32.mrf.mxu0
  %v4998 = vpop.f32.mrf.mxu0
  %v4999 = vadd.f32 %v4872, %v4998
  %v5000 = vpop.f32.mrf.mxu0
  %5001 = vmatprep.mubr.bf16.mxu0 0
  %5002 = vmatmul.mubr.bf16.gmra.mxu0 %v4859
  %v5003 = vpop.f32.mrf.mxu0
  %v5004 = vadd.f32 %v4872, %v5003
  %v5005 = vpop.f32.mrf.mxu0
  %v5006 = vpop.f32.mrf.mxu0
  %v5007 = vadd.f32 %v4872, %v5006
  %v5008 = vpop.f32.mrf.mxu0
  %5009 = vmatprep.mubr.bf16.mxu0 0
  %5010 = vmatmul.mubr.bf16.gmra.mxu0 %v4860
  %v5011 = vpop.f32.mrf.mxu0
  %v5012 = vadd.f32 %v4872, %v5011
  %v5013 = vpop.f32.mrf.mxu0
  %v5014 = vpop.f32.mrf.mxu0
  %v5015 = vadd.f32 %v4872, %v5014
  %v5016 = vpop.f32.mrf.mxu0
  %5017 = vmatprep.mubr.bf16.mxu0 0
  %5018 = vmatmul.mubr.bf16.gmra.mxu0 %v4861
  %v5019 = vpop.f32.mrf.mxu0
  %v5020 = vadd.f32 %v4872, %v5019
  %v5021 = vpop.f32.mrf.mxu0
  %v5022 = vpop.f32.mrf.mxu0
  %v5023 = vadd.f32 %v4872, %v5022
  %v5024 = vpop.f32.mrf.mxu0
  %5025 = vmatprep.mubr.bf16.mxu0 0
  %5026 = vmatmul.mubr.bf16.gmra.mxu0 %v4862
  %v5027 = vpop.f32.mrf.mxu0
  %v5028 = vadd.f32 %v4872, %v5027
  %v5029 = vpop.f32.mrf.mxu0
  %v5030 = vpop.f32.mrf.mxu0
  %v5031 = vadd.f32 %v4872, %v5030
  %v5032 = vpop.f32.mrf.mxu0
  %5033 = vmatprep.mubr.bf16.mxu0 0
  %5034 = vmatmul.mubr.bf16.gmra.mxu0 %v4863
  %v5035 = vpop.f32.mrf.mxu0
  %v5036 = vadd.f32 %v4872, %v5035
  %v5037 = vpop.f32.mrf.mxu0
  %v5038 = vpop.f32.mrf.mxu0
  %v5039 = vadd.f32 %v4872, %v5038
  %v5040 = vpop.f32.mrf.mxu0
  %5041 = vmatprep.mubr.bf16.mxu0 0
  %5042 = vmatmul.mubr.bf16.gmra.mxu0 %v4864
  %v5043 = vpop.f32.mrf.mxu0
  %v5044 = vadd.f32 %v4872, %v5043
  %v5045 = vpop.f32.mrf.mxu0
  %v5046 = vpop.f32.mrf.mxu0
  %v5047 = vadd.f32 %v4872, %v5046
  %v5048 = vpop.f32.mrf.mxu0
  %5049 = vmatprep.mubr.bf16.mxu0 0
  %5050 = vmatmul.mubr.bf16.gmra.mxu0 %v4865
  %v5051 = vpop.f32.mrf.mxu0
  %v5052 = vadd.f32 %v4872, %v5051
  %v5053 = vpop.f32.mrf.mxu0
  %v5054 = vpop.f32.mrf.mxu0
  %v5055 = vadd.f32 %v4872, %v5054
  %v5056 = vpop.f32.mrf.mxu0
  %5057 = vmatprep.mubr.bf16.mxu0 0
  %5058 = vmatmul.mubr.bf16.gmra.mxu0 %v4866
  %v5059 = vpop.f32.mrf.mxu0
  %v5060 = vadd.f32 %v4872, %v5059
  %v5061 = vpop.f32.mrf.mxu0
  %v5062 = vpop.f32.mrf.mxu0
  %v5063 = vadd.f32 %v4872, %v5062
  %v5064 = vpop.f32.mrf.mxu0
  %5065 = vmatprep.mubr.bf16.mxu0 0
  %5066 = vmatmul.mubr.bf16.gmra.mxu0 %v4867
  %v5067 = vpop.f32.mrf.mxu0
  %v5068 = vadd.f32 %v4872, %v5067
  %v5069 = vpop.f32.mrf.mxu0
  %v5070 = vpop.f32.mrf.mxu0
  %v5071 = vadd.f32 %v4872, %v5070
  %v5072 = vpop.f32.mrf.mxu0
  %5073 = vmatprep.mubr.bf16.mxu0 0
  %5074 = vmatmul.mubr.bf16.gmra.mxu0 %v4868
  %v5075 = vpop.f32.mrf.mxu0
  %v5076 = vadd.f32 %v4872, %v5075
  %v5077 = vpop.f32.mrf.mxu0
  %v5078 = vpop.f32.mrf.mxu0
  %v5079 = vadd.f32 %v4872, %v5078
  %v5080 = vpop.f32.mrf.mxu0
  %5081 = vdwg.mxu0
  %v5082 = vmax.f32 %v4956, 0.0
  %v5083 = vmax.f32 %v4959, 0.0
  %v5084 = vmax.f32 %v4964, 0.0
  %v5085 = vmax.f32 %v4967, 0.0
  %v5086 = vmax.f32 %v4972, 0.0
  %v5087 = vmax.f32 %v4975, 0.0
  %v5088 = vmax.f32 %v4980, 0.0
  %v5089 = vmax.f32 %v4983, 0.0
  %v5090 = vmax.f32 %v4988, 0.0
  %v5091 = vmax.f32 %v4991, 0.0
  %v5092 = vmax.f32 %v4996, 0.0
  %v5093 = vmax.f32 %v4999, 0.0
  %v5094 = vmax.f32 %v5004, 0.0
  %v5095 = vmax.f32 %v5007, 0.0
  %v5096 = vmax.f32 %v5012, 0.0
  %v5097 = vmax.f32 %v5015, 0.0
  %v5098 = vmax.f32 %v5020, 0.0
  %v5099 = vmax.f32 %v5023, 0.0
  %v5100 = vmax.f32 %v5028, 0.0
  %v5101 = vmax.f32 %v5031, 0.0
  %v5102 = vmax.f32 %v5036, 0.0
  %v5103 = vmax.f32 %v5039, 0.0
  %v5104 = vmax.f32 %v5044, 0.0
  %v5105 = vmax.f32 %v5047, 0.0
  %v5106 = vmax.f32 %v5052, 0.0
  %v5107 = vmax.f32 %v5055, 0.0
  %v5108 = vmax.f32 %v5060, 0.0
  %v5109 = vmax.f32 %v5063, 0.0
  %v5110 = vmax.f32 %v5068, 0.0
  %v5111 = vmax.f32 %v5071, 0.0
  %v5112 = vmax.f32 %v5076, 0.0
  %v5113 = vmax.f32 %v5079, 0.0
  %v5114 = vlaneseq
  %v5115 = vshrl.u32 %v5114, 7
  %v5116 = vsub.s32 2, %v5115
  %v5117 = vrot.slane %v3481, %v5116
  %v5118 = vmul.f32 %v5082, %v5117
  %v5119 = vmul.f32 %v5083, %v5117
  %v5120 = vmul.f32 %v5084, %v5117
  %v5121 = vmul.f32 %v5085, %v5117
  %v5122 = vmul.f32 %v5086, %v5117
  %v5123 = vmul.f32 %v5087, %v5117
  %v5124 = vmul.f32 %v5088, %v5117
  %v5125 = vmul.f32 %v5089, %v5117
  %v5126 = vmul.f32 %v5090, %v5117
  %v5127 = vmul.f32 %v5091, %v5117
  %v5128 = vmul.f32 %v5092, %v5117
  %v5129 = vmul.f32 %v5093, %v5117
  %v5130 = vmul.f32 %v5094, %v5117
  %v5131 = vmul.f32 %v5095, %v5117
  %v5132 = vmul.f32 %v5096, %v5117
  %v5133 = vmul.f32 %v5097, %v5117
  %v5134 = vmul.f32 %v5098, %v5117
  %v5135 = vmul.f32 %v5099, %v5117
  %v5136 = vmul.f32 %v5100, %v5117
  %v5137 = vmul.f32 %v5101, %v5117
  %v5138 = vmul.f32 %v5102, %v5117
  %v5139 = vmul.f32 %v5103, %v5117
  %v5140 = vmul.f32 %v5104, %v5117
  %v5141 = vmul.f32 %v5105, %v5117
  %v5142 = vmul.f32 %v5106, %v5117
  %v5143 = vmul.f32 %v5107, %v5117
  %v5144 = vmul.f32 %v5108, %v5117
  %v5145 = vmul.f32 %v5109, %v5117
  %v5146 = vmul.f32 %v5110, %v5117
  %v5147 = vmul.f32 %v5111, %v5117
  %v5148 = vmul.f32 %v5112, %v5117
  %v5149 = vmul.f32 %v5113, %v5117
  %v5150 = vlaneseq
  %v5151 = vshrl.u32 %v5150, 7
  %v5152 = vsub.s32 3, %v5151
  %v5153 = vrot.slane %v3481, %v5152
  %v5154 = vadd.f32 %v5118, %v5153
  %v5155 = vadd.f32 %v5119, %v5153
  %v5156 = vadd.f32 %v5120, %v5153
  %v5157 = vadd.f32 %v5121, %v5153
  %v5158 = vadd.f32 %v5122, %v5153
  %v5159 = vadd.f32 %v5123, %v5153
  %v5160 = vadd.f32 %v5124, %v5153
  %v5161 = vadd.f32 %v5125, %v5153
  %v5162 = vadd.f32 %v5126, %v5153
  %v5163 = vadd.f32 %v5127, %v5153
  %v5164 = vadd.f32 %v5128, %v5153
  %v5165 = vadd.f32 %v5129, %v5153
  %v5166 = vadd.f32 %v5130, %v5153
  %v5167 = vadd.f32 %v5131, %v5153
  %v5168 = vadd.f32 %v5132, %v5153
  %v5169 = vadd.f32 %v5133, %v5153
  %v5170 = vadd.f32 %v5134, %v5153
  %v5171 = vadd.f32 %v5135, %v5153
  %v5172 = vadd.f32 %v5136, %v5153
  %v5173 = vadd.f32 %v5137, %v5153
  %v5174 = vadd.f32 %v5138, %v5153
  %v5175 = vadd.f32 %v5139, %v5153
  %v5176 = vadd.f32 %v5140, %v5153
  %v5177 = vadd.f32 %v5141, %v5153
  %v5178 = vadd.f32 %v5142, %v5153
  %v5179 = vadd.f32 %v5143, %v5153
  %v5180 = vadd.f32 %v5144, %v5153
  %v5181 = vadd.f32 %v5145, %v5153
  %v5182 = vadd.f32 %v5146, %v5153
  %v5183 = vadd.f32 %v5147, %v5153
  %v5184 = vadd.f32 %v5148, %v5153
  %v5185 = vadd.f32 %v5149, %v5153
  %5186 = vst [vmem:[#allocation4 + $0x8] sm:$0xff] %v5154
  %5187 = vst [vmem:[#allocation4 + $0x20] sm:$0xff] %v5155
  %5188 = vst [vmem:[#allocation4 + $0x38] sm:$0xff] %v5156
  %5189 = vst [vmem:[#allocation4 + $0x50] sm:$0xff] %v5157
  %5190 = vst [vmem:[#allocation4 + $0x68] sm:$0xff] %v5158
  %5191 = vst [vmem:[#allocation4 + $0x80] sm:$0xff] %v5159
  %5192 = vst [vmem:[#allocation4 + $0x98] sm:$0xff] %v5160
  %5193 = vst [vmem:[#allocation4 + $0xb0] sm:$0xff] %v5161
  %5194 = vst [vmem:[#allocation4 + $0xc8] sm:$0xff] %v5162
  %5195 = vst [vmem:[#allocation4 + $0xe0] sm:$0xff] %v5163
  %5196 = vst [vmem:[#allocation4 + $0xf8] sm:$0xff] %v5164
  %5197 = vst [vmem:[#allocation4 + $0x110] sm:$0xff] %v5165
  %5198 = vst [vmem:[#allocation4 + $0x128] sm:$0xff] %v5166
  %5199 = vst [vmem:[#allocation4 + $0x140] sm:$0xff] %v5167
  %5200 = vst [vmem:[#allocation4 + $0x158] sm:$0xff] %v5168
  %5201 = vst [vmem:[#allocation4 + $0x170] sm:$0xff] %v5169
  %5202 = vst [vmem:[#allocation4 + $0x188] sm:$0xff] %v5170
  %5203 = vst [vmem:[#allocation4 + $0x1a0] sm:$0xff] %v5171
  %5204 = vst [vmem:[#allocation4 + $0x1b8] sm:$0xff] %v5172
  %5205 = vst [vmem:[#allocation4 + $0x1d0] sm:$0xff] %v5173
  %5206 = vst [vmem:[#allocation4 + $0x1e8] sm:$0xff] %v5174
  %5207 = vst [vmem:[#allocation4 + $0x200] sm:$0xff] %v5175
  %5208 = vst [vmem:[#allocation4 + $0x218] sm:$0xff] %v5176
  %5209 = vst [vmem:[#allocation4 + $0x230] sm:$0xff] %v5177
  %5210 = vst [vmem:[#allocation4 + $0x248] sm:$0xff] %v5178
  %5211 = vst [vmem:[#allocation4 + $0x260] sm:$0xff] %v5179
  %5212 = vst [vmem:[#allocation4 + $0x278] sm:$0xff] %v5180
  %5213 = vst [vmem:[#allocation4 + $0x290] sm:$0xff] %v5181
  %5214 = vst [vmem:[#allocation4 + $0x2a8] sm:$0xff] %v5182
  %5215 = vst [vmem:[#allocation4 + $0x2c0] sm:$0xff] %v5183
  %5216 = vst [vmem:[#allocation4 + $0x2d8] sm:$0xff] %v5184
  %5217 = vst [vmem:[#allocation4 + $0x2f0] sm:$0xff] %v5185
  %s5218 = sshll.u32 %s301, 4
  %5219 = dma.done %s306, %s5218
  %v5220 = vld [vmem:[#allocation4 + $0x300] sm:$0xff]
  %v5221 = vld [vmem:[#allocation4 + $0x318] sm:$0xff]
  %v5222 = vld [vmem:[#allocation4 + $0x330] sm:$0xff]
  %v5223 = vld [vmem:[#allocation4 + $0x348] sm:$0xff]
  %v5224 = vld [vmem:[#allocation4 + $0x360] sm:$0xff]
  %v5225 = vld [vmem:[#allocation4 + $0x378] sm:$0xff]
  %v5226 = vld [vmem:[#allocation4 + $0x390] sm:$0xff]
  %v5227 = vld [vmem:[#allocation4 + $0x3a8] sm:$0xff]
  %v5228 = vld [vmem:[#allocation4 + $0x3c0] sm:$0xff]
  %v5229 = vld [vmem:[#allocation4 + $0x3d8] sm:$0xff]
  %v5230 = vld [vmem:[#allocation4 + $0x3f0] sm:$0xff]
  %v5231 = vld [vmem:[#allocation4 + $0x408] sm:$0xff]
  %v5232 = vld [vmem:[#allocation4 + $0x420] sm:$0xff]
  %v5233 = vld [vmem:[#allocation4 + $0x438] sm:$0xff]
  %v5234 = vld [vmem:[#allocation4 + $0x450] sm:$0xff]
  %v5235 = vld [vmem:[#allocation4 + $0x468] sm:$0xff]
  %v5236 = vld [vmem:[#allocation4 + $0x480] sm:$0xff]
  %v5237 = vld [vmem:[#allocation4 + $0x498] sm:$0xff]
  %v5238 = vld [vmem:[#allocation4 + $0x4b0] sm:$0xff]
  %v5239 = vld [vmem:[#allocation4 + $0x4c8] sm:$0xff]
  %v5240 = vld [vmem:[#allocation4 + $0x4e0] sm:$0xff]
  %v5241 = vld [vmem:[#allocation4 + $0x4f8] sm:$0xff]
  %v5242 = vld [vmem:[#allocation4 + $0x510] sm:$0xff]
  %v5243 = vld [vmem:[#allocation4 + $0x528] sm:$0xff]
  %v5244 = vld [vmem:[#allocation4 + $0x540] sm:$0xff]
  %v5245 = vld [vmem:[#allocation4 + $0x558] sm:$0xff]
  %v5246 = vld [vmem:[#allocation4 + $0x570] sm:$0xff]
  %v5247 = vld [vmem:[#allocation4 + $0x588] sm:$0xff]
  %v5248 = vld [vmem:[#allocation4 + $0x5a0] sm:$0xff]
  %v5249 = vld [vmem:[#allocation4 + $0x5b8] sm:$0xff]
  %v5250 = vld [vmem:[#allocation4 + $0x5d0] sm:$0xff]
  %v5251 = vld [vmem:[#allocation4 + $0x5e8] sm:$0xff]
  %v5252 = vld [vmem:[%s305] sm:$0xff]
  %v5253 = vld [vmem:[%s305 + $0x8] sm:$0xff]
  %v5254 = vld [vmem:[%s305 + $0x10] sm:$0xff]
  %v5255 = vld [vmem:[%s305 + $0x18] sm:$0xff]
  %v5256 = vld [vmem:[%s305 + $0x20] sm:$0xff]
  %v5257 = vld [vmem:[%s305 + $0x28] sm:$0xff]
  %v5258 = vld [vmem:[%s305 + $0x30] sm:$0xff]
  %v5259 = vld [vmem:[%s305 + $0x38] sm:$0xff]
  %v5260 = vld [vmem:[%s305 + $0x40] sm:$0xff]
  %v5261 = vld [vmem:[%s305 + $0x48] sm:$0xff]
  %v5262 = vld [vmem:[%s305 + $0x50] sm:$0xff]
  %v5263 = vld [vmem:[%s305 + $0x58] sm:$0xff]
  %v5264 = vld [vmem:[%s305 + $0x60] sm:$0xff]
  %v5265 = vld [vmem:[%s305 + $0x68] sm:$0xff]
  %v5266 = vld [vmem:[%s305 + $0x70] sm:$0xff]
  %v5267 = vld [vmem:[%s305 + $0x78] sm:$0xff]
  %v5268 = vld [vmem:[%s305 + $0x80] sm:$0xff]
  %v5269 = vld [vmem:[%s305 + $0x88] sm:$0xff]
  %v5270 = vld [vmem:[%s305 + $0x90] sm:$0xff]
  %v5271 = vld [vmem:[%s305 + $0x98] sm:$0xff]
  %v5272 = vld [vmem:[%s305 + $0xa0] sm:$0xff]
  %v5273 = vld [vmem:[%s305 + $0xa8] sm:$0xff]
  %v5274 = vld [vmem:[%s305 + $0xb0] sm:$0xff]
  %v5275 = vld [vmem:[%s305 + $0xb8] sm:$0xff]
  %v5276 = vld [vmem:[%s305 + $0xc0] sm:$0xff]
  %v5277 = vld [vmem:[%s305 + $0xc8] sm:$0xff]
  %v5278 = vld [vmem:[%s305 + $0xd0] sm:$0xff]
  %v5279 = vld [vmem:[%s305 + $0xd8] sm:$0xff]
  %v5280 = vld [vmem:[%s305 + $0xe0] sm:$0xff]
  %v5281 = vld [vmem:[%s305 + $0xe8] sm:$0xff]
  %v5282 = vld [vmem:[%s305 + $0xf0] sm:$0xff]
  %v5283 = vld [vmem:[%s305 + $0xf8] sm:$0xff]
  %v5284 = vld [vmem:[%s305 + $0x100] sm:$0xff]
  %v5285 = vld [vmem:[%s305 + $0x108] sm:$0xff]
  %v5286 = vld [vmem:[%s305 + $0x110] sm:$0xff]
  %v5287 = vld [vmem:[%s305 + $0x118] sm:$0xff]
  %v5288 = vld [vmem:[%s305 + $0x120] sm:$0xff]
  %v5289 = vld [vmem:[%s305 + $0x128] sm:$0xff]
  %v5290 = vld [vmem:[%s305 + $0x130] sm:$0xff]
  %v5291 = vld [vmem:[%s305 + $0x138] sm:$0xff]
  %v5292 = vld [vmem:[%s305 + $0x140] sm:$0xff]
  %v5293 = vld [vmem:[%s305 + $0x148] sm:$0xff]
  %v5294 = vld [vmem:[%s305 + $0x150] sm:$0xff]
  %v5295 = vld [vmem:[%s305 + $0x158] sm:$0xff]
  %v5296 = vld [vmem:[%s305 + $0x160] sm:$0xff]
  %v5297 = vld [vmem:[%s305 + $0x168] sm:$0xff]
  %v5298 = vld [vmem:[%s305 + $0x170] sm:$0xff]
  %v5299 = vld [vmem:[%s305 + $0x178] sm:$0xff]
  %v5300 = vld [vmem:[%s305 + $0x180] sm:$0xff]
  %v5301 = vld [vmem:[%s305 + $0x188] sm:$0xff]
  %v5302 = vld [vmem:[%s305 + $0x190] sm:$0xff]
  %v5303 = vld [vmem:[%s305 + $0x198] sm:$0xff]
  %v5304 = vld [vmem:[%s305 + $0x1a0] sm:$0xff]
  %v5305 = vld [vmem:[%s305 + $0x1a8] sm:$0xff]
  %v5306 = vld [vmem:[%s305 + $0x1b0] sm:$0xff]
  %v5307 = vld [vmem:[%s305 + $0x1b8] sm:$0xff]
  %v5308 = vld [vmem:[%s305 + $0x1c0] sm:$0xff]
  %v5309 = vld [vmem:[%s305 + $0x1c8] sm:$0xff]
  %v5310 = vld [vmem:[%s305 + $0x1d0] sm:$0xff]
  %v5311 = vld [vmem:[%s305 + $0x1d8] sm:$0xff]
  %v5312 = vld [vmem:[%s305 + $0x1e0] sm:$0xff]
  %v5313 = vld [vmem:[%s305 + $0x1e8] sm:$0xff]
  %v5314 = vld [vmem:[%s305 + $0x1f0] sm:$0xff]
  %v5315 = vld [vmem:[%s305 + $0x1f8] sm:$0xff]
  %v5380 = vunpack.c.l.b16 %v5252
  %v5381 = vunpack.c.h.b16 %v5252
  %v5382 = vunpack.c.l.b16 %v5253
  %v5383 = vunpack.c.h.b16 %v5253
  %v5384 = vunpack.c.l.b16 %v5254
  %v5385 = vunpack.c.h.b16 %v5254
  %v5386 = vunpack.c.l.b16 %v5255
  %v5387 = vunpack.c.h.b16 %v5255
  %v5388 = vunpack.c.l.b16 %v5256
  %v5389 = vunpack.c.h.b16 %v5256
  %v5390 = vunpack.c.l.b16 %v5257
  %v5391 = vunpack.c.h.b16 %v5257
  %v5392 = vunpack.c.l.b16 %v5258
  %v5393 = vunpack.c.h.b16 %v5258
  %v5394 = vunpack.c.l.b16 %v5259
  %v5395 = vunpack.c.h.b16 %v5259
  %v5396 = vunpack.c.l.b16 %v5260
  %v5397 = vunpack.c.h.b16 %v5260
  %v5398 = vunpack.c.l.b16 %v5261
  %v5399 = vunpack.c.h.b16 %v5261
  %v5400 = vunpack.c.l.b16 %v5262
  %v5401 = vunpack.c.h.b16 %v5262
  %v5402 = vunpack.c.l.b16 %v5263
  %v5403 = vunpack.c.h.b16 %v5263
  %v5404 = vunpack.c.l.b16 %v5264
  %v5405 = vunpack.c.h.b16 %v5264
  %v5406 = vunpack.c.l.b16 %v5265
  %v5407 = vunpack.c.h.b16 %v5265
  %v5408 = vunpack.c.l.b16 %v5266
  %v5409 = vunpack.c.h.b16 %v5266
  %v5410 = vunpack.c.l.b16 %v5267
  %v5411 = vunpack.c.h.b16 %v5267
  %v5412 = vunpack.c.l.b16 %v5268
  %v5413 = vunpack.c.h.b16 %v5268
  %v5414 = vunpack.c.l.b16 %v5269
  %v5415 = vunpack.c.h.b16 %v5269
  %v5416 = vunpack.c.l.b16 %v5270
  %v5417 = vunpack.c.h.b16 %v5270
  %v5418 = vunpack.c.l.b16 %v5271
  %v5419 = vunpack.c.h.b16 %v5271
  %v5420 = vunpack.c.l.b16 %v5272
  %v5421 = vunpack.c.h.b16 %v5272
  %v5422 = vunpack.c.l.b16 %v5273
  %v5423 = vunpack.c.h.b16 %v5273
  %v5424 = vunpack.c.l.b16 %v5274
  %v5425 = vunpack.c.h.b16 %v5274
  %v5426 = vunpack.c.l.b16 %v5275
  %v5427 = vunpack.c.h.b16 %v5275
  %v5428 = vunpack.c.l.b16 %v5276
  %v5429 = vunpack.c.h.b16 %v5276
  %v5430 = vunpack.c.l.b16 %v5277
  %v5431 = vunpack.c.h.b16 %v5277
  %v5432 = vunpack.c.l.b16 %v5278
  %v5433 = vunpack.c.h.b16 %v5278
  %v5434 = vunpack.c.l.b16 %v5279
  %v5435 = vunpack.c.h.b16 %v5279
  %v5436 = vunpack.c.l.b16 %v5280
  %v5437 = vunpack.c.h.b16 %v5280
  %v5438 = vunpack.c.l.b16 %v5281
  %v5439 = vunpack.c.h.b16 %v5281
  %v5440 = vunpack.c.l.b16 %v5282
  %v5441 = vunpack.c.h.b16 %v5282
  %v5442 = vunpack.c.l.b16 %v5283
  %v5443 = vunpack.c.h.b16 %v5283
  %v5444 = vunpack.c.l.b16 %v5284
  %v5445 = vunpack.c.h.b16 %v5284
  %v5446 = vunpack.c.l.b16 %v5285
  %v5447 = vunpack.c.h.b16 %v5285
  %v5448 = vunpack.c.l.b16 %v5286
  %v5449 = vunpack.c.h.b16 %v5286
  %v5450 = vunpack.c.l.b16 %v5287
  %v5451 = vunpack.c.h.b16 %v5287
  %v5452 = vunpack.c.l.b16 %v5288
  %v5453 = vunpack.c.h.b16 %v5288
  %v5454 = vunpack.c.l.b16 %v5289
  %v5455 = vunpack.c.h.b16 %v5289
  %v5456 = vunpack.c.l.b16 %v5290
  %v5457 = vunpack.c.h.b16 %v5290
  %v5458 = vunpack.c.l.b16 %v5291
  %v5459 = vunpack.c.h.b16 %v5291
  %v5460 = vunpack.c.l.b16 %v5292
  %v5461 = vunpack.c.h.b16 %v5292
  %v5462 = vunpack.c.l.b16 %v5293
  %v5463 = vunpack.c.h.b16 %v5293
  %v5464 = vunpack.c.l.b16 %v5294
  %v5465 = vunpack.c.h.b16 %v5294
  %v5466 = vunpack.c.l.b16 %v5295
  %v5467 = vunpack.c.h.b16 %v5295
  %v5468 = vunpack.c.l.b16 %v5296
  %v5469 = vunpack.c.h.b16 %v5296
  %v5470 = vunpack.c.l.b16 %v5297
  %v5471 = vunpack.c.h.b16 %v5297
  %v5472 = vunpack.c.l.b16 %v5298
  %v5473 = vunpack.c.h.b16 %v5298
  %v5474 = vunpack.c.l.b16 %v5299
  %v5475 = vunpack.c.h.b16 %v5299
  %v5476 = vunpack.c.l.b16 %v5300
  %v5477 = vunpack.c.h.b16 %v5300
  %v5478 = vunpack.c.l.b16 %v5301
  %v5479 = vunpack.c.h.b16 %v5301
  %v5480 = vunpack.c.l.b16 %v5302
  %v5481 = vunpack.c.h.b16 %v5302
  %v5482 = vunpack.c.l.b16 %v5303
  %v5483 = vunpack.c.h.b16 %v5303
  %v5484 = vunpack.c.l.b16 %v5304
  %v5485 = vunpack.c.h.b16 %v5304
  %v5486 = vunpack.c.l.b16 %v5305
  %v5487 = vunpack.c.h.b16 %v5305
  %v5488 = vunpack.c.l.b16 %v5306
  %v5489 = vunpack.c.h.b16 %v5306
  %v5490 = vunpack.c.l.b16 %v5307
  %v5491 = vunpack.c.h.b16 %v5307
  %v5492 = vunpack.c.l.b16 %v5308
  %v5493 = vunpack.c.h.b16 %v5308
  %v5494 = vunpack.c.l.b16 %v5309
  %v5495 = vunpack.c.h.b16 %v5309
  %v5496 = vunpack.c.l.b16 %v5310
  %v5497 = vunpack.c.h.b16 %v5310
  %v5498 = vunpack.c.l.b16 %v5311
  %v5499 = vunpack.c.h.b16 %v5311
  %v5500 = vunpack.c.l.b16 %v5312
  %v5501 = vunpack.c.h.b16 %v5312
  %v5502 = vunpack.c.l.b16 %v5313
  %v5503 = vunpack.c.h.b16 %v5313
  %v5504 = vunpack.c.l.b16 %v5314
  %v5505 = vunpack.c.h.b16 %v5314
  %v5506 = vunpack.c.l.b16 %v5315
  %v5507 = vunpack.c.h.b16 %v5315
  %v5508 = vpack.c.b16 %v5384, %v5380
  %v5509 = vpack.c.b16 %v5385, %v5381
  %v5510 = vpack.c.b16 %v5386, %v5382
  %v5511 = vpack.c.b16 %v5387, %v5383
  %v5512 = vpack.c.b16 %v5392, %v5388
  %v5513 = vpack.c.b16 %v5393, %v5389
  %v5514 = vpack.c.b16 %v5394, %v5390
  %v5515 = vpack.c.b16 %v5395, %v5391
  %v5516 = vpack.c.b16 %v5400, %v5396
  %v5517 = vpack.c.b16 %v5401, %v5397
  %v5518 = vpack.c.b16 %v5402, %v5398
  %v5519 = vpack.c.b16 %v5403, %v5399
  %v5520 = vpack.c.b16 %v5408, %v5404
  %v5521 = vpack.c.b16 %v5409, %v5405
  %v5522 = vpack.c.b16 %v5410, %v5406
  %v5523 = vpack.c.b16 %v5411, %v5407
  %v5524 = vpack.c.b16 %v5416, %v5412
  %v5525 = vpack.c.b16 %v5417, %v5413
  %v5526 = vpack.c.b16 %v5418, %v5414
  %v5527 = vpack.c.b16 %v5419, %v5415
  %v5528 = vpack.c.b16 %v5424, %v5420
  %v5529 = vpack.c.b16 %v5425, %v5421
  %v5530 = vpack.c.b16 %v5426, %v5422
  %v5531 = vpack.c.b16 %v5427, %v5423
  %v5532 = vpack.c.b16 %v5432, %v5428
  %v5533 = vpack.c.b16 %v5433, %v5429
  %v5534 = vpack.c.b16 %v5434, %v5430
  %v5535 = vpack.c.b16 %v5435, %v5431
  %v5536 = vpack.c.b16 %v5440, %v5436
  %v5537 = vpack.c.b16 %v5441, %v5437
  %v5538 = vpack.c.b16 %v5442, %v5438
  %v5539 = vpack.c.b16 %v5443, %v5439
  %v5540 = vpack.c.b16 %v5448, %v5444
  %v5541 = vpack.c.b16 %v5449, %v5445
  %v5542 = vpack.c.b16 %v5450, %v5446
  %v5543 = vpack.c.b16 %v5451, %v5447
  %v5544 = vpack.c.b16 %v5456, %v5452
  %v5545 = vpack.c.b16 %v5457, %v5453
  %v5546 = vpack.c.b16 %v5458, %v5454
  %v5547 = vpack.c.b16 %v5459, %v5455
  %v5548 = vpack.c.b16 %v5464, %v5460
  %v5549 = vpack.c.b16 %v5465, %v5461
  %v5550 = vpack.c.b16 %v5466, %v5462
  %v5551 = vpack.c.b16 %v5467, %v5463
  %v5552 = vpack.c.b16 %v5472, %v5468
  %v5553 = vpack.c.b16 %v5473, %v5469
  %v5554 = vpack.c.b16 %v5474, %v5470
  %v5555 = vpack.c.b16 %v5475, %v5471
  %v5556 = vpack.c.b16 %v5480, %v5476
  %v5557 = vpack.c.b16 %v5481, %v5477
  %v5558 = vpack.c.b16 %v5482, %v5478
  %v5559 = vpack.c.b16 %v5483, %v5479
  %v5560 = vpack.c.b16 %v5488, %v5484
  %v5561 = vpack.c.b16 %v5489, %v5485
  %v5562 = vpack.c.b16 %v5490, %v5486
  %v5563 = vpack.c.b16 %v5491, %v5487
  %v5564 = vpack.c.b16 %v5496, %v5492
  %v5565 = vpack.c.b16 %v5497, %v5493
  %v5566 = vpack.c.b16 %v5498, %v5494
  %v5567 = vpack.c.b16 %v5499, %v5495
  %v5568 = vpack.c.b16 %v5504, %v5500
  %v5569 = vpack.c.b16 %v5505, %v5501
  %v5570 = vpack.c.b16 %v5506, %v5502
  %v5571 = vpack.c.b16 %v5507, %v5503
  %5636 = vmatprep.subr.bf16.mxu0 0
  %5637 = vmatpush1.bf16.msra.mxu0 %v3421
  %5638 = vmatprep.subr.bf16.mxu0 0
  %5639 = vmatpush1.bf16.msra.mxu0 %v3420
  %5640 = vmatprep.subr.bf16.mxu0 0
  %5641 = vmatpush1.bf16.msra.mxu0 %v3419
  %5642 = vmatprep.subr.bf16.mxu0 0
  %5643 = vmatpush1.bf16.msra.mxu0 %v3418
  %5644 = vmatprep.subr.bf16.mxu0 0
  %5645 = vmatpush1.bf16.msra.mxu0 %v3417
  %5646 = vmatprep.subr.bf16.mxu0 0
  %5647 = vmatpush1.bf16.msra.mxu0 %v3416
  %5648 = vmatprep.subr.bf16.mxu0 0
  %5649 = vmatpush1.bf16.msra.mxu0 %v3415
  %5650 = vmatprep.subr.bf16.mxu0 0
  %5651 = vmatpush1.bf16.msra.mxu0 %v3414
  %5652 = vmatprep.subr.bf16.mxu0 0
  %5653 = vmatpush2.bf16.msra.mxu0 %v3429
  %5654 = vmatprep.subr.bf16.mxu0 0
  %5655 = vmatpush2.bf16.msra.mxu0 %v3428
  %5656 = vmatprep.subr.bf16.mxu0 0
  %5657 = vmatpush2.bf16.msra.mxu0 %v3427
  %5658 = vmatprep.subr.bf16.mxu0 0
  %5659 = vmatpush2.bf16.msra.mxu0 %v3426
  %5660 = vmatprep.subr.bf16.mxu0 0
  %5661 = vmatpush2.bf16.msra.mxu0 %v3425
  %5662 = vmatprep.subr.bf16.mxu0 0
  %5663 = vmatpush2.bf16.msra.mxu0 %v3424
  %5664 = vmatprep.subr.bf16.mxu0 0
  %5665 = vmatpush2.bf16.msra.mxu0 %v3423
  %5666 = vmatprep.subr.bf16.mxu0 0
  %5667 = vmatpush2.bf16.msra.mxu0 %v3422
  %5668 = vmatprep.mubr.bf16.mxu0 %v5509
  %5669 = vmatmul.mubr.bf16.gmra.mxu0 %v5508
  %v5670 = vpop.f32.mrf.mxu0
  %v5671 = vadd.f32 0.0, %v5670
  %v5672 = vpop.f32.mrf.mxu0
  %v5673 = vpop.f32.mrf.mxu0
  %v5674 = vadd.f32 0.0, %v5673
  %v5675 = vpop.f32.mrf.mxu0
  %5676 = vmatprep.mubr.bf16.mxu0 %v5513
  %5677 = vmatmul.mubr.bf16.gmra.mxu0 %v5512
  %v5678 = vpop.f32.mrf.mxu0
  %v5679 = vadd.f32 0.0, %v5678
  %v5680 = vpop.f32.mrf.mxu0
  %v5681 = vpop.f32.mrf.mxu0
  %v5682 = vadd.f32 0.0, %v5681
  %v5683 = vpop.f32.mrf.mxu0
  %5684 = vmatprep.mubr.bf16.mxu0 %v5517
  %5685 = vmatmul.mubr.bf16.gmra.mxu0 %v5516
  %v5686 = vpop.f32.mrf.mxu0
  %v5687 = vadd.f32 0.0, %v5686
  %v5688 = vpop.f32.mrf.mxu0
  %v5689 = vpop.f32.mrf.mxu0
  %v5690 = vadd.f32 0.0, %v5689
  %v5691 = vpop.f32.mrf.mxu0
  %5692 = vmatprep.mubr.bf16.mxu0 %v5521
  %5693 = vmatmul.mubr.bf16.gmra.mxu0 %v5520
  %v5694 = vpop.f32.mrf.mxu0
  %v5695 = vadd.f32 0.0, %v5694
  %v5696 = vpop.f32.mrf.mxu0
  %v5697 = vpop.f32.mrf.mxu0
  %v5698 = vadd.f32 0.0, %v5697
  %v5699 = vpop.f32.mrf.mxu0
  %5700 = vmatprep.mubr.bf16.mxu0 %v5525
  %5701 = vmatmul.mubr.bf16.gmra.mxu0 %v5524
  %v5702 = vpop.f32.mrf.mxu0
  %v5703 = vadd.f32 0.0, %v5702
  %v5704 = vpop.f32.mrf.mxu0
  %v5705 = vpop.f32.mrf.mxu0
  %v5706 = vadd.f32 0.0, %v5705
  %v5707 = vpop.f32.mrf.mxu0
  %5708 = vmatprep.mubr.bf16.mxu0 %v5529
  %5709 = vmatmul.mubr.bf16.gmra.mxu0 %v5528
  %v5710 = vpop.f32.mrf.mxu0
  %v5711 = vadd.f32 0.0, %v5710
  %v5712 = vpop.f32.mrf.mxu0
  %v5713 = vpop.f32.mrf.mxu0
  %v5714 = vadd.f32 0.0, %v5713
  %v5715 = vpop.f32.mrf.mxu0
  %5716 = vmatprep.mubr.bf16.mxu0 %v5533
  %5717 = vmatmul.mubr.bf16.gmra.mxu0 %v5532
  %v5718 = vpop.f32.mrf.mxu0
  %v5719 = vadd.f32 0.0, %v5718
  %v5720 = vpop.f32.mrf.mxu0
  %v5721 = vpop.f32.mrf.mxu0
  %v5722 = vadd.f32 0.0, %v5721
  %v5723 = vpop.f32.mrf.mxu0
  %5724 = vmatprep.mubr.bf16.mxu0 %v5537
  %5725 = vmatmul.mubr.bf16.gmra.mxu0 %v5536
  %v5726 = vpop.f32.mrf.mxu0
  %v5727 = vadd.f32 0.0, %v5726
  %v5728 = vpop.f32.mrf.mxu0
  %v5729 = vpop.f32.mrf.mxu0
  %v5730 = vadd.f32 0.0, %v5729
  %v5731 = vpop.f32.mrf.mxu0
  %5732 = vmatprep.mubr.bf16.mxu0 %v5541
  %5733 = vmatmul.mubr.bf16.gmra.mxu0 %v5540
  %v5734 = vpop.f32.mrf.mxu0
  %v5735 = vadd.f32 0.0, %v5734
  %v5736 = vpop.f32.mrf.mxu0
  %v5737 = vpop.f32.mrf.mxu0
  %v5738 = vadd.f32 0.0, %v5737
  %v5739 = vpop.f32.mrf.mxu0
  %5740 = vmatprep.mubr.bf16.mxu0 %v5545
  %5741 = vmatmul.mubr.bf16.gmra.mxu0 %v5544
  %v5742 = vpop.f32.mrf.mxu0
  %v5743 = vadd.f32 0.0, %v5742
  %v5744 = vpop.f32.mrf.mxu0
  %v5745 = vpop.f32.mrf.mxu0
  %v5746 = vadd.f32 0.0, %v5745
  %v5747 = vpop.f32.mrf.mxu0
  %5748 = vmatprep.mubr.bf16.mxu0 %v5549
  %5749 = vmatmul.mubr.bf16.gmra.mxu0 %v5548
  %v5750 = vpop.f32.mrf.mxu0
  %v5751 = vadd.f32 0.0, %v5750
  %v5752 = vpop.f32.mrf.mxu0
  %v5753 = vpop.f32.mrf.mxu0
  %v5754 = vadd.f32 0.0, %v5753
  %v5755 = vpop.f32.mrf.mxu0
  %5756 = vmatprep.mubr.bf16.mxu0 %v5553
  %5757 = vmatmul.mubr.bf16.gmra.mxu0 %v5552
  %v5758 = vpop.f32.mrf.mxu0
  %v5759 = vadd.f32 0.0, %v5758
  %v5760 = vpop.f32.mrf.mxu0
  %v5761 = vpop.f32.mrf.mxu0
  %v5762 = vadd.f32 0.0, %v5761
  %v5763 = vpop.f32.mrf.mxu0
  %5764 = vmatprep.mubr.bf16.mxu0 %v5557
  %5765 = vmatmul.mubr.bf16.gmra.mxu0 %v5556
  %v5766 = vpop.f32.mrf.mxu0
  %v5767 = vadd.f32 0.0, %v5766
  %v5768 = vpop.f32.mrf.mxu0
  %v5769 = vpop.f32.mrf.mxu0
  %v5770 = vadd.f32 0.0, %v5769
  %v5771 = vpop.f32.mrf.mxu0
  %5772 = vmatprep.mubr.bf16.mxu0 %v5561
  %5773 = vmatmul.mubr.bf16.gmra.mxu0 %v5560
  %v5774 = vpop.f32.mrf.mxu0
  %v5775 = vadd.f32 0.0, %v5774
  %v5776 = vpop.f32.mrf.mxu0
  %v5777 = vpop.f32.mrf.mxu0
  %v5778 = vadd.f32 0.0, %v5777
  %v5779 = vpop.f32.mrf.mxu0
  %5780 = vmatprep.mubr.bf16.mxu0 %v5565
  %5781 = vmatmul.mubr.bf16.gmra.mxu0 %v5564
  %v5782 = vpop.f32.mrf.mxu0
  %v5783 = vadd.f32 0.0, %v5782
  %v5784 = vpop.f32.mrf.mxu0
  %v5785 = vpop.f32.mrf.mxu0
  %v5786 = vadd.f32 0.0, %v5785
  %v5787 = vpop.f32.mrf.mxu0
  %5788 = vmatprep.mubr.bf16.mxu0 %v5569
  %5789 = vmatmul.mubr.bf16.gmra.mxu0 %v5568
  %v5790 = vpop.f32.mrf.mxu0
  %v5791 = vadd.f32 0.0, %v5790
  %v5792 = vpop.f32.mrf.mxu0
  %v5793 = vpop.f32.mrf.mxu0
  %v5794 = vadd.f32 0.0, %v5793
  %v5795 = vpop.f32.mrf.mxu0
  %5796 = vdwg.mxu0
  %5797 = vmatprep.subr.bf16.mxu0 0
  %5798 = vmatpush1.bf16.msra.mxu0 %v3437
  %5799 = vmatprep.subr.bf16.mxu0 0
  %5800 = vmatpush1.bf16.msra.mxu0 %v3436
  %5801 = vmatprep.subr.bf16.mxu0 0
  %5802 = vmatpush1.bf16.msra.mxu0 %v3435
  %5803 = vmatprep.subr.bf16.mxu0 0
  %5804 = vmatpush1.bf16.msra.mxu0 %v3434
  %5805 = vmatprep.subr.bf16.mxu0 0
  %5806 = vmatpush1.bf16.msra.mxu0 %v3433
  %5807 = vmatprep.subr.bf16.mxu0 0
  %5808 = vmatpush1.bf16.msra.mxu0 %v3432
  %5809 = vmatprep.subr.bf16.mxu0 0
  %5810 = vmatpush1.bf16.msra.mxu0 %v3431
  %5811 = vmatprep.subr.bf16.mxu0 0
  %5812 = vmatpush1.bf16.msra.mxu0 %v3430
  %5813 = vmatprep.subr.bf16.mxu0 0
  %5814 = vmatpush2.bf16.msra.mxu0 %v3445
  %5815 = vmatprep.subr.bf16.mxu0 0
  %5816 = vmatpush2.bf16.msra.mxu0 %v3444
  %5817 = vmatprep.subr.bf16.mxu0 0
  %5818 = vmatpush2.bf16.msra.mxu0 %v3443
  %5819 = vmatprep.subr.bf16.mxu0 0
  %5820 = vmatpush2.bf16.msra.mxu0 %v3442
  %5821 = vmatprep.subr.bf16.mxu0 0
  %5822 = vmatpush2.bf16.msra.mxu0 %v3441
  %5823 = vmatprep.subr.bf16.mxu0 0
  %5824 = vmatpush2.bf16.msra.mxu0 %v3440
  %5825 = vmatprep.subr.bf16.mxu0 0
  %5826 = vmatpush2.bf16.msra.mxu0 %v3439
  %5827 = vmatprep.subr.bf16.mxu0 0
  %5828 = vmatpush2.bf16.msra.mxu0 %v3438
  %5829 = vmatprep.mubr.bf16.mxu0 %v5511
  %5830 = vmatmul.mubr.bf16.gmra.mxu0 %v5510
  %v5831 = vpop.f32.mrf.mxu0
  %v5832 = vadd.f32 %v5671, %v5831
  %v5833 = vpop.f32.mrf.mxu0
  %v5834 = vpop.f32.mrf.mxu0
  %v5835 = vadd.f32 %v5674, %v5834
  %v5836 = vpop.f32.mrf.mxu0
  %5837 = vmatprep.mubr.bf16.mxu0 %v5515
  %5838 = vmatmul.mubr.bf16.gmra.mxu0 %v5514
  %v5839 = vpop.f32.mrf.mxu0
  %v5840 = vadd.f32 %v5679, %v5839
  %v5841 = vpop.f32.mrf.mxu0
  %v5842 = vpop.f32.mrf.mxu0
  %v5843 = vadd.f32 %v5682, %v5842
  %v5844 = vpop.f32.mrf.mxu0
  %5845 = vmatprep.mubr.bf16.mxu0 %v5519
  %5846 = vmatmul.mubr.bf16.gmra.mxu0 %v5518
  %v5847 = vpop.f32.mrf.mxu0
  %v5848 = vadd.f32 %v5687, %v5847
  %v5849 = vpop.f32.mrf.mxu0
  %v5850 = vpop.f32.mrf.mxu0
  %v5851 = vadd.f32 %v5690, %v5850
  %v5852 = vpop.f32.mrf.mxu0
  %5853 = vmatprep.mubr.bf16.mxu0 %v5523
  %5854 = vmatmul.mubr.bf16.gmra.mxu0 %v5522
  %v5855 = vpop.f32.mrf.mxu0
  %v5856 = vadd.f32 %v5695, %v5855
  %v5857 = vpop.f32.mrf.mxu0
  %v5858 = vpop.f32.mrf.mxu0
  %v5859 = vadd.f32 %v5698, %v5858
  %v5860 = vpop.f32.mrf.mxu0
  %5861 = vmatprep.mubr.bf16.mxu0 %v5527
  %5862 = vmatmul.mubr.bf16.gmra.mxu0 %v5526
  %v5863 = vpop.f32.mrf.mxu0
  %v5864 = vadd.f32 %v5703, %v5863
  %v5865 = vpop.f32.mrf.mxu0
  %v5866 = vpop.f32.mrf.mxu0
  %v5867 = vadd.f32 %v5706, %v5866
  %v5868 = vpop.f32.mrf.mxu0
  %5869 = vmatprep.mubr.bf16.mxu0 %v5531
  %5870 = vmatmul.mubr.bf16.gmra.mxu0 %v5530
  %v5871 = vpop.f32.mrf.mxu0
  %v5872 = vadd.f32 %v5711, %v5871
  %v5873 = vpop.f32.mrf.mxu0
  %v5874 = vpop.f32.mrf.mxu0
  %v5875 = vadd.f32 %v5714, %v5874
  %v5876 = vpop.f32.mrf.mxu0
  %5877 = vmatprep.mubr.bf16.mxu0 %v5535
  %5878 = vmatmul.mubr.bf16.gmra.mxu0 %v5534
  %v5879 = vpop.f32.mrf.mxu0
  %v5880 = vadd.f32 %v5719, %v5879
  %v5881 = vpop.f32.mrf.mxu0
  %v5882 = vpop.f32.mrf.mxu0
  %v5883 = vadd.f32 %v5722, %v5882
  %v5884 = vpop.f32.mrf.mxu0
  %5885 = vmatprep.mubr.bf16.mxu0 %v5539
  %5886 = vmatmul.mubr.bf16.gmra.mxu0 %v5538
  %v5887 = vpop.f32.mrf.mxu0
  %v5888 = vadd.f32 %v5727, %v5887
  %v5889 = vpop.f32.mrf.mxu0
  %v5890 = vpop.f32.mrf.mxu0
  %v5891 = vadd.f32 %v5730, %v5890
  %v5892 = vpop.f32.mrf.mxu0
  %5893 = vmatprep.mubr.bf16.mxu0 %v5543
  %5894 = vmatmul.mubr.bf16.gmra.mxu0 %v5542
  %v5895 = vpop.f32.mrf.mxu0
  %v5896 = vadd.f32 %v5735, %v5895
  %v5897 = vpop.f32.mrf.mxu0
  %v5898 = vpop.f32.mrf.mxu0
  %v5899 = vadd.f32 %v5738, %v5898
  %v5900 = vpop.f32.mrf.mxu0
  %5901 = vmatprep.mubr.bf16.mxu0 %v5547
  %5902 = vmatmul.mubr.bf16.gmra.mxu0 %v5546
  %v5903 = vpop.f32.mrf.mxu0
  %v5904 = vadd.f32 %v5743, %v5903
  %v5905 = vpop.f32.mrf.mxu0
  %v5906 = vpop.f32.mrf.mxu0
  %v5907 = vadd.f32 %v5746, %v5906
  %v5908 = vpop.f32.mrf.mxu0
  %5909 = vmatprep.mubr.bf16.mxu0 %v5551
  %5910 = vmatmul.mubr.bf16.gmra.mxu0 %v5550
  %v5911 = vpop.f32.mrf.mxu0
  %v5912 = vadd.f32 %v5751, %v5911
  %v5913 = vpop.f32.mrf.mxu0
  %v5914 = vpop.f32.mrf.mxu0
  %v5915 = vadd.f32 %v5754, %v5914
  %v5916 = vpop.f32.mrf.mxu0
  %5917 = vmatprep.mubr.bf16.mxu0 %v5555
  %5918 = vmatmul.mubr.bf16.gmra.mxu0 %v5554
  %v5919 = vpop.f32.mrf.mxu0
  %v5920 = vadd.f32 %v5759, %v5919
  %v5921 = vpop.f32.mrf.mxu0
  %v5922 = vpop.f32.mrf.mxu0
  %v5923 = vadd.f32 %v5762, %v5922
  %v5924 = vpop.f32.mrf.mxu0
  %5925 = vmatprep.mubr.bf16.mxu0 %v5559
  %5926 = vmatmul.mubr.bf16.gmra.mxu0 %v5558
  %v5927 = vpop.f32.mrf.mxu0
  %v5928 = vadd.f32 %v5767, %v5927
  %v5929 = vpop.f32.mrf.mxu0
  %v5930 = vpop.f32.mrf.mxu0
  %v5931 = vadd.f32 %v5770, %v5930
  %v5932 = vpop.f32.mrf.mxu0
  %5933 = vmatprep.mubr.bf16.mxu0 %v5563
  %5934 = vmatmul.mubr.bf16.gmra.mxu0 %v5562
  %v5935 = vpop.f32.mrf.mxu0
  %v5936 = vadd.f32 %v5775, %v5935
  %v5937 = vpop.f32.mrf.mxu0
  %v5938 = vpop.f32.mrf.mxu0
  %v5939 = vadd.f32 %v5778, %v5938
  %v5940 = vpop.f32.mrf.mxu0
  %5941 = vmatprep.mubr.bf16.mxu0 %v5567
  %5942 = vmatmul.mubr.bf16.gmra.mxu0 %v5566
  %v5943 = vpop.f32.mrf.mxu0
  %v5944 = vadd.f32 %v5783, %v5943
  %v5945 = vpop.f32.mrf.mxu0
  %v5946 = vpop.f32.mrf.mxu0
  %v5947 = vadd.f32 %v5786, %v5946
  %v5948 = vpop.f32.mrf.mxu0
  %5949 = vmatprep.mubr.bf16.mxu0 %v5571
  %5950 = vmatmul.mubr.bf16.gmra.mxu0 %v5570
  %v5951 = vpop.f32.mrf.mxu0
  %v5952 = vadd.f32 %v5791, %v5951
  %v5953 = vpop.f32.mrf.mxu0
  %v5954 = vpop.f32.mrf.mxu0
  %v5955 = vadd.f32 %v5794, %v5954
  %v5956 = vpop.f32.mrf.mxu0
  %5957 = vdwg.mxu0
  %v5958 = vadd.f32 %v5220, %v5832
  %v5959 = vadd.f32 %v5221, %v5835
  %v5960 = vadd.f32 %v5222, %v5840
  %v5961 = vadd.f32 %v5223, %v5843
  %v5962 = vadd.f32 %v5224, %v5848
  %v5963 = vadd.f32 %v5225, %v5851
  %v5964 = vadd.f32 %v5226, %v5856
  %v5965 = vadd.f32 %v5227, %v5859
  %v5966 = vadd.f32 %v5228, %v5864
  %v5967 = vadd.f32 %v5229, %v5867
  %v5968 = vadd.f32 %v5230, %v5872
  %v5969 = vadd.f32 %v5231, %v5875
  %v5970 = vadd.f32 %v5232, %v5880
  %v5971 = vadd.f32 %v5233, %v5883
  %v5972 = vadd.f32 %v5234, %v5888
  %v5973 = vadd.f32 %v5235, %v5891
  %v5974 = vadd.f32 %v5236, %v5896
  %v5975 = vadd.f32 %v5237, %v5899
  %v5976 = vadd.f32 %v5238, %v5904
  %v5977 = vadd.f32 %v5239, %v5907
  %v5978 = vadd.f32 %v5240, %v5912
  %v5979 = vadd.f32 %v5241, %v5915
  %v5980 = vadd.f32 %v5242, %v5920
  %v5981 = vadd.f32 %v5243, %v5923
  %v5982 = vadd.f32 %v5244, %v5928
  %v5983 = vadd.f32 %v5245, %v5931
  %v5984 = vadd.f32 %v5246, %v5936
  %v5985 = vadd.f32 %v5247, %v5939
  %v5986 = vadd.f32 %v5248, %v5944
  %v5987 = vadd.f32 %v5249, %v5947
  %v5988 = vadd.f32 %v5250, %v5952
  %v5989 = vadd.f32 %v5251, %v5955
  %v5990 = vpack.c.bf16 %v5959, %v5958
  %v5991 = vpack.c.bf16 %v5961, %v5960
  %v5992 = vpack.c.bf16 %v5963, %v5962
  %v5993 = vpack.c.bf16 %v5965, %v5964
  %v5994 = vpack.c.bf16 %v5967, %v5966
  %v5995 = vpack.c.bf16 %v5969, %v5968
  %v5996 = vpack.c.bf16 %v5971, %v5970
  %v5997 = vpack.c.bf16 %v5973, %v5972
  %v5998 = vpack.c.bf16 %v5975, %v5974
  %v5999 = vpack.c.bf16 %v5977, %v5976
  %v6000 = vpack.c.bf16 %v5979, %v5978
  %v6001 = vpack.c.bf16 %v5981, %v5980
  %v6002 = vpack.c.bf16 %v5983, %v5982
  %v6003 = vpack.c.bf16 %v5985, %v5984
  %v6004 = vpack.c.bf16 %v5987, %v5986
  %v6005 = vpack.c.bf16 %v5989, %v5988
  %6006 = vmatprep.subr.bf16.mxu0 0
  %6007 = vmatpush1.bf16.msra.mxu0 %v4651
  %6008 = vmatprep.subr.bf16.mxu0 0
  %6009 = vmatpush1.bf16.msra.mxu0 %v4650
  %6010 = vmatprep.subr.bf16.mxu0 0
  %6011 = vmatpush1.bf16.msra.mxu0 %v4649
  %6012 = vmatprep.subr.bf16.mxu0 0
  %6013 = vmatpush1.bf16.msra.mxu0 %v4648
  %6014 = vmatprep.subr.bf16.mxu0 0
  %6015 = vmatpush1.bf16.msra.mxu0 %v4647
  %6016 = vmatprep.subr.bf16.mxu0 0
  %6017 = vmatpush1.bf16.msra.mxu0 %v4646
  %6018 = vmatprep.subr.bf16.mxu0 0
  %6019 = vmatpush1.bf16.msra.mxu0 %v4645
  %6020 = vmatprep.subr.bf16.mxu0 0
  %6021 = vmatpush1.bf16.msra.mxu0 %v4644
  %6022 = vmatprep.subr.bf16.mxu0 0
  %6023 = vmatpush2.bf16.msra.mxu0 0
  %6024 = vmatprep.subr.bf16.mxu0 0
  %6025 = vmatpush2.bf16.msra.mxu0 0
  %6026 = vmatprep.subr.bf16.mxu0 0
  %6027 = vmatpush2.bf16.msra.mxu0 0
  %6028 = vmatprep.subr.bf16.mxu0 0
  %6029 = vmatpush2.bf16.msra.mxu0 0
  %6030 = vmatprep.subr.bf16.mxu0 0
  %6031 = vmatpush2.bf16.msra.mxu0 0
  %6032 = vmatprep.subr.bf16.mxu0 0
  %6033 = vmatpush2.bf16.msra.mxu0 0
  %6034 = vmatprep.subr.bf16.mxu0 0
  %6035 = vmatpush2.bf16.msra.mxu0 0
  %6036 = vmatprep.subr.bf16.mxu0 0
  %6037 = vmatpush2.bf16.msra.mxu0 0
  %6038 = vmatprep.mubr.bf16.mxu0 0
  %6039 = vmatmul.mubr.bf16.gmra.mxu0 %v5990
  %v6040 = vpop.f32.mrf.mxu0
  %v6041 = vadd.f32 %v4611, %v6040
  %v6042 = vpop.f32.mrf.mxu0
  %v6043 = vpop.f32.mrf.mxu0
  %v6044 = vadd.f32 %v4611, %v6043
  %v6045 = vpop.f32.mrf.mxu0
  %6046 = vmatprep.mubr.bf16.mxu0 0
  %6047 = vmatmul.mubr.bf16.gmra.mxu0 %v5991
  %v6048 = vpop.f32.mrf.mxu0
  %v6049 = vadd.f32 %v4611, %v6048
  %v6050 = vpop.f32.mrf.mxu0
  %v6051 = vpop.f32.mrf.mxu0
  %v6052 = vadd.f32 %v4611, %v6051
  %v6053 = vpop.f32.mrf.mxu0
  %6054 = vmatprep.mubr.bf16.mxu0 0
  %6055 = vmatmul.mubr.bf16.gmra.mxu0 %v5992
  %v6056 = vpop.f32.mrf.mxu0
  %v6057 = vadd.f32 %v4611, %v6056
  %v6058 = vpop.f32.mrf.mxu0
  %v6059 = vpop.f32.mrf.mxu0
  %v6060 = vadd.f32 %v4611, %v6059
  %v6061 = vpop.f32.mrf.mxu0
  %6062 = vmatprep.mubr.bf16.mxu0 0
  %6063 = vmatmul.mubr.bf16.gmra.mxu0 %v5993
  %v6064 = vpop.f32.mrf.mxu0
  %v6065 = vadd.f32 %v4611, %v6064
  %v6066 = vpop.f32.mrf.mxu0
  %v6067 = vpop.f32.mrf.mxu0
  %v6068 = vadd.f32 %v4611, %v6067
  %v6069 = vpop.f32.mrf.mxu0
  %6070 = vmatprep.mubr.bf16.mxu0 0
  %6071 = vmatmul.mubr.bf16.gmra.mxu0 %v5994
  %v6072 = vpop.f32.mrf.mxu0
  %v6073 = vadd.f32 %v4611, %v6072
  %v6074 = vpop.f32.mrf.mxu0
  %v6075 = vpop.f32.mrf.mxu0
  %v6076 = vadd.f32 %v4611, %v6075
  %v6077 = vpop.f32.mrf.mxu0
  %6078 = vmatprep.mubr.bf16.mxu0 0
  %6079 = vmatmul.mubr.bf16.gmra.mxu0 %v5995
  %v6080 = vpop.f32.mrf.mxu0
  %v6081 = vadd.f32 %v4611, %v6080
  %v6082 = vpop.f32.mrf.mxu0
  %v6083 = vpop.f32.mrf.mxu0
  %v6084 = vadd.f32 %v4611, %v6083
  %v6085 = vpop.f32.mrf.mxu0
  %6086 = vmatprep.mubr.bf16.mxu0 0
  %6087 = vmatmul.mubr.bf16.gmra.mxu0 %v5996
  %v6088 = vpop.f32.mrf.mxu0
  %v6089 = vadd.f32 %v4611, %v6088
  %v6090 = vpop.f32.mrf.mxu0
  %v6091 = vpop.f32.mrf.mxu0
  %v6092 = vadd.f32 %v4611, %v6091
  %v6093 = vpop.f32.mrf.mxu0
  %6094 = vmatprep.mubr.bf16.mxu0 0
  %6095 = vmatmul.mubr.bf16.gmra.mxu0 %v5997
  %v6096 = vpop.f32.mrf.mxu0
  %v6097 = vadd.f32 %v4611, %v6096
  %v6098 = vpop.f32.mrf.mxu0
  %v6099 = vpop.f32.mrf.mxu0
  %v6100 = vadd.f32 %v4611, %v6099
  %v6101 = vpop.f32.mrf.mxu0
  %6102 = vmatprep.mubr.bf16.mxu0 0
  %6103 = vmatmul.mubr.bf16.gmra.mxu0 %v5998
  %v6104 = vpop.f32.mrf.mxu0
  %v6105 = vadd.f32 %v4611, %v6104
  %v6106 = vpop.f32.mrf.mxu0
  %v6107 = vpop.f32.mrf.mxu0
  %v6108 = vadd.f32 %v4611, %v6107
  %v6109 = vpop.f32.mrf.mxu0
  %6110 = vmatprep.mubr.bf16.mxu0 0
  %6111 = vmatmul.mubr.bf16.gmra.mxu0 %v5999
  %v6112 = vpop.f32.mrf.mxu0
  %v6113 = vadd.f32 %v4611, %v6112
  %v6114 = vpop.f32.mrf.mxu0
  %v6115 = vpop.f32.mrf.mxu0
  %v6116 = vadd.f32 %v4611, %v6115
  %v6117 = vpop.f32.mrf.mxu0
  %6118 = vmatprep.mubr.bf16.mxu0 0
  %6119 = vmatmul.mubr.bf16.gmra.mxu0 %v6000
  %v6120 = vpop.f32.mrf.mxu0
  %v6121 = vadd.f32 %v4611, %v6120
  %v6122 = vpop.f32.mrf.mxu0
  %v6123 = vpop.f32.mrf.mxu0
  %v6124 = vadd.f32 %v4611, %v6123
  %v6125 = vpop.f32.mrf.mxu0
  %6126 = vmatprep.mubr.bf16.mxu0 0
  %6127 = vmatmul.mubr.bf16.gmra.mxu0 %v6001
  %v6128 = vpop.f32.mrf.mxu0
  %v6129 = vadd.f32 %v4611, %v6128
  %v6130 = vpop.f32.mrf.mxu0
  %v6131 = vpop.f32.mrf.mxu0
  %v6132 = vadd.f32 %v4611, %v6131
  %v6133 = vpop.f32.mrf.mxu0
  %6134 = vmatprep.mubr.bf16.mxu0 0
  %6135 = vmatmul.mubr.bf16.gmra.mxu0 %v6002
  %v6136 = vpop.f32.mrf.mxu0
  %v6137 = vadd.f32 %v4611, %v6136
  %v6138 = vpop.f32.mrf.mxu0
  %v6139 = vpop.f32.mrf.mxu0
  %v6140 = vadd.f32 %v4611, %v6139
  %v6141 = vpop.f32.mrf.mxu0
  %6142 = vmatprep.mubr.bf16.mxu0 0
  %6143 = vmatmul.mubr.bf16.gmra.mxu0 %v6003
  %v6144 = vpop.f32.mrf.mxu0
  %v6145 = vadd.f32 %v4611, %v6144
  %v6146 = vpop.f32.mrf.mxu0
  %v6147 = vpop.f32.mrf.mxu0
  %v6148 = vadd.f32 %v4611, %v6147
  %v6149 = vpop.f32.mrf.mxu0
  %6150 = vmatprep.mubr.bf16.mxu0 0
  %6151 = vmatmul.mubr.bf16.gmra.mxu0 %v6004
  %v6152 = vpop.f32.mrf.mxu0
  %v6153 = vadd.f32 %v4611, %v6152
  %v6154 = vpop.f32.mrf.mxu0
  %v6155 = vpop.f32.mrf.mxu0
  %v6156 = vadd.f32 %v4611, %v6155
  %v6157 = vpop.f32.mrf.mxu0
  %6158 = vmatprep.mubr.bf16.mxu0 0
  %6159 = vmatmul.mubr.bf16.gmra.mxu0 %v6005
  %v6160 = vpop.f32.mrf.mxu0
  %v6161 = vadd.f32 %v4611, %v6160
  %v6162 = vpop.f32.mrf.mxu0
  %v6163 = vpop.f32.mrf.mxu0
  %v6164 = vadd.f32 %v4611, %v6163
  %v6165 = vpop.f32.mrf.mxu0
  %6166 = vdwg.mxu0
  %v6167 = vmax.f32 %v6041, 0.0
  %v6168 = vmax.f32 %v6044, 0.0
  %v6169 = vmax.f32 %v6049, 0.0
  %v6170 = vmax.f32 %v6052, 0.0
  %v6171 = vmax.f32 %v6057, 0.0
  %v6172 = vmax.f32 %v6060, 0.0
  %v6173 = vmax.f32 %v6065, 0.0
  %v6174 = vmax.f32 %v6068, 0.0
  %v6175 = vmax.f32 %v6073, 0.0
  %v6176 = vmax.f32 %v6076, 0.0
  %v6177 = vmax.f32 %v6081, 0.0
  %v6178 = vmax.f32 %v6084, 0.0
  %v6179 = vmax.f32 %v6089, 0.0
  %v6180 = vmax.f32 %v6092, 0.0
  %v6181 = vmax.f32 %v6097, 0.0
  %v6182 = vmax.f32 %v6100, 0.0
  %v6183 = vmax.f32 %v6105, 0.0
  %v6184 = vmax.f32 %v6108, 0.0
  %v6185 = vmax.f32 %v6113, 0.0
  %v6186 = vmax.f32 %v6116, 0.0
  %v6187 = vmax.f32 %v6121, 0.0
  %v6188 = vmax.f32 %v6124, 0.0
  %v6189 = vmax.f32 %v6129, 0.0
  %v6190 = vmax.f32 %v6132, 0.0
  %v6191 = vmax.f32 %v6137, 0.0
  %v6192 = vmax.f32 %v6140, 0.0
  %v6193 = vmax.f32 %v6145, 0.0
  %v6194 = vmax.f32 %v6148, 0.0
  %v6195 = vmax.f32 %v6153, 0.0
  %v6196 = vmax.f32 %v6156, 0.0
  %v6197 = vmax.f32 %v6161, 0.0
  %v6198 = vmax.f32 %v6164, 0.0
  %v6199 = vpack.c.bf16 %v6168, %v6167
  %v6200 = vpack.c.bf16 %v6170, %v6169
  %v6201 = vpack.c.bf16 %v6172, %v6171
  %v6202 = vpack.c.bf16 %v6174, %v6173
  %v6203 = vpack.c.bf16 %v6176, %v6175
  %v6204 = vpack.c.bf16 %v6178, %v6177
  %v6205 = vpack.c.bf16 %v6180, %v6179
  %v6206 = vpack.c.bf16 %v6182, %v6181
  %v6207 = vpack.c.bf16 %v6184, %v6183
  %v6208 = vpack.c.bf16 %v6186, %v6185
  %v6209 = vpack.c.bf16 %v6188, %v6187
  %v6210 = vpack.c.bf16 %v6190, %v6189
  %v6211 = vpack.c.bf16 %v6192, %v6191
  %v6212 = vpack.c.bf16 %v6194, %v6193
  %v6213 = vpack.c.bf16 %v6196, %v6195
  %v6214 = vpack.c.bf16 %v6198, %v6197
  %6215 = vmatprep.subr.bf16.mxu0 0
  %6216 = vmatpush1.bf16.msra.mxu0 %v4912
  %6217 = vmatprep.subr.bf16.mxu0 0
  %6218 = vmatpush1.bf16.msra.mxu0 %v4911
  %6219 = vmatprep.subr.bf16.mxu0 0
  %6220 = vmatpush1.bf16.msra.mxu0 %v4910
  %6221 = vmatprep.subr.bf16.mxu0 0
  %6222 = vmatpush1.bf16.msra.mxu0 %v4909
  %6223 = vmatprep.subr.bf16.mxu0 0
  %6224 = vmatpush1.bf16.msra.mxu0 %v4908
  %6225 = vmatprep.subr.bf16.mxu0 0
  %6226 = vmatpush1.bf16.msra.mxu0 %v4907
  %6227 = vmatprep.subr.bf16.mxu0 0
  %6228 = vmatpush1.bf16.msra.mxu0 %v4906
  %6229 = vmatprep.subr.bf16.mxu0 0
  %6230 = vmatpush1.bf16.msra.mxu0 %v4905
  %6231 = vmatprep.subr.bf16.mxu0 0
  %6232 = vmatpush2.bf16.msra.mxu0 0
  %6233 = vmatprep.subr.bf16.mxu0 0
  %6234 = vmatpush2.bf16.msra.mxu0 0
  %6235 = vmatprep.subr.bf16.mxu0 0
  %6236 = vmatpush2.bf16.msra.mxu0 0
  %6237 = vmatprep.subr.bf16.mxu0 0
  %6238 = vmatpush2.bf16.msra.mxu0 0
  %6239 = vmatprep.subr.bf16.mxu0 0
  %6240 = vmatpush2.bf16.msra.mxu0 0
  %6241 = vmatprep.subr.bf16.mxu0 0
  %6242 = vmatpush2.bf16.msra.mxu0 0
  %6243 = vmatprep.subr.bf16.mxu0 0
  %6244 = vmatpush2.bf16.msra.mxu0 0
  %6245 = vmatprep.subr.bf16.mxu0 0
  %6246 = vmatpush2.bf16.msra.mxu0 0
  %6247 = vmatprep.mubr.bf16.mxu0 0
  %6248 = vmatmul.mubr.bf16.gmra.mxu0 %v6199
  %v6249 = vpop.f32.mrf.mxu0
  %v6250 = vadd.f32 %v4872, %v6249
  %v6251 = vpop.f32.mrf.mxu0
  %v6252 = vpop.f32.mrf.mxu0
  %v6253 = vadd.f32 %v4872, %v6252
  %v6254 = vpop.f32.mrf.mxu0
  %6255 = vmatprep.mubr.bf16.mxu0 0
  %6256 = vmatmul.mubr.bf16.gmra.mxu0 %v6200
  %v6257 = vpop.f32.mrf.mxu0
  %v6258 = vadd.f32 %v4872, %v6257
  %v6259 = vpop.f32.mrf.mxu0
  %v6260 = vpop.f32.mrf.mxu0
  %v6261 = vadd.f32 %v4872, %v6260
  %v6262 = vpop.f32.mrf.mxu0
  %6263 = vmatprep.mubr.bf16.mxu0 0
  %6264 = vmatmul.mubr.bf16.gmra.mxu0 %v6201
  %v6265 = vpop.f32.mrf.mxu0
  %v6266 = vadd.f32 %v4872, %v6265
  %v6267 = vpop.f32.mrf.mxu0
  %v6268 = vpop.f32.mrf.mxu0
  %v6269 = vadd.f32 %v4872, %v6268
  %v6270 = vpop.f32.mrf.mxu0
  %6271 = vmatprep.mubr.bf16.mxu0 0
  %6272 = vmatmul.mubr.bf16.gmra.mxu0 %v6202
  %v6273 = vpop.f32.mrf.mxu0
  %v6274 = vadd.f32 %v4872, %v6273
  %v6275 = vpop.f32.mrf.mxu0
  %v6276 = vpop.f32.mrf.mxu0
  %v6277 = vadd.f32 %v4872, %v6276
  %v6278 = vpop.f32.mrf.mxu0
  %6279 = vmatprep.mubr.bf16.mxu0 0
  %6280 = vmatmul.mubr.bf16.gmra.mxu0 %v6203
  %v6281 = vpop.f32.mrf.mxu0
  %v6282 = vadd.f32 %v4872, %v6281
  %v6283 = vpop.f32.mrf.mxu0
  %v6284 = vpop.f32.mrf.mxu0
  %v6285 = vadd.f32 %v4872, %v6284
  %v6286 = vpop.f32.mrf.mxu0
  %6287 = vmatprep.mubr.bf16.mxu0 0
  %6288 = vmatmul.mubr.bf16.gmra.mxu0 %v6204
  %v6289 = vpop.f32.mrf.mxu0
  %v6290 = vadd.f32 %v4872, %v6289
  %v6291 = vpop.f32.mrf.mxu0
  %v6292 = vpop.f32.mrf.mxu0
  %v6293 = vadd.f32 %v4872, %v6292
  %v6294 = vpop.f32.mrf.mxu0
  %6295 = vmatprep.mubr.bf16.mxu0 0
  %6296 = vmatmul.mubr.bf16.gmra.mxu0 %v6205
  %v6297 = vpop.f32.mrf.mxu0
  %v6298 = vadd.f32 %v4872, %v6297
  %v6299 = vpop.f32.mrf.mxu0
  %v6300 = vpop.f32.mrf.mxu0
  %v6301 = vadd.f32 %v4872, %v6300
  %v6302 = vpop.f32.mrf.mxu0
  %6303 = vmatprep.mubr.bf16.mxu0 0
  %6304 = vmatmul.mubr.bf16.gmra.mxu0 %v6206
  %v6305 = vpop.f32.mrf.mxu0
  %v6306 = vadd.f32 %v4872, %v6305
  %v6307 = vpop.f32.mrf.mxu0
  %v6308 = vpop.f32.mrf.mxu0
  %v6309 = vadd.f32 %v4872, %v6308
  %v6310 = vpop.f32.mrf.mxu0
  %6311 = vmatprep.mubr.bf16.mxu0 0
  %6312 = vmatmul.mubr.bf16.gmra.mxu0 %v6207
  %v6313 = vpop.f32.mrf.mxu0
  %v6314 = vadd.f32 %v4872, %v6313
  %v6315 = vpop.f32.mrf.mxu0
  %v6316 = vpop.f32.mrf.mxu0
  %v6317 = vadd.f32 %v4872, %v6316
  %v6318 = vpop.f32.mrf.mxu0
  %6319 = vmatprep.mubr.bf16.mxu0 0
  %6320 = vmatmul.mubr.bf16.gmra.mxu0 %v6208
  %v6321 = vpop.f32.mrf.mxu0
  %v6322 = vadd.f32 %v4872, %v6321
  %v6323 = vpop.f32.mrf.mxu0
  %v6324 = vpop.f32.mrf.mxu0
  %v6325 = vadd.f32 %v4872, %v6324
  %v6326 = vpop.f32.mrf.mxu0
  %6327 = vmatprep.mubr.bf16.mxu0 0
  %6328 = vmatmul.mubr.bf16.gmra.mxu0 %v6209
  %v6329 = vpop.f32.mrf.mxu0
  %v6330 = vadd.f32 %v4872, %v6329
  %v6331 = vpop.f32.mrf.mxu0
  %v6332 = vpop.f32.mrf.mxu0
  %v6333 = vadd.f32 %v4872, %v6332
  %v6334 = vpop.f32.mrf.mxu0
  %6335 = vmatprep.mubr.bf16.mxu0 0
  %6336 = vmatmul.mubr.bf16.gmra.mxu0 %v6210
  %v6337 = vpop.f32.mrf.mxu0
  %v6338 = vadd.f32 %v4872, %v6337
  %v6339 = vpop.f32.mrf.mxu0
  %v6340 = vpop.f32.mrf.mxu0
  %v6341 = vadd.f32 %v4872, %v6340
  %v6342 = vpop.f32.mrf.mxu0
  %6343 = vmatprep.mubr.bf16.mxu0 0
  %6344 = vmatmul.mubr.bf16.gmra.mxu0 %v6211
  %v6345 = vpop.f32.mrf.mxu0
  %v6346 = vadd.f32 %v4872, %v6345
  %v6347 = vpop.f32.mrf.mxu0
  %v6348 = vpop.f32.mrf.mxu0
  %v6349 = vadd.f32 %v4872, %v6348
  %v6350 = vpop.f32.mrf.mxu0
  %6351 = vmatprep.mubr.bf16.mxu0 0
  %6352 = vmatmul.mubr.bf16.gmra.mxu0 %v6212
  %v6353 = vpop.f32.mrf.mxu0
  %v6354 = vadd.f32 %v4872, %v6353
  %v6355 = vpop.f32.mrf.mxu0
  %v6356 = vpop.f32.mrf.mxu0
  %v6357 = vadd.f32 %v4872, %v6356
  %v6358 = vpop.f32.mrf.mxu0
  %6359 = vmatprep.mubr.bf16.mxu0 0
  %6360 = vmatmul.mubr.bf16.gmra.mxu0 %v6213
  %v6361 = vpop.f32.mrf.mxu0
  %v6362 = vadd.f32 %v4872, %v6361
  %v6363 = vpop.f32.mrf.mxu0
  %v6364 = vpop.f32.mrf.mxu0
  %v6365 = vadd.f32 %v4872, %v6364
  %v6366 = vpop.f32.mrf.mxu0
  %6367 = vmatprep.mubr.bf16.mxu0 0
  %6368 = vmatmul.mubr.bf16.gmra.mxu0 %v6214
  %v6369 = vpop.f32.mrf.mxu0
  %v6370 = vadd.f32 %v4872, %v6369
  %v6371 = vpop.f32.mrf.mxu0
  %v6372 = vpop.f32.mrf.mxu0
  %v6373 = vadd.f32 %v4872, %v6372
  %v6374 = vpop.f32.mrf.mxu0
  %6375 = vdwg.mxu0
  %v6376 = vmax.f32 %v6250, 0.0
  %v6377 = vmax.f32 %v6253, 0.0
  %v6378 = vmax.f32 %v6258, 0.0
  %v6379 = vmax.f32 %v6261, 0.0
  %v6380 = vmax.f32 %v6266, 0.0
  %v6381 = vmax.f32 %v6269, 0.0
  %v6382 = vmax.f32 %v6274, 0.0
  %v6383 = vmax.f32 %v6277, 0.0
  %v6384 = vmax.f32 %v6282, 0.0
  %v6385 = vmax.f32 %v6285, 0.0
  %v6386 = vmax.f32 %v6290, 0.0
  %v6387 = vmax.f32 %v6293, 0.0
  %v6388 = vmax.f32 %v6298, 0.0
  %v6389 = vmax.f32 %v6301, 0.0
  %v6390 = vmax.f32 %v6306, 0.0
  %v6391 = vmax.f32 %v6309, 0.0
  %v6392 = vmax.f32 %v6314, 0.0
  %v6393 = vmax.f32 %v6317, 0.0
  %v6394 = vmax.f32 %v6322, 0.0
  %v6395 = vmax.f32 %v6325, 0.0
  %v6396 = vmax.f32 %v6330, 0.0
  %v6397 = vmax.f32 %v6333, 0.0
  %v6398 = vmax.f32 %v6338, 0.0
  %v6399 = vmax.f32 %v6341, 0.0
  %v6400 = vmax.f32 %v6346, 0.0
  %v6401 = vmax.f32 %v6349, 0.0
  %v6402 = vmax.f32 %v6354, 0.0
  %v6403 = vmax.f32 %v6357, 0.0
  %v6404 = vmax.f32 %v6362, 0.0
  %v6405 = vmax.f32 %v6365, 0.0
  %v6406 = vmax.f32 %v6370, 0.0
  %v6407 = vmax.f32 %v6373, 0.0
  %v6408 = vmul.f32 %v6376, %v5117
  %v6409 = vmul.f32 %v6377, %v5117
  %v6410 = vmul.f32 %v6378, %v5117
  %v6411 = vmul.f32 %v6379, %v5117
  %v6412 = vmul.f32 %v6380, %v5117
  %v6413 = vmul.f32 %v6381, %v5117
  %v6414 = vmul.f32 %v6382, %v5117
  %v6415 = vmul.f32 %v6383, %v5117
  %v6416 = vmul.f32 %v6384, %v5117
  %v6417 = vmul.f32 %v6385, %v5117
  %v6418 = vmul.f32 %v6386, %v5117
  %v6419 = vmul.f32 %v6387, %v5117
  %v6420 = vmul.f32 %v6388, %v5117
  %v6421 = vmul.f32 %v6389, %v5117
  %v6422 = vmul.f32 %v6390, %v5117
  %v6423 = vmul.f32 %v6391, %v5117
  %v6424 = vmul.f32 %v6392, %v5117
  %v6425 = vmul.f32 %v6393, %v5117
  %v6426 = vmul.f32 %v6394, %v5117
  %v6427 = vmul.f32 %v6395, %v5117
  %v6428 = vmul.f32 %v6396, %v5117
  %v6429 = vmul.f32 %v6397, %v5117
  %v6430 = vmul.f32 %v6398, %v5117
  %v6431 = vmul.f32 %v6399, %v5117
  %v6432 = vmul.f32 %v6400, %v5117
  %v6433 = vmul.f32 %v6401, %v5117
  %v6434 = vmul.f32 %v6402, %v5117
  %v6435 = vmul.f32 %v6403, %v5117
  %v6436 = vmul.f32 %v6404, %v5117
  %v6437 = vmul.f32 %v6405, %v5117
  %v6438 = vmul.f32 %v6406, %v5117
  %v6439 = vmul.f32 %v6407, %v5117
  %v6440 = vadd.f32 %v6408, %v5153
  %v6441 = vadd.f32 %v6409, %v5153
  %v6442 = vadd.f32 %v6410, %v5153
  %v6443 = vadd.f32 %v6411, %v5153
  %v6444 = vadd.f32 %v6412, %v5153
  %v6445 = vadd.f32 %v6413, %v5153
  %v6446 = vadd.f32 %v6414, %v5153
  %v6447 = vadd.f32 %v6415, %v5153
  %v6448 = vadd.f32 %v6416, %v5153
  %v6449 = vadd.f32 %v6417, %v5153
  %v6450 = vadd.f32 %v6418, %v5153
  %v6451 = vadd.f32 %v6419, %v5153
  %v6452 = vadd.f32 %v6420, %v5153
  %v6453 = vadd.f32 %v6421, %v5153
  %v6454 = vadd.f32 %v6422, %v5153
  %v6455 = vadd.f32 %v6423, %v5153
  %v6456 = vadd.f32 %v6424, %v5153
  %v6457 = vadd.f32 %v6425, %v5153
  %v6458 = vadd.f32 %v6426, %v5153
  %v6459 = vadd.f32 %v6427, %v5153
  %v6460 = vadd.f32 %v6428, %v5153
  %v6461 = vadd.f32 %v6429, %v5153
  %v6462 = vadd.f32 %v6430, %v5153
  %v6463 = vadd.f32 %v6431, %v5153
  %v6464 = vadd.f32 %v6432, %v5153
  %v6465 = vadd.f32 %v6433, %v5153
  %v6466 = vadd.f32 %v6434, %v5153
  %v6467 = vadd.f32 %v6435, %v5153
  %v6468 = vadd.f32 %v6436, %v5153
  %v6469 = vadd.f32 %v6437, %v5153
  %v6470 = vadd.f32 %v6438, %v5153
  %v6471 = vadd.f32 %v6439, %v5153
  %6472 = vst [vmem:[#allocation4 + $0x308] sm:$0xff] %v6440
  %6473 = vst [vmem:[#allocation4 + $0x320] sm:$0xff] %v6441
  %6474 = vst [vmem:[#allocation4 + $0x338] sm:$0xff] %v6442
  %6475 = vst [vmem:[#allocation4 + $0x350] sm:$0xff] %v6443
  %6476 = vst [vmem:[#allocation4 + $0x368] sm:$0xff] %v6444
  %6477 = vst [vmem:[#allocation4 + $0x380] sm:$0xff] %v6445
  %6478 = vst [vmem:[#allocation4 + $0x398] sm:$0xff] %v6446
  %6479 = vst [vmem:[#allocation4 + $0x3b0] sm:$0xff] %v6447
  %6480 = vst [vmem:[#allocation4 + $0x3c8] sm:$0xff] %v6448
  %6481 = vst [vmem:[#allocation4 + $0x3e0] sm:$0xff] %v6449
  %6482 = vst [vmem:[#allocation4 + $0x3f8] sm:$0xff] %v6450
  %6483 = vst [vmem:[#allocation4 + $0x410] sm:$0xff] %v6451
  %6484 = vst [vmem:[#allocation4 + $0x428] sm:$0xff] %v6452
  %6485 = vst [vmem:[#allocation4 + $0x440] sm:$0xff] %v6453
  %6486 = vst [vmem:[#allocation4 + $0x458] sm:$0xff] %v6454
  %6487 = vst [vmem:[#allocation4 + $0x470] sm:$0xff] %v6455
  %6488 = vst [vmem:[#allocation4 + $0x488] sm:$0xff] %v6456
  %6489 = vst [vmem:[#allocation4 + $0x4a0] sm:$0xff] %v6457
  %6490 = vst [vmem:[#allocation4 + $0x4b8] sm:$0xff] %v6458
  %6491 = vst [vmem:[#allocation4 + $0x4d0] sm:$0xff] %v6459
  %6492 = vst [vmem:[#allocation4 + $0x4e8] sm:$0xff] %v6460
  %6493 = vst [vmem:[#allocation4 + $0x500] sm:$0xff] %v6461
  %6494 = vst [vmem:[#allocation4 + $0x518] sm:$0xff] %v6462
  %6495 = vst [vmem:[#allocation4 + $0x530] sm:$0xff] %v6463
  %6496 = vst [vmem:[#allocation4 + $0x548] sm:$0xff] %v6464
  %6497 = vst [vmem:[#allocation4 + $0x560] sm:$0xff] %v6465
  %6498 = vst [vmem:[#allocation4 + $0x578] sm:$0xff] %v6466
  %6499 = vst [vmem:[#allocation4 + $0x590] sm:$0xff] %v6467
  %6500 = vst [vmem:[#allocation4 + $0x5a8] sm:$0xff] %v6468
  %6501 = vst [vmem:[#allocation4 + $0x5c0] sm:$0xff] %v6469
  %6502 = vst [vmem:[#allocation4 + $0x5d8] sm:$0xff] %v6470
  %6503 = vst [vmem:[#allocation4 + $0x5f0] sm:$0xff] %v6471
  %v6504 = vld [vmem:[#allocation4 + $0x8] sm:$0xff]
  %v6505 = vld [vmem:[#allocation4 + $0x20] sm:$0xff]
  %v6506 = vld [vmem:[#allocation4 + $0x38] sm:$0xff]
  %v6507 = vld [vmem:[#allocation4 + $0x50] sm:$0xff]
  %v6508 = vld [vmem:[#allocation4 + $0x68] sm:$0xff]
  %v6509 = vld [vmem:[#allocation4 + $0x80] sm:$0xff]
  %v6510 = vld [vmem:[#allocation4 + $0x98] sm:$0xff]
  %v6511 = vld [vmem:[#allocation4 + $0xb0] sm:$0xff]
  %v6512 = vld [vmem:[#allocation4 + $0xc8] sm:$0xff]
  %v6513 = vld [vmem:[#allocation4 + $0xe0] sm:$0xff]
  %v6514 = vld [vmem:[#allocation4 + $0xf8] sm:$0xff]
  %v6515 = vld [vmem:[#allocation4 + $0x110] sm:$0xff]
  %v6516 = vld [vmem:[#allocation4 + $0x128] sm:$0xff]
  %v6517 = vld [vmem:[#allocation4 + $0x140] sm:$0xff]
  %v6518 = vld [vmem:[#allocation4 + $0x158] sm:$0xff]
  %v6519 = vld [vmem:[#allocation4 + $0x170] sm:$0xff]
  %v6520 = vld [vmem:[#allocation4 + $0x188] sm:$0xff]
  %v6521 = vld [vmem:[#allocation4 + $0x1a0] sm:$0xff]
  %v6522 = vld [vmem:[#allocation4 + $0x1b8] sm:$0xff]
  %v6523 = vld [vmem:[#allocation4 + $0x1d0] sm:$0xff]
  %v6524 = vld [vmem:[#allocation4 + $0x1e8] sm:$0xff]
  %v6525 = vld [vmem:[#allocation4 + $0x200] sm:$0xff]
  %v6526 = vld [vmem:[#allocation4 + $0x218] sm:$0xff]
  %v6527 = vld [vmem:[#allocation4 + $0x230] sm:$0xff]
  %v6528 = vld [vmem:[#allocation4 + $0x248] sm:$0xff]
  %v6529 = vld [vmem:[#allocation4 + $0x260] sm:$0xff]
  %v6530 = vld [vmem:[#allocation4 + $0x278] sm:$0xff]
  %v6531 = vld [vmem:[#allocation4 + $0x290] sm:$0xff]
  %v6532 = vld [vmem:[#allocation4 + $0x2a8] sm:$0xff]
  %v6533 = vld [vmem:[#allocation4 + $0x2c0] sm:$0xff]
  %v6534 = vld [vmem:[#allocation4 + $0x2d8] sm:$0xff]
  %v6535 = vld [vmem:[#allocation4 + $0x2f0] sm:$0xff]
  %v6536 = vld [vmem:[#allocation4 + $0x308] sm:$0xff]
  %v6537 = vld [vmem:[#allocation4 + $0x320] sm:$0xff]
  %v6538 = vld [vmem:[#allocation4 + $0x338] sm:$0xff]
  %v6539 = vld [vmem:[#allocation4 + $0x350] sm:$0xff]
  %v6540 = vld [vmem:[#allocation4 + $0x368] sm:$0xff]
  %v6541 = vld [vmem:[#allocation4 + $0x380] sm:$0xff]
  %v6542 = vld [vmem:[#allocation4 + $0x398] sm:$0xff]
  %v6543 = vld [vmem:[#allocation4 + $0x3b0] sm:$0xff]
  %v6544 = vld [vmem:[#allocation4 + $0x3c8] sm:$0xff]
  %v6545 = vld [vmem:[#allocation4 + $0x3e0] sm:$0xff]
  %v6546 = vld [vmem:[#allocation4 + $0x3f8] sm:$0xff]
  %v6547 = vld [vmem:[#allocation4 + $0x410] sm:$0xff]
  %v6548 = vld [vmem:[#allocation4 + $0x428] sm:$0xff]
  %v6549 = vld [vmem:[#allocation4 + $0x440] sm:$0xff]
  %v6550 = vld [vmem:[#allocation4 + $0x458] sm:$0xff]
  %v6551 = vld [vmem:[#allocation4 + $0x470] sm:$0xff]
  %v6552 = vld [vmem:[#allocation4 + $0x488] sm:$0xff]
  %v6553 = vld [vmem:[#allocation4 + $0x4a0] sm:$0xff]
  %v6554 = vld [vmem:[#allocation4 + $0x4b8] sm:$0xff]
  %v6555 = vld [vmem:[#allocation4 + $0x4d0] sm:$0xff]
  %v6556 = vld [vmem:[#allocation4 + $0x4e8] sm:$0xff]
  %v6557 = vld [vmem:[#allocation4 + $0x500] sm:$0xff]
  %v6558 = vld [vmem:[#allocation4 + $0x518] sm:$0xff]
  %v6559 = vld [vmem:[#allocation4 + $0x530] sm:$0xff]
  %v6560 = vld [vmem:[#allocation4 + $0x548] sm:$0xff]
  %v6561 = vld [vmem:[#allocation4 + $0x560] sm:$0xff]
  %v6562 = vld [vmem:[#allocation4 + $0x578] sm:$0xff]
  %v6563 = vld [vmem:[#allocation4 + $0x590] sm:$0xff]
  %v6564 = vld [vmem:[#allocation4 + $0x5a8] sm:$0xff]
  %v6565 = vld [vmem:[#allocation4 + $0x5c0] sm:$0xff]
  %v6566 = vld [vmem:[#allocation4 + $0x5d8] sm:$0xff]
  %v6567 = vld [vmem:[#allocation4 + $0x5f0] sm:$0xff]
  %v6568 = vpack.c.bf16 %v6505, %v6504
  %v6569 = vpack.c.bf16 %v6507, %v6506
  %v6570 = vpack.c.bf16 %v6509, %v6508
  %v6571 = vpack.c.bf16 %v6511, %v6510
  %v6572 = vpack.c.bf16 %v6513, %v6512
  %v6573 = vpack.c.bf16 %v6515, %v6514
  %v6574 = vpack.c.bf16 %v6517, %v6516
  %v6575 = vpack.c.bf16 %v6519, %v6518
  %v6576 = vpack.c.bf16 %v6521, %v6520
  %v6577 = vpack.c.bf16 %v6523, %v6522
  %v6578 = vpack.c.bf16 %v6525, %v6524
  %v6579 = vpack.c.bf16 %v6527, %v6526
  %v6580 = vpack.c.bf16 %v6529, %v6528
  %v6581 = vpack.c.bf16 %v6531, %v6530
  %v6582 = vpack.c.bf16 %v6533, %v6532
  %v6583 = vpack.c.bf16 %v6535, %v6534
  %v6584 = vpack.c.bf16 %v6537, %v6536
  %v6585 = vpack.c.bf16 %v6539, %v6538
  %v6586 = vpack.c.bf16 %v6541, %v6540
  %v6587 = vpack.c.bf16 %v6543, %v6542
  %v6588 = vpack.c.bf16 %v6545, %v6544
  %v6589 = vpack.c.bf16 %v6547, %v6546
  %v6590 = vpack.c.bf16 %v6549, %v6548
  %v6591 = vpack.c.bf16 %v6551, %v6550
  %v6592 = vpack.c.bf16 %v6553, %v6552
  %v6593 = vpack.c.bf16 %v6555, %v6554
  %v6594 = vpack.c.bf16 %v6557, %v6556
  %v6595 = vpack.c.bf16 %v6559, %v6558
  %v6596 = vpack.c.bf16 %v6561, %v6560
  %v6597 = vpack.c.bf16 %v6563, %v6562
  %v6598 = vpack.c.bf16 %v6565, %v6564
  %v6599 = vpack.c.bf16 %v6567, %v6566
  %s6600 = scalar_lea.vmem %s3, 128
  %v6601 = vld [vmem:[%s6600] sm:$0xf]
  %v6602 = vld [vmem:[%s6600 + $0x4] sm:$0xf]
  %v6603 = vld [vmem:[%s6600 + $0x8] sm:$0xf]
  %v6604 = vld [vmem:[%s6600 + $0xc] sm:$0xf]
  %v6605 = vld [vmem:[%s6600 + $0x10] sm:$0xf]
  %v6606 = vld [vmem:[%s6600 + $0x14] sm:$0xf]
  %v6607 = vld [vmem:[%s6600 + $0x18] sm:$0xf]
  %v6608 = vld [vmem:[%s6600 + $0x1c] sm:$0xf]
  %v6609 = vld [vmem:[%s6600 + $0x20] sm:$0xf]
  %v6610 = vld [vmem:[%s6600 + $0x24] sm:$0xf]
  %v6611 = vld [vmem:[%s6600 + $0x28] sm:$0xf]
  %v6612 = vld [vmem:[%s6600 + $0x2c] sm:$0xf]
  %v6613 = vld [vmem:[%s6600 + $0x30] sm:$0xf]
  %v6614 = vld [vmem:[%s6600 + $0x34] sm:$0xf]
  %v6615 = vld [vmem:[%s6600 + $0x38] sm:$0xf]
  %v6616 = vld [vmem:[%s6600 + $0x3c] sm:$0xf]
  %s6617 = scalar_lea.vmem %s4, 128
  %v6618 = vld [vmem:[%s6617] sm:$0xf]
  %v6619 = vld [vmem:[%s6617 + $0x4] sm:$0xf]
  %v6620 = vld [vmem:[%s6617 + $0x8] sm:$0xf]
  %v6621 = vld [vmem:[%s6617 + $0xc] sm:$0xf]
  %v6622 = vld [vmem:[%s6617 + $0x10] sm:$0xf]
  %v6623 = vld [vmem:[%s6617 + $0x14] sm:$0xf]
  %v6624 = vld [vmem:[%s6617 + $0x18] sm:$0xf]
  %v6625 = vld [vmem:[%s6617 + $0x1c] sm:$0xf]
  %v6626 = vld [vmem:[%s6617 + $0x20] sm:$0xf]
  %v6627 = vld [vmem:[%s6617 + $0x24] sm:$0xf]
  %v6628 = vld [vmem:[%s6617 + $0x28] sm:$0xf]
  %v6629 = vld [vmem:[%s6617 + $0x2c] sm:$0xf]
  %v6630 = vld [vmem:[%s6617 + $0x30] sm:$0xf]
  %v6631 = vld [vmem:[%s6617 + $0x34] sm:$0xf]
  %v6632 = vld [vmem:[%s6617 + $0x38] sm:$0xf]
  %v6633 = vld [vmem:[%s6617 + $0x3c] sm:$0xf]
  %s6634 = scalar_lea.vmem %s5, 16
  %v6635 = vld [vmem:[%s6634] sm:$0xff]
  %p6637 = scmp.lt.u32.totalorder 512, 8
  %p6638 = pneg %p6637
  // Predicated region
  $region174: #{encoder_feed_forward.1} parent=0 // pred_check
    _
  $region175: #{encoder_feed_forward.1} parent=0 // pred_check_branch
    %6640 = sbr.rel (%p6637) target = $region177
  $region176: #{encoder_feed_forward.1} parent=0 // pred_region
    %s6656 = sand.u32 512, 7
    %p6657 = scmp.eq.s32.totalorder %s6656, 0
    // Predicated region
    $region189: #{encoder_feed_forward.1} parent=176 // pred_check
      %p6658 = pneg %p6657
    $region190: #{encoder_feed_forward.1} parent=176 // pred_check_branch
      %6660 = sbr.rel (%p6658) target = $region192
    $region191: #{encoder_feed_forward.1} parent=176 // pred_region
      loop: start=0, step=1, limit=1
      $region193: #{encoder_feed_forward.1} parent=191 // loop_pre_header
        _
      $region194: #{encoder_feed_forward.1} parent=191 // loop_header
        %s6662 = sphi 0, %s6666
        %p6663 = scmp.ge.s32.totalorder %s6662, 1
        %s6667 = sphi %s0, %s0
        %s6668 = sphi [#allocation2], [#allocation2]
      $region195: #{encoder_feed_forward.1} parent=191 // loop_header_branch
        %6665 = sbr.rel (%p6663) target = $region199
      $region196: #{encoder_feed_forward.1} parent=191 // loop_body
        %v6669 = vld [vmem:[%s6667] sm:$0xff]
        %6670 = vst [vmem:[%s6668] sm:$0xff] %v6669
        %v6671 = vld [vmem:[%s6667 + $0x8] sm:$0xff]
        %6672 = vst [vmem:[%s6668 + $0x8] sm:$0xff] %v6671
        %v6673 = vld [vmem:[%s6667 + $0x10] sm:$0xff]
        %6674 = vst [vmem:[%s6668 + $0x10] sm:$0xff] %v6673
        %v6675 = vld [vmem:[%s6667 + $0x18] sm:$0xff]
        %6676 = vst [vmem:[%s6668 + $0x18] sm:$0xff] %v6675
        %v6677 = vld [vmem:[%s6667 + $0x20] sm:$0xff]
        %6678 = vst [vmem:[%s6668 + $0x20] sm:$0xff] %v6677
        %v6679 = vld [vmem:[%s6667 + $0x28] sm:$0xff]
        %6680 = vst [vmem:[%s6668 + $0x28] sm:$0xff] %v6679
        %v6681 = vld [vmem:[%s6667 + $0x30] sm:$0xff]
        %6682 = vst [vmem:[%s6668 + $0x30] sm:$0xff] %v6681
        %v6683 = vld [vmem:[%s6667 + $0x38] sm:$0xff]
        %6684 = vst [vmem:[%s6668 + $0x38] sm:$0xff] %v6683
        %v6685 = vld [vmem:[%s6667 + $0x40] sm:$0xff]
        %6686 = vst [vmem:[%s6668 + $0x40] sm:$0xff] %v6685
        %v6687 = vld [vmem:[%s6667 + $0x48] sm:$0xff]
        %6688 = vst [vmem:[%s6668 + $0x48] sm:$0xff] %v6687
        %v6689 = vld [vmem:[%s6667 + $0x50] sm:$0xff]
        %6690 = vst [vmem:[%s6668 + $0x50] sm:$0xff] %v6689
        %v6691 = vld [vmem:[%s6667 + $0x58] sm:$0xff]
        %6692 = vst [vmem:[%s6668 + $0x58] sm:$0xff] %v6691
        %v6693 = vld [vmem:[%s6667 + $0x60] sm:$0xff]
        %6694 = vst [vmem:[%s6668 + $0x60] sm:$0xff] %v6693
        %v6695 = vld [vmem:[%s6667 + $0x68] sm:$0xff]
        %6696 = vst [vmem:[%s6668 + $0x68] sm:$0xff] %v6695
        %v6697 = vld [vmem:[%s6667 + $0x70] sm:$0xff]
        %6698 = vst [vmem:[%s6668 + $0x70] sm:$0xff] %v6697
        %v6699 = vld [vmem:[%s6667 + $0x78] sm:$0xff]
        %6700 = vst [vmem:[%s6668 + $0x78] sm:$0xff] %v6699
        %v6701 = vld [vmem:[%s6667 + $0x80] sm:$0xff]
        %6702 = vst [vmem:[%s6668 + $0x80] sm:$0xff] %v6701
        %v6703 = vld [vmem:[%s6667 + $0x88] sm:$0xff]
        %6704 = vst [vmem:[%s6668 + $0x88] sm:$0xff] %v6703
        %v6705 = vld [vmem:[%s6667 + $0x90] sm:$0xff]
        %6706 = vst [vmem:[%s6668 + $0x90] sm:$0xff] %v6705
        %v6707 = vld [vmem:[%s6667 + $0x98] sm:$0xff]
        %6708 = vst [vmem:[%s6668 + $0x98] sm:$0xff] %v6707
        %v6709 = vld [vmem:[%s6667 + $0xa0] sm:$0xff]
        %6710 = vst [vmem:[%s6668 + $0xa0] sm:$0xff] %v6709
        %v6711 = vld [vmem:[%s6667 + $0xa8] sm:$0xff]
        %6712 = vst [vmem:[%s6668 + $0xa8] sm:$0xff] %v6711
        %v6713 = vld [vmem:[%s6667 + $0xb0] sm:$0xff]
        %6714 = vst [vmem:[%s6668 + $0xb0] sm:$0xff] %v6713
        %v6715 = vld [vmem:[%s6667 + $0xb8] sm:$0xff]
        %6716 = vst [vmem:[%s6668 + $0xb8] sm:$0xff] %v6715
        %v6717 = vld [vmem:[%s6667 + $0xc0] sm:$0xff]
        %6718 = vst [vmem:[%s6668 + $0xc0] sm:$0xff] %v6717
        %v6719 = vld [vmem:[%s6667 + $0xc8] sm:$0xff]
        %6720 = vst [vmem:[%s6668 + $0xc8] sm:$0xff] %v6719
        %v6721 = vld [vmem:[%s6667 + $0xd0] sm:$0xff]
        %6722 = vst [vmem:[%s6668 + $0xd0] sm:$0xff] %v6721
        %v6723 = vld [vmem:[%s6667 + $0xd8] sm:$0xff]
        %6724 = vst [vmem:[%s6668 + $0xd8] sm:$0xff] %v6723
        %v6725 = vld [vmem:[%s6667 + $0xe0] sm:$0xff]
        %6726 = vst [vmem:[%s6668 + $0xe0] sm:$0xff] %v6725
        %v6727 = vld [vmem:[%s6667 + $0xe8] sm:$0xff]
        %6728 = vst [vmem:[%s6668 + $0xe8] sm:$0xff] %v6727
        %v6729 = vld [vmem:[%s6667 + $0xf0] sm:$0xff]
        %6730 = vst [vmem:[%s6668 + $0xf0] sm:$0xff] %v6729
        %v6731 = vld [vmem:[%s6667 + $0xf8] sm:$0xff]
        %6732 = vst [vmem:[%s6668 + $0xf8] sm:$0xff] %v6731
        %v6733 = vld [vmem:[%s6667 + $0x100] sm:$0xff]
        %6734 = vst [vmem:[%s6668 + $0x100] sm:$0xff] %v6733
        %v6735 = vld [vmem:[%s6667 + $0x108] sm:$0xff]
        %6736 = vst [vmem:[%s6668 + $0x108] sm:$0xff] %v6735
        %v6737 = vld [vmem:[%s6667 + $0x110] sm:$0xff]
        %6738 = vst [vmem:[%s6668 + $0x110] sm:$0xff] %v6737
        %v6739 = vld [vmem:[%s6667 + $0x118] sm:$0xff]
        %6740 = vst [vmem:[%s6668 + $0x118] sm:$0xff] %v6739
        %v6741 = vld [vmem:[%s6667 + $0x120] sm:$0xff]
        %6742 = vst [vmem:[%s6668 + $0x120] sm:$0xff] %v6741
        %v6743 = vld [vmem:[%s6667 + $0x128] sm:$0xff]
        %6744 = vst [vmem:[%s6668 + $0x128] sm:$0xff] %v6743
        %v6745 = vld [vmem:[%s6667 + $0x130] sm:$0xff]
        %6746 = vst [vmem:[%s6668 + $0x130] sm:$0xff] %v6745
        %v6747 = vld [vmem:[%s6667 + $0x138] sm:$0xff]
        %6748 = vst [vmem:[%s6668 + $0x138] sm:$0xff] %v6747
        %v6749 = vld [vmem:[%s6667 + $0x140] sm:$0xff]
        %6750 = vst [vmem:[%s6668 + $0x140] sm:$0xff] %v6749
        %v6751 = vld [vmem:[%s6667 + $0x148] sm:$0xff]
        %6752 = vst [vmem:[%s6668 + $0x148] sm:$0xff] %v6751
        %v6753 = vld [vmem:[%s6667 + $0x150] sm:$0xff]
        %6754 = vst [vmem:[%s6668 + $0x150] sm:$0xff] %v6753
        %v6755 = vld [vmem:[%s6667 + $0x158] sm:$0xff]
        %6756 = vst [vmem:[%s6668 + $0x158] sm:$0xff] %v6755
        %v6757 = vld [vmem:[%s6667 + $0x160] sm:$0xff]
        %6758 = vst [vmem:[%s6668 + $0x160] sm:$0xff] %v6757
        %v6759 = vld [vmem:[%s6667 + $0x168] sm:$0xff]
        %6760 = vst [vmem:[%s6668 + $0x168] sm:$0xff] %v6759
        %v6761 = vld [vmem:[%s6667 + $0x170] sm:$0xff]
        %6762 = vst [vmem:[%s6668 + $0x170] sm:$0xff] %v6761
        %v6763 = vld [vmem:[%s6667 + $0x178] sm:$0xff]
        %6764 = vst [vmem:[%s6668 + $0x178] sm:$0xff] %v6763
        %v6765 = vld [vmem:[%s6667 + $0x180] sm:$0xff]
        %6766 = vst [vmem:[%s6668 + $0x180] sm:$0xff] %v6765
        %v6767 = vld [vmem:[%s6667 + $0x188] sm:$0xff]
        %6768 = vst [vmem:[%s6668 + $0x188] sm:$0xff] %v6767
        %v6769 = vld [vmem:[%s6667 + $0x190] sm:$0xff]
        %6770 = vst [vmem:[%s6668 + $0x190] sm:$0xff] %v6769
        %v6771 = vld [vmem:[%s6667 + $0x198] sm:$0xff]
        %6772 = vst [vmem:[%s6668 + $0x198] sm:$0xff] %v6771
        %v6773 = vld [vmem:[%s6667 + $0x1a0] sm:$0xff]
        %6774 = vst [vmem:[%s6668 + $0x1a0] sm:$0xff] %v6773
        %v6775 = vld [vmem:[%s6667 + $0x1a8] sm:$0xff]
        %6776 = vst [vmem:[%s6668 + $0x1a8] sm:$0xff] %v6775
        %v6777 = vld [vmem:[%s6667 + $0x1b0] sm:$0xff]
        %6778 = vst [vmem:[%s6668 + $0x1b0] sm:$0xff] %v6777
        %v6779 = vld [vmem:[%s6667 + $0x1b8] sm:$0xff]
        %6780 = vst [vmem:[%s6668 + $0x1b8] sm:$0xff] %v6779
        %v6781 = vld [vmem:[%s6667 + $0x1c0] sm:$0xff]
        %6782 = vst [vmem:[%s6668 + $0x1c0] sm:$0xff] %v6781
        %v6783 = vld [vmem:[%s6667 + $0x1c8] sm:$0xff]
        %6784 = vst [vmem:[%s6668 + $0x1c8] sm:$0xff] %v6783
        %v6785 = vld [vmem:[%s6667 + $0x1d0] sm:$0xff]
        %6786 = vst [vmem:[%s6668 + $0x1d0] sm:$0xff] %v6785
        %v6787 = vld [vmem:[%s6667 + $0x1d8] sm:$0xff]
        %6788 = vst [vmem:[%s6668 + $0x1d8] sm:$0xff] %v6787
        %v6789 = vld [vmem:[%s6667 + $0x1e0] sm:$0xff]
        %6790 = vst [vmem:[%s6668 + $0x1e0] sm:$0xff] %v6789
        %v6791 = vld [vmem:[%s6667 + $0x1e8] sm:$0xff]
        %6792 = vst [vmem:[%s6668 + $0x1e8] sm:$0xff] %v6791
        %v6793 = vld [vmem:[%s6667 + $0x1f0] sm:$0xff]
        %6794 = vst [vmem:[%s6668 + $0x1f0] sm:$0xff] %v6793
        %v6795 = vld [vmem:[%s6667 + $0x1f8] sm:$0xff]
        %6796 = vst [vmem:[%s6668 + $0x1f8] sm:$0xff] %v6795
      $region197: #{encoder_feed_forward.1} parent=191 // loop_footer
        %s6666 = sadd.s32 1, %s6662
      $region198: #{encoder_feed_forward.1} parent=191 // loop_footer_branch
        %6661 = sbr.rel target = $region194
      $region199: #{encoder_feed_forward.1} parent=191 // loop_exit
        _
    $region192: #{encoder_feed_forward.1} parent=176 // pred_fallthru
      _
    %p6797 = pneg %p6657
    // Predicated region
    $region200: #{encoder_feed_forward.1} parent=176 // pred_check
      _
    $region201: #{encoder_feed_forward.1} parent=176 // pred_check_branch
      %6799 = sbr.rel (%p6657) target = $region203
    $region202: #{encoder_feed_forward.1} parent=176 // pred_region
      %s6800 = sand.u32 512, 7
    $region203: #{encoder_feed_forward.1} parent=176 // pred_fallthru
      _
  $region177: #{encoder_feed_forward.1} parent=0 // pred_fallthru
    _
  // Predicated region
  $region178: #{encoder_feed_forward.1} parent=0 // pred_check
    %p6641 = pneg %p6637
  $region179: #{encoder_feed_forward.1} parent=0 // pred_check_branch
    %6643 = sbr.rel (%p6641) target = $region181
  $region180: #{encoder_feed_forward.1} parent=0 // pred_region
    %s6644 = sshll.u32 1, 512
    %s6645 = ssub.s32 %s6644, 1
    loop: start=0, step=1, limit=1
    $region182: #{encoder_feed_forward.1} parent=180 // loop_pre_header
      _
    $region183: #{encoder_feed_forward.1} parent=180 // loop_header
      %s6647 = sphi 0, %s6651
      %p6648 = scmp.ge.s32.totalorder %s6647, 1
      %s6652 = sphi %s0, %s0
      %s6653 = sphi [#allocation2], [#allocation2]
    $region184: #{encoder_feed_forward.1} parent=180 // loop_header_branch
      %6650 = sbr.rel (%p6648) target = $region188
    $region185: #{encoder_feed_forward.1} parent=180 // loop_body
      %v6654 = vld [vmem:[%s6652] sm:%s6645]
      %6655 = vst [vmem:[%s6653] sm:%s6645] %v6654
    $region186: #{encoder_feed_forward.1} parent=180 // loop_footer
      %s6651 = sadd.s32 1, %s6647
    $region187: #{encoder_feed_forward.1} parent=180 // loop_footer_branch
      %6646 = sbr.rel target = $region183
    $region188: #{encoder_feed_forward.1} parent=180 // loop_exit
      _
  $region181: #{encoder_feed_forward.1} parent=0 // pred_fallthru
    _
  // Predicated region
  $region204: #{encoder_feed_forward.1} parent=0 // pred_check
    _
  $region205: #{encoder_feed_forward.1} parent=0 // pred_check_branch
    %6803 = sbr.rel (0) target = $region207
  $region206: #{encoder_feed_forward.1} parent=0 // pred_region
    %6804 = vsyncadd [#allocation3], 8192
  $region207: #{encoder_feed_forward.1} parent=0 // pred_fallthru
    _
  %s6805 = sshll.u32 %s301, 4
  %6806 = dma.done [#allocation3], %s6805
  %p6808 = scmp.lt.u32.totalorder 512, 8
  %p6809 = pneg %p6808
  // Predicated region
  $region208: #{encoder_feed_forward.1} parent=0 // pred_check
    _
  $region209: #{encoder_feed_forward.1} parent=0 // pred_check_branch
    %6811 = sbr.rel (%p6808) target = $region211
  $region210: #{encoder_feed_forward.1} parent=0 // pred_region
    %s6827 = sand.u32 512, 7
    %p6828 = scmp.eq.s32.totalorder %s6827, 0
    // Predicated region
    $region223: #{encoder_feed_forward.1} parent=210 // pred_check
      %p6829 = pneg %p6828
    $region224: #{encoder_feed_forward.1} parent=210 // pred_check_branch
      %6831 = sbr.rel (%p6829) target = $region226
    $region225: #{encoder_feed_forward.1} parent=210 // pred_region
      loop: start=0, step=1, limit=1
      $region227: #{encoder_feed_forward.1} parent=225 // loop_pre_header
        _
      $region228: #{encoder_feed_forward.1} parent=225 // loop_header
        %s6833 = sphi 0, %s6837
        %p6834 = scmp.ge.s32.totalorder %s6833, 1
        %s6838 = sphi %s304, %s304
        %s6839 = sphi %s305, %s305
      $region229: #{encoder_feed_forward.1} parent=225 // loop_header_branch
        %6836 = sbr.rel (%p6834) target = $region233
      $region230: #{encoder_feed_forward.1} parent=225 // loop_body
        %v6840 = vld [vmem:[%s6838] sm:$0xff]
        %6841 = vst [vmem:[%s6839] sm:$0xff] %v6840
        %v6842 = vld [vmem:[%s6838 + $0x8] sm:$0xff]
        %6843 = vst [vmem:[%s6839 + $0x8] sm:$0xff] %v6842
        %v6844 = vld [vmem:[%s6838 + $0x10] sm:$0xff]
        %6845 = vst [vmem:[%s6839 + $0x10] sm:$0xff] %v6844
        %v6846 = vld [vmem:[%s6838 + $0x18] sm:$0xff]
        %6847 = vst [vmem:[%s6839 + $0x18] sm:$0xff] %v6846
        %v6848 = vld [vmem:[%s6838 + $0x20] sm:$0xff]
        %6849 = vst [vmem:[%s6839 + $0x20] sm:$0xff] %v6848
        %v6850 = vld [vmem:[%s6838 + $0x28] sm:$0xff]
        %6851 = vst [vmem:[%s6839 + $0x28] sm:$0xff] %v6850
        %v6852 = vld [vmem:[%s6838 + $0x30] sm:$0xff]
        %6853 = vst [vmem:[%s6839 + $0x30] sm:$0xff] %v6852
        %v6854 = vld [vmem:[%s6838 + $0x38] sm:$0xff]
        %6855 = vst [vmem:[%s6839 + $0x38] sm:$0xff] %v6854
        %v6856 = vld [vmem:[%s6838 + $0x40] sm:$0xff]
        %6857 = vst [vmem:[%s6839 + $0x40] sm:$0xff] %v6856
        %v6858 = vld [vmem:[%s6838 + $0x48] sm:$0xff]
        %6859 = vst [vmem:[%s6839 + $0x48] sm:$0xff] %v6858
        %v6860 = vld [vmem:[%s6838 + $0x50] sm:$0xff]
        %6861 = vst [vmem:[%s6839 + $0x50] sm:$0xff] %v6860
        %v6862 = vld [vmem:[%s6838 + $0x58] sm:$0xff]
        %6863 = vst [vmem:[%s6839 + $0x58] sm:$0xff] %v6862
        %v6864 = vld [vmem:[%s6838 + $0x60] sm:$0xff]
        %6865 = vst [vmem:[%s6839 + $0x60] sm:$0xff] %v6864
        %v6866 = vld [vmem:[%s6838 + $0x68] sm:$0xff]
        %6867 = vst [vmem:[%s6839 + $0x68] sm:$0xff] %v6866
        %v6868 = vld [vmem:[%s6838 + $0x70] sm:$0xff]
        %6869 = vst [vmem:[%s6839 + $0x70] sm:$0xff] %v6868
        %v6870 = vld [vmem:[%s6838 + $0x78] sm:$0xff]
        %6871 = vst [vmem:[%s6839 + $0x78] sm:$0xff] %v6870
        %v6872 = vld [vmem:[%s6838 + $0x80] sm:$0xff]
        %6873 = vst [vmem:[%s6839 + $0x80] sm:$0xff] %v6872
        %v6874 = vld [vmem:[%s6838 + $0x88] sm:$0xff]
        %6875 = vst [vmem:[%s6839 + $0x88] sm:$0xff] %v6874
        %v6876 = vld [vmem:[%s6838 + $0x90] sm:$0xff]
        %6877 = vst [vmem:[%s6839 + $0x90] sm:$0xff] %v6876
        %v6878 = vld [vmem:[%s6838 + $0x98] sm:$0xff]
        %6879 = vst [vmem:[%s6839 + $0x98] sm:$0xff] %v6878
        %v6880 = vld [vmem:[%s6838 + $0xa0] sm:$0xff]
        %6881 = vst [vmem:[%s6839 + $0xa0] sm:$0xff] %v6880
        %v6882 = vld [vmem:[%s6838 + $0xa8] sm:$0xff]
        %6883 = vst [vmem:[%s6839 + $0xa8] sm:$0xff] %v6882
        %v6884 = vld [vmem:[%s6838 + $0xb0] sm:$0xff]
        %6885 = vst [vmem:[%s6839 + $0xb0] sm:$0xff] %v6884
        %v6886 = vld [vmem:[%s6838 + $0xb8] sm:$0xff]
        %6887 = vst [vmem:[%s6839 + $0xb8] sm:$0xff] %v6886
        %v6888 = vld [vmem:[%s6838 + $0xc0] sm:$0xff]
        %6889 = vst [vmem:[%s6839 + $0xc0] sm:$0xff] %v6888
        %v6890 = vld [vmem:[%s6838 + $0xc8] sm:$0xff]
        %6891 = vst [vmem:[%s6839 + $0xc8] sm:$0xff] %v6890
        %v6892 = vld [vmem:[%s6838 + $0xd0] sm:$0xff]
        %6893 = vst [vmem:[%s6839 + $0xd0] sm:$0xff] %v6892
        %v6894 = vld [vmem:[%s6838 + $0xd8] sm:$0xff]
        %6895 = vst [vmem:[%s6839 + $0xd8] sm:$0xff] %v6894
        %v6896 = vld [vmem:[%s6838 + $0xe0] sm:$0xff]
        %6897 = vst [vmem:[%s6839 + $0xe0] sm:$0xff] %v6896
        %v6898 = vld [vmem:[%s6838 + $0xe8] sm:$0xff]
        %6899 = vst [vmem:[%s6839 + $0xe8] sm:$0xff] %v6898
        %v6900 = vld [vmem:[%s6838 + $0xf0] sm:$0xff]
        %6901 = vst [vmem:[%s6839 + $0xf0] sm:$0xff] %v6900
        %v6902 = vld [vmem:[%s6838 + $0xf8] sm:$0xff]
        %6903 = vst [vmem:[%s6839 + $0xf8] sm:$0xff] %v6902
        %v6904 = vld [vmem:[%s6838 + $0x100] sm:$0xff]
        %6905 = vst [vmem:[%s6839 + $0x100] sm:$0xff] %v6904
        %v6906 = vld [vmem:[%s6838 + $0x108] sm:$0xff]
        %6907 = vst [vmem:[%s6839 + $0x108] sm:$0xff] %v6906
        %v6908 = vld [vmem:[%s6838 + $0x110] sm:$0xff]
        %6909 = vst [vmem:[%s6839 + $0x110] sm:$0xff] %v6908
        %v6910 = vld [vmem:[%s6838 + $0x118] sm:$0xff]
        %6911 = vst [vmem:[%s6839 + $0x118] sm:$0xff] %v6910
        %v6912 = vld [vmem:[%s6838 + $0x120] sm:$0xff]
        %6913 = vst [vmem:[%s6839 + $0x120] sm:$0xff] %v6912
        %v6914 = vld [vmem:[%s6838 + $0x128] sm:$0xff]
        %6915 = vst [vmem:[%s6839 + $0x128] sm:$0xff] %v6914
        %v6916 = vld [vmem:[%s6838 + $0x130] sm:$0xff]
        %6917 = vst [vmem:[%s6839 + $0x130] sm:$0xff] %v6916
        %v6918 = vld [vmem:[%s6838 + $0x138] sm:$0xff]
        %6919 = vst [vmem:[%s6839 + $0x138] sm:$0xff] %v6918
        %v6920 = vld [vmem:[%s6838 + $0x140] sm:$0xff]
        %6921 = vst [vmem:[%s6839 + $0x140] sm:$0xff] %v6920
        %v6922 = vld [vmem:[%s6838 + $0x148] sm:$0xff]
        %6923 = vst [vmem:[%s6839 + $0x148] sm:$0xff] %v6922
        %v6924 = vld [vmem:[%s6838 + $0x150] sm:$0xff]
        %6925 = vst [vmem:[%s6839 + $0x150] sm:$0xff] %v6924
        %v6926 = vld [vmem:[%s6838 + $0x158] sm:$0xff]
        %6927 = vst [vmem:[%s6839 + $0x158] sm:$0xff] %v6926
        %v6928 = vld [vmem:[%s6838 + $0x160] sm:$0xff]
        %6929 = vst [vmem:[%s6839 + $0x160] sm:$0xff] %v6928
        %v6930 = vld [vmem:[%s6838 + $0x168] sm:$0xff]
        %6931 = vst [vmem:[%s6839 + $0x168] sm:$0xff] %v6930
        %v6932 = vld [vmem:[%s6838 + $0x170] sm:$0xff]
        %6933 = vst [vmem:[%s6839 + $0x170] sm:$0xff] %v6932
        %v6934 = vld [vmem:[%s6838 + $0x178] sm:$0xff]
        %6935 = vst [vmem:[%s6839 + $0x178] sm:$0xff] %v6934
        %v6936 = vld [vmem:[%s6838 + $0x180] sm:$0xff]
        %6937 = vst [vmem:[%s6839 + $0x180] sm:$0xff] %v6936
        %v6938 = vld [vmem:[%s6838 + $0x188] sm:$0xff]
        %6939 = vst [vmem:[%s6839 + $0x188] sm:$0xff] %v6938
        %v6940 = vld [vmem:[%s6838 + $0x190] sm:$0xff]
        %6941 = vst [vmem:[%s6839 + $0x190] sm:$0xff] %v6940
        %v6942 = vld [vmem:[%s6838 + $0x198] sm:$0xff]
        %6943 = vst [vmem:[%s6839 + $0x198] sm:$0xff] %v6942
        %v6944 = vld [vmem:[%s6838 + $0x1a0] sm:$0xff]
        %6945 = vst [vmem:[%s6839 + $0x1a0] sm:$0xff] %v6944
        %v6946 = vld [vmem:[%s6838 + $0x1a8] sm:$0xff]
        %6947 = vst [vmem:[%s6839 + $0x1a8] sm:$0xff] %v6946
        %v6948 = vld [vmem:[%s6838 + $0x1b0] sm:$0xff]
        %6949 = vst [vmem:[%s6839 + $0x1b0] sm:$0xff] %v6948
        %v6950 = vld [vmem:[%s6838 + $0x1b8] sm:$0xff]
        %6951 = vst [vmem:[%s6839 + $0x1b8] sm:$0xff] %v6950
        %v6952 = vld [vmem:[%s6838 + $0x1c0] sm:$0xff]
        %6953 = vst [vmem:[%s6839 + $0x1c0] sm:$0xff] %v6952
        %v6954 = vld [vmem:[%s6838 + $0x1c8] sm:$0xff]
        %6955 = vst [vmem:[%s6839 + $0x1c8] sm:$0xff] %v6954
        %v6956 = vld [vmem:[%s6838 + $0x1d0] sm:$0xff]
        %6957 = vst [vmem:[%s6839 + $0x1d0] sm:$0xff] %v6956
        %v6958 = vld [vmem:[%s6838 + $0x1d8] sm:$0xff]
        %6959 = vst [vmem:[%s6839 + $0x1d8] sm:$0xff] %v6958
        %v6960 = vld [vmem:[%s6838 + $0x1e0] sm:$0xff]
        %6961 = vst [vmem:[%s6839 + $0x1e0] sm:$0xff] %v6960
        %v6962 = vld [vmem:[%s6838 + $0x1e8] sm:$0xff]
        %6963 = vst [vmem:[%s6839 + $0x1e8] sm:$0xff] %v6962
        %v6964 = vld [vmem:[%s6838 + $0x1f0] sm:$0xff]
        %6965 = vst [vmem:[%s6839 + $0x1f0] sm:$0xff] %v6964
        %v6966 = vld [vmem:[%s6838 + $0x1f8] sm:$0xff]
        %6967 = vst [vmem:[%s6839 + $0x1f8] sm:$0xff] %v6966
      $region231: #{encoder_feed_forward.1} parent=225 // loop_footer
        %s6837 = sadd.s32 1, %s6833
      $region232: #{encoder_feed_forward.1} parent=225 // loop_footer_branch
        %6832 = sbr.rel target = $region228
      $region233: #{encoder_feed_forward.1} parent=225 // loop_exit
        _
    $region226: #{encoder_feed_forward.1} parent=210 // pred_fallthru
      _
    %p6968 = pneg %p6828
    // Predicated region
    $region234: #{encoder_feed_forward.1} parent=210 // pred_check
      _
    $region235: #{encoder_feed_forward.1} parent=210 // pred_check_branch
      %6970 = sbr.rel (%p6828) target = $region237
    $region236: #{encoder_feed_forward.1} parent=210 // pred_region
      %s6971 = sand.u32 512, 7
    $region237: #{encoder_feed_forward.1} parent=210 // pred_fallthru
      _
  $region211: #{encoder_feed_forward.1} parent=0 // pred_fallthru
    _
  // Predicated region
  $region212: #{encoder_feed_forward.1} parent=0 // pred_check
    %p6812 = pneg %p6808
  $region213: #{encoder_feed_forward.1} parent=0 // pred_check_branch
    %6814 = sbr.rel (%p6812) target = $region215
  $region214: #{encoder_feed_forward.1} parent=0 // pred_region
    %s6815 = sshll.u32 1, 512
    %s6816 = ssub.s32 %s6815, 1
    loop: start=0, step=1, limit=1
    $region216: #{encoder_feed_forward.1} parent=214 // loop_pre_header
      _
    $region217: #{encoder_feed_forward.1} parent=214 // loop_header
      %s6818 = sphi 0, %s6822
      %p6819 = scmp.ge.s32.totalorder %s6818, 1
      %s6823 = sphi %s304, %s304
      %s6824 = sphi %s305, %s305
    $region218: #{encoder_feed_forward.1} parent=214 // loop_header_branch
      %6821 = sbr.rel (%p6819) target = $region222
    $region219: #{encoder_feed_forward.1} parent=214 // loop_body
      %v6825 = vld [vmem:[%s6823] sm:%s6816]
      %6826 = vst [vmem:[%s6824] sm:%s6816] %v6825
    $region220: #{encoder_feed_forward.1} parent=214 // loop_footer
      %s6822 = sadd.s32 1, %s6818
    $region221: #{encoder_feed_forward.1} parent=214 // loop_footer_branch
      %6817 = sbr.rel target = $region217
    $region222: #{encoder_feed_forward.1} parent=214 // loop_exit
      _
  $region215: #{encoder_feed_forward.1} parent=0 // pred_fallthru
    _
  // Predicated region
  $region238: #{encoder_feed_forward.1} parent=0 // pred_check
    _
  $region239: #{encoder_feed_forward.1} parent=0 // pred_check_branch
    %6974 = sbr.rel (0) target = $region241
  $region240: #{encoder_feed_forward.1} parent=0 // pred_region
    %6975 = vsyncadd %s306, 8192
  $region241: #{encoder_feed_forward.1} parent=0 // pred_fallthru
    _
  %v6976 = vld [vmem:[#allocation4 + $0x8] sm:$0xff]
  %v6977 = vld [vmem:[#allocation4 + $0x20] sm:$0xff]
  %v6978 = vld [vmem:[#allocation4 + $0x38] sm:$0xff]
  %v6979 = vld [vmem:[#allocation4 + $0x50] sm:$0xff]
  %v6980 = vld [vmem:[#allocation4 + $0x68] sm:$0xff]
  %v6981 = vld [vmem:[#allocation4 + $0x80] sm:$0xff]
  %v6982 = vld [vmem:[#allocation4 + $0x98] sm:$0xff]
  %v6983 = vld [vmem:[#allocation4 + $0xb0] sm:$0xff]
  %v6984 = vld [vmem:[#allocation4 + $0xc8] sm:$0xff]
  %v6985 = vld [vmem:[#allocation4 + $0xe0] sm:$0xff]
  %v6986 = vld [vmem:[#allocation4 + $0xf8] sm:$0xff]
  %v6987 = vld [vmem:[#allocation4 + $0x110] sm:$0xff]
  %v6988 = vld [vmem:[#allocation4 + $0x128] sm:$0xff]
  %v6989 = vld [vmem:[#allocation4 + $0x140] sm:$0xff]
  %v6990 = vld [vmem:[#allocation4 + $0x158] sm:$0xff]
  %v6991 = vld [vmem:[#allocation4 + $0x170] sm:$0xff]
  %v6992 = vld [vmem:[#allocation4 + $0x188] sm:$0xff]
  %v6993 = vld [vmem:[#allocation4 + $0x1a0] sm:$0xff]
  %v6994 = vld [vmem:[#allocation4 + $0x1b8] sm:$0xff]
  %v6995 = vld [vmem:[#allocation4 + $0x1d0] sm:$0xff]
  %v6996 = vld [vmem:[#allocation4 + $0x1e8] sm:$0xff]
  %v6997 = vld [vmem:[#allocation4 + $0x200] sm:$0xff]
  %v6998 = vld [vmem:[#allocation4 + $0x218] sm:$0xff]
  %v6999 = vld [vmem:[#allocation4 + $0x230] sm:$0xff]
  %v7000 = vld [vmem:[#allocation4 + $0x248] sm:$0xff]
  %v7001 = vld [vmem:[#allocation4 + $0x260] sm:$0xff]
  %v7002 = vld [vmem:[#allocation4 + $0x278] sm:$0xff]
  %v7003 = vld [vmem:[#allocation4 + $0x290] sm:$0xff]
  %v7004 = vld [vmem:[#allocation4 + $0x2a8] sm:$0xff]
  %v7005 = vld [vmem:[#allocation4 + $0x2c0] sm:$0xff]
  %v7006 = vld [vmem:[#allocation4 + $0x2d8] sm:$0xff]
  %v7007 = vld [vmem:[#allocation4 + $0x2f0] sm:$0xff]
  %v7008 = vld [vmem:[#allocation2] sm:$0xff]
  %v7009 = vld [vmem:[#allocation2 + $0x8] sm:$0xff]
  %v7010 = vld [vmem:[#allocation2 + $0x10] sm:$0xff]
  %v7011 = vld [vmem:[#allocation2 + $0x18] sm:$0xff]
  %v7012 = vld [vmem:[#allocation2 + $0x20] sm:$0xff]
  %v7013 = vld [vmem:[#allocation2 + $0x28] sm:$0xff]
  %v7014 = vld [vmem:[#allocation2 + $0x30] sm:$0xff]
  %v7015 = vld [vmem:[#allocation2 + $0x38] sm:$0xff]
  %v7016 = vld [vmem:[#allocation2 + $0x40] sm:$0xff]
  %v7017 = vld [vmem:[#allocation2 + $0x48] sm:$0xff]
  %v7018 = vld [vmem:[#allocation2 + $0x50] sm:$0xff]
  %v7019 = vld [vmem:[#allocation2 + $0x58] sm:$0xff]
  %v7020 = vld [vmem:[#allocation2 + $0x60] sm:$0xff]
  %v7021 = vld [vmem:[#allocation2 + $0x68] sm:$0xff]
  %v7022 = vld [vmem:[#allocation2 + $0x70] sm:$0xff]
  %v7023 = vld [vmem:[#allocation2 + $0x78] sm:$0xff]
  %v7024 = vld [vmem:[#allocation2 + $0x80] sm:$0xff]
  %v7025 = vld [vmem:[#allocation2 + $0x88] sm:$0xff]
  %v7026 = vld [vmem:[#allocation2 + $0x90] sm:$0xff]
  %v7027 = vld [vmem:[#allocation2 + $0x98] sm:$0xff]
  %v7028 = vld [vmem:[#allocation2 + $0xa0] sm:$0xff]
  %v7029 = vld [vmem:[#allocation2 + $0xa8] sm:$0xff]
  %v7030 = vld [vmem:[#allocation2 + $0xb0] sm:$0xff]
  %v7031 = vld [vmem:[#allocation2 + $0xb8] sm:$0xff]
  %v7032 = vld [vmem:[#allocation2 + $0xc0] sm:$0xff]
  %v7033 = vld [vmem:[#allocation2 + $0xc8] sm:$0xff]
  %v7034 = vld [vmem:[#allocation2 + $0xd0] sm:$0xff]
  %v7035 = vld [vmem:[#allocation2 + $0xd8] sm:$0xff]
  %v7036 = vld [vmem:[#allocation2 + $0xe0] sm:$0xff]
  %v7037 = vld [vmem:[#allocation2 + $0xe8] sm:$0xff]
  %v7038 = vld [vmem:[#allocation2 + $0xf0] sm:$0xff]
  %v7039 = vld [vmem:[#allocation2 + $0xf8] sm:$0xff]
  %v7040 = vld [vmem:[#allocation2 + $0x100] sm:$0xff]
  %v7041 = vld [vmem:[#allocation2 + $0x108] sm:$0xff]
  %v7042 = vld [vmem:[#allocation2 + $0x110] sm:$0xff]
  %v7043 = vld [vmem:[#allocation2 + $0x118] sm:$0xff]
  %v7044 = vld [vmem:[#allocation2 + $0x120] sm:$0xff]
  %v7045 = vld [vmem:[#allocation2 + $0x128] sm:$0xff]
  %v7046 = vld [vmem:[#allocation2 + $0x130] sm:$0xff]
  %v7047 = vld [vmem:[#allocation2 + $0x138] sm:$0xff]
  %v7048 = vld [vmem:[#allocation2 + $0x140] sm:$0xff]
  %v7049 = vld [vmem:[#allocation2 + $0x148] sm:$0xff]
  %v7050 = vld [vmem:[#allocation2 + $0x150] sm:$0xff]
  %v7051 = vld [vmem:[#allocation2 + $0x158] sm:$0xff]
  %v7052 = vld [vmem:[#allocation2 + $0x160] sm:$0xff]
  %v7053 = vld [vmem:[#allocation2 + $0x168] sm:$0xff]
  %v7054 = vld [vmem:[#allocation2 + $0x170] sm:$0xff]
  %v7055 = vld [vmem:[#allocation2 + $0x178] sm:$0xff]
  %v7056 = vld [vmem:[#allocation2 + $0x180] sm:$0xff]
  %v7057 = vld [vmem:[#allocation2 + $0x188] sm:$0xff]
  %v7058 = vld [vmem:[#allocation2 + $0x190] sm:$0xff]
  %v7059 = vld [vmem:[#allocation2 + $0x198] sm:$0xff]
  %v7060 = vld [vmem:[#allocation2 + $0x1a0] sm:$0xff]
  %v7061 = vld [vmem:[#allocation2 + $0x1a8] sm:$0xff]
  %v7062 = vld [vmem:[#allocation2 + $0x1b0] sm:$0xff]
  %v7063 = vld [vmem:[#allocation2 + $0x1b8] sm:$0xff]
  %v7064 = vld [vmem:[#allocation2 + $0x1c0] sm:$0xff]
  %v7065 = vld [vmem:[#allocation2 + $0x1c8] sm:$0xff]
  %v7066 = vld [vmem:[#allocation2 + $0x1d0] sm:$0xff]
  %v7067 = vld [vmem:[#allocation2 + $0x1d8] sm:$0xff]
  %v7068 = vld [vmem:[#allocation2 + $0x1e0] sm:$0xff]
  %v7069 = vld [vmem:[#allocation2 + $0x1e8] sm:$0xff]
  %v7070 = vld [vmem:[#allocation2 + $0x1f0] sm:$0xff]
  %v7071 = vld [vmem:[#allocation2 + $0x1f8] sm:$0xff]
  %v7136 = vunpack.c.l.b16 %v7008
  %v7137 = vunpack.c.h.b16 %v7008
  %v7138 = vunpack.c.l.b16 %v7009
  %v7139 = vunpack.c.h.b16 %v7009
  %v7140 = vunpack.c.l.b16 %v7010
  %v7141 = vunpack.c.h.b16 %v7010
  %v7142 = vunpack.c.l.b16 %v7011
  %v7143 = vunpack.c.h.b16 %v7011
  %v7144 = vunpack.c.l.b16 %v7012
  %v7145 = vunpack.c.h.b16 %v7012
  %v7146 = vunpack.c.l.b16 %v7013
  %v7147 = vunpack.c.h.b16 %v7013
  %v7148 = vunpack.c.l.b16 %v7014
  %v7149 = vunpack.c.h.b16 %v7014
  %v7150 = vunpack.c.l.b16 %v7015
  %v7151 = vunpack.c.h.b16 %v7015
  %v7152 = vunpack.c.l.b16 %v7016
  %v7153 = vunpack.c.h.b16 %v7016
  %v7154 = vunpack.c.l.b16 %v7017
  %v7155 = vunpack.c.h.b16 %v7017
  %v7156 = vunpack.c.l.b16 %v7018
  %v7157 = vunpack.c.h.b16 %v7018
  %v7158 = vunpack.c.l.b16 %v7019
  %v7159 = vunpack.c.h.b16 %v7019
  %v7160 = vunpack.c.l.b16 %v7020
  %v7161 = vunpack.c.h.b16 %v7020
  %v7162 = vunpack.c.l.b16 %v7021
  %v7163 = vunpack.c.h.b16 %v7021
  %v7164 = vunpack.c.l.b16 %v7022
  %v7165 = vunpack.c.h.b16 %v7022
  %v7166 = vunpack.c.l.b16 %v7023
  %v7167 = vunpack.c.h.b16 %v7023
  %v7168 = vunpack.c.l.b16 %v7024
  %v7169 = vunpack.c.h.b16 %v7024
  %v7170 = vunpack.c.l.b16 %v7025
  %v7171 = vunpack.c.h.b16 %v7025
  %v7172 = vunpack.c.l.b16 %v7026
  %v7173 = vunpack.c.h.b16 %v7026
  %v7174 = vunpack.c.l.b16 %v7027
  %v7175 = vunpack.c.h.b16 %v7027
  %v7176 = vunpack.c.l.b16 %v7028
  %v7177 = vunpack.c.h.b16 %v7028
  %v7178 = vunpack.c.l.b16 %v7029
  %v7179 = vunpack.c.h.b16 %v7029
  %v7180 = vunpack.c.l.b16 %v7030
  %v7181 = vunpack.c.h.b16 %v7030
  %v7182 = vunpack.c.l.b16 %v7031
  %v7183 = vunpack.c.h.b16 %v7031
  %v7184 = vunpack.c.l.b16 %v7032
  %v7185 = vunpack.c.h.b16 %v7032
  %v7186 = vunpack.c.l.b16 %v7033
  %v7187 = vunpack.c.h.b16 %v7033
  %v7188 = vunpack.c.l.b16 %v7034
  %v7189 = vunpack.c.h.b16 %v7034
  %v7190 = vunpack.c.l.b16 %v7035
  %v7191 = vunpack.c.h.b16 %v7035
  %v7192 = vunpack.c.l.b16 %v7036
  %v7193 = vunpack.c.h.b16 %v7036
  %v7194 = vunpack.c.l.b16 %v7037
  %v7195 = vunpack.c.h.b16 %v7037
  %v7196 = vunpack.c.l.b16 %v7038
  %v7197 = vunpack.c.h.b16 %v7038
  %v7198 = vunpack.c.l.b16 %v7039
  %v7199 = vunpack.c.h.b16 %v7039
  %v7200 = vunpack.c.l.b16 %v7040
  %v7201 = vunpack.c.h.b16 %v7040
  %v7202 = vunpack.c.l.b16 %v7041
  %v7203 = vunpack.c.h.b16 %v7041
  %v7204 = vunpack.c.l.b16 %v7042
  %v7205 = vunpack.c.h.b16 %v7042
  %v7206 = vunpack.c.l.b16 %v7043
  %v7207 = vunpack.c.h.b16 %v7043
  %v7208 = vunpack.c.l.b16 %v7044
  %v7209 = vunpack.c.h.b16 %v7044
  %v7210 = vunpack.c.l.b16 %v7045
  %v7211 = vunpack.c.h.b16 %v7045
  %v7212 = vunpack.c.l.b16 %v7046
  %v7213 = vunpack.c.h.b16 %v7046
  %v7214 = vunpack.c.l.b16 %v7047
  %v7215 = vunpack.c.h.b16 %v7047
  %v7216 = vunpack.c.l.b16 %v7048
  %v7217 = vunpack.c.h.b16 %v7048
  %v7218 = vunpack.c.l.b16 %v7049
  %v7219 = vunpack.c.h.b16 %v7049
  %v7220 = vunpack.c.l.b16 %v7050
  %v7221 = vunpack.c.h.b16 %v7050
  %v7222 = vunpack.c.l.b16 %v7051
  %v7223 = vunpack.c.h.b16 %v7051
  %v7224 = vunpack.c.l.b16 %v7052
  %v7225 = vunpack.c.h.b16 %v7052
  %v7226 = vunpack.c.l.b16 %v7053
  %v7227 = vunpack.c.h.b16 %v7053
  %v7228 = vunpack.c.l.b16 %v7054
  %v7229 = vunpack.c.h.b16 %v7054
  %v7230 = vunpack.c.l.b16 %v7055
  %v7231 = vunpack.c.h.b16 %v7055
  %v7232 = vunpack.c.l.b16 %v7056
  %v7233 = vunpack.c.h.b16 %v7056
  %v7234 = vunpack.c.l.b16 %v7057
  %v7235 = vunpack.c.h.b16 %v7057
  %v7236 = vunpack.c.l.b16 %v7058
  %v7237 = vunpack.c.h.b16 %v7058
  %v7238 = vunpack.c.l.b16 %v7059
  %v7239 = vunpack.c.h.b16 %v7059
  %v7240 = vunpack.c.l.b16 %v7060
  %v7241 = vunpack.c.h.b16 %v7060
  %v7242 = vunpack.c.l.b16 %v7061
  %v7243 = vunpack.c.h.b16 %v7061
  %v7244 = vunpack.c.l.b16 %v7062
  %v7245 = vunpack.c.h.b16 %v7062
  %v7246 = vunpack.c.l.b16 %v7063
  %v7247 = vunpack.c.h.b16 %v7063
  %v7248 = vunpack.c.l.b16 %v7064
  %v7249 = vunpack.c.h.b16 %v7064
  %v7250 = vunpack.c.l.b16 %v7065
  %v7251 = vunpack.c.h.b16 %v7065
  %v7252 = vunpack.c.l.b16 %v7066
  %v7253 = vunpack.c.h.b16 %v7066
  %v7254 = vunpack.c.l.b16 %v7067
  %v7255 = vunpack.c.h.b16 %v7067
  %v7256 = vunpack.c.l.b16 %v7068
  %v7257 = vunpack.c.h.b16 %v7068
  %v7258 = vunpack.c.l.b16 %v7069
  %v7259 = vunpack.c.h.b16 %v7069
  %v7260 = vunpack.c.l.b16 %v7070
  %v7261 = vunpack.c.h.b16 %v7070
  %v7262 = vunpack.c.l.b16 %v7071
  %v7263 = vunpack.c.h.b16 %v7071
  %v7264 = vpack.c.b16 %v7140, %v7136
  %v7265 = vpack.c.b16 %v7141, %v7137
  %v7266 = vpack.c.b16 %v7142, %v7138
  %v7267 = vpack.c.b16 %v7143, %v7139
  %v7268 = vpack.c.b16 %v7148, %v7144
  %v7269 = vpack.c.b16 %v7149, %v7145
  %v7270 = vpack.c.b16 %v7150, %v7146
  %v7271 = vpack.c.b16 %v7151, %v7147
  %v7272 = vpack.c.b16 %v7156, %v7152
  %v7273 = vpack.c.b16 %v7157, %v7153
  %v7274 = vpack.c.b16 %v7158, %v7154
  %v7275 = vpack.c.b16 %v7159, %v7155
  %v7276 = vpack.c.b16 %v7164, %v7160
  %v7277 = vpack.c.b16 %v7165, %v7161
  %v7278 = vpack.c.b16 %v7166, %v7162
  %v7279 = vpack.c.b16 %v7167, %v7163
  %v7280 = vpack.c.b16 %v7172, %v7168
  %v7281 = vpack.c.b16 %v7173, %v7169
  %v7282 = vpack.c.b16 %v7174, %v7170
  %v7283 = vpack.c.b16 %v7175, %v7171
  %v7284 = vpack.c.b16 %v7180, %v7176
  %v7285 = vpack.c.b16 %v7181, %v7177
  %v7286 = vpack.c.b16 %v7182, %v7178
  %v7287 = vpack.c.b16 %v7183, %v7179
  %v7288 = vpack.c.b16 %v7188, %v7184
  %v7289 = vpack.c.b16 %v7189, %v7185
  %v7290 = vpack.c.b16 %v7190, %v7186
  %v7291 = vpack.c.b16 %v7191, %v7187
  %v7292 = vpack.c.b16 %v7196, %v7192
  %v7293 = vpack.c.b16 %v7197, %v7193
  %v7294 = vpack.c.b16 %v7198, %v7194
  %v7295 = vpack.c.b16 %v7199, %v7195
  %v7296 = vpack.c.b16 %v7204, %v7200
  %v7297 = vpack.c.b16 %v7205, %v7201
  %v7298 = vpack.c.b16 %v7206, %v7202
  %v7299 = vpack.c.b16 %v7207, %v7203
  %v7300 = vpack.c.b16 %v7212, %v7208
  %v7301 = vpack.c.b16 %v7213, %v7209
  %v7302 = vpack.c.b16 %v7214, %v7210
  %v7303 = vpack.c.b16 %v7215, %v7211
  %v7304 = vpack.c.b16 %v7220, %v7216
  %v7305 = vpack.c.b16 %v7221, %v7217
  %v7306 = vpack.c.b16 %v7222, %v7218
  %v7307 = vpack.c.b16 %v7223, %v7219
  %v7308 = vpack.c.b16 %v7228, %v7224
  %v7309 = vpack.c.b16 %v7229, %v7225
  %v7310 = vpack.c.b16 %v7230, %v7226
  %v7311 = vpack.c.b16 %v7231, %v7227
  %v7312 = vpack.c.b16 %v7236, %v7232
  %v7313 = vpack.c.b16 %v7237, %v7233
  %v7314 = vpack.c.b16 %v7238, %v7234
  %v7315 = vpack.c.b16 %v7239, %v7235
  %v7316 = vpack.c.b16 %v7244, %v7240
  %v7317 = vpack.c.b16 %v7245, %v7241
  %v7318 = vpack.c.b16 %v7246, %v7242
  %v7319 = vpack.c.b16 %v7247, %v7243
  %v7320 = vpack.c.b16 %v7252, %v7248
  %v7321 = vpack.c.b16 %v7253, %v7249
  %v7322 = vpack.c.b16 %v7254, %v7250
  %v7323 = vpack.c.b16 %v7255, %v7251
  %v7324 = vpack.c.b16 %v7260, %v7256
  %v7325 = vpack.c.b16 %v7261, %v7257
  %v7326 = vpack.c.b16 %v7262, %v7258
  %v7327 = vpack.c.b16 %v7263, %v7259
  %7392 = vmatprep.subr.bf16.mxu0 0
  %7393 = vmatpush1.bf16.msra.mxu0 %v6575
  %7394 = vmatprep.subr.bf16.mxu0 0
  %7395 = vmatpush1.bf16.msra.mxu0 %v6574
  %7396 = vmatprep.subr.bf16.mxu0 0
  %7397 = vmatpush1.bf16.msra.mxu0 %v6573
  %7398 = vmatprep.subr.bf16.mxu0 0
  %7399 = vmatpush1.bf16.msra.mxu0 %v6572
  %7400 = vmatprep.subr.bf16.mxu0 0
  %7401 = vmatpush1.bf16.msra.mxu0 %v6571
  %7402 = vmatprep.subr.bf16.mxu0 0
  %7403 = vmatpush1.bf16.msra.mxu0 %v6570
  %7404 = vmatprep.subr.bf16.mxu0 0
  %7405 = vmatpush1.bf16.msra.mxu0 %v6569
  %7406 = vmatprep.subr.bf16.mxu0 0
  %7407 = vmatpush1.bf16.msra.mxu0 %v6568
  %7408 = vmatprep.subr.bf16.mxu0 0
  %7409 = vmatpush2.bf16.msra.mxu0 %v6583
  %7410 = vmatprep.subr.bf16.mxu0 0
  %7411 = vmatpush2.bf16.msra.mxu0 %v6582
  %7412 = vmatprep.subr.bf16.mxu0 0
  %7413 = vmatpush2.bf16.msra.mxu0 %v6581
  %7414 = vmatprep.subr.bf16.mxu0 0
  %7415 = vmatpush2.bf16.msra.mxu0 %v6580
  %7416 = vmatprep.subr.bf16.mxu0 0
  %7417 = vmatpush2.bf16.msra.mxu0 %v6579
  %7418 = vmatprep.subr.bf16.mxu0 0
  %7419 = vmatpush2.bf16.msra.mxu0 %v6578
  %7420 = vmatprep.subr.bf16.mxu0 0
  %7421 = vmatpush2.bf16.msra.mxu0 %v6577
  %7422 = vmatprep.subr.bf16.mxu0 0
  %7423 = vmatpush2.bf16.msra.mxu0 %v6576
  %7424 = vmatprep.mubr.bf16.mxu0 %v7265
  %7425 = vmatmul.mubr.bf16.gmra.mxu0 %v7264
  %v7426 = vpop.f32.mrf.mxu0
  %v7427 = vadd.f32 0.0, %v7426
  %v7428 = vpop.f32.mrf.mxu0
  %v7429 = vpop.f32.mrf.mxu0
  %v7430 = vadd.f32 0.0, %v7429
  %v7431 = vpop.f32.mrf.mxu0
  %7432 = vmatprep.mubr.bf16.mxu0 %v7269
  %7433 = vmatmul.mubr.bf16.gmra.mxu0 %v7268
  %v7434 = vpop.f32.mrf.mxu0
  %v7435 = vadd.f32 0.0, %v7434
  %v7436 = vpop.f32.mrf.mxu0
  %v7437 = vpop.f32.mrf.mxu0
  %v7438 = vadd.f32 0.0, %v7437
  %v7439 = vpop.f32.mrf.mxu0
  %7440 = vmatprep.mubr.bf16.mxu0 %v7273
  %7441 = vmatmul.mubr.bf16.gmra.mxu0 %v7272
  %v7442 = vpop.f32.mrf.mxu0
  %v7443 = vadd.f32 0.0, %v7442
  %v7444 = vpop.f32.mrf.mxu0
  %v7445 = vpop.f32.mrf.mxu0
  %v7446 = vadd.f32 0.0, %v7445
  %v7447 = vpop.f32.mrf.mxu0
  %7448 = vmatprep.mubr.bf16.mxu0 %v7277
  %7449 = vmatmul.mubr.bf16.gmra.mxu0 %v7276
  %v7450 = vpop.f32.mrf.mxu0
  %v7451 = vadd.f32 0.0, %v7450
  %v7452 = vpop.f32.mrf.mxu0
  %v7453 = vpop.f32.mrf.mxu0
  %v7454 = vadd.f32 0.0, %v7453
  %v7455 = vpop.f32.mrf.mxu0
  %7456 = vmatprep.mubr.bf16.mxu0 %v7281
  %7457 = vmatmul.mubr.bf16.gmra.mxu0 %v7280
  %v7458 = vpop.f32.mrf.mxu0
  %v7459 = vadd.f32 0.0, %v7458
  %v7460 = vpop.f32.mrf.mxu0
  %v7461 = vpop.f32.mrf.mxu0
  %v7462 = vadd.f32 0.0, %v7461
  %v7463 = vpop.f32.mrf.mxu0
  %7464 = vmatprep.mubr.bf16.mxu0 %v7285
  %7465 = vmatmul.mubr.bf16.gmra.mxu0 %v7284
  %v7466 = vpop.f32.mrf.mxu0
  %v7467 = vadd.f32 0.0, %v7466
  %v7468 = vpop.f32.mrf.mxu0
  %v7469 = vpop.f32.mrf.mxu0
  %v7470 = vadd.f32 0.0, %v7469
  %v7471 = vpop.f32.mrf.mxu0
  %7472 = vmatprep.mubr.bf16.mxu0 %v7289
  %7473 = vmatmul.mubr.bf16.gmra.mxu0 %v7288
  %v7474 = vpop.f32.mrf.mxu0
  %v7475 = vadd.f32 0.0, %v7474
  %v7476 = vpop.f32.mrf.mxu0
  %v7477 = vpop.f32.mrf.mxu0
  %v7478 = vadd.f32 0.0, %v7477
  %v7479 = vpop.f32.mrf.mxu0
  %7480 = vmatprep.mubr.bf16.mxu0 %v7293
  %7481 = vmatmul.mubr.bf16.gmra.mxu0 %v7292
  %v7482 = vpop.f32.mrf.mxu0
  %v7483 = vadd.f32 0.0, %v7482
  %v7484 = vpop.f32.mrf.mxu0
  %v7485 = vpop.f32.mrf.mxu0
  %v7486 = vadd.f32 0.0, %v7485
  %v7487 = vpop.f32.mrf.mxu0
  %7488 = vmatprep.mubr.bf16.mxu0 %v7297
  %7489 = vmatmul.mubr.bf16.gmra.mxu0 %v7296
  %v7490 = vpop.f32.mrf.mxu0
  %v7491 = vadd.f32 0.0, %v7490
  %v7492 = vpop.f32.mrf.mxu0
  %v7493 = vpop.f32.mrf.mxu0
  %v7494 = vadd.f32 0.0, %v7493
  %v7495 = vpop.f32.mrf.mxu0
  %7496 = vmatprep.mubr.bf16.mxu0 %v7301
  %7497 = vmatmul.mubr.bf16.gmra.mxu0 %v7300
  %v7498 = vpop.f32.mrf.mxu0
  %v7499 = vadd.f32 0.0, %v7498
  %v7500 = vpop.f32.mrf.mxu0
  %v7501 = vpop.f32.mrf.mxu0
  %v7502 = vadd.f32 0.0, %v7501
  %v7503 = vpop.f32.mrf.mxu0
  %7504 = vmatprep.mubr.bf16.mxu0 %v7305
  %7505 = vmatmul.mubr.bf16.gmra.mxu0 %v7304
  %v7506 = vpop.f32.mrf.mxu0
  %v7507 = vadd.f32 0.0, %v7506
  %v7508 = vpop.f32.mrf.mxu0
  %v7509 = vpop.f32.mrf.mxu0
  %v7510 = vadd.f32 0.0, %v7509
  %v7511 = vpop.f32.mrf.mxu0
  %7512 = vmatprep.mubr.bf16.mxu0 %v7309
  %7513 = vmatmul.mubr.bf16.gmra.mxu0 %v7308
  %v7514 = vpop.f32.mrf.mxu0
  %v7515 = vadd.f32 0.0, %v7514
  %v7516 = vpop.f32.mrf.mxu0
  %v7517 = vpop.f32.mrf.mxu0
  %v7518 = vadd.f32 0.0, %v7517
  %v7519 = vpop.f32.mrf.mxu0
  %7520 = vmatprep.mubr.bf16.mxu0 %v7313
  %7521 = vmatmul.mubr.bf16.gmra.mxu0 %v7312
  %v7522 = vpop.f32.mrf.mxu0
  %v7523 = vadd.f32 0.0, %v7522
  %v7524 = vpop.f32.mrf.mxu0
  %v7525 = vpop.f32.mrf.mxu0
  %v7526 = vadd.f32 0.0, %v7525
  %v7527 = vpop.f32.mrf.mxu0
  %7528 = vmatprep.mubr.bf16.mxu0 %v7317
  %7529 = vmatmul.mubr.bf16.gmra.mxu0 %v7316
  %v7530 = vpop.f32.mrf.mxu0
  %v7531 = vadd.f32 0.0, %v7530
  %v7532 = vpop.f32.mrf.mxu0
  %v7533 = vpop.f32.mrf.mxu0
  %v7534 = vadd.f32 0.0, %v7533
  %v7535 = vpop.f32.mrf.mxu0
  %7536 = vmatprep.mubr.bf16.mxu0 %v7321
  %7537 = vmatmul.mubr.bf16.gmra.mxu0 %v7320
  %v7538 = vpop.f32.mrf.mxu0
  %v7539 = vadd.f32 0.0, %v7538
  %v7540 = vpop.f32.mrf.mxu0
  %v7541 = vpop.f32.mrf.mxu0
  %v7542 = vadd.f32 0.0, %v7541
  %v7543 = vpop.f32.mrf.mxu0
  %7544 = vmatprep.mubr.bf16.mxu0 %v7325
  %7545 = vmatmul.mubr.bf16.gmra.mxu0 %v7324
  %v7546 = vpop.f32.mrf.mxu0
  %v7547 = vadd.f32 0.0, %v7546
  %v7548 = vpop.f32.mrf.mxu0
  %v7549 = vpop.f32.mrf.mxu0
  %v7550 = vadd.f32 0.0, %v7549
  %v7551 = vpop.f32.mrf.mxu0
  %7552 = vdwg.mxu0
  %7553 = vmatprep.subr.bf16.mxu0 0
  %7554 = vmatpush1.bf16.msra.mxu0 %v6591
  %7555 = vmatprep.subr.bf16.mxu0 0
  %7556 = vmatpush1.bf16.msra.mxu0 %v6590
  %7557 = vmatprep.subr.bf16.mxu0 0
  %7558 = vmatpush1.bf16.msra.mxu0 %v6589
  %7559 = vmatprep.subr.bf16.mxu0 0
  %7560 = vmatpush1.bf16.msra.mxu0 %v6588
  %7561 = vmatprep.subr.bf16.mxu0 0
  %7562 = vmatpush1.bf16.msra.mxu0 %v6587
  %7563 = vmatprep.subr.bf16.mxu0 0
  %7564 = vmatpush1.bf16.msra.mxu0 %v6586
  %7565 = vmatprep.subr.bf16.mxu0 0
  %7566 = vmatpush1.bf16.msra.mxu0 %v6585
  %7567 = vmatprep.subr.bf16.mxu0 0
  %7568 = vmatpush1.bf16.msra.mxu0 %v6584
  %7569 = vmatprep.subr.bf16.mxu0 0
  %7570 = vmatpush2.bf16.msra.mxu0 %v6599
  %7571 = vmatprep.subr.bf16.mxu0 0
  %7572 = vmatpush2.bf16.msra.mxu0 %v6598
  %7573 = vmatprep.subr.bf16.mxu0 0
  %7574 = vmatpush2.bf16.msra.mxu0 %v6597
  %7575 = vmatprep.subr.bf16.mxu0 0
  %7576 = vmatpush2.bf16.msra.mxu0 %v6596
  %7577 = vmatprep.subr.bf16.mxu0 0
  %7578 = vmatpush2.bf16.msra.mxu0 %v6595
  %7579 = vmatprep.subr.bf16.mxu0 0
  %7580 = vmatpush2.bf16.msra.mxu0 %v6594
  %7581 = vmatprep.subr.bf16.mxu0 0
  %7582 = vmatpush2.bf16.msra.mxu0 %v6593
  %7583 = vmatprep.subr.bf16.mxu0 0
  %7584 = vmatpush2.bf16.msra.mxu0 %v6592
  %7585 = vmatprep.mubr.bf16.mxu0 %v7267
  %7586 = vmatmul.mubr.bf16.gmra.mxu0 %v7266
  %v7587 = vpop.f32.mrf.mxu0
  %v7588 = vadd.f32 %v7427, %v7587
  %v7589 = vpop.f32.mrf.mxu0
  %v7590 = vpop.f32.mrf.mxu0
  %v7591 = vadd.f32 %v7430, %v7590
  %v7592 = vpop.f32.mrf.mxu0
  %7593 = vmatprep.mubr.bf16.mxu0 %v7271
  %7594 = vmatmul.mubr.bf16.gmra.mxu0 %v7270
  %v7595 = vpop.f32.mrf.mxu0
  %v7596 = vadd.f32 %v7435, %v7595
  %v7597 = vpop.f32.mrf.mxu0
  %v7598 = vpop.f32.mrf.mxu0
  %v7599 = vadd.f32 %v7438, %v7598
  %v7600 = vpop.f32.mrf.mxu0
  %7601 = vmatprep.mubr.bf16.mxu0 %v7275
  %7602 = vmatmul.mubr.bf16.gmra.mxu0 %v7274
  %v7603 = vpop.f32.mrf.mxu0
  %v7604 = vadd.f32 %v7443, %v7603
  %v7605 = vpop.f32.mrf.mxu0
  %v7606 = vpop.f32.mrf.mxu0
  %v7607 = vadd.f32 %v7446, %v7606
  %v7608 = vpop.f32.mrf.mxu0
  %7609 = vmatprep.mubr.bf16.mxu0 %v7279
  %7610 = vmatmul.mubr.bf16.gmra.mxu0 %v7278
  %v7611 = vpop.f32.mrf.mxu0
  %v7612 = vadd.f32 %v7451, %v7611
  %v7613 = vpop.f32.mrf.mxu0
  %v7614 = vpop.f32.mrf.mxu0
  %v7615 = vadd.f32 %v7454, %v7614
  %v7616 = vpop.f32.mrf.mxu0
  %7617 = vmatprep.mubr.bf16.mxu0 %v7283
  %7618 = vmatmul.mubr.bf16.gmra.mxu0 %v7282
  %v7619 = vpop.f32.mrf.mxu0
  %v7620 = vadd.f32 %v7459, %v7619
  %v7621 = vpop.f32.mrf.mxu0
  %v7622 = vpop.f32.mrf.mxu0
  %v7623 = vadd.f32 %v7462, %v7622
  %v7624 = vpop.f32.mrf.mxu0
  %7625 = vmatprep.mubr.bf16.mxu0 %v7287
  %7626 = vmatmul.mubr.bf16.gmra.mxu0 %v7286
  %v7627 = vpop.f32.mrf.mxu0
  %v7628 = vadd.f32 %v7467, %v7627
  %v7629 = vpop.f32.mrf.mxu0
  %v7630 = vpop.f32.mrf.mxu0
  %v7631 = vadd.f32 %v7470, %v7630
  %v7632 = vpop.f32.mrf.mxu0
  %7633 = vmatprep.mubr.bf16.mxu0 %v7291
  %7634 = vmatmul.mubr.bf16.gmra.mxu0 %v7290
  %v7635 = vpop.f32.mrf.mxu0
  %v7636 = vadd.f32 %v7475, %v7635
  %v7637 = vpop.f32.mrf.mxu0
  %v7638 = vpop.f32.mrf.mxu0
  %v7639 = vadd.f32 %v7478, %v7638
  %v7640 = vpop.f32.mrf.mxu0
  %7641 = vmatprep.mubr.bf16.mxu0 %v7295
  %7642 = vmatmul.mubr.bf16.gmra.mxu0 %v7294
  %v7643 = vpop.f32.mrf.mxu0
  %v7644 = vadd.f32 %v7483, %v7643
  %v7645 = vpop.f32.mrf.mxu0
  %v7646 = vpop.f32.mrf.mxu0
  %v7647 = vadd.f32 %v7486, %v7646
  %v7648 = vpop.f32.mrf.mxu0
  %7649 = vmatprep.mubr.bf16.mxu0 %v7299
  %7650 = vmatmul.mubr.bf16.gmra.mxu0 %v7298
  %v7651 = vpop.f32.mrf.mxu0
  %v7652 = vadd.f32 %v7491, %v7651
  %v7653 = vpop.f32.mrf.mxu0
  %v7654 = vpop.f32.mrf.mxu0
  %v7655 = vadd.f32 %v7494, %v7654
  %v7656 = vpop.f32.mrf.mxu0
  %7657 = vmatprep.mubr.bf16.mxu0 %v7303
  %7658 = vmatmul.mubr.bf16.gmra.mxu0 %v7302
  %v7659 = vpop.f32.mrf.mxu0
  %v7660 = vadd.f32 %v7499, %v7659
  %v7661 = vpop.f32.mrf.mxu0
  %v7662 = vpop.f32.mrf.mxu0
  %v7663 = vadd.f32 %v7502, %v7662
  %v7664 = vpop.f32.mrf.mxu0
  %7665 = vmatprep.mubr.bf16.mxu0 %v7307
  %7666 = vmatmul.mubr.bf16.gmra.mxu0 %v7306
  %v7667 = vpop.f32.mrf.mxu0
  %v7668 = vadd.f32 %v7507, %v7667
  %v7669 = vpop.f32.mrf.mxu0
  %v7670 = vpop.f32.mrf.mxu0
  %v7671 = vadd.f32 %v7510, %v7670
  %v7672 = vpop.f32.mrf.mxu0
  %7673 = vmatprep.mubr.bf16.mxu0 %v7311
  %7674 = vmatmul.mubr.bf16.gmra.mxu0 %v7310
  %v7675 = vpop.f32.mrf.mxu0
  %v7676 = vadd.f32 %v7515, %v7675
  %v7677 = vpop.f32.mrf.mxu0
  %v7678 = vpop.f32.mrf.mxu0
  %v7679 = vadd.f32 %v7518, %v7678
  %v7680 = vpop.f32.mrf.mxu0
  %7681 = vmatprep.mubr.bf16.mxu0 %v7315
  %7682 = vmatmul.mubr.bf16.gmra.mxu0 %v7314
  %v7683 = vpop.f32.mrf.mxu0
  %v7684 = vadd.f32 %v7523, %v7683
  %v7685 = vpop.f32.mrf.mxu0
  %v7686 = vpop.f32.mrf.mxu0
  %v7687 = vadd.f32 %v7526, %v7686
  %v7688 = vpop.f32.mrf.mxu0
  %7689 = vmatprep.mubr.bf16.mxu0 %v7319
  %7690 = vmatmul.mubr.bf16.gmra.mxu0 %v7318
  %v7691 = vpop.f32.mrf.mxu0
  %v7692 = vadd.f32 %v7531, %v7691
  %v7693 = vpop.f32.mrf.mxu0
  %v7694 = vpop.f32.mrf.mxu0
  %v7695 = vadd.f32 %v7534, %v7694
  %v7696 = vpop.f32.mrf.mxu0
  %7697 = vmatprep.mubr.bf16.mxu0 %v7323
  %7698 = vmatmul.mubr.bf16.gmra.mxu0 %v7322
  %v7699 = vpop.f32.mrf.mxu0
  %v7700 = vadd.f32 %v7539, %v7699
  %v7701 = vpop.f32.mrf.mxu0
  %v7702 = vpop.f32.mrf.mxu0
  %v7703 = vadd.f32 %v7542, %v7702
  %v7704 = vpop.f32.mrf.mxu0
  %7705 = vmatprep.mubr.bf16.mxu0 %v7327
  %7706 = vmatmul.mubr.bf16.gmra.mxu0 %v7326
  %v7707 = vpop.f32.mrf.mxu0
  %v7708 = vadd.f32 %v7547, %v7707
  %v7709 = vpop.f32.mrf.mxu0
  %v7710 = vpop.f32.mrf.mxu0
  %v7711 = vadd.f32 %v7550, %v7710
  %v7712 = vpop.f32.mrf.mxu0
  %7713 = vdwg.mxu0
  %v7714 = vadd.f32 %v6976, %v7588
  %v7715 = vadd.f32 %v6977, %v7591
  %v7716 = vadd.f32 %v6978, %v7596
  %v7717 = vadd.f32 %v6979, %v7599
  %v7718 = vadd.f32 %v6980, %v7604
  %v7719 = vadd.f32 %v6981, %v7607
  %v7720 = vadd.f32 %v6982, %v7612
  %v7721 = vadd.f32 %v6983, %v7615
  %v7722 = vadd.f32 %v6984, %v7620
  %v7723 = vadd.f32 %v6985, %v7623
  %v7724 = vadd.f32 %v6986, %v7628
  %v7725 = vadd.f32 %v6987, %v7631
  %v7726 = vadd.f32 %v6988, %v7636
  %v7727 = vadd.f32 %v6989, %v7639
  %v7728 = vadd.f32 %v6990, %v7644
  %v7729 = vadd.f32 %v6991, %v7647
  %v7730 = vadd.f32 %v6992, %v7652
  %v7731 = vadd.f32 %v6993, %v7655
  %v7732 = vadd.f32 %v6994, %v7660
  %v7733 = vadd.f32 %v6995, %v7663
  %v7734 = vadd.f32 %v6996, %v7668
  %v7735 = vadd.f32 %v6997, %v7671
  %v7736 = vadd.f32 %v6998, %v7676
  %v7737 = vadd.f32 %v6999, %v7679
  %v7738 = vadd.f32 %v7000, %v7684
  %v7739 = vadd.f32 %v7001, %v7687
  %v7740 = vadd.f32 %v7002, %v7692
  %v7741 = vadd.f32 %v7003, %v7695
  %v7742 = vadd.f32 %v7004, %v7700
  %v7743 = vadd.f32 %v7005, %v7703
  %v7744 = vadd.f32 %v7006, %v7708
  %v7745 = vadd.f32 %v7007, %v7711
  %v7746 = vpack.c.bf16 %v7715, %v7714
  %v7747 = vpack.c.bf16 %v7717, %v7716
  %v7748 = vpack.c.bf16 %v7719, %v7718
  %v7749 = vpack.c.bf16 %v7721, %v7720
  %v7750 = vpack.c.bf16 %v7723, %v7722
  %v7751 = vpack.c.bf16 %v7725, %v7724
  %v7752 = vpack.c.bf16 %v7727, %v7726
  %v7753 = vpack.c.bf16 %v7729, %v7728
  %v7754 = vpack.c.bf16 %v7731, %v7730
  %v7755 = vpack.c.bf16 %v7733, %v7732
  %v7756 = vpack.c.bf16 %v7735, %v7734
  %v7757 = vpack.c.bf16 %v7737, %v7736
  %v7758 = vpack.c.bf16 %v7739, %v7738
  %v7759 = vpack.c.bf16 %v7741, %v7740
  %v7760 = vpack.c.bf16 %v7743, %v7742
  %v7761 = vpack.c.bf16 %v7745, %v7744
  %v7762 = vlaneseq
  %v7763 = vshrl.u32 %v7762, 7
  %v7764 = vsub.s32 0, %v7763
  %v7765 = vrot.slane %v6635, %v7764
  %v7782 = vunpack.c.l.b16 %v6601
  %v7783 = vunpack.c.l.b16 %v6602
  %v7784 = vunpack.c.l.b16 %v6603
  %v7785 = vunpack.c.l.b16 %v6604
  %v7786 = vunpack.c.l.b16 %v6605
  %v7787 = vunpack.c.l.b16 %v6606
  %v7788 = vunpack.c.l.b16 %v6607
  %v7789 = vunpack.c.l.b16 %v6608
  %v7790 = vunpack.c.l.b16 %v6609
  %v7791 = vunpack.c.l.b16 %v6610
  %v7792 = vunpack.c.l.b16 %v6611
  %v7793 = vunpack.c.l.b16 %v6612
  %v7794 = vunpack.c.l.b16 %v6613
  %v7795 = vunpack.c.l.b16 %v6614
  %v7796 = vunpack.c.l.b16 %v6615
  %v7797 = vunpack.c.l.b16 %v6616
  %v7798 = vpack.c.b16 %v7783, %v7782
  %v7799 = vpack.c.b16 %v7785, %v7784
  %v7800 = vpack.c.b16 %v7787, %v7786
  %v7801 = vpack.c.b16 %v7789, %v7788
  %v7802 = vpack.c.b16 %v7791, %v7790
  %v7803 = vpack.c.b16 %v7793, %v7792
  %v7804 = vpack.c.b16 %v7795, %v7794
  %v7805 = vpack.c.b16 %v7797, %v7796
  %7814 = vmatprep.subr.bf16.mxu0 0
  %7815 = vmatpush1.bf16.msra.mxu0 %v7805
  %7816 = vmatprep.subr.bf16.mxu0 0
  %7817 = vmatpush1.bf16.msra.mxu0 %v7804
  %7818 = vmatprep.subr.bf16.mxu0 0
  %7819 = vmatpush1.bf16.msra.mxu0 %v7803
  %7820 = vmatprep.subr.bf16.mxu0 0
  %7821 = vmatpush1.bf16.msra.mxu0 %v7802
  %7822 = vmatprep.subr.bf16.mxu0 0
  %7823 = vmatpush1.bf16.msra.mxu0 %v7801
  %7824 = vmatprep.subr.bf16.mxu0 0
  %7825 = vmatpush1.bf16.msra.mxu0 %v7800
  %7826 = vmatprep.subr.bf16.mxu0 0
  %7827 = vmatpush1.bf16.msra.mxu0 %v7799
  %7828 = vmatprep.subr.bf16.mxu0 0
  %7829 = vmatpush1.bf16.msra.mxu0 %v7798
  %7830 = vmatprep.subr.bf16.mxu0 0
  %7831 = vmatpush2.bf16.msra.mxu0 0
  %7832 = vmatprep.subr.bf16.mxu0 0
  %7833 = vmatpush2.bf16.msra.mxu0 0
  %7834 = vmatprep.subr.bf16.mxu0 0
  %7835 = vmatpush2.bf16.msra.mxu0 0
  %7836 = vmatprep.subr.bf16.mxu0 0
  %7837 = vmatpush2.bf16.msra.mxu0 0
  %7838 = vmatprep.subr.bf16.mxu0 0
  %7839 = vmatpush2.bf16.msra.mxu0 0
  %7840 = vmatprep.subr.bf16.mxu0 0
  %7841 = vmatpush2.bf16.msra.mxu0 0
  %7842 = vmatprep.subr.bf16.mxu0 0
  %7843 = vmatpush2.bf16.msra.mxu0 0
  %7844 = vmatprep.subr.bf16.mxu0 0
  %7845 = vmatpush2.bf16.msra.mxu0 0
  %7846 = vmatprep.mubr.bf16.mxu0 0
  %7847 = vmatmul.mubr.bf16.gmra.mxu0 %v7746
  %v7848 = vpop.f32.mrf.mxu0
  %v7849 = vadd.f32 %v7765, %v7848
  %v7850 = vpop.f32.mrf.mxu0
  %v7851 = vpop.f32.mrf.mxu0
  %v7852 = vadd.f32 %v7765, %v7851
  %v7853 = vpop.f32.mrf.mxu0
  %7854 = vmatprep.mubr.bf16.mxu0 0
  %7855 = vmatmul.mubr.bf16.gmra.mxu0 %v7747
  %v7856 = vpop.f32.mrf.mxu0
  %v7857 = vadd.f32 %v7765, %v7856
  %v7858 = vpop.f32.mrf.mxu0
  %v7859 = vpop.f32.mrf.mxu0
  %v7860 = vadd.f32 %v7765, %v7859
  %v7861 = vpop.f32.mrf.mxu0
  %7862 = vmatprep.mubr.bf16.mxu0 0
  %7863 = vmatmul.mubr.bf16.gmra.mxu0 %v7748
  %v7864 = vpop.f32.mrf.mxu0
  %v7865 = vadd.f32 %v7765, %v7864
  %v7866 = vpop.f32.mrf.mxu0
  %v7867 = vpop.f32.mrf.mxu0
  %v7868 = vadd.f32 %v7765, %v7867
  %v7869 = vpop.f32.mrf.mxu0
  %7870 = vmatprep.mubr.bf16.mxu0 0
  %7871 = vmatmul.mubr.bf16.gmra.mxu0 %v7749
  %v7872 = vpop.f32.mrf.mxu0
  %v7873 = vadd.f32 %v7765, %v7872
  %v7874 = vpop.f32.mrf.mxu0
  %v7875 = vpop.f32.mrf.mxu0
  %v7876 = vadd.f32 %v7765, %v7875
  %v7877 = vpop.f32.mrf.mxu0
  %7878 = vmatprep.mubr.bf16.mxu0 0
  %7879 = vmatmul.mubr.bf16.gmra.mxu0 %v7750
  %v7880 = vpop.f32.mrf.mxu0
  %v7881 = vadd.f32 %v7765, %v7880
  %v7882 = vpop.f32.mrf.mxu0
  %v7883 = vpop.f32.mrf.mxu0
  %v7884 = vadd.f32 %v7765, %v7883
  %v7885 = vpop.f32.mrf.mxu0
  %7886 = vmatprep.mubr.bf16.mxu0 0
  %7887 = vmatmul.mubr.bf16.gmra.mxu0 %v7751
  %v7888 = vpop.f32.mrf.mxu0
  %v7889 = vadd.f32 %v7765, %v7888
  %v7890 = vpop.f32.mrf.mxu0
  %v7891 = vpop.f32.mrf.mxu0
  %v7892 = vadd.f32 %v7765, %v7891
  %v7893 = vpop.f32.mrf.mxu0
  %7894 = vmatprep.mubr.bf16.mxu0 0
  %7895 = vmatmul.mubr.bf16.gmra.mxu0 %v7752
  %v7896 = vpop.f32.mrf.mxu0
  %v7897 = vadd.f32 %v7765, %v7896
  %v7898 = vpop.f32.mrf.mxu0
  %v7899 = vpop.f32.mrf.mxu0
  %v7900 = vadd.f32 %v7765, %v7899
  %v7901 = vpop.f32.mrf.mxu0
  %7902 = vmatprep.mubr.bf16.mxu0 0
  %7903 = vmatmul.mubr.bf16.gmra.mxu0 %v7753
  %v7904 = vpop.f32.mrf.mxu0
  %v7905 = vadd.f32 %v7765, %v7904
  %v7906 = vpop.f32.mrf.mxu0
  %v7907 = vpop.f32.mrf.mxu0
  %v7908 = vadd.f32 %v7765, %v7907
  %v7909 = vpop.f32.mrf.mxu0
  %7910 = vmatprep.mubr.bf16.mxu0 0
  %7911 = vmatmul.mubr.bf16.gmra.mxu0 %v7754
  %v7912 = vpop.f32.mrf.mxu0
  %v7913 = vadd.f32 %v7765, %v7912
  %v7914 = vpop.f32.mrf.mxu0
  %v7915 = vpop.f32.mrf.mxu0
  %v7916 = vadd.f32 %v7765, %v7915
  %v7917 = vpop.f32.mrf.mxu0
  %7918 = vmatprep.mubr.bf16.mxu0 0
  %7919 = vmatmul.mubr.bf16.gmra.mxu0 %v7755
  %v7920 = vpop.f32.mrf.mxu0
  %v7921 = vadd.f32 %v7765, %v7920
  %v7922 = vpop.f32.mrf.mxu0
  %v7923 = vpop.f32.mrf.mxu0
  %v7924 = vadd.f32 %v7765, %v7923
  %v7925 = vpop.f32.mrf.mxu0
  %7926 = vmatprep.mubr.bf16.mxu0 0
  %7927 = vmatmul.mubr.bf16.gmra.mxu0 %v7756
  %v7928 = vpop.f32.mrf.mxu0
  %v7929 = vadd.f32 %v7765, %v7928
  %v7930 = vpop.f32.mrf.mxu0
  %v7931 = vpop.f32.mrf.mxu0
  %v7932 = vadd.f32 %v7765, %v7931
  %v7933 = vpop.f32.mrf.mxu0
  %7934 = vmatprep.mubr.bf16.mxu0 0
  %7935 = vmatmul.mubr.bf16.gmra.mxu0 %v7757
  %v7936 = vpop.f32.mrf.mxu0
  %v7937 = vadd.f32 %v7765, %v7936
  %v7938 = vpop.f32.mrf.mxu0
  %v7939 = vpop.f32.mrf.mxu0
  %v7940 = vadd.f32 %v7765, %v7939
  %v7941 = vpop.f32.mrf.mxu0
  %7942 = vmatprep.mubr.bf16.mxu0 0
  %7943 = vmatmul.mubr.bf16.gmra.mxu0 %v7758
  %v7944 = vpop.f32.mrf.mxu0
  %v7945 = vadd.f32 %v7765, %v7944
  %v7946 = vpop.f32.mrf.mxu0
  %v7947 = vpop.f32.mrf.mxu0
  %v7948 = vadd.f32 %v7765, %v7947
  %v7949 = vpop.f32.mrf.mxu0
  %7950 = vmatprep.mubr.bf16.mxu0 0
  %7951 = vmatmul.mubr.bf16.gmra.mxu0 %v7759
  %v7952 = vpop.f32.mrf.mxu0
  %v7953 = vadd.f32 %v7765, %v7952
  %v7954 = vpop.f32.mrf.mxu0
  %v7955 = vpop.f32.mrf.mxu0
  %v7956 = vadd.f32 %v7765, %v7955
  %v7957 = vpop.f32.mrf.mxu0
  %7958 = vmatprep.mubr.bf16.mxu0 0
  %7959 = vmatmul.mubr.bf16.gmra.mxu0 %v7760
  %v7960 = vpop.f32.mrf.mxu0
  %v7961 = vadd.f32 %v7765, %v7960
  %v7962 = vpop.f32.mrf.mxu0
  %v7963 = vpop.f32.mrf.mxu0
  %v7964 = vadd.f32 %v7765, %v7963
  %v7965 = vpop.f32.mrf.mxu0
  %7966 = vmatprep.mubr.bf16.mxu0 0
  %7967 = vmatmul.mubr.bf16.gmra.mxu0 %v7761
  %v7968 = vpop.f32.mrf.mxu0
  %v7969 = vadd.f32 %v7765, %v7968
  %v7970 = vpop.f32.mrf.mxu0
  %v7971 = vpop.f32.mrf.mxu0
  %v7972 = vadd.f32 %v7765, %v7971
  %v7973 = vpop.f32.mrf.mxu0
  %7974 = vdwg.mxu0
  %v7975 = vmax.f32 %v7849, 0.0
  %v7976 = vmax.f32 %v7852, 0.0
  %v7977 = vmax.f32 %v7857, 0.0
  %v7978 = vmax.f32 %v7860, 0.0
  %v7979 = vmax.f32 %v7865, 0.0
  %v7980 = vmax.f32 %v7868, 0.0
  %v7981 = vmax.f32 %v7873, 0.0
  %v7982 = vmax.f32 %v7876, 0.0
  %v7983 = vmax.f32 %v7881, 0.0
  %v7984 = vmax.f32 %v7884, 0.0
  %v7985 = vmax.f32 %v7889, 0.0
  %v7986 = vmax.f32 %v7892, 0.0
  %v7987 = vmax.f32 %v7897, 0.0
  %v7988 = vmax.f32 %v7900, 0.0
  %v7989 = vmax.f32 %v7905, 0.0
  %v7990 = vmax.f32 %v7908, 0.0
  %v7991 = vmax.f32 %v7913, 0.0
  %v7992 = vmax.f32 %v7916, 0.0
  %v7993 = vmax.f32 %v7921, 0.0
  %v7994 = vmax.f32 %v7924, 0.0
  %v7995 = vmax.f32 %v7929, 0.0
  %v7996 = vmax.f32 %v7932, 0.0
  %v7997 = vmax.f32 %v7937, 0.0
  %v7998 = vmax.f32 %v7940, 0.0
  %v7999 = vmax.f32 %v7945, 0.0
  %v8000 = vmax.f32 %v7948, 0.0
  %v8001 = vmax.f32 %v7953, 0.0
  %v8002 = vmax.f32 %v7956, 0.0
  %v8003 = vmax.f32 %v7961, 0.0
  %v8004 = vmax.f32 %v7964, 0.0
  %v8005 = vmax.f32 %v7969, 0.0
  %v8006 = vmax.f32 %v7972, 0.0
  %v8007 = vpack.c.bf16 %v7976, %v7975
  %v8008 = vpack.c.bf16 %v7978, %v7977
  %v8009 = vpack.c.bf16 %v7980, %v7979
  %v8010 = vpack.c.bf16 %v7982, %v7981
  %v8011 = vpack.c.bf16 %v7984, %v7983
  %v8012 = vpack.c.bf16 %v7986, %v7985
  %v8013 = vpack.c.bf16 %v7988, %v7987
  %v8014 = vpack.c.bf16 %v7990, %v7989
  %v8015 = vpack.c.bf16 %v7992, %v7991
  %v8016 = vpack.c.bf16 %v7994, %v7993
  %v8017 = vpack.c.bf16 %v7996, %v7995
  %v8018 = vpack.c.bf16 %v7998, %v7997
  %v8019 = vpack.c.bf16 %v8000, %v7999
  %v8020 = vpack.c.bf16 %v8002, %v8001
  %v8021 = vpack.c.bf16 %v8004, %v8003
  %v8022 = vpack.c.bf16 %v8006, %v8005
  %v8023 = vlaneseq
  %v8024 = vshrl.u32 %v8023, 7
  %v8025 = vsub.s32 1, %v8024
  %v8026 = vrot.slane %v6635, %v8025
  %v8043 = vunpack.c.l.b16 %v6618
  %v8044 = vunpack.c.l.b16 %v6619
  %v8045 = vunpack.c.l.b16 %v6620
  %v8046 = vunpack.c.l.b16 %v6621
  %v8047 = vunpack.c.l.b16 %v6622
  %v8048 = vunpack.c.l.b16 %v6623
  %v8049 = vunpack.c.l.b16 %v6624
  %v8050 = vunpack.c.l.b16 %v6625
  %v8051 = vunpack.c.l.b16 %v6626
  %v8052 = vunpack.c.l.b16 %v6627
  %v8053 = vunpack.c.l.b16 %v6628
  %v8054 = vunpack.c.l.b16 %v6629
  %v8055 = vunpack.c.l.b16 %v6630
  %v8056 = vunpack.c.l.b16 %v6631
  %v8057 = vunpack.c.l.b16 %v6632
  %v8058 = vunpack.c.l.b16 %v6633
  %v8059 = vpack.c.b16 %v8044, %v8043
  %v8060 = vpack.c.b16 %v8046, %v8045
  %v8061 = vpack.c.b16 %v8048, %v8047
  %v8062 = vpack.c.b16 %v8050, %v8049
  %v8063 = vpack.c.b16 %v8052, %v8051
  %v8064 = vpack.c.b16 %v8054, %v8053
  %v8065 = vpack.c.b16 %v8056, %v8055
  %v8066 = vpack.c.b16 %v8058, %v8057
  %8075 = vmatprep.subr.bf16.mxu0 0
  %8076 = vmatpush1.bf16.msra.mxu0 %v8066
  %8077 = vmatprep.subr.bf16.mxu0 0
  %8078 = vmatpush1.bf16.msra.mxu0 %v8065
  %8079 = vmatprep.subr.bf16.mxu0 0
  %8080 = vmatpush1.bf16.msra.mxu0 %v8064
  %8081 = vmatprep.subr.bf16.mxu0 0
  %8082 = vmatpush1.bf16.msra.mxu0 %v8063
  %8083 = vmatprep.subr.bf16.mxu0 0
  %8084 = vmatpush1.bf16.msra.mxu0 %v8062
  %8085 = vmatprep.subr.bf16.mxu0 0
  %8086 = vmatpush1.bf16.msra.mxu0 %v8061
  %8087 = vmatprep.subr.bf16.mxu0 0
  %8088 = vmatpush1.bf16.msra.mxu0 %v8060
  %8089 = vmatprep.subr.bf16.mxu0 0
  %8090 = vmatpush1.bf16.msra.mxu0 %v8059
  %8091 = vmatprep.subr.bf16.mxu0 0
  %8092 = vmatpush2.bf16.msra.mxu0 0
  %8093 = vmatprep.subr.bf16.mxu0 0
  %8094 = vmatpush2.bf16.msra.mxu0 0
  %8095 = vmatprep.subr.bf16.mxu0 0
  %8096 = vmatpush2.bf16.msra.mxu0 0
  %8097 = vmatprep.subr.bf16.mxu0 0
  %8098 = vmatpush2.bf16.msra.mxu0 0
  %8099 = vmatprep.subr.bf16.mxu0 0
  %8100 = vmatpush2.bf16.msra.mxu0 0
  %8101 = vmatprep.subr.bf16.mxu0 0
  %8102 = vmatpush2.bf16.msra.mxu0 0
  %8103 = vmatprep.subr.bf16.mxu0 0
  %8104 = vmatpush2.bf16.msra.mxu0 0
  %8105 = vmatprep.subr.bf16.mxu0 0
  %8106 = vmatpush2.bf16.msra.mxu0 0
  %8107 = vmatprep.mubr.bf16.mxu0 0
  %8108 = vmatmul.mubr.bf16.gmra.mxu0 %v8007
  %v8109 = vpop.f32.mrf.mxu0
  %v8110 = vadd.f32 %v8026, %v8109
  %v8111 = vpop.f32.mrf.mxu0
  %v8112 = vpop.f32.mrf.mxu0
  %v8113 = vadd.f32 %v8026, %v8112
  %v8114 = vpop.f32.mrf.mxu0
  %8115 = vmatprep.mubr.bf16.mxu0 0
  %8116 = vmatmul.mubr.bf16.gmra.mxu0 %v8008
  %v8117 = vpop.f32.mrf.mxu0
  %v8118 = vadd.f32 %v8026, %v8117
  %v8119 = vpop.f32.mrf.mxu0
  %v8120 = vpop.f32.mrf.mxu0
  %v8121 = vadd.f32 %v8026, %v8120
  %v8122 = vpop.f32.mrf.mxu0
  %8123 = vmatprep.mubr.bf16.mxu0 0
  %8124 = vmatmul.mubr.bf16.gmra.mxu0 %v8009
  %v8125 = vpop.f32.mrf.mxu0
  %v8126 = vadd.f32 %v8026, %v8125
  %v8127 = vpop.f32.mrf.mxu0
  %v8128 = vpop.f32.mrf.mxu0
  %v8129 = vadd.f32 %v8026, %v8128
  %v8130 = vpop.f32.mrf.mxu0
  %8131 = vmatprep.mubr.bf16.mxu0 0
  %8132 = vmatmul.mubr.bf16.gmra.mxu0 %v8010
  %v8133 = vpop.f32.mrf.mxu0
  %v8134 = vadd.f32 %v8026, %v8133
  %v8135 = vpop.f32.mrf.mxu0
  %v8136 = vpop.f32.mrf.mxu0
  %v8137 = vadd.f32 %v8026, %v8136
  %v8138 = vpop.f32.mrf.mxu0
  %8139 = vmatprep.mubr.bf16.mxu0 0
  %8140 = vmatmul.mubr.bf16.gmra.mxu0 %v8011
  %v8141 = vpop.f32.mrf.mxu0
  %v8142 = vadd.f32 %v8026, %v8141
  %v8143 = vpop.f32.mrf.mxu0
  %v8144 = vpop.f32.mrf.mxu0
  %v8145 = vadd.f32 %v8026, %v8144
  %v8146 = vpop.f32.mrf.mxu0
  %8147 = vmatprep.mubr.bf16.mxu0 0
  %8148 = vmatmul.mubr.bf16.gmra.mxu0 %v8012
  %v8149 = vpop.f32.mrf.mxu0
  %v8150 = vadd.f32 %v8026, %v8149
  %v8151 = vpop.f32.mrf.mxu0
  %v8152 = vpop.f32.mrf.mxu0
  %v8153 = vadd.f32 %v8026, %v8152
  %v8154 = vpop.f32.mrf.mxu0
  %8155 = vmatprep.mubr.bf16.mxu0 0
  %8156 = vmatmul.mubr.bf16.gmra.mxu0 %v8013
  %v8157 = vpop.f32.mrf.mxu0
  %v8158 = vadd.f32 %v8026, %v8157
  %v8159 = vpop.f32.mrf.mxu0
  %v8160 = vpop.f32.mrf.mxu0
  %v8161 = vadd.f32 %v8026, %v8160
  %v8162 = vpop.f32.mrf.mxu0
  %8163 = vmatprep.mubr.bf16.mxu0 0
  %8164 = vmatmul.mubr.bf16.gmra.mxu0 %v8014
  %v8165 = vpop.f32.mrf.mxu0
  %v8166 = vadd.f32 %v8026, %v8165
  %v8167 = vpop.f32.mrf.mxu0
  %v8168 = vpop.f32.mrf.mxu0
  %v8169 = vadd.f32 %v8026, %v8168
  %v8170 = vpop.f32.mrf.mxu0
  %8171 = vmatprep.mubr.bf16.mxu0 0
  %8172 = vmatmul.mubr.bf16.gmra.mxu0 %v8015
  %v8173 = vpop.f32.mrf.mxu0
  %v8174 = vadd.f32 %v8026, %v8173
  %v8175 = vpop.f32.mrf.mxu0
  %v8176 = vpop.f32.mrf.mxu0
  %v8177 = vadd.f32 %v8026, %v8176
  %v8178 = vpop.f32.mrf.mxu0
  %8179 = vmatprep.mubr.bf16.mxu0 0
  %8180 = vmatmul.mubr.bf16.gmra.mxu0 %v8016
  %v8181 = vpop.f32.mrf.mxu0
  %v8182 = vadd.f32 %v8026, %v8181
  %v8183 = vpop.f32.mrf.mxu0
  %v8184 = vpop.f32.mrf.mxu0
  %v8185 = vadd.f32 %v8026, %v8184
  %v8186 = vpop.f32.mrf.mxu0
  %8187 = vmatprep.mubr.bf16.mxu0 0
  %8188 = vmatmul.mubr.bf16.gmra.mxu0 %v8017
  %v8189 = vpop.f32.mrf.mxu0
  %v8190 = vadd.f32 %v8026, %v8189
  %v8191 = vpop.f32.mrf.mxu0
  %v8192 = vpop.f32.mrf.mxu0
  %v8193 = vadd.f32 %v8026, %v8192
  %v8194 = vpop.f32.mrf.mxu0
  %8195 = vmatprep.mubr.bf16.mxu0 0
  %8196 = vmatmul.mubr.bf16.gmra.mxu0 %v8018
  %v8197 = vpop.f32.mrf.mxu0
  %v8198 = vadd.f32 %v8026, %v8197
  %v8199 = vpop.f32.mrf.mxu0
  %v8200 = vpop.f32.mrf.mxu0
  %v8201 = vadd.f32 %v8026, %v8200
  %v8202 = vpop.f32.mrf.mxu0
  %8203 = vmatprep.mubr.bf16.mxu0 0
  %8204 = vmatmul.mubr.bf16.gmra.mxu0 %v8019
  %v8205 = vpop.f32.mrf.mxu0
  %v8206 = vadd.f32 %v8026, %v8205
  %v8207 = vpop.f32.mrf.mxu0
  %v8208 = vpop.f32.mrf.mxu0
  %v8209 = vadd.f32 %v8026, %v8208
  %v8210 = vpop.f32.mrf.mxu0
  %8211 = vmatprep.mubr.bf16.mxu0 0
  %8212 = vmatmul.mubr.bf16.gmra.mxu0 %v8020
  %v8213 = vpop.f32.mrf.mxu0
  %v8214 = vadd.f32 %v8026, %v8213
  %v8215 = vpop.f32.mrf.mxu0
  %v8216 = vpop.f32.mrf.mxu0
  %v8217 = vadd.f32 %v8026, %v8216
  %v8218 = vpop.f32.mrf.mxu0
  %8219 = vmatprep.mubr.bf16.mxu0 0
  %8220 = vmatmul.mubr.bf16.gmra.mxu0 %v8021
  %v8221 = vpop.f32.mrf.mxu0
  %v8222 = vadd.f32 %v8026, %v8221
  %v8223 = vpop.f32.mrf.mxu0
  %v8224 = vpop.f32.mrf.mxu0
  %v8225 = vadd.f32 %v8026, %v8224
  %v8226 = vpop.f32.mrf.mxu0
  %8227 = vmatprep.mubr.bf16.mxu0 0
  %8228 = vmatmul.mubr.bf16.gmra.mxu0 %v8022
  %v8229 = vpop.f32.mrf.mxu0
  %v8230 = vadd.f32 %v8026, %v8229
  %v8231 = vpop.f32.mrf.mxu0
  %v8232 = vpop.f32.mrf.mxu0
  %v8233 = vadd.f32 %v8026, %v8232
  %v8234 = vpop.f32.mrf.mxu0
  %8235 = vdwg.mxu0
  %v8236 = vmax.f32 %v8110, 0.0
  %v8237 = vmax.f32 %v8113, 0.0
  %v8238 = vmax.f32 %v8118, 0.0
  %v8239 = vmax.f32 %v8121, 0.0
  %v8240 = vmax.f32 %v8126, 0.0
  %v8241 = vmax.f32 %v8129, 0.0
  %v8242 = vmax.f32 %v8134, 0.0
  %v8243 = vmax.f32 %v8137, 0.0
  %v8244 = vmax.f32 %v8142, 0.0
  %v8245 = vmax.f32 %v8145, 0.0
  %v8246 = vmax.f32 %v8150, 0.0
  %v8247 = vmax.f32 %v8153, 0.0
  %v8248 = vmax.f32 %v8158, 0.0
  %v8249 = vmax.f32 %v8161, 0.0
  %v8250 = vmax.f32 %v8166, 0.0
  %v8251 = vmax.f32 %v8169, 0.0
  %v8252 = vmax.f32 %v8174, 0.0
  %v8253 = vmax.f32 %v8177, 0.0
  %v8254 = vmax.f32 %v8182, 0.0
  %v8255 = vmax.f32 %v8185, 0.0
  %v8256 = vmax.f32 %v8190, 0.0
  %v8257 = vmax.f32 %v8193, 0.0
  %v8258 = vmax.f32 %v8198, 0.0
  %v8259 = vmax.f32 %v8201, 0.0
  %v8260 = vmax.f32 %v8206, 0.0
  %v8261 = vmax.f32 %v8209, 0.0
  %v8262 = vmax.f32 %v8214, 0.0
  %v8263 = vmax.f32 %v8217, 0.0
  %v8264 = vmax.f32 %v8222, 0.0
  %v8265 = vmax.f32 %v8225, 0.0
  %v8266 = vmax.f32 %v8230, 0.0
  %v8267 = vmax.f32 %v8233, 0.0
  %v8268 = vlaneseq
  %v8269 = vshrl.u32 %v8268, 7
  %v8270 = vsub.s32 2, %v8269
  %v8271 = vrot.slane %v6635, %v8270
  %v8272 = vmul.f32 %v8236, %v8271
  %v8273 = vmul.f32 %v8237, %v8271
  %v8274 = vmul.f32 %v8238, %v8271
  %v8275 = vmul.f32 %v8239, %v8271
  %v8276 = vmul.f32 %v8240, %v8271
  %v8277 = vmul.f32 %v8241, %v8271
  %v8278 = vmul.f32 %v8242, %v8271
  %v8279 = vmul.f32 %v8243, %v8271
  %v8280 = vmul.f32 %v8244, %v8271
  %v8281 = vmul.f32 %v8245, %v8271
  %v8282 = vmul.f32 %v8246, %v8271
  %v8283 = vmul.f32 %v8247, %v8271
  %v8284 = vmul.f32 %v8248, %v8271
  %v8285 = vmul.f32 %v8249, %v8271
  %v8286 = vmul.f32 %v8250, %v8271
  %v8287 = vmul.f32 %v8251, %v8271
  %v8288 = vmul.f32 %v8252, %v8271
  %v8289 = vmul.f32 %v8253, %v8271
  %v8290 = vmul.f32 %v8254, %v8271
  %v8291 = vmul.f32 %v8255, %v8271
  %v8292 = vmul.f32 %v8256, %v8271
  %v8293 = vmul.f32 %v8257, %v8271
  %v8294 = vmul.f32 %v8258, %v8271
  %v8295 = vmul.f32 %v8259, %v8271
  %v8296 = vmul.f32 %v8260, %v8271
  %v8297 = vmul.f32 %v8261, %v8271
  %v8298 = vmul.f32 %v8262, %v8271
  %v8299 = vmul.f32 %v8263, %v8271
  %v8300 = vmul.f32 %v8264, %v8271
  %v8301 = vmul.f32 %v8265, %v8271
  %v8302 = vmul.f32 %v8266, %v8271
  %v8303 = vmul.f32 %v8267, %v8271
  %v8304 = vlaneseq
  %v8305 = vshrl.u32 %v8304, 7
  %v8306 = vsub.s32 3, %v8305
  %v8307 = vrot.slane %v6635, %v8306
  %v8308 = vadd.f32 %v8272, %v8307
  %v8309 = vadd.f32 %v8273, %v8307
  %v8310 = vadd.f32 %v8274, %v8307
  %v8311 = vadd.f32 %v8275, %v8307
  %v8312 = vadd.f32 %v8276, %v8307
  %v8313 = vadd.f32 %v8277, %v8307
  %v8314 = vadd.f32 %v8278, %v8307
  %v8315 = vadd.f32 %v8279, %v8307
  %v8316 = vadd.f32 %v8280, %v8307
  %v8317 = vadd.f32 %v8281, %v8307
  %v8318 = vadd.f32 %v8282, %v8307
  %v8319 = vadd.f32 %v8283, %v8307
  %v8320 = vadd.f32 %v8284, %v8307
  %v8321 = vadd.f32 %v8285, %v8307
  %v8322 = vadd.f32 %v8286, %v8307
  %v8323 = vadd.f32 %v8287, %v8307
  %v8324 = vadd.f32 %v8288, %v8307
  %v8325 = vadd.f32 %v8289, %v8307
  %v8326 = vadd.f32 %v8290, %v8307
  %v8327 = vadd.f32 %v8291, %v8307
  %v8328 = vadd.f32 %v8292, %v8307
  %v8329 = vadd.f32 %v8293, %v8307
  %v8330 = vadd.f32 %v8294, %v8307
  %v8331 = vadd.f32 %v8295, %v8307
  %v8332 = vadd.f32 %v8296, %v8307
  %v8333 = vadd.f32 %v8297, %v8307
  %v8334 = vadd.f32 %v8298, %v8307
  %v8335 = vadd.f32 %v8299, %v8307
  %v8336 = vadd.f32 %v8300, %v8307
  %v8337 = vadd.f32 %v8301, %v8307
  %v8338 = vadd.f32 %v8302, %v8307
  %v8339 = vadd.f32 %v8303, %v8307
  %8340 = vst [vmem:[#allocation4 + $0x10] sm:$0xff] %v8308
  %8341 = vst [vmem:[#allocation4 + $0x28] sm:$0xff] %v8309
  %8342 = vst [vmem:[#allocation4 + $0x40] sm:$0xff] %v8310
  %8343 = vst [vmem:[#allocation4 + $0x58] sm:$0xff] %v8311
  %8344 = vst [vmem:[#allocation4 + $0x70] sm:$0xff] %v8312
  %8345 = vst [vmem:[#allocation4 + $0x88] sm:$0xff] %v8313
  %8346 = vst [vmem:[#allocation4 + $0xa0] sm:$0xff] %v8314
  %8347 = vst [vmem:[#allocation4 + $0xb8] sm:$0xff] %v8315
  %8348 = vst [vmem:[#allocation4 + $0xd0] sm:$0xff] %v8316
  %8349 = vst [vmem:[#allocation4 + $0xe8] sm:$0xff] %v8317
  %8350 = vst [vmem:[#allocation4 + $0x100] sm:$0xff] %v8318
  %8351 = vst [vmem:[#allocation4 + $0x118] sm:$0xff] %v8319
  %8352 = vst [vmem:[#allocation4 + $0x130] sm:$0xff] %v8320
  %8353 = vst [vmem:[#allocation4 + $0x148] sm:$0xff] %v8321
  %8354 = vst [vmem:[#allocation4 + $0x160] sm:$0xff] %v8322
  %8355 = vst [vmem:[#allocation4 + $0x178] sm:$0xff] %v8323
  %8356 = vst [vmem:[#allocation4 + $0x190] sm:$0xff] %v8324
  %8357 = vst [vmem:[#allocation4 + $0x1a8] sm:$0xff] %v8325
  %8358 = vst [vmem:[#allocation4 + $0x1c0] sm:$0xff] %v8326
  %8359 = vst [vmem:[#allocation4 + $0x1d8] sm:$0xff] %v8327
  %8360 = vst [vmem:[#allocation4 + $0x1f0] sm:$0xff] %v8328
  %8361 = vst [vmem:[#allocation4 + $0x208] sm:$0xff] %v8329
  %8362 = vst [vmem:[#allocation4 + $0x220] sm:$0xff] %v8330
  %8363 = vst [vmem:[#allocation4 + $0x238] sm:$0xff] %v8331
  %8364 = vst [vmem:[#allocation4 + $0x250] sm:$0xff] %v8332
  %8365 = vst [vmem:[#allocation4 + $0x268] sm:$0xff] %v8333
  %8366 = vst [vmem:[#allocation4 + $0x280] sm:$0xff] %v8334
  %8367 = vst [vmem:[#allocation4 + $0x298] sm:$0xff] %v8335
  %8368 = vst [vmem:[#allocation4 + $0x2b0] sm:$0xff] %v8336
  %8369 = vst [vmem:[#allocation4 + $0x2c8] sm:$0xff] %v8337
  %8370 = vst [vmem:[#allocation4 + $0x2e0] sm:$0xff] %v8338
  %8371 = vst [vmem:[#allocation4 + $0x2f8] sm:$0xff] %v8339
  %s8372 = sshll.u32 %s301, 4
  %8373 = dma.done %s306, %s8372
  %v8374 = vld [vmem:[#allocation4 + $0x308] sm:$0xff]
  %v8375 = vld [vmem:[#allocation4 + $0x320] sm:$0xff]
  %v8376 = vld [vmem:[#allocation4 + $0x338] sm:$0xff]
  %v8377 = vld [vmem:[#allocation4 + $0x350] sm:$0xff]
  %v8378 = vld [vmem:[#allocation4 + $0x368] sm:$0xff]
  %v8379 = vld [vmem:[#allocation4 + $0x380] sm:$0xff]
  %v8380 = vld [vmem:[#allocation4 + $0x398] sm:$0xff]
  %v8381 = vld [vmem:[#allocation4 + $0x3b0] sm:$0xff]
  %v8382 = vld [vmem:[#allocation4 + $0x3c8] sm:$0xff]
  %v8383 = vld [vmem:[#allocation4 + $0x3e0] sm:$0xff]
  %v8384 = vld [vmem:[#allocation4 + $0x3f8] sm:$0xff]
  %v8385 = vld [vmem:[#allocation4 + $0x410] sm:$0xff]
  %v8386 = vld [vmem:[#allocation4 + $0x428] sm:$0xff]
  %v8387 = vld [vmem:[#allocation4 + $0x440] sm:$0xff]
  %v8388 = vld [vmem:[#allocation4 + $0x458] sm:$0xff]
  %v8389 = vld [vmem:[#allocation4 + $0x470] sm:$0xff]
  %v8390 = vld [vmem:[#allocation4 + $0x488] sm:$0xff]
  %v8391 = vld [vmem:[#allocation4 + $0x4a0] sm:$0xff]
  %v8392 = vld [vmem:[#allocation4 + $0x4b8] sm:$0xff]
  %v8393 = vld [vmem:[#allocation4 + $0x4d0] sm:$0xff]
  %v8394 = vld [vmem:[#allocation4 + $0x4e8] sm:$0xff]
  %v8395 = vld [vmem:[#allocation4 + $0x500] sm:$0xff]
  %v8396 = vld [vmem:[#allocation4 + $0x518] sm:$0xff]
  %v8397 = vld [vmem:[#allocation4 + $0x530] sm:$0xff]
  %v8398 = vld [vmem:[#allocation4 + $0x548] sm:$0xff]
  %v8399 = vld [vmem:[#allocation4 + $0x560] sm:$0xff]
  %v8400 = vld [vmem:[#allocation4 + $0x578] sm:$0xff]
  %v8401 = vld [vmem:[#allocation4 + $0x590] sm:$0xff]
  %v8402 = vld [vmem:[#allocation4 + $0x5a8] sm:$0xff]
  %v8403 = vld [vmem:[#allocation4 + $0x5c0] sm:$0xff]
  %v8404 = vld [vmem:[#allocation4 + $0x5d8] sm:$0xff]
  %v8405 = vld [vmem:[#allocation4 + $0x5f0] sm:$0xff]
  %v8406 = vld [vmem:[%s305] sm:$0xff]
  %v8407 = vld [vmem:[%s305 + $0x8] sm:$0xff]
  %v8408 = vld [vmem:[%s305 + $0x10] sm:$0xff]
  %v8409 = vld [vmem:[%s305 + $0x18] sm:$0xff]
  %v8410 = vld [vmem:[%s305 + $0x20] sm:$0xff]
  %v8411 = vld [vmem:[%s305 + $0x28] sm:$0xff]
  %v8412 = vld [vmem:[%s305 + $0x30] sm:$0xff]
  %v8413 = vld [vmem:[%s305 + $0x38] sm:$0xff]
  %v8414 = vld [vmem:[%s305 + $0x40] sm:$0xff]
  %v8415 = vld [vmem:[%s305 + $0x48] sm:$0xff]
  %v8416 = vld [vmem:[%s305 + $0x50] sm:$0xff]
  %v8417 = vld [vmem:[%s305 + $0x58] sm:$0xff]
  %v8418 = vld [vmem:[%s305 + $0x60] sm:$0xff]
  %v8419 = vld [vmem:[%s305 + $0x68] sm:$0xff]
  %v8420 = vld [vmem:[%s305 + $0x70] sm:$0xff]
  %v8421 = vld [vmem:[%s305 + $0x78] sm:$0xff]
  %v8422 = vld [vmem:[%s305 + $0x80] sm:$0xff]
  %v8423 = vld [vmem:[%s305 + $0x88] sm:$0xff]
  %v8424 = vld [vmem:[%s305 + $0x90] sm:$0xff]
  %v8425 = vld [vmem:[%s305 + $0x98] sm:$0xff]
  %v8426 = vld [vmem:[%s305 + $0xa0] sm:$0xff]
  %v8427 = vld [vmem:[%s305 + $0xa8] sm:$0xff]
  %v8428 = vld [vmem:[%s305 + $0xb0] sm:$0xff]
  %v8429 = vld [vmem:[%s305 + $0xb8] sm:$0xff]
  %v8430 = vld [vmem:[%s305 + $0xc0] sm:$0xff]
  %v8431 = vld [vmem:[%s305 + $0xc8] sm:$0xff]
  %v8432 = vld [vmem:[%s305 + $0xd0] sm:$0xff]
  %v8433 = vld [vmem:[%s305 + $0xd8] sm:$0xff]
  %v8434 = vld [vmem:[%s305 + $0xe0] sm:$0xff]
  %v8435 = vld [vmem:[%s305 + $0xe8] sm:$0xff]
  %v8436 = vld [vmem:[%s305 + $0xf0] sm:$0xff]
  %v8437 = vld [vmem:[%s305 + $0xf8] sm:$0xff]
  %v8438 = vld [vmem:[%s305 + $0x100] sm:$0xff]
  %v8439 = vld [vmem:[%s305 + $0x108] sm:$0xff]
  %v8440 = vld [vmem:[%s305 + $0x110] sm:$0xff]
  %v8441 = vld [vmem:[%s305 + $0x118] sm:$0xff]
  %v8442 = vld [vmem:[%s305 + $0x120] sm:$0xff]
  %v8443 = vld [vmem:[%s305 + $0x128] sm:$0xff]
  %v8444 = vld [vmem:[%s305 + $0x130] sm:$0xff]
  %v8445 = vld [vmem:[%s305 + $0x138] sm:$0xff]
  %v8446 = vld [vmem:[%s305 + $0x140] sm:$0xff]
  %v8447 = vld [vmem:[%s305 + $0x148] sm:$0xff]
  %v8448 = vld [vmem:[%s305 + $0x150] sm:$0xff]
  %v8449 = vld [vmem:[%s305 + $0x158] sm:$0xff]
  %v8450 = vld [vmem:[%s305 + $0x160] sm:$0xff]
  %v8451 = vld [vmem:[%s305 + $0x168] sm:$0xff]
  %v8452 = vld [vmem:[%s305 + $0x170] sm:$0xff]
  %v8453 = vld [vmem:[%s305 + $0x178] sm:$0xff]
  %v8454 = vld [vmem:[%s305 + $0x180] sm:$0xff]
  %v8455 = vld [vmem:[%s305 + $0x188] sm:$0xff]
  %v8456 = vld [vmem:[%s305 + $0x190] sm:$0xff]
  %v8457 = vld [vmem:[%s305 + $0x198] sm:$0xff]
  %v8458 = vld [vmem:[%s305 + $0x1a0] sm:$0xff]
  %v8459 = vld [vmem:[%s305 + $0x1a8] sm:$0xff]
  %v8460 = vld [vmem:[%s305 + $0x1b0] sm:$0xff]
  %v8461 = vld [vmem:[%s305 + $0x1b8] sm:$0xff]
  %v8462 = vld [vmem:[%s305 + $0x1c0] sm:$0xff]
  %v8463 = vld [vmem:[%s305 + $0x1c8] sm:$0xff]
  %v8464 = vld [vmem:[%s305 + $0x1d0] sm:$0xff]
  %v8465 = vld [vmem:[%s305 + $0x1d8] sm:$0xff]
  %v8466 = vld [vmem:[%s305 + $0x1e0] sm:$0xff]
  %v8467 = vld [vmem:[%s305 + $0x1e8] sm:$0xff]
  %v8468 = vld [vmem:[%s305 + $0x1f0] sm:$0xff]
  %v8469 = vld [vmem:[%s305 + $0x1f8] sm:$0xff]
  %v8534 = vunpack.c.l.b16 %v8406
  %v8535 = vunpack.c.h.b16 %v8406
  %v8536 = vunpack.c.l.b16 %v8407
  %v8537 = vunpack.c.h.b16 %v8407
  %v8538 = vunpack.c.l.b16 %v8408
  %v8539 = vunpack.c.h.b16 %v8408
  %v8540 = vunpack.c.l.b16 %v8409
  %v8541 = vunpack.c.h.b16 %v8409
  %v8542 = vunpack.c.l.b16 %v8410
  %v8543 = vunpack.c.h.b16 %v8410
  %v8544 = vunpack.c.l.b16 %v8411
  %v8545 = vunpack.c.h.b16 %v8411
  %v8546 = vunpack.c.l.b16 %v8412
  %v8547 = vunpack.c.h.b16 %v8412
  %v8548 = vunpack.c.l.b16 %v8413
  %v8549 = vunpack.c.h.b16 %v8413
  %v8550 = vunpack.c.l.b16 %v8414
  %v8551 = vunpack.c.h.b16 %v8414
  %v8552 = vunpack.c.l.b16 %v8415
  %v8553 = vunpack.c.h.b16 %v8415
  %v8554 = vunpack.c.l.b16 %v8416
  %v8555 = vunpack.c.h.b16 %v8416
  %v8556 = vunpack.c.l.b16 %v8417
  %v8557 = vunpack.c.h.b16 %v8417
  %v8558 = vunpack.c.l.b16 %v8418
  %v8559 = vunpack.c.h.b16 %v8418
  %v8560 = vunpack.c.l.b16 %v8419
  %v8561 = vunpack.c.h.b16 %v8419
  %v8562 = vunpack.c.l.b16 %v8420
  %v8563 = vunpack.c.h.b16 %v8420
  %v8564 = vunpack.c.l.b16 %v8421
  %v8565 = vunpack.c.h.b16 %v8421
  %v8566 = vunpack.c.l.b16 %v8422
  %v8567 = vunpack.c.h.b16 %v8422
  %v8568 = vunpack.c.l.b16 %v8423
  %v8569 = vunpack.c.h.b16 %v8423
  %v8570 = vunpack.c.l.b16 %v8424
  %v8571 = vunpack.c.h.b16 %v8424
  %v8572 = vunpack.c.l.b16 %v8425
  %v8573 = vunpack.c.h.b16 %v8425
  %v8574 = vunpack.c.l.b16 %v8426
  %v8575 = vunpack.c.h.b16 %v8426
  %v8576 = vunpack.c.l.b16 %v8427
  %v8577 = vunpack.c.h.b16 %v8427
  %v8578 = vunpack.c.l.b16 %v8428
  %v8579 = vunpack.c.h.b16 %v8428
  %v8580 = vunpack.c.l.b16 %v8429
  %v8581 = vunpack.c.h.b16 %v8429
  %v8582 = vunpack.c.l.b16 %v8430
  %v8583 = vunpack.c.h.b16 %v8430
  %v8584 = vunpack.c.l.b16 %v8431
  %v8585 = vunpack.c.h.b16 %v8431
  %v8586 = vunpack.c.l.b16 %v8432
  %v8587 = vunpack.c.h.b16 %v8432
  %v8588 = vunpack.c.l.b16 %v8433
  %v8589 = vunpack.c.h.b16 %v8433
  %v8590 = vunpack.c.l.b16 %v8434
  %v8591 = vunpack.c.h.b16 %v8434
  %v8592 = vunpack.c.l.b16 %v8435
  %v8593 = vunpack.c.h.b16 %v8435
  %v8594 = vunpack.c.l.b16 %v8436
  %v8595 = vunpack.c.h.b16 %v8436
  %v8596 = vunpack.c.l.b16 %v8437
  %v8597 = vunpack.c.h.b16 %v8437
  %v8598 = vunpack.c.l.b16 %v8438
  %v8599 = vunpack.c.h.b16 %v8438
  %v8600 = vunpack.c.l.b16 %v8439
  %v8601 = vunpack.c.h.b16 %v8439
  %v8602 = vunpack.c.l.b16 %v8440
  %v8603 = vunpack.c.h.b16 %v8440
  %v8604 = vunpack.c.l.b16 %v8441
  %v8605 = vunpack.c.h.b16 %v8441
  %v8606 = vunpack.c.l.b16 %v8442
  %v8607 = vunpack.c.h.b16 %v8442
  %v8608 = vunpack.c.l.b16 %v8443
  %v8609 = vunpack.c.h.b16 %v8443
  %v8610 = vunpack.c.l.b16 %v8444
  %v8611 = vunpack.c.h.b16 %v8444
  %v8612 = vunpack.c.l.b16 %v8445
  %v8613 = vunpack.c.h.b16 %v8445
  %v8614 = vunpack.c.l.b16 %v8446
  %v8615 = vunpack.c.h.b16 %v8446
  %v8616 = vunpack.c.l.b16 %v8447
  %v8617 = vunpack.c.h.b16 %v8447
  %v8618 = vunpack.c.l.b16 %v8448
  %v8619 = vunpack.c.h.b16 %v8448
  %v8620 = vunpack.c.l.b16 %v8449
  %v8621 = vunpack.c.h.b16 %v8449
  %v8622 = vunpack.c.l.b16 %v8450
  %v8623 = vunpack.c.h.b16 %v8450
  %v8624 = vunpack.c.l.b16 %v8451
  %v8625 = vunpack.c.h.b16 %v8451
  %v8626 = vunpack.c.l.b16 %v8452
  %v8627 = vunpack.c.h.b16 %v8452
  %v8628 = vunpack.c.l.b16 %v8453
  %v8629 = vunpack.c.h.b16 %v8453
  %v8630 = vunpack.c.l.b16 %v8454
  %v8631 = vunpack.c.h.b16 %v8454
  %v8632 = vunpack.c.l.b16 %v8455
  %v8633 = vunpack.c.h.b16 %v8455
  %v8634 = vunpack.c.l.b16 %v8456
  %v8635 = vunpack.c.h.b16 %v8456
  %v8636 = vunpack.c.l.b16 %v8457
  %v8637 = vunpack.c.h.b16 %v8457
  %v8638 = vunpack.c.l.b16 %v8458
  %v8639 = vunpack.c.h.b16 %v8458
  %v8640 = vunpack.c.l.b16 %v8459
  %v8641 = vunpack.c.h.b16 %v8459
  %v8642 = vunpack.c.l.b16 %v8460
  %v8643 = vunpack.c.h.b16 %v8460
  %v8644 = vunpack.c.l.b16 %v8461
  %v8645 = vunpack.c.h.b16 %v8461
  %v8646 = vunpack.c.l.b16 %v8462
  %v8647 = vunpack.c.h.b16 %v8462
  %v8648 = vunpack.c.l.b16 %v8463
  %v8649 = vunpack.c.h.b16 %v8463
  %v8650 = vunpack.c.l.b16 %v8464
  %v8651 = vunpack.c.h.b16 %v8464
  %v8652 = vunpack.c.l.b16 %v8465
  %v8653 = vunpack.c.h.b16 %v8465
  %v8654 = vunpack.c.l.b16 %v8466
  %v8655 = vunpack.c.h.b16 %v8466
  %v8656 = vunpack.c.l.b16 %v8467
  %v8657 = vunpack.c.h.b16 %v8467
  %v8658 = vunpack.c.l.b16 %v8468
  %v8659 = vunpack.c.h.b16 %v8468
  %v8660 = vunpack.c.l.b16 %v8469
  %v8661 = vunpack.c.h.b16 %v8469
  %v8662 = vpack.c.b16 %v8538, %v8534
  %v8663 = vpack.c.b16 %v8539, %v8535
  %v8664 = vpack.c.b16 %v8540, %v8536
  %v8665 = vpack.c.b16 %v8541, %v8537
  %v8666 = vpack.c.b16 %v8546, %v8542
  %v8667 = vpack.c.b16 %v8547, %v8543
  %v8668 = vpack.c.b16 %v8548, %v8544
  %v8669 = vpack.c.b16 %v8549, %v8545
  %v8670 = vpack.c.b16 %v8554, %v8550
  %v8671 = vpack.c.b16 %v8555, %v8551
  %v8672 = vpack.c.b16 %v8556, %v8552
  %v8673 = vpack.c.b16 %v8557, %v8553
  %v8674 = vpack.c.b16 %v8562, %v8558
  %v8675 = vpack.c.b16 %v8563, %v8559
  %v8676 = vpack.c.b16 %v8564, %v8560
  %v8677 = vpack.c.b16 %v8565, %v8561
  %v8678 = vpack.c.b16 %v8570, %v8566
  %v8679 = vpack.c.b16 %v8571, %v8567
  %v8680 = vpack.c.b16 %v8572, %v8568
  %v8681 = vpack.c.b16 %v8573, %v8569
  %v8682 = vpack.c.b16 %v8578, %v8574
  %v8683 = vpack.c.b16 %v8579, %v8575
  %v8684 = vpack.c.b16 %v8580, %v8576
  %v8685 = vpack.c.b16 %v8581, %v8577
  %v8686 = vpack.c.b16 %v8586, %v8582
  %v8687 = vpack.c.b16 %v8587, %v8583
  %v8688 = vpack.c.b16 %v8588, %v8584
  %v8689 = vpack.c.b16 %v8589, %v8585
  %v8690 = vpack.c.b16 %v8594, %v8590
  %v8691 = vpack.c.b16 %v8595, %v8591
  %v8692 = vpack.c.b16 %v8596, %v8592
  %v8693 = vpack.c.b16 %v8597, %v8593
  %v8694 = vpack.c.b16 %v8602, %v8598
  %v8695 = vpack.c.b16 %v8603, %v8599
  %v8696 = vpack.c.b16 %v8604, %v8600
  %v8697 = vpack.c.b16 %v8605, %v8601
  %v8698 = vpack.c.b16 %v8610, %v8606
  %v8699 = vpack.c.b16 %v8611, %v8607
  %v8700 = vpack.c.b16 %v8612, %v8608
  %v8701 = vpack.c.b16 %v8613, %v8609
  %v8702 = vpack.c.b16 %v8618, %v8614
  %v8703 = vpack.c.b16 %v8619, %v8615
  %v8704 = vpack.c.b16 %v8620, %v8616
  %v8705 = vpack.c.b16 %v8621, %v8617
  %v8706 = vpack.c.b16 %v8626, %v8622
  %v8707 = vpack.c.b16 %v8627, %v8623
  %v8708 = vpack.c.b16 %v8628, %v8624
  %v8709 = vpack.c.b16 %v8629, %v8625
  %v8710 = vpack.c.b16 %v8634, %v8630
  %v8711 = vpack.c.b16 %v8635, %v8631
  %v8712 = vpack.c.b16 %v8636, %v8632
  %v8713 = vpack.c.b16 %v8637, %v8633
  %v8714 = vpack.c.b16 %v8642, %v8638
  %v8715 = vpack.c.b16 %v8643, %v8639
  %v8716 = vpack.c.b16 %v8644, %v8640
  %v8717 = vpack.c.b16 %v8645, %v8641
  %v8718 = vpack.c.b16 %v8650, %v8646
  %v8719 = vpack.c.b16 %v8651, %v8647
  %v8720 = vpack.c.b16 %v8652, %v8648
  %v8721 = vpack.c.b16 %v8653, %v8649
  %v8722 = vpack.c.b16 %v8658, %v8654
  %v8723 = vpack.c.b16 %v8659, %v8655
  %v8724 = vpack.c.b16 %v8660, %v8656
  %v8725 = vpack.c.b16 %v8661, %v8657
  %8790 = vmatprep.subr.bf16.mxu0 0
  %8791 = vmatpush1.bf16.msra.mxu0 %v6575
  %8792 = vmatprep.subr.bf16.mxu0 0
  %8793 = vmatpush1.bf16.msra.mxu0 %v6574
  %8794 = vmatprep.subr.bf16.mxu0 0
  %8795 = vmatpush1.bf16.msra.mxu0 %v6573
  %8796 = vmatprep.subr.bf16.mxu0 0
  %8797 = vmatpush1.bf16.msra.mxu0 %v6572
  %8798 = vmatprep.subr.bf16.mxu0 0
  %8799 = vmatpush1.bf16.msra.mxu0 %v6571
  %8800 = vmatprep.subr.bf16.mxu0 0
  %8801 = vmatpush1.bf16.msra.mxu0 %v6570
  %8802 = vmatprep.subr.bf16.mxu0 0
  %8803 = vmatpush1.bf16.msra.mxu0 %v6569
  %8804 = vmatprep.subr.bf16.mxu0 0
  %8805 = vmatpush1.bf16.msra.mxu0 %v6568
  %8806 = vmatprep.subr.bf16.mxu0 0
  %8807 = vmatpush2.bf16.msra.mxu0 %v6583
  %8808 = vmatprep.subr.bf16.mxu0 0
  %8809 = vmatpush2.bf16.msra.mxu0 %v6582
  %8810 = vmatprep.subr.bf16.mxu0 0
  %8811 = vmatpush2.bf16.msra.mxu0 %v6581
  %8812 = vmatprep.subr.bf16.mxu0 0
  %8813 = vmatpush2.bf16.msra.mxu0 %v6580
  %8814 = vmatprep.subr.bf16.mxu0 0
  %8815 = vmatpush2.bf16.msra.mxu0 %v6579
  %8816 = vmatprep.subr.bf16.mxu0 0
  %8817 = vmatpush2.bf16.msra.mxu0 %v6578
  %8818 = vmatprep.subr.bf16.mxu0 0
  %8819 = vmatpush2.bf16.msra.mxu0 %v6577
  %8820 = vmatprep.subr.bf16.mxu0 0
  %8821 = vmatpush2.bf16.msra.mxu0 %v6576
  %8822 = vmatprep.mubr.bf16.mxu0 %v8663
  %8823 = vmatmul.mubr.bf16.gmra.mxu0 %v8662
  %v8824 = vpop.f32.mrf.mxu0
  %v8825 = vadd.f32 0.0, %v8824
  %v8826 = vpop.f32.mrf.mxu0
  %v8827 = vpop.f32.mrf.mxu0
  %v8828 = vadd.f32 0.0, %v8827
  %v8829 = vpop.f32.mrf.mxu0
  %8830 = vmatprep.mubr.bf16.mxu0 %v8667
  %8831 = vmatmul.mubr.bf16.gmra.mxu0 %v8666
  %v8832 = vpop.f32.mrf.mxu0
  %v8833 = vadd.f32 0.0, %v8832
  %v8834 = vpop.f32.mrf.mxu0
  %v8835 = vpop.f32.mrf.mxu0
  %v8836 = vadd.f32 0.0, %v8835
  %v8837 = vpop.f32.mrf.mxu0
  %8838 = vmatprep.mubr.bf16.mxu0 %v8671
  %8839 = vmatmul.mubr.bf16.gmra.mxu0 %v8670
  %v8840 = vpop.f32.mrf.mxu0
  %v8841 = vadd.f32 0.0, %v8840
  %v8842 = vpop.f32.mrf.mxu0
  %v8843 = vpop.f32.mrf.mxu0
  %v8844 = vadd.f32 0.0, %v8843
  %v8845 = vpop.f32.mrf.mxu0
  %8846 = vmatprep.mubr.bf16.mxu0 %v8675
  %8847 = vmatmul.mubr.bf16.gmra.mxu0 %v8674
  %v8848 = vpop.f32.mrf.mxu0
  %v8849 = vadd.f32 0.0, %v8848
  %v8850 = vpop.f32.mrf.mxu0
  %v8851 = vpop.f32.mrf.mxu0
  %v8852 = vadd.f32 0.0, %v8851
  %v8853 = vpop.f32.mrf.mxu0
  %8854 = vmatprep.mubr.bf16.mxu0 %v8679
  %8855 = vmatmul.mubr.bf16.gmra.mxu0 %v8678
  %v8856 = vpop.f32.mrf.mxu0
  %v8857 = vadd.f32 0.0, %v8856
  %v8858 = vpop.f32.mrf.mxu0
  %v8859 = vpop.f32.mrf.mxu0
  %v8860 = vadd.f32 0.0, %v8859
  %v8861 = vpop.f32.mrf.mxu0
  %8862 = vmatprep.mubr.bf16.mxu0 %v8683
  %8863 = vmatmul.mubr.bf16.gmra.mxu0 %v8682
  %v8864 = vpop.f32.mrf.mxu0
  %v8865 = vadd.f32 0.0, %v8864
  %v8866 = vpop.f32.mrf.mxu0
  %v8867 = vpop.f32.mrf.mxu0
  %v8868 = vadd.f32 0.0, %v8867
  %v8869 = vpop.f32.mrf.mxu0
  %8870 = vmatprep.mubr.bf16.mxu0 %v8687
  %8871 = vmatmul.mubr.bf16.gmra.mxu0 %v8686
  %v8872 = vpop.f32.mrf.mxu0
  %v8873 = vadd.f32 0.0, %v8872
  %v8874 = vpop.f32.mrf.mxu0
  %v8875 = vpop.f32.mrf.mxu0
  %v8876 = vadd.f32 0.0, %v8875
  %v8877 = vpop.f32.mrf.mxu0
  %8878 = vmatprep.mubr.bf16.mxu0 %v8691
  %8879 = vmatmul.mubr.bf16.gmra.mxu0 %v8690
  %v8880 = vpop.f32.mrf.mxu0
  %v8881 = vadd.f32 0.0, %v8880
  %v8882 = vpop.f32.mrf.mxu0
  %v8883 = vpop.f32.mrf.mxu0
  %v8884 = vadd.f32 0.0, %v8883
  %v8885 = vpop.f32.mrf.mxu0
  %8886 = vmatprep.mubr.bf16.mxu0 %v8695
  %8887 = vmatmul.mubr.bf16.gmra.mxu0 %v8694
  %v8888 = vpop.f32.mrf.mxu0
  %v8889 = vadd.f32 0.0, %v8888
  %v8890 = vpop.f32.mrf.mxu0
  %v8891 = vpop.f32.mrf.mxu0
  %v8892 = vadd.f32 0.0, %v8891
  %v8893 = vpop.f32.mrf.mxu0
  %8894 = vmatprep.mubr.bf16.mxu0 %v8699
  %8895 = vmatmul.mubr.bf16.gmra.mxu0 %v8698
  %v8896 = vpop.f32.mrf.mxu0
  %v8897 = vadd.f32 0.0, %v8896
  %v8898 = vpop.f32.mrf.mxu0
  %v8899 = vpop.f32.mrf.mxu0
  %v8900 = vadd.f32 0.0, %v8899
  %v8901 = vpop.f32.mrf.mxu0
  %8902 = vmatprep.mubr.bf16.mxu0 %v8703
  %8903 = vmatmul.mubr.bf16.gmra.mxu0 %v8702
  %v8904 = vpop.f32.mrf.mxu0
  %v8905 = vadd.f32 0.0, %v8904
  %v8906 = vpop.f32.mrf.mxu0
  %v8907 = vpop.f32.mrf.mxu0
  %v8908 = vadd.f32 0.0, %v8907
  %v8909 = vpop.f32.mrf.mxu0
  %8910 = vmatprep.mubr.bf16.mxu0 %v8707
  %8911 = vmatmul.mubr.bf16.gmra.mxu0 %v8706
  %v8912 = vpop.f32.mrf.mxu0
  %v8913 = vadd.f32 0.0, %v8912
  %v8914 = vpop.f32.mrf.mxu0
  %v8915 = vpop.f32.mrf.mxu0
  %v8916 = vadd.f32 0.0, %v8915
  %v8917 = vpop.f32.mrf.mxu0
  %8918 = vmatprep.mubr.bf16.mxu0 %v8711
  %8919 = vmatmul.mubr.bf16.gmra.mxu0 %v8710
  %v8920 = vpop.f32.mrf.mxu0
  %v8921 = vadd.f32 0.0, %v8920
  %v8922 = vpop.f32.mrf.mxu0
  %v8923 = vpop.f32.mrf.mxu0
  %v8924 = vadd.f32 0.0, %v8923
  %v8925 = vpop.f32.mrf.mxu0
  %8926 = vmatprep.mubr.bf16.mxu0 %v8715
  %8927 = vmatmul.mubr.bf16.gmra.mxu0 %v8714
  %v8928 = vpop.f32.mrf.mxu0
  %v8929 = vadd.f32 0.0, %v8928
  %v8930 = vpop.f32.mrf.mxu0
  %v8931 = vpop.f32.mrf.mxu0
  %v8932 = vadd.f32 0.0, %v8931
  %v8933 = vpop.f32.mrf.mxu0
  %8934 = vmatprep.mubr.bf16.mxu0 %v8719
  %8935 = vmatmul.mubr.bf16.gmra.mxu0 %v8718
  %v8936 = vpop.f32.mrf.mxu0
  %v8937 = vadd.f32 0.0, %v8936
  %v8938 = vpop.f32.mrf.mxu0
  %v8939 = vpop.f32.mrf.mxu0
  %v8940 = vadd.f32 0.0, %v8939
  %v8941 = vpop.f32.mrf.mxu0
  %8942 = vmatprep.mubr.bf16.mxu0 %v8723
  %8943 = vmatmul.mubr.bf16.gmra.mxu0 %v8722
  %v8944 = vpop.f32.mrf.mxu0
  %v8945 = vadd.f32 0.0, %v8944
  %v8946 = vpop.f32.mrf.mxu0
  %v8947 = vpop.f32.mrf.mxu0
  %v8948 = vadd.f32 0.0, %v8947
  %v8949 = vpop.f32.mrf.mxu0
  %8950 = vdwg.mxu0
  %8951 = vmatprep.subr.bf16.mxu0 0
  %8952 = vmatpush1.bf16.msra.mxu0 %v6591
  %8953 = vmatprep.subr.bf16.mxu0 0
  %8954 = vmatpush1.bf16.msra.mxu0 %v6590
  %8955 = vmatprep.subr.bf16.mxu0 0
  %8956 = vmatpush1.bf16.msra.mxu0 %v6589
  %8957 = vmatprep.subr.bf16.mxu0 0
  %8958 = vmatpush1.bf16.msra.mxu0 %v6588
  %8959 = vmatprep.subr.bf16.mxu0 0
  %8960 = vmatpush1.bf16.msra.mxu0 %v6587
  %8961 = vmatprep.subr.bf16.mxu0 0
  %8962 = vmatpush1.bf16.msra.mxu0 %v6586
  %8963 = vmatprep.subr.bf16.mxu0 0
  %8964 = vmatpush1.bf16.msra.mxu0 %v6585
  %8965 = vmatprep.subr.bf16.mxu0 0
  %8966 = vmatpush1.bf16.msra.mxu0 %v6584
  %8967 = vmatprep.subr.bf16.mxu0 0
  %8968 = vmatpush2.bf16.msra.mxu0 %v6599
  %8969 = vmatprep.subr.bf16.mxu0 0
  %8970 = vmatpush2.bf16.msra.mxu0 %v6598
  %8971 = vmatprep.subr.bf16.mxu0 0
  %8972 = vmatpush2.bf16.msra.mxu0 %v6597
  %8973 = vmatprep.subr.bf16.mxu0 0
  %8974 = vmatpush2.bf16.msra.mxu0 %v6596
  %8975 = vmatprep.subr.bf16.mxu0 0
  %8976 = vmatpush2.bf16.msra.mxu0 %v6595
  %8977 = vmatprep.subr.bf16.mxu0 0
  %8978 = vmatpush2.bf16.msra.mxu0 %v6594
  %8979 = vmatprep.subr.bf16.mxu0 0
  %8980 = vmatpush2.bf16.msra.mxu0 %v6593
  %8981 = vmatprep.subr.bf16.mxu0 0
  %8982 = vmatpush2.bf16.msra.mxu0 %v6592
  %8983 = vmatprep.mubr.bf16.mxu0 %v8665
  %8984 = vmatmul.mubr.bf16.gmra.mxu0 %v8664
  %v8985 = vpop.f32.mrf.mxu0
  %v8986 = vadd.f32 %v8825, %v8985
  %v8987 = vpop.f32.mrf.mxu0
  %v8988 = vpop.f32.mrf.mxu0
  %v8989 = vadd.f32 %v8828, %v8988
  %v8990 = vpop.f32.mrf.mxu0
  %8991 = vmatprep.mubr.bf16.mxu0 %v8669
  %8992 = vmatmul.mubr.bf16.gmra.mxu0 %v8668
  %v8993 = vpop.f32.mrf.mxu0
  %v8994 = vadd.f32 %v8833, %v8993
  %v8995 = vpop.f32.mrf.mxu0
  %v8996 = vpop.f32.mrf.mxu0
  %v8997 = vadd.f32 %v8836, %v8996
  %v8998 = vpop.f32.mrf.mxu0
  %8999 = vmatprep.mubr.bf16.mxu0 %v8673
  %9000 = vmatmul.mubr.bf16.gmra.mxu0 %v8672
  %v9001 = vpop.f32.mrf.mxu0
  %v9002 = vadd.f32 %v8841, %v9001
  %v9003 = vpop.f32.mrf.mxu0
  %v9004 = vpop.f32.mrf.mxu0
  %v9005 = vadd.f32 %v8844, %v9004
  %v9006 = vpop.f32.mrf.mxu0
  %9007 = vmatprep.mubr.bf16.mxu0 %v8677
  %9008 = vmatmul.mubr.bf16.gmra.mxu0 %v8676
  %v9009 = vpop.f32.mrf.mxu0
  %v9010 = vadd.f32 %v8849, %v9009
  %v9011 = vpop.f32.mrf.mxu0
  %v9012 = vpop.f32.mrf.mxu0
  %v9013 = vadd.f32 %v8852, %v9012
  %v9014 = vpop.f32.mrf.mxu0
  %9015 = vmatprep.mubr.bf16.mxu0 %v8681
  %9016 = vmatmul.mubr.bf16.gmra.mxu0 %v8680
  %v9017 = vpop.f32.mrf.mxu0
  %v9018 = vadd.f32 %v8857, %v9017
  %v9019 = vpop.f32.mrf.mxu0
  %v9020 = vpop.f32.mrf.mxu0
  %v9021 = vadd.f32 %v8860, %v9020
  %v9022 = vpop.f32.mrf.mxu0
  %9023 = vmatprep.mubr.bf16.mxu0 %v8685
  %9024 = vmatmul.mubr.bf16.gmra.mxu0 %v8684
  %v9025 = vpop.f32.mrf.mxu0
  %v9026 = vadd.f32 %v8865, %v9025
  %v9027 = vpop.f32.mrf.mxu0
  %v9028 = vpop.f32.mrf.mxu0
  %v9029 = vadd.f32 %v8868, %v9028
  %v9030 = vpop.f32.mrf.mxu0
  %9031 = vmatprep.mubr.bf16.mxu0 %v8689
  %9032 = vmatmul.mubr.bf16.gmra.mxu0 %v8688
  %v9033 = vpop.f32.mrf.mxu0
  %v9034 = vadd.f32 %v8873, %v9033
  %v9035 = vpop.f32.mrf.mxu0
  %v9036 = vpop.f32.mrf.mxu0
  %v9037 = vadd.f32 %v8876, %v9036
  %v9038 = vpop.f32.mrf.mxu0
  %9039 = vmatprep.mubr.bf16.mxu0 %v8693
  %9040 = vmatmul.mubr.bf16.gmra.mxu0 %v8692
  %v9041 = vpop.f32.mrf.mxu0
  %v9042 = vadd.f32 %v8881, %v9041
  %v9043 = vpop.f32.mrf.mxu0
  %v9044 = vpop.f32.mrf.mxu0
  %v9045 = vadd.f32 %v8884, %v9044
  %v9046 = vpop.f32.mrf.mxu0
  %9047 = vmatprep.mubr.bf16.mxu0 %v8697
  %9048 = vmatmul.mubr.bf16.gmra.mxu0 %v8696
  %v9049 = vpop.f32.mrf.mxu0
  %v9050 = vadd.f32 %v8889, %v9049
  %v9051 = vpop.f32.mrf.mxu0
  %v9052 = vpop.f32.mrf.mxu0
  %v9053 = vadd.f32 %v8892, %v9052
  %v9054 = vpop.f32.mrf.mxu0
  %9055 = vmatprep.mubr.bf16.mxu0 %v8701
  %9056 = vmatmul.mubr.bf16.gmra.mxu0 %v8700
  %v9057 = vpop.f32.mrf.mxu0
  %v9058 = vadd.f32 %v8897, %v9057
  %v9059 = vpop.f32.mrf.mxu0
  %v9060 = vpop.f32.mrf.mxu0
  %v9061 = vadd.f32 %v8900, %v9060
  %v9062 = vpop.f32.mrf.mxu0
  %9063 = vmatprep.mubr.bf16.mxu0 %v8705
  %9064 = vmatmul.mubr.bf16.gmra.mxu0 %v8704
  %v9065 = vpop.f32.mrf.mxu0
  %v9066 = vadd.f32 %v8905, %v9065
  %v9067 = vpop.f32.mrf.mxu0
  %v9068 = vpop.f32.mrf.mxu0
  %v9069 = vadd.f32 %v8908, %v9068
  %v9070 = vpop.f32.mrf.mxu0
  %9071 = vmatprep.mubr.bf16.mxu0 %v8709
  %9072 = vmatmul.mubr.bf16.gmra.mxu0 %v8708
  %v9073 = vpop.f32.mrf.mxu0
  %v9074 = vadd.f32 %v8913, %v9073
  %v9075 = vpop.f32.mrf.mxu0
  %v9076 = vpop.f32.mrf.mxu0
  %v9077 = vadd.f32 %v8916, %v9076
  %v9078 = vpop.f32.mrf.mxu0
  %9079 = vmatprep.mubr.bf16.mxu0 %v8713
  %9080 = vmatmul.mubr.bf16.gmra.mxu0 %v8712
  %v9081 = vpop.f32.mrf.mxu0
  %v9082 = vadd.f32 %v8921, %v9081
  %v9083 = vpop.f32.mrf.mxu0
  %v9084 = vpop.f32.mrf.mxu0
  %v9085 = vadd.f32 %v8924, %v9084
  %v9086 = vpop.f32.mrf.mxu0
  %9087 = vmatprep.mubr.bf16.mxu0 %v8717
  %9088 = vmatmul.mubr.bf16.gmra.mxu0 %v8716
  %v9089 = vpop.f32.mrf.mxu0
  %v9090 = vadd.f32 %v8929, %v9089
  %v9091 = vpop.f32.mrf.mxu0
  %v9092 = vpop.f32.mrf.mxu0
  %v9093 = vadd.f32 %v8932, %v9092
  %v9094 = vpop.f32.mrf.mxu0
  %9095 = vmatprep.mubr.bf16.mxu0 %v8721
  %9096 = vmatmul.mubr.bf16.gmra.mxu0 %v8720
  %v9097 = vpop.f32.mrf.mxu0
  %v9098 = vadd.f32 %v8937, %v9097
  %v9099 = vpop.f32.mrf.mxu0
  %v9100 = vpop.f32.mrf.mxu0
  %v9101 = vadd.f32 %v8940, %v9100
  %v9102 = vpop.f32.mrf.mxu0
  %9103 = vmatprep.mubr.bf16.mxu0 %v8725
  %9104 = vmatmul.mubr.bf16.gmra.mxu0 %v8724
  %v9105 = vpop.f32.mrf.mxu0
  %v9106 = vadd.f32 %v8945, %v9105
  %v9107 = vpop.f32.mrf.mxu0
  %v9108 = vpop.f32.mrf.mxu0
  %v9109 = vadd.f32 %v8948, %v9108
  %v9110 = vpop.f32.mrf.mxu0
  %9111 = vdwg.mxu0
  %v9112 = vadd.f32 %v8374, %v8986
  %v9113 = vadd.f32 %v8375, %v8989
  %v9114 = vadd.f32 %v8376, %v8994
  %v9115 = vadd.f32 %v8377, %v8997
  %v9116 = vadd.f32 %v8378, %v9002
  %v9117 = vadd.f32 %v8379, %v9005
  %v9118 = vadd.f32 %v8380, %v9010
  %v9119 = vadd.f32 %v8381, %v9013
  %v9120 = vadd.f32 %v8382, %v9018
  %v9121 = vadd.f32 %v8383, %v9021
  %v9122 = vadd.f32 %v8384, %v9026
  %v9123 = vadd.f32 %v8385, %v9029
  %v9124 = vadd.f32 %v8386, %v9034
  %v9125 = vadd.f32 %v8387, %v9037
  %v9126 = vadd.f32 %v8388, %v9042
  %v9127 = vadd.f32 %v8389, %v9045
  %v9128 = vadd.f32 %v8390, %v9050
  %v9129 = vadd.f32 %v8391, %v9053
  %v9130 = vadd.f32 %v8392, %v9058
  %v9131 = vadd.f32 %v8393, %v9061
  %v9132 = vadd.f32 %v8394, %v9066
  %v9133 = vadd.f32 %v8395, %v9069
  %v9134 = vadd.f32 %v8396, %v9074
  %v9135 = vadd.f32 %v8397, %v9077
  %v9136 = vadd.f32 %v8398, %v9082
  %v9137 = vadd.f32 %v8399, %v9085
  %v9138 = vadd.f32 %v8400, %v9090
  %v9139 = vadd.f32 %v8401, %v9093
  %v9140 = vadd.f32 %v8402, %v9098
  %v9141 = vadd.f32 %v8403, %v9101
  %v9142 = vadd.f32 %v8404, %v9106
  %v9143 = vadd.f32 %v8405, %v9109
  %v9144 = vpack.c.bf16 %v9113, %v9112
  %v9145 = vpack.c.bf16 %v9115, %v9114
  %v9146 = vpack.c.bf16 %v9117, %v9116
  %v9147 = vpack.c.bf16 %v9119, %v9118
  %v9148 = vpack.c.bf16 %v9121, %v9120
  %v9149 = vpack.c.bf16 %v9123, %v9122
  %v9150 = vpack.c.bf16 %v9125, %v9124
  %v9151 = vpack.c.bf16 %v9127, %v9126
  %v9152 = vpack.c.bf16 %v9129, %v9128
  %v9153 = vpack.c.bf16 %v9131, %v9130
  %v9154 = vpack.c.bf16 %v9133, %v9132
  %v9155 = vpack.c.bf16 %v9135, %v9134
  %v9156 = vpack.c.bf16 %v9137, %v9136
  %v9157 = vpack.c.bf16 %v9139, %v9138
  %v9158 = vpack.c.bf16 %v9141, %v9140
  %v9159 = vpack.c.bf16 %v9143, %v9142
  %9160 = vmatprep.subr.bf16.mxu0 0
  %9161 = vmatpush1.bf16.msra.mxu0 %v7805
  %9162 = vmatprep.subr.bf16.mxu0 0
  %9163 = vmatpush1.bf16.msra.mxu0 %v7804
  %9164 = vmatprep.subr.bf16.mxu0 0
  %9165 = vmatpush1.bf16.msra.mxu0 %v7803
  %9166 = vmatprep.subr.bf16.mxu0 0
  %9167 = vmatpush1.bf16.msra.mxu0 %v7802
  %9168 = vmatprep.subr.bf16.mxu0 0
  %9169 = vmatpush1.bf16.msra.mxu0 %v7801
  %9170 = vmatprep.subr.bf16.mxu0 0
  %9171 = vmatpush1.bf16.msra.mxu0 %v7800
  %9172 = vmatprep.subr.bf16.mxu0 0
  %9173 = vmatpush1.bf16.msra.mxu0 %v7799
  %9174 = vmatprep.subr.bf16.mxu0 0
  %9175 = vmatpush1.bf16.msra.mxu0 %v7798
  %9176 = vmatprep.subr.bf16.mxu0 0
  %9177 = vmatpush2.bf16.msra.mxu0 0
  %9178 = vmatprep.subr.bf16.mxu0 0
  %9179 = vmatpush2.bf16.msra.mxu0 0
  %9180 = vmatprep.subr.bf16.mxu0 0
  %9181 = vmatpush2.bf16.msra.mxu0 0
  %9182 = vmatprep.subr.bf16.mxu0 0
  %9183 = vmatpush2.bf16.msra.mxu0 0
  %9184 = vmatprep.subr.bf16.mxu0 0
  %9185 = vmatpush2.bf16.msra.mxu0 0
  %9186 = vmatprep.subr.bf16.mxu0 0
  %9187 = vmatpush2.bf16.msra.mxu0 0
  %9188 = vmatprep.subr.bf16.mxu0 0
  %9189 = vmatpush2.bf16.msra.mxu0 0
  %9190 = vmatprep.subr.bf16.mxu0 0
  %9191 = vmatpush2.bf16.msra.mxu0 0
  %9192 = vmatprep.mubr.bf16.mxu0 0
  %9193 = vmatmul.mubr.bf16.gmra.mxu0 %v9144
  %v9194 = vpop.f32.mrf.mxu0
  %v9195 = vadd.f32 %v7765, %v9194
  %v9196 = vpop.f32.mrf.mxu0
  %v9197 = vpop.f32.mrf.mxu0
  %v9198 = vadd.f32 %v7765, %v9197
  %v9199 = vpop.f32.mrf.mxu0
  %9200 = vmatprep.mubr.bf16.mxu0 0
  %9201 = vmatmul.mubr.bf16.gmra.mxu0 %v9145
  %v9202 = vpop.f32.mrf.mxu0
  %v9203 = vadd.f32 %v7765, %v9202
  %v9204 = vpop.f32.mrf.mxu0
  %v9205 = vpop.f32.mrf.mxu0
  %v9206 = vadd.f32 %v7765, %v9205
  %v9207 = vpop.f32.mrf.mxu0
  %9208 = vmatprep.mubr.bf16.mxu0 0
  %9209 = vmatmul.mubr.bf16.gmra.mxu0 %v9146
  %v9210 = vpop.f32.mrf.mxu0
  %v9211 = vadd.f32 %v7765, %v9210
  %v9212 = vpop.f32.mrf.mxu0
  %v9213 = vpop.f32.mrf.mxu0
  %v9214 = vadd.f32 %v7765, %v9213
  %v9215 = vpop.f32.mrf.mxu0
  %9216 = vmatprep.mubr.bf16.mxu0 0
  %9217 = vmatmul.mubr.bf16.gmra.mxu0 %v9147
  %v9218 = vpop.f32.mrf.mxu0
  %v9219 = vadd.f32 %v7765, %v9218
  %v9220 = vpop.f32.mrf.mxu0
  %v9221 = vpop.f32.mrf.mxu0
  %v9222 = vadd.f32 %v7765, %v9221
  %v9223 = vpop.f32.mrf.mxu0
  %9224 = vmatprep.mubr.bf16.mxu0 0
  %9225 = vmatmul.mubr.bf16.gmra.mxu0 %v9148
  %v9226 = vpop.f32.mrf.mxu0
  %v9227 = vadd.f32 %v7765, %v9226
  %v9228 = vpop.f32.mrf.mxu0
  %v9229 = vpop.f32.mrf.mxu0
  %v9230 = vadd.f32 %v7765, %v9229
  %v9231 = vpop.f32.mrf.mxu0
  %9232 = vmatprep.mubr.bf16.mxu0 0
  %9233 = vmatmul.mubr.bf16.gmra.mxu0 %v9149
  %v9234 = vpop.f32.mrf.mxu0
  %v9235 = vadd.f32 %v7765, %v9234
  %v9236 = vpop.f32.mrf.mxu0
  %v9237 = vpop.f32.mrf.mxu0
  %v9238 = vadd.f32 %v7765, %v9237
  %v9239 = vpop.f32.mrf.mxu0
  %9240 = vmatprep.mubr.bf16.mxu0 0
  %9241 = vmatmul.mubr.bf16.gmra.mxu0 %v9150
  %v9242 = vpop.f32.mrf.mxu0
  %v9243 = vadd.f32 %v7765, %v9242
  %v9244 = vpop.f32.mrf.mxu0
  %v9245 = vpop.f32.mrf.mxu0
  %v9246 = vadd.f32 %v7765, %v9245
  %v9247 = vpop.f32.mrf.mxu0
  %9248 = vmatprep.mubr.bf16.mxu0 0
  %9249 = vmatmul.mubr.bf16.gmra.mxu0 %v9151
  %v9250 = vpop.f32.mrf.mxu0
  %v9251 = vadd.f32 %v7765, %v9250
  %v9252 = vpop.f32.mrf.mxu0
  %v9253 = vpop.f32.mrf.mxu0
  %v9254 = vadd.f32 %v7765, %v9253
  %v9255 = vpop.f32.mrf.mxu0
  %9256 = vmatprep.mubr.bf16.mxu0 0
  %9257 = vmatmul.mubr.bf16.gmra.mxu0 %v9152
  %v9258 = vpop.f32.mrf.mxu0
  %v9259 = vadd.f32 %v7765, %v9258
  %v9260 = vpop.f32.mrf.mxu0
  %v9261 = vpop.f32.mrf.mxu0
  %v9262 = vadd.f32 %v7765, %v9261
  %v9263 = vpop.f32.mrf.mxu0
  %9264 = vmatprep.mubr.bf16.mxu0 0
  %9265 = vmatmul.mubr.bf16.gmra.mxu0 %v9153
  %v9266 = vpop.f32.mrf.mxu0
  %v9267 = vadd.f32 %v7765, %v9266
  %v9268 = vpop.f32.mrf.mxu0
  %v9269 = vpop.f32.mrf.mxu0
  %v9270 = vadd.f32 %v7765, %v9269
  %v9271 = vpop.f32.mrf.mxu0
  %9272 = vmatprep.mubr.bf16.mxu0 0
  %9273 = vmatmul.mubr.bf16.gmra.mxu0 %v9154
  %v9274 = vpop.f32.mrf.mxu0
  %v9275 = vadd.f32 %v7765, %v9274
  %v9276 = vpop.f32.mrf.mxu0
  %v9277 = vpop.f32.mrf.mxu0
  %v9278 = vadd.f32 %v7765, %v9277
  %v9279 = vpop.f32.mrf.mxu0
  %9280 = vmatprep.mubr.bf16.mxu0 0
  %9281 = vmatmul.mubr.bf16.gmra.mxu0 %v9155
  %v9282 = vpop.f32.mrf.mxu0
  %v9283 = vadd.f32 %v7765, %v9282
  %v9284 = vpop.f32.mrf.mxu0
  %v9285 = vpop.f32.mrf.mxu0
  %v9286 = vadd.f32 %v7765, %v9285
  %v9287 = vpop.f32.mrf.mxu0
  %9288 = vmatprep.mubr.bf16.mxu0 0
  %9289 = vmatmul.mubr.bf16.gmra.mxu0 %v9156
  %v9290 = vpop.f32.mrf.mxu0
  %v9291 = vadd.f32 %v7765, %v9290
  %v9292 = vpop.f32.mrf.mxu0
  %v9293 = vpop.f32.mrf.mxu0
  %v9294 = vadd.f32 %v7765, %v9293
  %v9295 = vpop.f32.mrf.mxu0
  %9296 = vmatprep.mubr.bf16.mxu0 0
  %9297 = vmatmul.mubr.bf16.gmra.mxu0 %v9157
  %v9298 = vpop.f32.mrf.mxu0
  %v9299 = vadd.f32 %v7765, %v9298
  %v9300 = vpop.f32.mrf.mxu0
  %v9301 = vpop.f32.mrf.mxu0
  %v9302 = vadd.f32 %v7765, %v9301
  %v9303 = vpop.f32.mrf.mxu0
  %9304 = vmatprep.mubr.bf16.mxu0 0
  %9305 = vmatmul.mubr.bf16.gmra.mxu0 %v9158
  %v9306 = vpop.f32.mrf.mxu0
  %v9307 = vadd.f32 %v7765, %v9306
  %v9308 = vpop.f32.mrf.mxu0
  %v9309 = vpop.f32.mrf.mxu0
  %v9310 = vadd.f32 %v7765, %v9309
  %v9311 = vpop.f32.mrf.mxu0
  %9312 = vmatprep.mubr.bf16.mxu0 0
  %9313 = vmatmul.mubr.bf16.gmra.mxu0 %v9159
  %v9314 = vpop.f32.mrf.mxu0
  %v9315 = vadd.f32 %v7765, %v9314
  %v9316 = vpop.f32.mrf.mxu0
  %v9317 = vpop.f32.mrf.mxu0
  %v9318 = vadd.f32 %v7765, %v9317
  %v9319 = vpop.f32.mrf.mxu0
  %9320 = vdwg.mxu0
  %v9321 = vmax.f32 %v9195, 0.0
  %v9322 = vmax.f32 %v9198, 0.0
  %v9323 = vmax.f32 %v9203, 0.0
  %v9324 = vmax.f32 %v9206, 0.0
  %v9325 = vmax.f32 %v9211, 0.0
  %v9326 = vmax.f32 %v9214, 0.0
  %v9327 = vmax.f32 %v9219, 0.0
  %v9328 = vmax.f32 %v9222, 0.0
  %v9329 = vmax.f32 %v9227, 0.0
  %v9330 = vmax.f32 %v9230, 0.0
  %v9331 = vmax.f32 %v9235, 0.0
  %v9332 = vmax.f32 %v9238, 0.0
  %v9333 = vmax.f32 %v9243, 0.0
  %v9334 = vmax.f32 %v9246, 0.0
  %v9335 = vmax.f32 %v9251, 0.0
  %v9336 = vmax.f32 %v9254, 0.0
  %v9337 = vmax.f32 %v9259, 0.0
  %v9338 = vmax.f32 %v9262, 0.0
  %v9339 = vmax.f32 %v9267, 0.0
  %v9340 = vmax.f32 %v9270, 0.0
  %v9341 = vmax.f32 %v9275, 0.0
  %v9342 = vmax.f32 %v9278, 0.0
  %v9343 = vmax.f32 %v9283, 0.0
  %v9344 = vmax.f32 %v9286, 0.0
  %v9345 = vmax.f32 %v9291, 0.0
  %v9346 = vmax.f32 %v9294, 0.0
  %v9347 = vmax.f32 %v9299, 0.0
  %v9348 = vmax.f32 %v9302, 0.0
  %v9349 = vmax.f32 %v9307, 0.0
  %v9350 = vmax.f32 %v9310, 0.0
  %v9351 = vmax.f32 %v9315, 0.0
  %v9352 = vmax.f32 %v9318, 0.0
  %v9353 = vpack.c.bf16 %v9322, %v9321
  %v9354 = vpack.c.bf16 %v9324, %v9323
  %v9355 = vpack.c.bf16 %v9326, %v9325
  %v9356 = vpack.c.bf16 %v9328, %v9327
  %v9357 = vpack.c.bf16 %v9330, %v9329
  %v9358 = vpack.c.bf16 %v9332, %v9331
  %v9359 = vpack.c.bf16 %v9334, %v9333
  %v9360 = vpack.c.bf16 %v9336, %v9335
  %v9361 = vpack.c.bf16 %v9338, %v9337
  %v9362 = vpack.c.bf16 %v9340, %v9339
  %v9363 = vpack.c.bf16 %v9342, %v9341
  %v9364 = vpack.c.bf16 %v9344, %v9343
  %v9365 = vpack.c.bf16 %v9346, %v9345
  %v9366 = vpack.c.bf16 %v9348, %v9347
  %v9367 = vpack.c.bf16 %v9350, %v9349
  %v9368 = vpack.c.bf16 %v9352, %v9351
  %9369 = vmatprep.subr.bf16.mxu0 0
  %9370 = vmatpush1.bf16.msra.mxu0 %v8066
  %9371 = vmatprep.subr.bf16.mxu0 0
  %9372 = vmatpush1.bf16.msra.mxu0 %v8065
  %9373 = vmatprep.subr.bf16.mxu0 0
  %9374 = vmatpush1.bf16.msra.mxu0 %v8064
  %9375 = vmatprep.subr.bf16.mxu0 0
  %9376 = vmatpush1.bf16.msra.mxu0 %v8063
  %9377 = vmatprep.subr.bf16.mxu0 0
  %9378 = vmatpush1.bf16.msra.mxu0 %v8062
  %9379 = vmatprep.subr.bf16.mxu0 0
  %9380 = vmatpush1.bf16.msra.mxu0 %v8061
  %9381 = vmatprep.subr.bf16.mxu0 0
  %9382 = vmatpush1.bf16.msra.mxu0 %v8060
  %9383 = vmatprep.subr.bf16.mxu0 0
  %9384 = vmatpush1.bf16.msra.mxu0 %v8059
  %9385 = vmatprep.subr.bf16.mxu0 0
  %9386 = vmatpush2.bf16.msra.mxu0 0
  %9387 = vmatprep.subr.bf16.mxu0 0
  %9388 = vmatpush2.bf16.msra.mxu0 0
  %9389 = vmatprep.subr.bf16.mxu0 0
  %9390 = vmatpush2.bf16.msra.mxu0 0
  %9391 = vmatprep.subr.bf16.mxu0 0
  %9392 = vmatpush2.bf16.msra.mxu0 0
  %9393 = vmatprep.subr.bf16.mxu0 0
  %9394 = vmatpush2.bf16.msra.mxu0 0
  %9395 = vmatprep.subr.bf16.mxu0 0
  %9396 = vmatpush2.bf16.msra.mxu0 0
  %9397 = vmatprep.subr.bf16.mxu0 0
  %9398 = vmatpush2.bf16.msra.mxu0 0
  %9399 = vmatprep.subr.bf16.mxu0 0
  %9400 = vmatpush2.bf16.msra.mxu0 0
  %9401 = vmatprep.mubr.bf16.mxu0 0
  %9402 = vmatmul.mubr.bf16.gmra.mxu0 %v9353
  %v9403 = vpop.f32.mrf.mxu0
  %v9404 = vadd.f32 %v8026, %v9403
  %v9405 = vpop.f32.mrf.mxu0
  %v9406 = vpop.f32.mrf.mxu0
  %v9407 = vadd.f32 %v8026, %v9406
  %v9408 = vpop.f32.mrf.mxu0
  %9409 = vmatprep.mubr.bf16.mxu0 0
  %9410 = vmatmul.mubr.bf16.gmra.mxu0 %v9354
  %v9411 = vpop.f32.mrf.mxu0
  %v9412 = vadd.f32 %v8026, %v9411
  %v9413 = vpop.f32.mrf.mxu0
  %v9414 = vpop.f32.mrf.mxu0
  %v9415 = vadd.f32 %v8026, %v9414
  %v9416 = vpop.f32.mrf.mxu0
  %9417 = vmatprep.mubr.bf16.mxu0 0
  %9418 = vmatmul.mubr.bf16.gmra.mxu0 %v9355
  %v9419 = vpop.f32.mrf.mxu0
  %v9420 = vadd.f32 %v8026, %v9419
  %v9421 = vpop.f32.mrf.mxu0
  %v9422 = vpop.f32.mrf.mxu0
  %v9423 = vadd.f32 %v8026, %v9422
  %v9424 = vpop.f32.mrf.mxu0
  %9425 = vmatprep.mubr.bf16.mxu0 0
  %9426 = vmatmul.mubr.bf16.gmra.mxu0 %v9356
  %v9427 = vpop.f32.mrf.mxu0
  %v9428 = vadd.f32 %v8026, %v9427
  %v9429 = vpop.f32.mrf.mxu0
  %v9430 = vpop.f32.mrf.mxu0
  %v9431 = vadd.f32 %v8026, %v9430
  %v9432 = vpop.f32.mrf.mxu0
  %9433 = vmatprep.mubr.bf16.mxu0 0
  %9434 = vmatmul.mubr.bf16.gmra.mxu0 %v9357
  %v9435 = vpop.f32.mrf.mxu0
  %v9436 = vadd.f32 %v8026, %v9435
  %v9437 = vpop.f32.mrf.mxu0
  %v9438 = vpop.f32.mrf.mxu0
  %v9439 = vadd.f32 %v8026, %v9438
  %v9440 = vpop.f32.mrf.mxu0
  %9441 = vmatprep.mubr.bf16.mxu0 0
  %9442 = vmatmul.mubr.bf16.gmra.mxu0 %v9358
  %v9443 = vpop.f32.mrf.mxu0
  %v9444 = vadd.f32 %v8026, %v9443
  %v9445 = vpop.f32.mrf.mxu0
  %v9446 = vpop.f32.mrf.mxu0
  %v9447 = vadd.f32 %v8026, %v9446
  %v9448 = vpop.f32.mrf.mxu0
  %9449 = vmatprep.mubr.bf16.mxu0 0
  %9450 = vmatmul.mubr.bf16.gmra.mxu0 %v9359
  %v9451 = vpop.f32.mrf.mxu0
  %v9452 = vadd.f32 %v8026, %v9451
  %v9453 = vpop.f32.mrf.mxu0
  %v9454 = vpop.f32.mrf.mxu0
  %v9455 = vadd.f32 %v8026, %v9454
  %v9456 = vpop.f32.mrf.mxu0
  %9457 = vmatprep.mubr.bf16.mxu0 0
  %9458 = vmatmul.mubr.bf16.gmra.mxu0 %v9360
  %v9459 = vpop.f32.mrf.mxu0
  %v9460 = vadd.f32 %v8026, %v9459
  %v9461 = vpop.f32.mrf.mxu0
  %v9462 = vpop.f32.mrf.mxu0
  %v9463 = vadd.f32 %v8026, %v9462
  %v9464 = vpop.f32.mrf.mxu0
  %9465 = vmatprep.mubr.bf16.mxu0 0
  %9466 = vmatmul.mubr.bf16.gmra.mxu0 %v9361
  %v9467 = vpop.f32.mrf.mxu0
  %v9468 = vadd.f32 %v8026, %v9467
  %v9469 = vpop.f32.mrf.mxu0
  %v9470 = vpop.f32.mrf.mxu0
  %v9471 = vadd.f32 %v8026, %v9470
  %v9472 = vpop.f32.mrf.mxu0
  %9473 = vmatprep.mubr.bf16.mxu0 0
  %9474 = vmatmul.mubr.bf16.gmra.mxu0 %v9362
  %v9475 = vpop.f32.mrf.mxu0
  %v9476 = vadd.f32 %v8026, %v9475
  %v9477 = vpop.f32.mrf.mxu0
  %v9478 = vpop.f32.mrf.mxu0
  %v9479 = vadd.f32 %v8026, %v9478
  %v9480 = vpop.f32.mrf.mxu0
  %9481 = vmatprep.mubr.bf16.mxu0 0
  %9482 = vmatmul.mubr.bf16.gmra.mxu0 %v9363
  %v9483 = vpop.f32.mrf.mxu0
  %v9484 = vadd.f32 %v8026, %v9483
  %v9485 = vpop.f32.mrf.mxu0
  %v9486 = vpop.f32.mrf.mxu0
  %v9487 = vadd.f32 %v8026, %v9486
  %v9488 = vpop.f32.mrf.mxu0
  %9489 = vmatprep.mubr.bf16.mxu0 0
  %9490 = vmatmul.mubr.bf16.gmra.mxu0 %v9364
  %v9491 = vpop.f32.mrf.mxu0
  %v9492 = vadd.f32 %v8026, %v9491
  %v9493 = vpop.f32.mrf.mxu0
  %v9494 = vpop.f32.mrf.mxu0
  %v9495 = vadd.f32 %v8026, %v9494
  %v9496 = vpop.f32.mrf.mxu0
  %9497 = vmatprep.mubr.bf16.mxu0 0
  %9498 = vmatmul.mubr.bf16.gmra.mxu0 %v9365
  %v9499 = vpop.f32.mrf.mxu0
  %v9500 = vadd.f32 %v8026, %v9499
  %v9501 = vpop.f32.mrf.mxu0
  %v9502 = vpop.f32.mrf.mxu0
  %v9503 = vadd.f32 %v8026, %v9502
  %v9504 = vpop.f32.mrf.mxu0
  %9505 = vmatprep.mubr.bf16.mxu0 0
  %9506 = vmatmul.mubr.bf16.gmra.mxu0 %v9366
  %v9507 = vpop.f32.mrf.mxu0
  %v9508 = vadd.f32 %v8026, %v9507
  %v9509 = vpop.f32.mrf.mxu0
  %v9510 = vpop.f32.mrf.mxu0
  %v9511 = vadd.f32 %v8026, %v9510
  %v9512 = vpop.f32.mrf.mxu0
  %9513 = vmatprep.mubr.bf16.mxu0 0
  %9514 = vmatmul.mubr.bf16.gmra.mxu0 %v9367
  %v9515 = vpop.f32.mrf.mxu0
  %v9516 = vadd.f32 %v8026, %v9515
  %v9517 = vpop.f32.mrf.mxu0
  %v9518 = vpop.f32.mrf.mxu0
  %v9519 = vadd.f32 %v8026, %v9518
  %v9520 = vpop.f32.mrf.mxu0
  %9521 = vmatprep.mubr.bf16.mxu0 0
  %9522 = vmatmul.mubr.bf16.gmra.mxu0 %v9368
  %v9523 = vpop.f32.mrf.mxu0
  %v9524 = vadd.f32 %v8026, %v9523
  %v9525 = vpop.f32.mrf.mxu0
  %v9526 = vpop.f32.mrf.mxu0
  %v9527 = vadd.f32 %v8026, %v9526
  %v9528 = vpop.f32.mrf.mxu0
  %9529 = vdwg.mxu0
  %v9530 = vmax.f32 %v9404, 0.0
  %v9531 = vmax.f32 %v9407, 0.0
  %v9532 = vmax.f32 %v9412, 0.0
  %v9533 = vmax.f32 %v9415, 0.0
  %v9534 = vmax.f32 %v9420, 0.0
  %v9535 = vmax.f32 %v9423, 0.0
  %v9536 = vmax.f32 %v9428, 0.0
  %v9537 = vmax.f32 %v9431, 0.0
  %v9538 = vmax.f32 %v9436, 0.0
  %v9539 = vmax.f32 %v9439, 0.0
  %v9540 = vmax.f32 %v9444, 0.0
  %v9541 = vmax.f32 %v9447, 0.0
  %v9542 = vmax.f32 %v9452, 0.0
  %v9543 = vmax.f32 %v9455, 0.0
  %v9544 = vmax.f32 %v9460, 0.0
  %v9545 = vmax.f32 %v9463, 0.0
  %v9546 = vmax.f32 %v9468, 0.0
  %v9547 = vmax.f32 %v9471, 0.0
  %v9548 = vmax.f32 %v9476, 0.0
  %v9549 = vmax.f32 %v9479, 0.0
  %v9550 = vmax.f32 %v9484, 0.0
  %v9551 = vmax.f32 %v9487, 0.0
  %v9552 = vmax.f32 %v9492, 0.0
  %v9553 = vmax.f32 %v9495, 0.0
  %v9554 = vmax.f32 %v9500, 0.0
  %v9555 = vmax.f32 %v9503, 0.0
  %v9556 = vmax.f32 %v9508, 0.0
  %v9557 = vmax.f32 %v9511, 0.0
  %v9558 = vmax.f32 %v9516, 0.0
  %v9559 = vmax.f32 %v9519, 0.0
  %v9560 = vmax.f32 %v9524, 0.0
  %v9561 = vmax.f32 %v9527, 0.0
  %v9562 = vmul.f32 %v9530, %v8271
  %v9563 = vmul.f32 %v9531, %v8271
  %v9564 = vmul.f32 %v9532, %v8271
  %v9565 = vmul.f32 %v9533, %v8271
  %v9566 = vmul.f32 %v9534, %v8271
  %v9567 = vmul.f32 %v9535, %v8271
  %v9568 = vmul.f32 %v9536, %v8271
  %v9569 = vmul.f32 %v9537, %v8271
  %v9570 = vmul.f32 %v9538, %v8271
  %v9571 = vmul.f32 %v9539, %v8271
  %v9572 = vmul.f32 %v9540, %v8271
  %v9573 = vmul.f32 %v9541, %v8271
  %v9574 = vmul.f32 %v9542, %v8271
  %v9575 = vmul.f32 %v9543, %v8271
  %v9576 = vmul.f32 %v9544, %v8271
  %v9577 = vmul.f32 %v9545, %v8271
  %v9578 = vmul.f32 %v9546, %v8271
  %v9579 = vmul.f32 %v9547, %v8271
  %v9580 = vmul.f32 %v9548, %v8271
  %v9581 = vmul.f32 %v9549, %v8271
  %v9582 = vmul.f32 %v9550, %v8271
  %v9583 = vmul.f32 %v9551, %v8271
  %v9584 = vmul.f32 %v9552, %v8271
  %v9585 = vmul.f32 %v9553, %v8271
  %v9586 = vmul.f32 %v9554, %v8271
  %v9587 = vmul.f32 %v9555, %v8271
  %v9588 = vmul.f32 %v9556, %v8271
  %v9589 = vmul.f32 %v9557, %v8271
  %v9590 = vmul.f32 %v9558, %v8271
  %v9591 = vmul.f32 %v9559, %v8271
  %v9592 = vmul.f32 %v9560, %v8271
  %v9593 = vmul.f32 %v9561, %v8271
  %v9594 = vadd.f32 %v9562, %v8307
  %v9595 = vadd.f32 %v9563, %v8307
  %v9596 = vadd.f32 %v9564, %v8307
  %v9597 = vadd.f32 %v9565, %v8307
  %v9598 = vadd.f32 %v9566, %v8307
  %v9599 = vadd.f32 %v9567, %v8307
  %v9600 = vadd.f32 %v9568, %v8307
  %v9601 = vadd.f32 %v9569, %v8307
  %v9602 = vadd.f32 %v9570, %v8307
  %v9603 = vadd.f32 %v9571, %v8307
  %v9604 = vadd.f32 %v9572, %v8307
  %v9605 = vadd.f32 %v9573, %v8307
  %v9606 = vadd.f32 %v9574, %v8307
  %v9607 = vadd.f32 %v9575, %v8307
  %v9608 = vadd.f32 %v9576, %v8307
  %v9609 = vadd.f32 %v9577, %v8307
  %v9610 = vadd.f32 %v9578, %v8307
  %v9611 = vadd.f32 %v9579, %v8307
  %v9612 = vadd.f32 %v9580, %v8307
  %v9613 = vadd.f32 %v9581, %v8307
  %v9614 = vadd.f32 %v9582, %v8307
  %v9615 = vadd.f32 %v9583, %v8307
  %v9616 = vadd.f32 %v9584, %v8307
  %v9617 = vadd.f32 %v9585, %v8307
  %v9618 = vadd.f32 %v9586, %v8307
  %v9619 = vadd.f32 %v9587, %v8307
  %v9620 = vadd.f32 %v9588, %v8307
  %v9621 = vadd.f32 %v9589, %v8307
  %v9622 = vadd.f32 %v9590, %v8307
  %v9623 = vadd.f32 %v9591, %v8307
  %v9624 = vadd.f32 %v9592, %v8307
  %v9625 = vadd.f32 %v9593, %v8307
  %9626 = vst [vmem:[#allocation4 + $0x310] sm:$0xff] %v9594
  %9627 = vst [vmem:[#allocation4 + $0x328] sm:$0xff] %v9595
  %9628 = vst [vmem:[#allocation4 + $0x340] sm:$0xff] %v9596
  %9629 = vst [vmem:[#allocation4 + $0x358] sm:$0xff] %v9597
  %9630 = vst [vmem:[#allocation4 + $0x370] sm:$0xff] %v9598
  %9631 = vst [vmem:[#allocation4 + $0x388] sm:$0xff] %v9599
  %9632 = vst [vmem:[#allocation4 + $0x3a0] sm:$0xff] %v9600
  %9633 = vst [vmem:[#allocation4 + $0x3b8] sm:$0xff] %v9601
  %9634 = vst [vmem:[#allocation4 + $0x3d0] sm:$0xff] %v9602
  %9635 = vst [vmem:[#allocation4 + $0x3e8] sm:$0xff] %v9603
  %9636 = vst [vmem:[#allocation4 + $0x400] sm:$0xff] %v9604
  %9637 = vst [vmem:[#allocation4 + $0x418] sm:$0xff] %v9605
  %9638 = vst [vmem:[#allocation4 + $0x430] sm:$0xff] %v9606
  %9639 = vst [vmem:[#allocation4 + $0x448] sm:$0xff] %v9607
  %9640 = vst [vmem:[#allocation4 + $0x460] sm:$0xff] %v9608
  %9641 = vst [vmem:[#allocation4 + $0x478] sm:$0xff] %v9609
  %9642 = vst [vmem:[#allocation4 + $0x490] sm:$0xff] %v9610
  %9643 = vst [vmem:[#allocation4 + $0x4a8] sm:$0xff] %v9611
  %9644 = vst [vmem:[#allocation4 + $0x4c0] sm:$0xff] %v9612
  %9645 = vst [vmem:[#allocation4 + $0x4d8] sm:$0xff] %v9613
  %9646 = vst [vmem:[#allocation4 + $0x4f0] sm:$0xff] %v9614
  %9647 = vst [vmem:[#allocation4 + $0x508] sm:$0xff] %v9615
  %9648 = vst [vmem:[#allocation4 + $0x520] sm:$0xff] %v9616
  %9649 = vst [vmem:[#allocation4 + $0x538] sm:$0xff] %v9617
  %9650 = vst [vmem:[#allocation4 + $0x550] sm:$0xff] %v9618
  %9651 = vst [vmem:[#allocation4 + $0x568] sm:$0xff] %v9619
  %9652 = vst [vmem:[#allocation4 + $0x580] sm:$0xff] %v9620
  %9653 = vst [vmem:[#allocation4 + $0x598] sm:$0xff] %v9621
  %9654 = vst [vmem:[#allocation4 + $0x5b0] sm:$0xff] %v9622
  %9655 = vst [vmem:[#allocation4 + $0x5c8] sm:$0xff] %v9623
  %9656 = vst [vmem:[#allocation4 + $0x5e0] sm:$0xff] %v9624
  %9657 = vst [vmem:[#allocation4 + $0x5f8] sm:$0xff] %v9625
  %v9658 = vld [vmem:[%s2] sm:$0xff]
  %v9659 = vld [vmem:[%s2 + $0x8] sm:$0xff]
  %v9660 = vld [vmem:[%s2 + $0x10] sm:$0xff]
  %v9661 = vld [vmem:[%s2 + $0x18] sm:$0xff]
  %v9662 = vld [vmem:[%s2 + $0x20] sm:$0xff]
  %v9663 = vld [vmem:[%s2 + $0x28] sm:$0xff]
  %v9664 = vld [vmem:[%s2 + $0x30] sm:$0xff]
  %v9665 = vld [vmem:[%s2 + $0x38] sm:$0xff]
  %v9666 = vld [vmem:[%s2 + $0x40] sm:$0xff]
  %v9667 = vld [vmem:[%s2 + $0x48] sm:$0xff]
  %v9668 = vld [vmem:[%s2 + $0x50] sm:$0xff]
  %v9669 = vld [vmem:[%s2 + $0x58] sm:$0xff]
  %v9670 = vld [vmem:[%s2 + $0x60] sm:$0xff]
  %v9671 = vld [vmem:[%s2 + $0x68] sm:$0xff]
  %v9672 = vld [vmem:[%s2 + $0x70] sm:$0xff]
  %v9673 = vld [vmem:[%s2 + $0x78] sm:$0xff]
  %v9674 = vld [vmem:[%s2 + $0x80] sm:$0xff]
  %v9675 = vld [vmem:[%s2 + $0x88] sm:$0xff]
  %v9676 = vld [vmem:[%s2 + $0x90] sm:$0xff]
  %v9677 = vld [vmem:[%s2 + $0x98] sm:$0xff]
  %v9678 = vld [vmem:[#allocation4] sm:$0xff]
  %v9679 = vld [vmem:[#allocation4 + $0x8] sm:$0xff]
  %v9680 = vld [vmem:[#allocation4 + $0x10] sm:$0xff]
  %v9681 = vld [vmem:[#allocation4 + $0x18] sm:$0xff]
  %v9682 = vld [vmem:[#allocation4 + $0x20] sm:$0xff]
  %v9683 = vld [vmem:[#allocation4 + $0x28] sm:$0xff]
  %v9684 = vld [vmem:[#allocation4 + $0x30] sm:$0xff]
  %v9685 = vld [vmem:[#allocation4 + $0x38] sm:$0xff]
  %v9686 = vld [vmem:[#allocation4 + $0x40] sm:$0xff]
  %v9687 = vld [vmem:[#allocation4 + $0x48] sm:$0xff]
  %v9688 = vld [vmem:[#allocation4 + $0x50] sm:$0xff]
  %v9689 = vld [vmem:[#allocation4 + $0x58] sm:$0xff]
  %v9690 = vld [vmem:[#allocation4 + $0x60] sm:$0xff]
  %v9691 = vld [vmem:[#allocation4 + $0x68] sm:$0xff]
  %v9692 = vld [vmem:[#allocation4 + $0x70] sm:$0xff]
  %v9693 = vld [vmem:[#allocation4 + $0x78] sm:$0xff]
  %v9694 = vld [vmem:[#allocation4 + $0x80] sm:$0xff]
  %v9695 = vld [vmem:[#allocation4 + $0x88] sm:$0xff]
  %v9696 = vld [vmem:[#allocation4 + $0x90] sm:$0xff]
  %v9697 = vld [vmem:[#allocation4 + $0x98] sm:$0xff]
  %v9698 = vld [vmem:[#allocation4 + $0xa0] sm:$0xff]
  %v9699 = vld [vmem:[#allocation4 + $0xa8] sm:$0xff]
  %v9700 = vld [vmem:[#allocation4 + $0xb0] sm:$0xff]
  %v9701 = vld [vmem:[#allocation4 + $0xb8] sm:$0xff]
  %v9702 = vld [vmem:[#allocation4 + $0xc0] sm:$0xff]
  %v9703 = vld [vmem:[#allocation4 + $0xc8] sm:$0xff]
  %v9704 = vld [vmem:[#allocation4 + $0xd0] sm:$0xff]
  %v9705 = vld [vmem:[#allocation4 + $0xd8] sm:$0xff]
  %v9706 = vld [vmem:[#allocation4 + $0xe0] sm:$0xff]
  %v9707 = vld [vmem:[#allocation4 + $0xe8] sm:$0xff]
  %v9708 = vld [vmem:[#allocation4 + $0xf0] sm:$0xff]
  %v9709 = vld [vmem:[#allocation4 + $0xf8] sm:$0xff]
  %v9710 = vld [vmem:[#allocation4 + $0x100] sm:$0xff]
  %v9711 = vld [vmem:[#allocation4 + $0x108] sm:$0xff]
  %v9712 = vld [vmem:[#allocation4 + $0x110] sm:$0xff]
  %v9713 = vld [vmem:[#allocation4 + $0x118] sm:$0xff]
  %v9714 = vld [vmem:[#allocation4 + $0x120] sm:$0xff]
  %v9715 = vld [vmem:[#allocation4 + $0x128] sm:$0xff]
  %v9716 = vld [vmem:[#allocation4 + $0x130] sm:$0xff]
  %v9717 = vld [vmem:[#allocation4 + $0x138] sm:$0xff]
  %v9718 = vld [vmem:[#allocation4 + $0x140] sm:$0xff]
  %v9719 = vld [vmem:[#allocation4 + $0x148] sm:$0xff]
  %v9720 = vld [vmem:[#allocation4 + $0x150] sm:$0xff]
  %v9721 = vld [vmem:[#allocation4 + $0x158] sm:$0xff]
  %v9722 = vld [vmem:[#allocation4 + $0x160] sm:$0xff]
  %v9723 = vld [vmem:[#allocation4 + $0x168] sm:$0xff]
  %v9724 = vld [vmem:[#allocation4 + $0x170] sm:$0xff]
  %v9725 = vld [vmem:[#allocation4 + $0x178] sm:$0xff]
  %v9726 = vld [vmem:[#allocation4 + $0x180] sm:$0xff]
  %v9727 = vld [vmem:[#allocation4 + $0x188] sm:$0xff]
  %v9728 = vld [vmem:[#allocation4 + $0x190] sm:$0xff]
  %v9729 = vld [vmem:[#allocation4 + $0x198] sm:$0xff]
  %v9730 = vld [vmem:[#allocation4 + $0x1a0] sm:$0xff]
  %v9731 = vld [vmem:[#allocation4 + $0x1a8] sm:$0xff]
  %v9732 = vld [vmem:[#allocation4 + $0x1b0] sm:$0xff]
  %v9733 = vld [vmem:[#allocation4 + $0x1b8] sm:$0xff]
  %v9734 = vld [vmem:[#allocation4 + $0x1c0] sm:$0xff]
  %v9735 = vld [vmem:[#allocation4 + $0x1c8] sm:$0xff]
  %v9736 = vld [vmem:[#allocation4 + $0x1d0] sm:$0xff]
  %v9737 = vld [vmem:[#allocation4 + $0x1d8] sm:$0xff]
  %v9738 = vld [vmem:[#allocation4 + $0x1e0] sm:$0xff]
  %v9739 = vld [vmem:[#allocation4 + $0x1e8] sm:$0xff]
  %v9740 = vld [vmem:[#allocation4 + $0x1f0] sm:$0xff]
  %v9741 = vld [vmem:[#allocation4 + $0x1f8] sm:$0xff]
  %v9742 = vld [vmem:[#allocation4 + $0x200] sm:$0xff]
  %v9743 = vld [vmem:[#allocation4 + $0x208] sm:$0xff]
  %v9744 = vld [vmem:[#allocation4 + $0x210] sm:$0xff]
  %v9745 = vld [vmem:[#allocation4 + $0x218] sm:$0xff]
  %v9746 = vld [vmem:[#allocation4 + $0x220] sm:$0xff]
  %v9747 = vld [vmem:[#allocation4 + $0x228] sm:$0xff]
  %v9748 = vld [vmem:[#allocation4 + $0x230] sm:$0xff]
  %v9749 = vld [vmem:[#allocation4 + $0x238] sm:$0xff]
  %v9750 = vld [vmem:[#allocation4 + $0x240] sm:$0xff]
  %v9751 = vld [vmem:[#allocation4 + $0x248] sm:$0xff]
  %v9752 = vld [vmem:[#allocation4 + $0x250] sm:$0xff]
  %v9753 = vld [vmem:[#allocation4 + $0x258] sm:$0xff]
  %v9754 = vld [vmem:[#allocation4 + $0x260] sm:$0xff]
  %v9755 = vld [vmem:[#allocation4 + $0x268] sm:$0xff]
  %v9756 = vld [vmem:[#allocation4 + $0x270] sm:$0xff]
  %v9757 = vld [vmem:[#allocation4 + $0x278] sm:$0xff]
  %v9758 = vld [vmem:[#allocation4 + $0x280] sm:$0xff]
  %v9759 = vld [vmem:[#allocation4 + $0x288] sm:$0xff]
  %v9760 = vld [vmem:[#allocation4 + $0x290] sm:$0xff]
  %v9761 = vld [vmem:[#allocation4 + $0x298] sm:$0xff]
  %v9762 = vld [vmem:[#allocation4 + $0x2a0] sm:$0xff]
  %v9763 = vld [vmem:[#allocation4 + $0x2a8] sm:$0xff]
  %v9764 = vld [vmem:[#allocation4 + $0x2b0] sm:$0xff]
  %v9765 = vld [vmem:[#allocation4 + $0x2b8] sm:$0xff]
  %v9766 = vld [vmem:[#allocation4 + $0x2c0] sm:$0xff]
  %v9767 = vld [vmem:[#allocation4 + $0x2c8] sm:$0xff]
  %v9768 = vld [vmem:[#allocation4 + $0x2d0] sm:$0xff]
  %v9769 = vld [vmem:[#allocation4 + $0x2d8] sm:$0xff]
  %v9770 = vld [vmem:[#allocation4 + $0x2e0] sm:$0xff]
  %v9771 = vld [vmem:[#allocation4 + $0x2e8] sm:$0xff]
  %v9772 = vld [vmem:[#allocation4 + $0x2f0] sm:$0xff]
  %v9773 = vld [vmem:[#allocation4 + $0x2f8] sm:$0xff]
  %v9774 = vld [vmem:[#allocation4 + $0x300] sm:$0xff]
  %v9775 = vld [vmem:[#allocation4 + $0x308] sm:$0xff]
  %v9776 = vld [vmem:[#allocation4 + $0x310] sm:$0xff]
  %v9777 = vld [vmem:[#allocation4 + $0x318] sm:$0xff]
  %v9778 = vld [vmem:[#allocation4 + $0x320] sm:$0xff]
  %v9779 = vld [vmem:[#allocation4 + $0x328] sm:$0xff]
  %v9780 = vld [vmem:[#allocation4 + $0x330] sm:$0xff]
  %v9781 = vld [vmem:[#allocation4 + $0x338] sm:$0xff]
  %v9782 = vld [vmem:[#allocation4 + $0x340] sm:$0xff]
  %v9783 = vld [vmem:[#allocation4 + $0x348] sm:$0xff]
  %v9784 = vld [vmem:[#allocation4 + $0x350] sm:$0xff]
  %v9785 = vld [vmem:[#allocation4 + $0x358] sm:$0xff]
  %v9786 = vld [vmem:[#allocation4 + $0x360] sm:$0xff]
  %v9787 = vld [vmem:[#allocation4 + $0x368] sm:$0xff]
  %v9788 = vld [vmem:[#allocation4 + $0x370] sm:$0xff]
  %v9789 = vld [vmem:[#allocation4 + $0x378] sm:$0xff]
  %v9790 = vld [vmem:[#allocation4 + $0x380] sm:$0xff]
  %v9791 = vld [vmem:[#allocation4 + $0x388] sm:$0xff]
  %v9792 = vld [vmem:[#allocation4 + $0x390] sm:$0xff]
  %v9793 = vld [vmem:[#allocation4 + $0x398] sm:$0xff]
  %v9794 = vld [vmem:[#allocation4 + $0x3a0] sm:$0xff]
  %v9795 = vld [vmem:[#allocation4 + $0x3a8] sm:$0xff]
  %v9796 = vld [vmem:[#allocation4 + $0x3b0] sm:$0xff]
  %v9797 = vld [vmem:[#allocation4 + $0x3b8] sm:$0xff]
  %v9798 = vld [vmem:[#allocation4 + $0x3c0] sm:$0xff]
  %v9799 = vld [vmem:[#allocation4 + $0x3c8] sm:$0xff]
  %v9800 = vld [vmem:[#allocation4 + $0x3d0] sm:$0xff]
  %v9801 = vld [vmem:[#allocation4 + $0x3d8] sm:$0xff]
  %v9802 = vld [vmem:[#allocation4 + $0x3e0] sm:$0xff]
  %v9803 = vld [vmem:[#allocation4 + $0x3e8] sm:$0xff]
  %v9804 = vld [vmem:[#allocation4 + $0x3f0] sm:$0xff]
  %v9805 = vld [vmem:[#allocation4 + $0x3f8] sm:$0xff]
  %v9806 = vld [vmem:[#allocation4 + $0x400] sm:$0xff]
  %v9807 = vld [vmem:[#allocation4 + $0x408] sm:$0xff]
  %v9808 = vld [vmem:[#allocation4 + $0x410] sm:$0xff]
  %v9809 = vld [vmem:[#allocation4 + $0x418] sm:$0xff]
  %v9810 = vld [vmem:[#allocation4 + $0x420] sm:$0xff]
  %v9811 = vld [vmem:[#allocation4 + $0x428] sm:$0xff]
  %v9812 = vld [vmem:[#allocation4 + $0x430] sm:$0xff]
  %v9813 = vld [vmem:[#allocation4 + $0x438] sm:$0xff]
  %v9814 = vld [vmem:[#allocation4 + $0x440] sm:$0xff]
  %v9815 = vld [vmem:[#allocation4 + $0x448] sm:$0xff]
  %v9816 = vld [vmem:[#allocation4 + $0x450] sm:$0xff]
  %v9817 = vld [vmem:[#allocation4 + $0x458] sm:$0xff]
  %v9818 = vld [vmem:[#allocation4 + $0x460] sm:$0xff]
  %v9819 = vld [vmem:[#allocation4 + $0x468] sm:$0xff]
  %v9820 = vld [vmem:[#allocation4 + $0x470] sm:$0xff]
  %v9821 = vld [vmem:[#allocation4 + $0x478] sm:$0xff]
  %v9822 = vld [vmem:[#allocation4 + $0x480] sm:$0xff]
  %v9823 = vld [vmem:[#allocation4 + $0x488] sm:$0xff]
  %v9824 = vld [vmem:[#allocation4 + $0x490] sm:$0xff]
  %v9825 = vld [vmem:[#allocation4 + $0x498] sm:$0xff]
  %v9826 = vld [vmem:[#allocation4 + $0x4a0] sm:$0xff]
  %v9827 = vld [vmem:[#allocation4 + $0x4a8] sm:$0xff]
  %v9828 = vld [vmem:[#allocation4 + $0x4b0] sm:$0xff]
  %v9829 = vld [vmem:[#allocation4 + $0x4b8] sm:$0xff]
  %v9830 = vld [vmem:[#allocation4 + $0x4c0] sm:$0xff]
  %v9831 = vld [vmem:[#allocation4 + $0x4c8] sm:$0xff]
  %v9832 = vld [vmem:[#allocation4 + $0x4d0] sm:$0xff]
  %v9833 = vld [vmem:[#allocation4 + $0x4d8] sm:$0xff]
  %v9834 = vld [vmem:[#allocation4 + $0x4e0] sm:$0xff]
  %v9835 = vld [vmem:[#allocation4 + $0x4e8] sm:$0xff]
  %v9836 = vld [vmem:[#allocation4 + $0x4f0] sm:$0xff]
  %v9837 = vld [vmem:[#allocation4 + $0x4f8] sm:$0xff]
  %v9838 = vld [vmem:[#allocation4 + $0x500] sm:$0xff]
  %v9839 = vld [vmem:[#allocation4 + $0x508] sm:$0xff]
  %v9840 = vld [vmem:[#allocation4 + $0x510] sm:$0xff]
  %v9841 = vld [vmem:[#allocation4 + $0x518] sm:$0xff]
  %v9842 = vld [vmem:[#allocation4 + $0x520] sm:$0xff]
  %v9843 = vld [vmem:[#allocation4 + $0x528] sm:$0xff]
  %v9844 = vld [vmem:[#allocation4 + $0x530] sm:$0xff]
  %v9845 = vld [vmem:[#allocation4 + $0x538] sm:$0xff]
  %v9846 = vld [vmem:[#allocation4 + $0x540] sm:$0xff]
  %v9847 = vld [vmem:[#allocation4 + $0x548] sm:$0xff]
  %v9848 = vld [vmem:[#allocation4 + $0x550] sm:$0xff]
  %v9849 = vld [vmem:[#allocation4 + $0x558] sm:$0xff]
  %v9850 = vld [vmem:[#allocation4 + $0x560] sm:$0xff]
  %v9851 = vld [vmem:[#allocation4 + $0x568] sm:$0xff]
  %v9852 = vld [vmem:[#allocation4 + $0x570] sm:$0xff]
  %v9853 = vld [vmem:[#allocation4 + $0x578] sm:$0xff]
  %v9854 = vld [vmem:[#allocation4 + $0x580] sm:$0xff]
  %v9855 = vld [vmem:[#allocation4 + $0x588] sm:$0xff]
  %v9856 = vld [vmem:[#allocation4 + $0x590] sm:$0xff]
  %v9857 = vld [vmem:[#allocation4 + $0x598] sm:$0xff]
  %v9858 = vld [vmem:[#allocation4 + $0x5a0] sm:$0xff]
  %v9859 = vld [vmem:[#allocation4 + $0x5a8] sm:$0xff]
  %v9860 = vld [vmem:[#allocation4 + $0x5b0] sm:$0xff]
  %v9861 = vld [vmem:[#allocation4 + $0x5b8] sm:$0xff]
  %v9862 = vld [vmem:[#allocation4 + $0x5c0] sm:$0xff]
  %v9863 = vld [vmem:[#allocation4 + $0x5c8] sm:$0xff]
  %v9864 = vld [vmem:[#allocation4 + $0x5d0] sm:$0xff]
  %v9865 = vld [vmem:[#allocation4 + $0x5d8] sm:$0xff]
  %v9866 = vld [vmem:[#allocation4 + $0x5e0] sm:$0xff]
  %v9867 = vld [vmem:[#allocation4 + $0x5e8] sm:$0xff]
  %v9868 = vld [vmem:[#allocation4 + $0x5f0] sm:$0xff]
  %v9869 = vld [vmem:[#allocation4 + $0x5f8] sm:$0xff]
  %9870 = vmatprep.subr.mxu0 %v9724
  %9871 = vmatpush1.msra.mxu0 %v9723
  %9872 = vmatprep.subr.mxu0 %v9721
  %9873 = vmatpush1.msra.mxu0 %v9720
  %9874 = vmatprep.subr.mxu0 %v9718
  %9875 = vmatpush1.msra.mxu0 %v9717
  %9876 = vmatprep.subr.mxu0 %v9715
  %9877 = vmatpush1.msra.mxu0 %v9714
  %9878 = vmatprep.subr.mxu0 %v9712
  %9879 = vmatpush1.msra.mxu0 %v9711
  %9880 = vmatprep.subr.mxu0 %v9709
  %9881 = vmatpush1.msra.mxu0 %v9708
  %9882 = vmatprep.subr.mxu0 %v9706
  %9883 = vmatpush1.msra.mxu0 %v9705
  %9884 = vmatprep.subr.mxu0 %v9703
  %9885 = vmatpush1.msra.mxu0 %v9702
  %9886 = vmatprep.subr.mxu0 %v9700
  %9887 = vmatpush1.msra.mxu0 %v9699
  %9888 = vmatprep.subr.mxu0 %v9697
  %9889 = vmatpush1.msra.mxu0 %v9696
  %9890 = vmatprep.subr.mxu0 %v9694
  %9891 = vmatpush1.msra.mxu0 %v9693
  %9892 = vmatprep.subr.mxu0 %v9691
  %9893 = vmatpush1.msra.mxu0 %v9690
  %9894 = vmatprep.subr.mxu0 %v9688
  %9895 = vmatpush1.msra.mxu0 %v9687
  %9896 = vmatprep.subr.mxu0 %v9685
  %9897 = vmatpush1.msra.mxu0 %v9684
  %9898 = vmatprep.subr.mxu0 %v9682
  %9899 = vmatpush1.msra.mxu0 %v9681
  %9900 = vmatprep.subr.mxu0 %v9679
  %9901 = vmatpush1.msra.mxu0 %v9678
  %9902 = vmatprep.subr.mxu0 %v9772
  %9903 = vmatpush2.msra.mxu0 %v9771
  %9904 = vmatprep.subr.mxu0 %v9769
  %9905 = vmatpush2.msra.mxu0 %v9768
  %9906 = vmatprep.subr.mxu0 %v9766
  %9907 = vmatpush2.msra.mxu0 %v9765
  %9908 = vmatprep.subr.mxu0 %v9763
  %9909 = vmatpush2.msra.mxu0 %v9762
  %9910 = vmatprep.subr.mxu0 %v9760
  %9911 = vmatpush2.msra.mxu0 %v9759
  %9912 = vmatprep.subr.mxu0 %v9757
  %9913 = vmatpush2.msra.mxu0 %v9756
  %9914 = vmatprep.subr.mxu0 %v9754
  %9915 = vmatpush2.msra.mxu0 %v9753
  %9916 = vmatprep.subr.mxu0 %v9751
  %9917 = vmatpush2.msra.mxu0 %v9750
  %9918 = vmatprep.subr.mxu0 %v9748
  %9919 = vmatpush2.msra.mxu0 %v9747
  %9920 = vmatprep.subr.mxu0 %v9745
  %9921 = vmatpush2.msra.mxu0 %v9744
  %9922 = vmatprep.subr.mxu0 %v9742
  %9923 = vmatpush2.msra.mxu0 %v9741
  %9924 = vmatprep.subr.mxu0 %v9739
  %9925 = vmatpush2.msra.mxu0 %v9738
  %9926 = vmatprep.subr.mxu0 %v9736
  %9927 = vmatpush2.msra.mxu0 %v9735
  %9928 = vmatprep.subr.mxu0 %v9733
  %9929 = vmatpush2.msra.mxu0 %v9732
  %9930 = vmatprep.subr.mxu0 %v9730
  %9931 = vmatpush2.msra.mxu0 %v9729
  %9932 = vmatprep.subr.mxu0 %v9727
  %9933 = vmatpush2.msra.mxu0 %v9726
  %9934 = vmatprep.mubr.f32.mxu0 %v9659
  %9935 = vmatmul.mubr.f32.gmra.mxu0 %v9658
  %v9936 = vpop.f32.mrf.mxu0
  %v9937 = vadd.f32 0.0, %v9936
  %v9938 = vpop.f32.mrf.mxu0
  %v9939 = vadd.f32 0.0, %v9938
  %9940 = vmatprep.mubr.f32.mxu0 %v9663
  %9941 = vmatmul.mubr.f32.gmra.mxu0 %v9662
  %v9942 = vpop.f32.mrf.mxu0
  %v9943 = vadd.f32 0.0, %v9942
  %v9944 = vpop.f32.mrf.mxu0
  %v9945 = vadd.f32 0.0, %v9944
  %9946 = vmatprep.mubr.f32.mxu0 %v9667
  %9947 = vmatmul.mubr.f32.gmra.mxu0 %v9666
  %v9948 = vpop.f32.mrf.mxu0
  %v9949 = vadd.f32 0.0, %v9948
  %v9950 = vpop.f32.mrf.mxu0
  %v9951 = vadd.f32 0.0, %v9950
  %9952 = vmatprep.mubr.f32.mxu0 %v9671
  %9953 = vmatmul.mubr.f32.gmra.mxu0 %v9670
  %v9954 = vpop.f32.mrf.mxu0
  %v9955 = vadd.f32 0.0, %v9954
  %v9956 = vpop.f32.mrf.mxu0
  %v9957 = vadd.f32 0.0, %v9956
  %9958 = vmatprep.mubr.f32.mxu0 %v9675
  %9959 = vmatmul.mubr.f32.gmra.mxu0 %v9674
  %v9960 = vpop.f32.mrf.mxu0
  %v9961 = vadd.f32 0.0, %v9960
  %v9962 = vpop.f32.mrf.mxu0
  %v9963 = vadd.f32 0.0, %v9962
  %9964 = vdwg.mxu0
  %9965 = vmatprep.subr.mxu0 %v9820
  %9966 = vmatpush1.msra.mxu0 %v9819
  %9967 = vmatprep.subr.mxu0 %v9817
  %9968 = vmatpush1.msra.mxu0 %v9816
  %9969 = vmatprep.subr.mxu0 %v9814
  %9970 = vmatpush1.msra.mxu0 %v9813
  %9971 = vmatprep.subr.mxu0 %v9811
  %9972 = vmatpush1.msra.mxu0 %v9810
  %9973 = vmatprep.subr.mxu0 %v9808
  %9974 = vmatpush1.msra.mxu0 %v9807
  %9975 = vmatprep.subr.mxu0 %v9805
  %9976 = vmatpush1.msra.mxu0 %v9804
  %9977 = vmatprep.subr.mxu0 %v9802
  %9978 = vmatpush1.msra.mxu0 %v9801
  %9979 = vmatprep.subr.mxu0 %v9799
  %9980 = vmatpush1.msra.mxu0 %v9798
  %9981 = vmatprep.subr.mxu0 %v9796
  %9982 = vmatpush1.msra.mxu0 %v9795
  %9983 = vmatprep.subr.mxu0 %v9793
  %9984 = vmatpush1.msra.mxu0 %v9792
  %9985 = vmatprep.subr.mxu0 %v9790
  %9986 = vmatpush1.msra.mxu0 %v9789
  %9987 = vmatprep.subr.mxu0 %v9787
  %9988 = vmatpush1.msra.mxu0 %v9786
  %9989 = vmatprep.subr.mxu0 %v9784
  %9990 = vmatpush1.msra.mxu0 %v9783
  %9991 = vmatprep.subr.mxu0 %v9781
  %9992 = vmatpush1.msra.mxu0 %v9780
  %9993 = vmatprep.subr.mxu0 %v9778
  %9994 = vmatpush1.msra.mxu0 %v9777
  %9995 = vmatprep.subr.mxu0 %v9775
  %9996 = vmatpush1.msra.mxu0 %v9774
  %9997 = vmatprep.subr.mxu0 %v9868
  %9998 = vmatpush2.msra.mxu0 %v9867
  %9999 = vmatprep.subr.mxu0 %v9865
  %10000 = vmatpush2.msra.mxu0 %v9864
  %10001 = vmatprep.subr.mxu0 %v9862
  %10002 = vmatpush2.msra.mxu0 %v9861
  %10003 = vmatprep.subr.mxu0 %v9859
  %10004 = vmatpush2.msra.mxu0 %v9858
  %10005 = vmatprep.subr.mxu0 %v9856
  %10006 = vmatpush2.msra.mxu0 %v9855
  %10007 = vmatprep.subr.mxu0 %v9853
  %10008 = vmatpush2.msra.mxu0 %v9852
  %10009 = vmatprep.subr.mxu0 %v9850
  %10010 = vmatpush2.msra.mxu0 %v9849
  %10011 = vmatprep.subr.mxu0 %v9847
  %10012 = vmatpush2.msra.mxu0 %v9846
  %10013 = vmatprep.subr.mxu0 %v9844
  %10014 = vmatpush2.msra.mxu0 %v9843
  %10015 = vmatprep.subr.mxu0 %v9841
  %10016 = vmatpush2.msra.mxu0 %v9840
  %10017 = vmatprep.subr.mxu0 %v9838
  %10018 = vmatpush2.msra.mxu0 %v9837
  %10019 = vmatprep.subr.mxu0 %v9835
  %10020 = vmatpush2.msra.mxu0 %v9834
  %10021 = vmatprep.subr.mxu0 %v9832
  %10022 = vmatpush2.msra.mxu0 %v9831
  %10023 = vmatprep.subr.mxu0 %v9829
  %10024 = vmatpush2.msra.mxu0 %v9828
  %10025 = vmatprep.subr.mxu0 %v9826
  %10026 = vmatpush2.msra.mxu0 %v9825
  %10027 = vmatprep.subr.mxu0 %v9823
  %10028 = vmatpush2.msra.mxu0 %v9822
  %10029 = vmatprep.mubr.f32.mxu0 %v9661
  %10030 = vmatmul.mubr.f32.gmra.mxu0 %v9660
  %v10031 = vpop.f32.mrf.mxu0
  %v10032 = vadd.f32 %v9937, %v10031
  %v10033 = vpop.f32.mrf.mxu0
  %v10034 = vadd.f32 %v9939, %v10033
  %10035 = vmatprep.mubr.f32.mxu0 %v9665
  %10036 = vmatmul.mubr.f32.gmra.mxu0 %v9664
  %v10037 = vpop.f32.mrf.mxu0
  %v10038 = vadd.f32 %v9943, %v10037
  %v10039 = vpop.f32.mrf.mxu0
  %v10040 = vadd.f32 %v9945, %v10039
  %10041 = vmatprep.mubr.f32.mxu0 %v9669
  %10042 = vmatmul.mubr.f32.gmra.mxu0 %v9668
  %v10043 = vpop.f32.mrf.mxu0
  %v10044 = vadd.f32 %v9949, %v10043
  %v10045 = vpop.f32.mrf.mxu0
  %v10046 = vadd.f32 %v9951, %v10045
  %10047 = vmatprep.mubr.f32.mxu0 %v9673
  %10048 = vmatmul.mubr.f32.gmra.mxu0 %v9672
  %v10049 = vpop.f32.mrf.mxu0
  %v10050 = vadd.f32 %v9955, %v10049
  %v10051 = vpop.f32.mrf.mxu0
  %v10052 = vadd.f32 %v9957, %v10051
  %10053 = vmatprep.mubr.f32.mxu0 %v9677
  %10054 = vmatmul.mubr.f32.gmra.mxu0 %v9676
  %v10055 = vpop.f32.mrf.mxu0
  %v10056 = vadd.f32 %v9961, %v10055
  %v10057 = vpop.f32.mrf.mxu0
  %v10058 = vadd.f32 %v9963, %v10057
  %10059 = vdwg.mxu0
  %10060 = vmatprep.subr.mxu0 0.0
  %10061 = vmatpush1.msra.mxu0 %v9725
  %10062 = vmatprep.subr.mxu0 0.0
  %10063 = vmatpush1.msra.mxu0 %v9722
  %10064 = vmatprep.subr.mxu0 0.0
  %10065 = vmatpush1.msra.mxu0 %v9719
  %10066 = vmatprep.subr.mxu0 0.0
  %10067 = vmatpush1.msra.mxu0 %v9716
  %10068 = vmatprep.subr.mxu0 0.0
  %10069 = vmatpush1.msra.mxu0 %v9713
  %10070 = vmatprep.subr.mxu0 0.0
  %10071 = vmatpush1.msra.mxu0 %v9710
  %10072 = vmatprep.subr.mxu0 0.0
  %10073 = vmatpush1.msra.mxu0 %v9707
  %10074 = vmatprep.subr.mxu0 0.0
  %10075 = vmatpush1.msra.mxu0 %v9704
  %10076 = vmatprep.subr.mxu0 0.0
  %10077 = vmatpush1.msra.mxu0 %v9701
  %10078 = vmatprep.subr.mxu0 0.0
  %10079 = vmatpush1.msra.mxu0 %v9698
  %10080 = vmatprep.subr.mxu0 0.0
  %10081 = vmatpush1.msra.mxu0 %v9695
  %10082 = vmatprep.subr.mxu0 0.0
  %10083 = vmatpush1.msra.mxu0 %v9692
  %10084 = vmatprep.subr.mxu0 0.0
  %10085 = vmatpush1.msra.mxu0 %v9689
  %10086 = vmatprep.subr.mxu0 0.0
  %10087 = vmatpush1.msra.mxu0 %v9686
  %10088 = vmatprep.subr.mxu0 0.0
  %10089 = vmatpush1.msra.mxu0 %v9683
  %10090 = vmatprep.subr.mxu0 0.0
  %10091 = vmatpush1.msra.mxu0 %v9680
  %10092 = vmatprep.subr.mxu0 0.0
  %10093 = vmatpush2.msra.mxu0 %v9773
  %10094 = vmatprep.subr.mxu0 0.0
  %10095 = vmatpush2.msra.mxu0 %v9770
  %10096 = vmatprep.subr.mxu0 0.0
  %10097 = vmatpush2.msra.mxu0 %v9767
  %10098 = vmatprep.subr.mxu0 0.0
  %10099 = vmatpush2.msra.mxu0 %v9764
  %10100 = vmatprep.subr.mxu0 0.0
  %10101 = vmatpush2.msra.mxu0 %v9761
  %10102 = vmatprep.subr.mxu0 0.0
  %10103 = vmatpush2.msra.mxu0 %v9758
  %10104 = vmatprep.subr.mxu0 0.0
  %10105 = vmatpush2.msra.mxu0 %v9755
  %10106 = vmatprep.subr.mxu0 0.0
  %10107 = vmatpush2.msra.mxu0 %v9752
  %10108 = vmatprep.subr.mxu0 0.0
  %10109 = vmatpush2.msra.mxu0 %v9749
  %10110 = vmatprep.subr.mxu0 0.0
  %10111 = vmatpush2.msra.mxu0 %v9746
  %10112 = vmatprep.subr.mxu0 0.0
  %10113 = vmatpush2.msra.mxu0 %v9743
  %10114 = vmatprep.subr.mxu0 0.0
  %10115 = vmatpush2.msra.mxu0 %v9740
  %10116 = vmatprep.subr.mxu0 0.0
  %10117 = vmatpush2.msra.mxu0 %v9737
  %10118 = vmatprep.subr.mxu0 0.0
  %10119 = vmatpush2.msra.mxu0 %v9734
  %10120 = vmatprep.subr.mxu0 0.0
  %10121 = vmatpush2.msra.mxu0 %v9731
  %10122 = vmatprep.subr.mxu0 0.0
  %10123 = vmatpush2.msra.mxu0 %v9728
  %10124 = vmatprep.mubr.f32.mxu0 %v9659
  %10125 = vmatmul.mubr.f32.gmra.mxu0 %v9658
  %v10126 = vpop.f32.mrf.mxu0
  %v10127 = vadd.f32 0.0, %v10126
  %v10128 = vpop.f32.mrf.mxu0
  %10129 = vmatprep.mubr.f32.mxu0 %v9663
  %10130 = vmatmul.mubr.f32.gmra.mxu0 %v9662
  %v10131 = vpop.f32.mrf.mxu0
  %v10132 = vadd.f32 0.0, %v10131
  %v10133 = vpop.f32.mrf.mxu0
  %10134 = vmatprep.mubr.f32.mxu0 %v9667
  %10135 = vmatmul.mubr.f32.gmra.mxu0 %v9666
  %v10136 = vpop.f32.mrf.mxu0
  %v10137 = vadd.f32 0.0, %v10136
  %v10138 = vpop.f32.mrf.mxu0
  %10139 = vmatprep.mubr.f32.mxu0 %v9671
  %10140 = vmatmul.mubr.f32.gmra.mxu0 %v9670
  %v10141 = vpop.f32.mrf.mxu0
  %v10142 = vadd.f32 0.0, %v10141
  %v10143 = vpop.f32.mrf.mxu0
  %10144 = vmatprep.mubr.f32.mxu0 %v9675
  %10145 = vmatmul.mubr.f32.gmra.mxu0 %v9674
  %v10146 = vpop.f32.mrf.mxu0
  %v10147 = vadd.f32 0.0, %v10146
  %v10148 = vpop.f32.mrf.mxu0
  %10149 = vdwg.mxu0
  %10150 = vmatprep.subr.mxu0 0.0
  %10151 = vmatpush1.msra.mxu0 %v9821
  %10152 = vmatprep.subr.mxu0 0.0
  %10153 = vmatpush1.msra.mxu0 %v9818
  %10154 = vmatprep.subr.mxu0 0.0
  %10155 = vmatpush1.msra.mxu0 %v9815
  %10156 = vmatprep.subr.mxu0 0.0
  %10157 = vmatpush1.msra.mxu0 %v9812
  %10158 = vmatprep.subr.mxu0 0.0
  %10159 = vmatpush1.msra.mxu0 %v9809
  %10160 = vmatprep.subr.mxu0 0.0
  %10161 = vmatpush1.msra.mxu0 %v9806
  %10162 = vmatprep.subr.mxu0 0.0
  %10163 = vmatpush1.msra.mxu0 %v9803
  %10164 = vmatprep.subr.mxu0 0.0
  %10165 = vmatpush1.msra.mxu0 %v9800
  %10166 = vmatprep.subr.mxu0 0.0
  %10167 = vmatpush1.msra.mxu0 %v9797
  %10168 = vmatprep.subr.mxu0 0.0
  %10169 = vmatpush1.msra.mxu0 %v9794
  %10170 = vmatprep.subr.mxu0 0.0
  %10171 = vmatpush1.msra.mxu0 %v9791
  %10172 = vmatprep.subr.mxu0 0.0
  %10173 = vmatpush1.msra.mxu0 %v9788
  %10174 = vmatprep.subr.mxu0 0.0
  %10175 = vmatpush1.msra.mxu0 %v9785
  %10176 = vmatprep.subr.mxu0 0.0
  %10177 = vmatpush1.msra.mxu0 %v9782
  %10178 = vmatprep.subr.mxu0 0.0
  %10179 = vmatpush1.msra.mxu0 %v9779
  %10180 = vmatprep.subr.mxu0 0.0
  %10181 = vmatpush1.msra.mxu0 %v9776
  %10182 = vmatprep.subr.mxu0 0.0
  %10183 = vmatpush2.msra.mxu0 %v9869
  %10184 = vmatprep.subr.mxu0 0.0
  %10185 = vmatpush2.msra.mxu0 %v9866
  %10186 = vmatprep.subr.mxu0 0.0
  %10187 = vmatpush2.msra.mxu0 %v9863
  %10188 = vmatprep.subr.mxu0 0.0
  %10189 = vmatpush2.msra.mxu0 %v9860
  %10190 = vmatprep.subr.mxu0 0.0
  %10191 = vmatpush2.msra.mxu0 %v9857
  %10192 = vmatprep.subr.mxu0 0.0
  %10193 = vmatpush2.msra.mxu0 %v9854
  %10194 = vmatprep.subr.mxu0 0.0
  %10195 = vmatpush2.msra.mxu0 %v9851
  %10196 = vmatprep.subr.mxu0 0.0
  %10197 = vmatpush2.msra.mxu0 %v9848
  %10198 = vmatprep.subr.mxu0 0.0
  %10199 = vmatpush2.msra.mxu0 %v9845
  %10200 = vmatprep.subr.mxu0 0.0
  %10201 = vmatpush2.msra.mxu0 %v9842
  %10202 = vmatprep.subr.mxu0 0.0
  %10203 = vmatpush2.msra.mxu0 %v9839
  %10204 = vmatprep.subr.mxu0 0.0
  %10205 = vmatpush2.msra.mxu0 %v9836
  %10206 = vmatprep.subr.mxu0 0.0
  %10207 = vmatpush2.msra.mxu0 %v9833
  %10208 = vmatprep.subr.mxu0 0.0
  %10209 = vmatpush2.msra.mxu0 %v9830
  %10210 = vmatprep.subr.mxu0 0.0
  %10211 = vmatpush2.msra.mxu0 %v9827
  %10212 = vmatprep.subr.mxu0 0.0
  %10213 = vmatpush2.msra.mxu0 %v9824
  %10214 = vmatprep.mubr.f32.mxu0 %v9661
  %10215 = vmatmul.mubr.f32.gmra.mxu0 %v9660
  %v10216 = vpop.f32.mrf.mxu0
  %v10217 = vadd.f32 %v10127, %v10216
  %v10218 = vpop.f32.mrf.mxu0
  %10219 = vmatprep.mubr.f32.mxu0 %v9665
  %10220 = vmatmul.mubr.f32.gmra.mxu0 %v9664
  %v10221 = vpop.f32.mrf.mxu0
  %v10222 = vadd.f32 %v10132, %v10221
  %v10223 = vpop.f32.mrf.mxu0
  %10224 = vmatprep.mubr.f32.mxu0 %v9669
  %10225 = vmatmul.mubr.f32.gmra.mxu0 %v9668
  %v10226 = vpop.f32.mrf.mxu0
  %v10227 = vadd.f32 %v10137, %v10226
  %v10228 = vpop.f32.mrf.mxu0
  %10229 = vmatprep.mubr.f32.mxu0 %v9673
  %10230 = vmatmul.mubr.f32.gmra.mxu0 %v9672
  %v10231 = vpop.f32.mrf.mxu0
  %v10232 = vadd.f32 %v10142, %v10231
  %v10233 = vpop.f32.mrf.mxu0
  %10234 = vmatprep.mubr.f32.mxu0 %v9677
  %10235 = vmatmul.mubr.f32.gmra.mxu0 %v9676
  %v10236 = vpop.f32.mrf.mxu0
  %v10237 = vadd.f32 %v10147, %v10236
  %v10238 = vpop.f32.mrf.mxu0
  %10239 = vdwg.mxu0
  %v10240 = vld [vmem:[%s6] sm:$0xf]
  %v10241 = vld [vmem:[%s6 + $0x4] sm:$0xf]
  %v10242 = vld [vmem:[%s6 + $0x8] sm:$0xf]
  %v10243 = vld [vmem:[%s6 + $0xc] sm:$0xf]
  %v10244 = vld [vmem:[%s6 + $0x10] sm:$0xf]
  %v10245 = vld [vmem:[%s6 + $0x14] sm:$0xf]
  %v10246 = vld [vmem:[%s6 + $0x18] sm:$0xf]
  %v10247 = vld [vmem:[%s6 + $0x1c] sm:$0xf]
  %v10248 = vld [vmem:[%s6 + $0x20] sm:$0xf]
  %v10249 = vld [vmem:[%s6 + $0x24] sm:$0xf]
  %v10250 = vld [vmem:[%s6 + $0x28] sm:$0xf]
  %v10251 = vld [vmem:[%s6 + $0x2c] sm:$0xf]
  %v10252 = vld [vmem:[%s6 + $0x30] sm:$0xf]
  %v10253 = vld [vmem:[%s6 + $0x34] sm:$0xf]
  %v10254 = vld [vmem:[%s6 + $0x38] sm:$0xf]
  %v10255 = vld [vmem:[%s6 + $0x3c] sm:$0xf]
  %v10256 = vld [vmem:[%s6 + $0x40] sm:$0xf]
  %v10257 = vld [vmem:[%s6 + $0x44] sm:$0xf]
  %v10258 = vld [vmem:[%s6 + $0x48] sm:$0xf]
  %v10259 = vld [vmem:[%s6 + $0x4c] sm:$0xf]
  %v10260 = vld [vmem:[%s6 + $0x50] sm:$0xf]
  %v10261 = vld [vmem:[%s6 + $0x54] sm:$0xf]
  %v10262 = vld [vmem:[%s6 + $0x58] sm:$0xf]
  %v10263 = vld [vmem:[%s6 + $0x5c] sm:$0xf]
  %v10264 = vld [vmem:[%s6 + $0x60] sm:$0xf]
  %v10265 = vld [vmem:[%s6 + $0x64] sm:$0xf]
  %v10266 = vld [vmem:[%s6 + $0x68] sm:$0xf]
  %v10267 = vld [vmem:[%s6 + $0x6c] sm:$0xf]
  %v10268 = vld [vmem:[%s6 + $0x70] sm:$0xf]
  %v10269 = vld [vmem:[%s6 + $0x74] sm:$0xf]
  %v10270 = vld [vmem:[%s6 + $0x78] sm:$0xf]
  %v10271 = vld [vmem:[%s6 + $0x7c] sm:$0xf]
  %v10272 = vld [vmem:[%s6 + $0x80] sm:$0xf]
  %v10273 = vld [vmem:[%s6 + $0x84] sm:$0xf]
  %v10274 = vld [vmem:[%s6 + $0x88] sm:$0xf]
  %v10275 = vld [vmem:[%s6 + $0x8c] sm:$0xf]
  %v10276 = vld [vmem:[%s6 + $0x90] sm:$0xf]
  %v10277 = vld [vmem:[%s6 + $0x94] sm:$0xf]
  %v10278 = vld [vmem:[%s6 + $0x98] sm:$0xf]
  %v10279 = vld [vmem:[%s6 + $0x9c] sm:$0xf]
  %v10280 = vld [vmem:[%s6 + $0xa0] sm:$0xf]
  %v10281 = vld [vmem:[%s6 + $0xa4] sm:$0xf]
  %v10282 = vld [vmem:[%s6 + $0xa8] sm:$0xf]
  %v10283 = vld [vmem:[%s6 + $0xac] sm:$0xf]
  %v10284 = vld [vmem:[%s6 + $0xb0] sm:$0xf]
  %v10285 = vld [vmem:[%s6 + $0xb4] sm:$0xf]
  %v10286 = vld [vmem:[%s6 + $0xb8] sm:$0xf]
  %v10287 = vld [vmem:[%s6 + $0xbc] sm:$0xf]
  %v10288 = vld [vmem:[%s7] sm:$0x1]
  %v10289 = vpack.c.bf16 %v10038, %v10032
  %v10290 = vpack.c.bf16 %v10040, %v10034
  %v10291 = vpack.c.bf16 %v10222, %v10217
  %v10292 = vpack.c.bf16 %v10050, %v10044
  %v10293 = vpack.c.bf16 %v10052, %v10046
  %v10294 = vpack.c.bf16 %v10232, %v10227
  %v10295 = vpack.c.bf16 %v10056, %v10056
  %v10296 = vpack.c.bf16 %v10058, %v10058
  %v10297 = vpack.c.bf16 %v10237, %v10237
  %v10299 = vlaneseq
  %v10300 = vshrl.u32 %v10299, 7
  %v10301 = vsub.s32 0, %v10300
  %v10302 = vrot.slane %v10288, %v10301
  %v10352 = vunpack.c.l.b16 %v10240
  %v10353 = vunpack.c.l.b16 %v10241
  %v10354 = vunpack.c.l.b16 %v10242
  %v10355 = vunpack.c.l.b16 %v10243
  %v10356 = vunpack.c.l.b16 %v10244
  %v10357 = vunpack.c.l.b16 %v10245
  %v10358 = vunpack.c.l.b16 %v10246
  %v10359 = vunpack.c.l.b16 %v10247
  %v10360 = vunpack.c.l.b16 %v10248
  %v10361 = vunpack.c.l.b16 %v10249
  %v10362 = vunpack.c.l.b16 %v10250
  %v10363 = vunpack.c.l.b16 %v10251
  %v10364 = vunpack.c.l.b16 %v10252
  %v10365 = vunpack.c.l.b16 %v10253
  %v10366 = vunpack.c.l.b16 %v10254
  %v10367 = vunpack.c.l.b16 %v10255
  %v10368 = vunpack.c.l.b16 %v10256
  %v10369 = vunpack.c.l.b16 %v10257
  %v10370 = vunpack.c.l.b16 %v10258
  %v10371 = vunpack.c.l.b16 %v10259
  %v10372 = vunpack.c.l.b16 %v10260
  %v10373 = vunpack.c.l.b16 %v10261
  %v10374 = vunpack.c.l.b16 %v10262
  %v10375 = vunpack.c.l.b16 %v10263
  %v10376 = vunpack.c.l.b16 %v10264
  %v10377 = vunpack.c.l.b16 %v10265
  %v10378 = vunpack.c.l.b16 %v10266
  %v10379 = vunpack.c.l.b16 %v10267
  %v10380 = vunpack.c.l.b16 %v10268
  %v10381 = vunpack.c.l.b16 %v10269
  %v10382 = vunpack.c.l.b16 %v10270
  %v10383 = vunpack.c.l.b16 %v10271
  %v10384 = vunpack.c.l.b16 %v10272
  %v10385 = vunpack.c.l.b16 %v10273
  %v10386 = vunpack.c.l.b16 %v10274
  %v10387 = vunpack.c.l.b16 %v10275
  %v10388 = vunpack.c.l.b16 %v10276
  %v10389 = vunpack.c.l.b16 %v10277
  %v10390 = vunpack.c.l.b16 %v10278
  %v10391 = vunpack.c.l.b16 %v10279
  %v10392 = vunpack.c.l.b16 %v10280
  %v10393 = vunpack.c.l.b16 %v10281
  %v10394 = vunpack.c.l.b16 %v10282
  %v10395 = vunpack.c.l.b16 %v10283
  %v10396 = vunpack.c.l.b16 %v10284
  %v10397 = vunpack.c.l.b16 %v10285
  %v10398 = vunpack.c.l.b16 %v10286
  %v10399 = vunpack.c.l.b16 %v10287
  %v10400 = vpack.c.b16 %v10353, %v10352
  %v10401 = vpack.c.b16 %v10355, %v10354
  %v10402 = vpack.c.b16 %v10357, %v10356
  %v10403 = vpack.c.b16 %v10359, %v10358
  %v10404 = vpack.c.b16 %v10361, %v10360
  %v10405 = vpack.c.b16 %v10363, %v10362
  %v10406 = vpack.c.b16 %v10365, %v10364
  %v10407 = vpack.c.b16 %v10367, %v10366
  %v10408 = vpack.c.b16 %v10369, %v10368
  %v10409 = vpack.c.b16 %v10371, %v10370
  %v10410 = vpack.c.b16 %v10373, %v10372
  %v10411 = vpack.c.b16 %v10375, %v10374
  %v10412 = vpack.c.b16 %v10377, %v10376
  %v10413 = vpack.c.b16 %v10379, %v10378
  %v10414 = vpack.c.b16 %v10381, %v10380
  %v10415 = vpack.c.b16 %v10383, %v10382
  %v10416 = vpack.c.b16 %v10385, %v10384
  %v10417 = vpack.c.b16 %v10387, %v10386
  %v10418 = vpack.c.b16 %v10389, %v10388
  %v10419 = vpack.c.b16 %v10391, %v10390
  %v10420 = vpack.c.b16 %v10393, %v10392
  %v10421 = vpack.c.b16 %v10395, %v10394
  %v10422 = vpack.c.b16 %v10397, %v10396
  %v10423 = vpack.c.b16 %v10399, %v10398
  %10448 = vmatprep.subr.bf16.mxu0 0
  %10449 = vmatpush1.bf16.msra.mxu0 %v10407
  %10450 = vmatprep.subr.bf16.mxu0 0
  %10451 = vmatpush1.bf16.msra.mxu0 %v10406
  %10452 = vmatprep.subr.bf16.mxu0 0
  %10453 = vmatpush1.bf16.msra.mxu0 %v10405
  %10454 = vmatprep.subr.bf16.mxu0 0
  %10455 = vmatpush1.bf16.msra.mxu0 %v10404
  %10456 = vmatprep.subr.bf16.mxu0 0
  %10457 = vmatpush1.bf16.msra.mxu0 %v10403
  %10458 = vmatprep.subr.bf16.mxu0 0
  %10459 = vmatpush1.bf16.msra.mxu0 %v10402
  %10460 = vmatprep.subr.bf16.mxu0 0
  %10461 = vmatpush1.bf16.msra.mxu0 %v10401
  %10462 = vmatprep.subr.bf16.mxu0 0
  %10463 = vmatpush1.bf16.msra.mxu0 %v10400
  %10464 = vmatprep.subr.bf16.mxu0 0
  %10465 = vmatpush2.bf16.msra.mxu0 %v10415
  %10466 = vmatprep.subr.bf16.mxu0 0
  %10467 = vmatpush2.bf16.msra.mxu0 %v10414
  %10468 = vmatprep.subr.bf16.mxu0 0
  %10469 = vmatpush2.bf16.msra.mxu0 %v10413
  %10470 = vmatprep.subr.bf16.mxu0 0
  %10471 = vmatpush2.bf16.msra.mxu0 %v10412
  %10472 = vmatprep.subr.bf16.mxu0 0
  %10473 = vmatpush2.bf16.msra.mxu0 %v10411
  %10474 = vmatprep.subr.bf16.mxu0 0
  %10475 = vmatpush2.bf16.msra.mxu0 %v10410
  %10476 = vmatprep.subr.bf16.mxu0 0
  %10477 = vmatpush2.bf16.msra.mxu0 %v10409
  %10478 = vmatprep.subr.bf16.mxu0 0
  %10479 = vmatpush2.bf16.msra.mxu0 %v10408
  %10480 = vmatprep.mubr.bf16.mxu0 %v10290
  %10481 = vmatmul.mubr.bf16.gmra.mxu0 %v10289
  %v10482 = vpop.f32.mrf.mxu0
  %v10483 = vadd.f32 %v10302, %v10482
  %v10484 = vpop.f32.mrf.mxu0
  %v10485 = vpop.f32.mrf.mxu0
  %v10486 = vadd.f32 %v10302, %v10485
  %v10487 = vpop.f32.mrf.mxu0
  %10488 = vmatprep.mubr.bf16.mxu0 %v10293
  %10489 = vmatmul.mubr.bf16.gmra.mxu0 %v10292
  %v10490 = vpop.f32.mrf.mxu0
  %v10491 = vadd.f32 %v10302, %v10490
  %v10492 = vpop.f32.mrf.mxu0
  %v10493 = vpop.f32.mrf.mxu0
  %v10494 = vadd.f32 %v10302, %v10493
  %v10495 = vpop.f32.mrf.mxu0
  %10496 = vmatprep.mubr.bf16.mxu0 %v10296
  %10497 = vmatmul.mubr.bf16.gmra.mxu0 %v10295
  %v10498 = vpop.f32.mrf.mxu0
  %v10499 = vadd.f32 %v10302, %v10498
  %v10500 = vpop.f32.mrf.mxu0
  %v10501 = vpop.f32.mrf.mxu0
  %v10502 = vpop.f32.mrf.mxu0
  %10503 = vdwg.mxu0
  %10504 = vmatprep.subr.bf16.mxu0 0
  %10505 = vmatpush1.bf16.msra.mxu0 %v10423
  %10506 = vmatprep.subr.bf16.mxu0 0
  %10507 = vmatpush1.bf16.msra.mxu0 %v10422
  %10508 = vmatprep.subr.bf16.mxu0 0
  %10509 = vmatpush1.bf16.msra.mxu0 %v10421
  %10510 = vmatprep.subr.bf16.mxu0 0
  %10511 = vmatpush1.bf16.msra.mxu0 %v10420
  %10512 = vmatprep.subr.bf16.mxu0 0
  %10513 = vmatpush1.bf16.msra.mxu0 %v10419
  %10514 = vmatprep.subr.bf16.mxu0 0
  %10515 = vmatpush1.bf16.msra.mxu0 %v10418
  %10516 = vmatprep.subr.bf16.mxu0 0
  %10517 = vmatpush1.bf16.msra.mxu0 %v10417
  %10518 = vmatprep.subr.bf16.mxu0 0
  %10519 = vmatpush1.bf16.msra.mxu0 %v10416
  %10520 = vmatprep.subr.bf16.mxu0 0
  %10521 = vmatpush2.bf16.msra.mxu0 0
  %10522 = vmatprep.subr.bf16.mxu0 0
  %10523 = vmatpush2.bf16.msra.mxu0 0
  %10524 = vmatprep.subr.bf16.mxu0 0
  %10525 = vmatpush2.bf16.msra.mxu0 0
  %10526 = vmatprep.subr.bf16.mxu0 0
  %10527 = vmatpush2.bf16.msra.mxu0 0
  %10528 = vmatprep.subr.bf16.mxu0 0
  %10529 = vmatpush2.bf16.msra.mxu0 0
  %10530 = vmatprep.subr.bf16.mxu0 0
  %10531 = vmatpush2.bf16.msra.mxu0 0
  %10532 = vmatprep.subr.bf16.mxu0 0
  %10533 = vmatpush2.bf16.msra.mxu0 0
  %10534 = vmatprep.subr.bf16.mxu0 0
  %10535 = vmatpush2.bf16.msra.mxu0 0
  %10536 = vmatprep.mubr.bf16.mxu0 0
  %10537 = vmatmul.mubr.bf16.gmra.mxu0 %v10291
  %v10538 = vpop.f32.mrf.mxu0
  %v10539 = vadd.f32 %v10483, %v10538
  %v10540 = vpop.f32.mrf.mxu0
  %v10541 = vpop.f32.mrf.mxu0
  %v10542 = vadd.f32 %v10486, %v10541
  %v10543 = vpop.f32.mrf.mxu0
  %10544 = vmatprep.mubr.bf16.mxu0 0
  %10545 = vmatmul.mubr.bf16.gmra.mxu0 %v10294
  %v10546 = vpop.f32.mrf.mxu0
  %v10547 = vadd.f32 %v10491, %v10546
  %v10548 = vpop.f32.mrf.mxu0
  %v10549 = vpop.f32.mrf.mxu0
  %v10550 = vadd.f32 %v10494, %v10549
  %v10551 = vpop.f32.mrf.mxu0
  %10552 = vmatprep.mubr.bf16.mxu0 0
  %10553 = vmatmul.mubr.bf16.gmra.mxu0 %v10297
  %v10554 = vpop.f32.mrf.mxu0
  %v10555 = vadd.f32 %v10499, %v10554
  %v10556 = vpop.f32.mrf.mxu0
  %v10557 = vpop.f32.mrf.mxu0
  %v10558 = vpop.f32.mrf.mxu0
  %10559 = vdwg.mxu0
  %v10560 = vmax.f32 %v10539, 0.0
  %v10561 = vmax.f32 %v10542, 0.0
  %v10562 = vmax.f32 %v10547, 0.0
  %v10563 = vmax.f32 %v10550, 0.0
  %v10564 = vmax.f32 %v10555, 0.0
  %v10565 = vld [vmem:[%s8] sm:$0xf]
  %v10566 = vld [vmem:[%s8 + $0x4] sm:$0xf]
  %v10567 = vld [vmem:[%s8 + $0x8] sm:$0xf]
  %v10568 = vld [vmem:[%s8 + $0xc] sm:$0xf]
  %v10569 = vld [vmem:[%s8 + $0x10] sm:$0xf]
  %v10570 = vld [vmem:[%s8 + $0x14] sm:$0xf]
  %v10571 = vld [vmem:[%s8 + $0x18] sm:$0xf]
  %v10572 = vld [vmem:[%s8 + $0x1c] sm:$0xf]
  %v10573 = vld [vmem:[%s8 + $0x20] sm:$0xf]
  %v10574 = vld [vmem:[%s8 + $0x24] sm:$0xf]
  %v10575 = vld [vmem:[%s8 + $0x28] sm:$0xf]
  %v10576 = vld [vmem:[%s8 + $0x2c] sm:$0xf]
  %v10577 = vld [vmem:[%s8 + $0x30] sm:$0xf]
  %v10578 = vld [vmem:[%s8 + $0x34] sm:$0xf]
  %v10579 = vld [vmem:[%s8 + $0x38] sm:$0xf]
  %v10580 = vld [vmem:[%s8 + $0x3c] sm:$0xf]
  %v10581 = vld [vmem:[%s9] sm:$0x1]
  %v10582 = vpack.c.bf16 %v10561, %v10560
  %v10583 = vpack.c.bf16 %v10563, %v10562
  %v10584 = vpack.c.bf16 %v10564, %v10564
  %v10586 = vlaneseq
  %v10587 = vshrl.u32 %v10586, 7
  %v10588 = vsub.s32 0, %v10587
  %v10589 = vrot.slane %v10581, %v10588
  %v10607 = vunpack.c.l.b16 %v10565
  %v10608 = vunpack.c.l.b16 %v10566
  %v10609 = vunpack.c.l.b16 %v10567
  %v10610 = vunpack.c.l.b16 %v10568
  %v10611 = vunpack.c.l.b16 %v10569
  %v10612 = vunpack.c.l.b16 %v10570
  %v10613 = vunpack.c.l.b16 %v10571
  %v10614 = vunpack.c.l.b16 %v10572
  %v10615 = vunpack.c.l.b16 %v10573
  %v10616 = vunpack.c.l.b16 %v10574
  %v10617 = vunpack.c.l.b16 %v10575
  %v10618 = vunpack.c.l.b16 %v10576
  %v10619 = vunpack.c.l.b16 %v10577
  %v10620 = vunpack.c.l.b16 %v10578
  %v10621 = vunpack.c.l.b16 %v10579
  %v10622 = vunpack.c.l.b16 %v10580
  %v10623 = vpack.c.b16 %v10608, %v10607
  %v10624 = vpack.c.b16 %v10610, %v10609
  %v10625 = vpack.c.b16 %v10612, %v10611
  %v10626 = vpack.c.b16 %v10614, %v10613
  %v10627 = vpack.c.b16 %v10616, %v10615
  %v10628 = vpack.c.b16 %v10618, %v10617
  %v10629 = vpack.c.b16 %v10620, %v10619
  %v10630 = vpack.c.b16 %v10622, %v10621
  %10639 = vmatprep.subr.bf16.mxu0 0
  %10640 = vmatpush1.bf16.msra.mxu0 %v10630
  %10641 = vmatprep.subr.bf16.mxu0 0
  %10642 = vmatpush1.bf16.msra.mxu0 %v10629
  %10643 = vmatprep.subr.bf16.mxu0 0
  %10644 = vmatpush1.bf16.msra.mxu0 %v10628
  %10645 = vmatprep.subr.bf16.mxu0 0
  %10646 = vmatpush1.bf16.msra.mxu0 %v10627
  %10647 = vmatprep.subr.bf16.mxu0 0
  %10648 = vmatpush1.bf16.msra.mxu0 %v10626
  %10649 = vmatprep.subr.bf16.mxu0 0
  %10650 = vmatpush1.bf16.msra.mxu0 %v10625
  %10651 = vmatprep.subr.bf16.mxu0 0
  %10652 = vmatpush1.bf16.msra.mxu0 %v10624
  %10653 = vmatprep.subr.bf16.mxu0 0
  %10654 = vmatpush1.bf16.msra.mxu0 %v10623
  %10655 = vmatprep.subr.bf16.mxu0 0
  %10656 = vmatpush2.bf16.msra.mxu0 0
  %10657 = vmatprep.subr.bf16.mxu0 0
  %10658 = vmatpush2.bf16.msra.mxu0 0
  %10659 = vmatprep.subr.bf16.mxu0 0
  %10660 = vmatpush2.bf16.msra.mxu0 0
  %10661 = vmatprep.subr.bf16.mxu0 0
  %10662 = vmatpush2.bf16.msra.mxu0 0
  %10663 = vmatprep.subr.bf16.mxu0 0
  %10664 = vmatpush2.bf16.msra.mxu0 0
  %10665 = vmatprep.subr.bf16.mxu0 0
  %10666 = vmatpush2.bf16.msra.mxu0 0
  %10667 = vmatprep.subr.bf16.mxu0 0
  %10668 = vmatpush2.bf16.msra.mxu0 0
  %10669 = vmatprep.subr.bf16.mxu0 0
  %10670 = vmatpush2.bf16.msra.mxu0 0
  %10671 = vmatprep.mubr.bf16.mxu0 0
  %10672 = vmatmul.mubr.bf16.gmra.mxu0 %v10582
  %v10673 = vpop.f32.mrf.mxu0
  %v10674 = vadd.f32 %v10589, %v10673
  %v10675 = vpop.f32.mrf.mxu0
  %v10676 = vpop.f32.mrf.mxu0
  %v10677 = vadd.f32 %v10589, %v10676
  %v10678 = vpop.f32.mrf.mxu0
  %10679 = vmatprep.mubr.bf16.mxu0 0
  %10680 = vmatmul.mubr.bf16.gmra.mxu0 %v10583
  %v10681 = vpop.f32.mrf.mxu0
  %v10682 = vadd.f32 %v10589, %v10681
  %v10683 = vpop.f32.mrf.mxu0
  %v10684 = vpop.f32.mrf.mxu0
  %v10685 = vadd.f32 %v10589, %v10684
  %v10686 = vpop.f32.mrf.mxu0
  %10687 = vmatprep.mubr.bf16.mxu0 0
  %10688 = vmatmul.mubr.bf16.gmra.mxu0 %v10584
  %v10689 = vpop.f32.mrf.mxu0
  %v10690 = vadd.f32 %v10589, %v10689
  %v10691 = vpop.f32.mrf.mxu0
  %v10692 = vpop.f32.mrf.mxu0
  %v10693 = vpop.f32.mrf.mxu0
  %10694 = vdwg.mxu0
  %v10695 = vlaneseq
  %v10696 = vand.u32 %v10695, 127
  %vm10697 = vcmp.lt.s32.totalorder %v10696, 10
  %v10698 = vsel %vm10697, %v10674, -1e+30
  %v10699 = vsel %vm10697, %v10677, -1e+30
  %v10700 = vsel %vm10697, %v10682, -1e+30
  %v10701 = vsel %vm10697, %v10685, -1e+30
  %v10702 = vsel %vm10697, %v10690, -1e+30
  %10703 = vmax.xlane.f32.xlu0 %v10698
  %v10704 = vpop.xlane.xlu0 %10703
  %10705 = vmax.xlane.f32.xlu0 %v10699
  %v10706 = vpop.xlane.xlu0 %10705
  %10707 = vmax.xlane.f32.xlu0 %v10700
  %v10708 = vpop.xlane.xlu0 %10707
  %10709 = vmax.xlane.f32.xlu0 %v10701
  %v10710 = vpop.xlane.xlu0 %10709
  %10711 = vmax.xlane.f32.xlu0 %v10702
  %v10712 = vpop.xlane.xlu0 %10711
  %v10713 = vsub.f32 %v10698, %v10704
  %v10714 = vsub.f32 %v10699, %v10706
  %v10715 = vsub.f32 %v10700, %v10708
  %v10716 = vsub.f32 %v10701, %v10710
  %v10717 = vsub.f32 %v10702, %v10712
  %v10718 = vmul.f32 %v10713, 1.442695
  %v10719 = vpow.pop %v10718
  %v10720 = vmul.f32 %v10714, 1.442695
  %v10721 = vpow.pop %v10720
  %v10722 = vmul.f32 %v10715, 1.442695
  %v10723 = vpow.pop %v10722
  %v10724 = vmul.f32 %v10716, 1.442695
  %v10725 = vpow.pop %v10724
  %v10726 = vmul.f32 %v10717, 1.442695
  %v10727 = vpow.pop %v10726
  %10728 = vadd.xlane.f32.xlu0 %v10719
  %v10729 = vpop.xlane.xlu0 %10728
  %10730 = vadd.xlane.f32.xlu0 %v10721
  %v10731 = vpop.xlane.xlu0 %10730
  %10732 = vadd.xlane.f32.xlu0 %v10723
  %v10733 = vpop.xlane.xlu0 %10732
  %10734 = vadd.xlane.f32.xlu0 %v10725
  %v10735 = vpop.xlane.xlu0 %10734
  %10736 = vadd.xlane.f32.xlu0 %v10727
  %v10737 = vpop.xlane.xlu0 %10736
  %v10738 = vlog2.pop %v10729
  %v10739 = vmul.f32 %v10738, 0.6931472
  %v10740 = vlog2.pop %v10731
  %v10741 = vmul.f32 %v10740, 0.6931472
  %v10742 = vlog2.pop %v10733
  %v10743 = vmul.f32 %v10742, 0.6931472
  %v10744 = vlog2.pop %v10735
  %v10745 = vmul.f32 %v10744, 0.6931472
  %v10746 = vlog2.pop %v10737
  %v10747 = vmul.f32 %v10746, 0.6931472
  %v10748 = vsub.f32 %v10713, %v10739
  %v10749 = vsub.f32 %v10714, %v10741
  %v10750 = vsub.f32 %v10715, %v10743
  %v10751 = vsub.f32 %v10716, %v10745
  %v10752 = vsub.f32 %v10717, %v10747
  %10753 = vst [vmem:[%s10] sm:$0xff] %v10748
  %10754 = vst [vmem:[%s10 + $0x8] sm:$0xff] %v10749
  %10755 = vst [vmem:[%s10 + $0x10] sm:$0xff] %v10750
  %10756 = vst [vmem:[%s10 + $0x18] sm:$0xff] %v10751
  %10757 = vst [vmem:[%s10 + $0x20] sm:$0xff] %v10752
  // Predicated region
  $region242: #{encoder_feed_forward.1} parent=0 // pred_check
    _
  $region243: #{encoder_feed_forward.1} parent=0 // pred_check_branch
    %10759 = sbr.rel (0) target = $region245
  $region244: #{encoder_feed_forward.1} parent=0 // pred_region
    _
  $region245: #{encoder_feed_forward.1} parent=0 // pred_fallthru
    _
  // Predicated region
  $region246: #{encoder_feed_forward.1} parent=0 // pred_check
    _
  $region247: #{encoder_feed_forward.1} parent=0 // pred_check_branch
    %10761 = sbr.rel (0) target = $region249
  $region248: #{encoder_feed_forward.1} parent=0 // pred_region
    _
  $region249: #{encoder_feed_forward.1} parent=0 // pred_fallthru
    _
  %10762 = vsyncmov [#allocation3]
  %s10763 = vpop.sfrf %10762
  %p10764 = scmp.eq.s32.totalorder %s10763, 0
  %p10765 = pneg %p10764
  %10767 = shalt.err (%p10765)
  %s10768 = scalar_lea.sflag [#allocation3], 1
  %10769 = vsyncmov %s10768
  %s10770 = vpop.sfrf %10769
  %p10771 = scmp.eq.s32.totalorder %s10770, 0
  %p10772 = pneg %p10771
  %10774 = shalt.err (%p10772)

</llo_original>
